<compile_context>
chip_gen: v7x
topology: tpu7x:2x2x1
jax: 0.10.0
libtpu: 0.0.40
codegen_flags: <defaults>
</compile_context>

<pallas_src>
import jax
import jax.numpy as jnp
from jax.experimental import pallas as pl
from jax.experimental.pallas import tpu as pltpu


def _round_up(x, m):
    return ((x + m - 1) // m) * m


def _time_embedding_kernel(t_ref, freq_ref, w1_ref, b1_ref, w2_ref, b2_ref,
                           out_ref):
    # t_ref:    (TB, 1)     float32   -- batch tile of timesteps
    # freq_ref: (1, dim)    float32   -- hoisted freq table, duplicated halves
    # w1_ref:   (dim, dim)  float32   -- first Linear weight (in, out), resident
    # b1_ref:   (1, dim)    float32
    # w2_ref:   (dim, dim)  float32
    # b2_ref:   (1, dim)    float32
    # out_ref:  (TB, dim)   float32
    tb, dim = out_ref.shape
    half_dim = dim // 2

    t = t_ref[...]                         # (TB, 1)
    phase = t * freq_ref[...]              # (TB, dim)  broadcast over lanes

    # Build concat([sin(phase_half), cos(phase_half)], -1) in place with a
    # lane-index select so the first Linear is a single MXU dot.
    lane = jax.lax.broadcasted_iota(jnp.int32, (tb, dim), 1)
    emb = jnp.where(lane < half_dim, jnp.sin(phase), jnp.cos(phase))

    # Linear -> SiLU -> Linear, all in f32.
    h = jnp.dot(emb, w1_ref[...], preferred_element_type=jnp.float32) + b1_ref[...]
    h = h * jax.nn.sigmoid(h)
    y = jnp.dot(h, w2_ref[...], preferred_element_type=jnp.float32) + b2_ref[...]

    # TODO(synk): for dim < 128 a lane-dense (TB*dim/128, 128) output view
    # would turn these masked stores into full-lane stores; kept as (TB, dim)
    # to avoid an in-kernel cross-lane reshape.
    out_ref[...] = y.astype(out_ref.dtype)


def time_embedding_forward(t, w1, b1, w2, b2, *, block_b=None):
    """t: (B,) float32.  w1, w2: (dim, dim) stored as (in, out).  b1, b2: (dim,)."""
    B = int(t.shape[0])
    dim = int(w1.shape[0])
    assert dim % 2 == 0, "TimeEmbedding requires an even embedding dim"
    assert w1.shape == (dim, dim) and w2.shape == (dim, dim)
    assert b1.shape == (dim,) and b2.shape == (dim,)
    half_dim = dim // 2

    # Batch tile: >=256 rows for MXU occupancy on v6e/v7x, capped at 512 to
    # stay comfortably inside v7x's smaller VMEM even at large dim.
    if block_b is None:
        block_b = min(512, _round_up(max(B, 1), 256))
    block_b = _round_up(block_b, 8)

    nb = pl.cdiv(B, block_b)
    b_pad = nb * block_b

    t2 = jnp.pad(t.astype(jnp.float32).reshape(B, 1), ((0, b_pad - B), (0, 0)))

    # Hoisted loop-invariant frequency table: freq[k] = 10000 ** (-k/half_dim),
    # duplicated over both halves so the kernel computes phase once for all
    # dim lanes and selects sin vs cos.
    freq = 10000.0 ** (-(jnp.arange(half_dim, dtype=jnp.float32) / half_dim))
    freq_full = jnp.concatenate([freq, freq]).reshape(1, dim)

    w1f = w1.astype(jnp.float32)
    w2f = w2.astype(jnp.float32)
    b1_2 = b1.astype(jnp.float32).reshape(1, dim)
    b2_2 = b2.astype(jnp.float32).reshape(1, dim)

    # Resident operands: same block for every grid step -> stays in VMEM.
    resident = lambda shape: pl.BlockSpec(shape, lambda i: (0, 0))

    out = pl.pallas_call(
        _time_embedding_kernel,
        out_shape=jax.ShapeDtypeStruct((b_pad, dim), jnp.float32),
        grid=(nb,),
        in_specs=[
            pl.BlockSpec((block_b, 1), lambda i: (i, 0)),   # t: tiled over batch
            resident((1, dim)),                             # freq table
            resident((dim, dim)),                           # w1
            resident((1, dim)),                             # b1
            resident((dim, dim)),                           # w2
            resident((1, dim)),                             # b2
        ],
        out_specs=pl.BlockSpec((block_b, dim), lambda i: (i, 0)),
        compiler_params=pltpu.CompilerParams(
            dimension_semantics=("parallel",),
        ),
    )(t2, freq_full, w1f, b1_2, w2f, b2_2)

    return out[:B]


def time_embedding_reference(t, w1, b1, w2, b2):
    """Pure-JAX reference matching the PyTorch forward exactly."""
    dim = w1.shape[0]
    half_dim = dim // 2
    emb = jnp.arange(half_dim, dtype=jnp.float32) / half_dim
    emb = t[:, None] * (10000.0 ** (-emb))
    emb = jnp.concatenate([jnp.sin(emb), jnp.cos(emb)], axis=-1)
    h = emb @ w1 + b1
    h = h * jax.nn.sigmoid(h)
    return h @ w2 + b2


if __name__ == "__main__":
    dim = 32  # nn.Linear(dim, dim); half_dim = 16

    key = jax.random.PRNGKey(0)
    k_t, k_w1, k_b1, k_w2, k_b2, k_t2 = jax.random.split(key, 6)

    bound = 1.0 / jnp.sqrt(jnp.float32(dim))
    w1 = jax.random.uniform(k_w1, (dim, dim), jnp.float32, -bound, bound)
    b1 = jax.random.uniform(k_b1, (dim,), jnp.float32, -bound, bound)
    w2 = jax.random.uniform(k_w2, (dim, dim), jnp.float32, -bound, bound)
    b2 = jax.random.uniform(k_b2, (dim,), jnp.float32, -bound, bound)

    # Small case (single grid step, padded batch tile).
    B = 8
    t_small = jax.random.uniform(k_t, (B,), jnp.float32, 0.0, 100.0)
    out = jax.block_until_ready(time_embedding_forward(t_small, w1, b1, w2, b2))
    ref = time_embedding_reference(t_small, w1, b1, w2, b2)
    assert out.shape == (B, dim)
    assert jnp.allclose(out, ref, atol=2e-4, rtol=2e-4), (
        f"max abs err (B={B}) = {jnp.max(jnp.abs(out - ref))}")

    # Larger batch: exercises the multi-step parallel grid + padding path.
    B2 = 600
    t_big = jax.random.uniform(k_t2, (B2,), jnp.float32, 0.0, 100.0)
    out2 = jax.block_until_ready(time_embedding_forward(t_big, w1, b1, w2, b2))
    ref2 = time_embedding_reference(t_big, w1, b1, w2, b2)
    assert out2.shape == (B2, dim)
    assert jnp.allclose(out2, ref2, atol=2e-4, rtol=2e-4), (
        f"max abs err (B={B2}) = {jnp.max(jnp.abs(out2 - ref2))}")

    print("KERNEL_OK")
</pallas_src>

<mosaic_0001>
module attributes {stable_mosaic.version = 11 : i64} {
  func.func @_time_embedding_kernel(%arg0: i32, %arg1: memref<256x1xf32, #tpu.memory_space<vmem>>, %arg2: memref<1x32xf32, #tpu.memory_space<vmem>>, %arg3: memref<32x32xf32, #tpu.memory_space<vmem>>, %arg4: memref<1x32xf32, #tpu.memory_space<vmem>>, %arg5: memref<32x32xf32, #tpu.memory_space<vmem>>, %arg6: memref<1x32xf32, #tpu.memory_space<vmem>>, %arg7: memref<256x32xf32, #tpu.memory_space<vmem>>) attributes {dimension_semantics = [#tpu.dimension_semantics<parallel>], iteration_bounds = array<i64: 1>, scalar_prefetch = 0 : i64, scratch_operands = 0 : i64, tpu.core_type = #tpu.core_type<tc>, window_params = [{transform_indices = @transform_0, window_bounds = array<i64: 256, 1>}, {pipeline_mode = #tpu.pipeline_mode<synchronous>, transform_indices = @transform_1, window_bounds = array<i64: 1, 32>}, {pipeline_mode = #tpu.pipeline_mode<synchronous>, transform_indices = @transform_2, window_bounds = array<i64: 32, 32>}, {pipeline_mode = #tpu.pipeline_mode<synchronous>, transform_indices = @transform_3, window_bounds = array<i64: 1, 32>}, {pipeline_mode = #tpu.pipeline_mode<synchronous>, transform_indices = @transform_4, window_bounds = array<i64: 32, 32>}, {pipeline_mode = #tpu.pipeline_mode<synchronous>, transform_indices = @transform_5, window_bounds = array<i64: 1, 32>}, {transform_indices = @transform_6, window_bounds = array<i64: 256, 32>}]} {
    %c0 = arith.constant 0 : index
    %c0_0 = arith.constant 0 : index
    %0 = vector.load %arg1[%c0, %c0_0] : memref<256x1xf32, #tpu.memory_space<vmem>>, vector<256x1xf32>
    %c0_1 = arith.constant 0 : index
    %c0_2 = arith.constant 0 : index
    %1 = vector.load %arg2[%c0_1, %c0_2] : memref<1x32xf32, #tpu.memory_space<vmem>>, vector<1x32xf32>
    %2 = vector.broadcast %0 : vector<256x1xf32> to vector<256x32xf32>
    %3 = vector.broadcast %1 : vector<1x32xf32> to vector<256x32xf32>
    %4 = arith.mulf %2, %3 : vector<256x32xf32>
    %5 = tpu.iota {dimensions = array<i32: 1>} : vector<256x32xi32>
    %c16_i32 = arith.constant 16 : i32
    %6 = vector.broadcast %c16_i32 : i32 to vector<256x32xi32>
    %7 = arith.cmpi slt, %5, %6 : vector<256x32xi32>
    %8 = math.sin %4 : vector<256x32xf32>
    %9 = math.cos %4 : vector<256x32xf32>
    %10 = arith.select %7, %8, %9 : vector<256x32xi1>, vector<256x32xf32>
    %c0_3 = arith.constant 0 : index
    %c0_4 = arith.constant 0 : index
    %11 = vector.load %arg3[%c0_3, %c0_4] : memref<32x32xf32, #tpu.memory_space<vmem>>, vector<32x32xf32>
    %cst = arith.constant dense<0.000000e+00> : vector<256x32xf32>
    %12 = tpu.matmul %10, %11, %cst {dimension_numbers = #tpu.dot_dimension_numbers<[1], [0], [0], [1], [0, 0, 1, 1], [], []>} : vector<256x32xf32>, vector<32x32xf32>, vector<256x32xf32> -> vector<256x32xf32>
    %c0_5 = arith.constant 0 : index
    %c0_6 = arith.constant 0 : index
    %13 = vector.load %arg4[%c0_5, %c0_6] : memref<1x32xf32, #tpu.memory_space<vmem>>, vector<1x32xf32>
    %14 = vector.broadcast %13 : vector<1x32xf32> to vector<256x32xf32>
    %15 = arith.addf %12, %14 : vector<256x32xf32>
    %16 = arith.negf %15 : vector<256x32xf32>
    %17 = math.exp %16 : vector<256x32xf32>
    %cst_7 = arith.constant 1.000000e+00 : f32
    %18 = vector.broadcast %cst_7 : f32 to vector<256x32xf32>
    %19 = arith.addf %18, %17 : vector<256x32xf32>
    %20 = arith.divf %18, %19 : vector<256x32xf32>
    %21 = arith.mulf %15, %20 : vector<256x32xf32>
    %c0_8 = arith.constant 0 : index
    %c0_9 = arith.constant 0 : index
    %22 = vector.load %arg5[%c0_8, %c0_9] : memref<32x32xf32, #tpu.memory_space<vmem>>, vector<32x32xf32>
    %cst_10 = arith.constant dense<0.000000e+00> : vector<256x32xf32>
    %23 = tpu.matmul %21, %22, %cst_10 {dimension_numbers = #tpu.dot_dimension_numbers<[1], [0], [0], [1], [0, 0, 1, 1], [], []>} : vector<256x32xf32>, vector<32x32xf32>, vector<256x32xf32> -> vector<256x32xf32>
    %c0_11 = arith.constant 0 : index
    %c0_12 = arith.constant 0 : index
    %24 = vector.load %arg6[%c0_11, %c0_12] : memref<1x32xf32, #tpu.memory_space<vmem>>, vector<1x32xf32>
    %25 = vector.broadcast %24 : vector<1x32xf32> to vector<256x32xf32>
    %26 = arith.addf %23, %25 : vector<256x32xf32>
    %c0_13 = arith.constant 0 : index
    %c0_14 = arith.constant 0 : index
    %27 = vector.load %arg7[%c0_13, %c0_14] : memref<256x32xf32, #tpu.memory_space<vmem>>, vector<256x32xf32>
    tpu.vector_store %arg7[%c0_13, %c0_14], %26 {strides = array<i32>} : memref<256x32xf32, #tpu.memory_space<vmem>>, vector<256x32xf32>,
    return
  }
  func.func @transform_0(%arg0: i32) -> (i32, i32) {
    %c0_i32 = arith.constant 0 : i32
    %c0_i32_0 = arith.constant 0 : i32
    return %arg0, %c0_i32 : i32, i32
  }
  func.func @transform_1(%arg0: i32) -> (i32, i32) {
    %c0_i32 = arith.constant 0 : i32
    %c0_i32_0 = arith.constant 0 : i32
    %c0_i32_1 = arith.constant 0 : i32
    return %c0_i32, %c0_i32_0 : i32, i32
  }
  func.func @transform_2(%arg0: i32) -> (i32, i32) {
    %c0_i32 = arith.constant 0 : i32
    %c0_i32_0 = arith.constant 0 : i32
    %c0_i32_1 = arith.constant 0 : i32
    return %c0_i32, %c0_i32_0 : i32, i32
  }
  func.func @transform_3(%arg0: i32) -> (i32, i32) {
    %c0_i32 = arith.constant 0 : i32
    %c0_i32_0 = arith.constant 0 : i32
    %c0_i32_1 = arith.constant 0 : i32
    return %c0_i32, %c0_i32_0 : i32, i32
  }
  func.func @transform_4(%arg0: i32) -> (i32, i32) {
    %c0_i32 = arith.constant 0 : i32
    %c0_i32_0 = arith.constant 0 : i32
    %c0_i32_1 = arith.constant 0 : i32
    return %c0_i32, %c0_i32_0 : i32, i32
  }
  func.func @transform_5(%arg0: i32) -> (i32, i32) {
    %c0_i32 = arith.constant 0 : i32
    %c0_i32_0 = arith.constant 0 : i32
    %c0_i32_1 = arith.constant 0 : i32
    return %c0_i32, %c0_i32_0 : i32, i32
  }
  func.func @transform_6(%arg0: i32) -> (i32, i32) {
    %c0_i32 = arith.constant 0 : i32
    %c0_i32_0 = arith.constant 0 : i32
    return %arg0, %c0_i32 : i32, i32
  }
}

</mosaic_0001>

<llo_original>
// kernel: tpu_custom_call.1
$region0: #{tpu_custom_call.1}
  #allocation0 [shape = 'u32[]', space=smem, size = 0x4, offset = 0x4, fixed_abs, tag = 'smem constant byte address 0x4 - core index']
  #allocation1 [shape = 'u32[144,128]{1,0:T(1,128)}', space=vmem, size = 0x12000, scoped, tag = 'internal scratch']
  %s0 = inlined_call_operand.vmem [shape: f32[256,1], index: 0, kind: input, shape index: {}]
  %s1 = inlined_call_operand.vmem [shape: f32[1,32], index: 1, kind: input, shape index: {}]
  %s2 = inlined_call_operand.vmem [shape: f32[32,32], index: 2, kind: input, shape index: {}]
  %s3 = inlined_call_operand.vmem [shape: f32[1,32], index: 3, kind: input, shape index: {}]
  %s4 = inlined_call_operand.vmem [shape: f32[32,32], index: 4, kind: input, shape index: {}]
  %s5 = inlined_call_operand.vmem [shape: f32[1,32], index: 5, kind: input, shape index: {}]
  %s6 = inlined_call_operand.vmem [shape: f32[256,32], index: 6, kind: output, shape index: {}]
  %s7 = sld [smem:[#allocation0]]
  $region34: #{tpu_custom_call.1} parent=0
    _
  %s9 = ssub.s32 1, %s7
  %s10 = scalar_select 0, %s9, %s7
  // Predicated region
  $region2: #{tpu_custom_call.1} parent=0 // pred_check
    _
  $region3: #{tpu_custom_call.1} parent=0 // pred_check_branch
    %12 = sbr.rel (0) target = $region5
  $region4: #{tpu_custom_call.1} parent=0 // pred_region
    _
  $region5: #{tpu_custom_call.1} parent=0 // pred_fallthru
    _
  // Predicated region
  $region6: #{tpu_custom_call.1} parent=0 // pred_check
    _
  $region7: #{tpu_custom_call.1} parent=0 // pred_check_branch
    %14 = sbr.rel (0) target = $region9
  $region8: #{tpu_custom_call.1} parent=0 // pred_region
    _
  $region9: #{tpu_custom_call.1} parent=0 // pred_fallthru
    _
  // Predicated region
  $region10: #{tpu_custom_call.1} parent=0 // pred_check
    _
  $region11: #{tpu_custom_call.1} parent=0 // pred_check_branch
    %16 = sbr.rel (0) target = $region13
  $region12: #{tpu_custom_call.1} parent=0 // pred_region
    _
  $region13: #{tpu_custom_call.1} parent=0 // pred_fallthru
    _
  // Predicated region
  $region14: #{tpu_custom_call.1} parent=0 // pred_check
    _
  $region15: #{tpu_custom_call.1} parent=0 // pred_check_branch
    %18 = sbr.rel (0) target = $region17
  $region16: #{tpu_custom_call.1} parent=0 // pred_region
    _
  $region17: #{tpu_custom_call.1} parent=0 // pred_fallthru
    _
  // Predicated region
  $region18: #{tpu_custom_call.1} parent=0 // pred_check
    _
  $region19: #{tpu_custom_call.1} parent=0 // pred_check_branch
    %20 = sbr.rel (0) target = $region21
  $region20: #{tpu_custom_call.1} parent=0 // pred_region
    _
  $region21: #{tpu_custom_call.1} parent=0 // pred_fallthru
    _
  // Predicated region
  $region22: #{tpu_custom_call.1} parent=0 // pred_check
    _
  $region23: #{tpu_custom_call.1} parent=0 // pred_check_branch
    %22 = sbr.rel (0) target = $region25
  $region24: #{tpu_custom_call.1} parent=0 // pred_region
    _
  $region25: #{tpu_custom_call.1} parent=0 // pred_fallthru
    _
  %v23 = vld [vmem:[%s0] sm:$0xff]
  %v24 = vld [vmem:[%s0 + $0x8] sm:$0xff]
  %v25 = vld [vmem:[%s0 + $0x10] sm:$0xff]
  %v26 = vld [vmem:[%s0 + $0x18] sm:$0xff]
  %v27 = vld [vmem:[%s0 + $0x20] sm:$0xff]
  %v28 = vld [vmem:[%s0 + $0x28] sm:$0xff]
  %v29 = vld [vmem:[%s0 + $0x30] sm:$0xff]
  %v30 = vld [vmem:[%s0 + $0x38] sm:$0xff]
  %v31 = vld [vmem:[%s0 + $0x40] sm:$0xff]
  %v32 = vld [vmem:[%s0 + $0x48] sm:$0xff]
  %v33 = vld [vmem:[%s0 + $0x50] sm:$0xff]
  %v34 = vld [vmem:[%s0 + $0x58] sm:$0xff]
  %v35 = vld [vmem:[%s0 + $0x60] sm:$0xff]
  %v36 = vld [vmem:[%s0 + $0x68] sm:$0xff]
  %v37 = vld [vmem:[%s0 + $0x70] sm:$0xff]
  %v38 = vld [vmem:[%s0 + $0x78] sm:$0xff]
  %v39 = vld [vmem:[%s0 + $0x80] sm:$0xff]
  %v40 = vld [vmem:[%s0 + $0x88] sm:$0xff]
  %v41 = vld [vmem:[%s0 + $0x90] sm:$0xff]
  %v42 = vld [vmem:[%s0 + $0x98] sm:$0xff]
  %v43 = vld [vmem:[%s0 + $0xa0] sm:$0xff]
  %v44 = vld [vmem:[%s0 + $0xa8] sm:$0xff]
  %v45 = vld [vmem:[%s0 + $0xb0] sm:$0xff]
  %v46 = vld [vmem:[%s0 + $0xb8] sm:$0xff]
  %v47 = vld [vmem:[%s0 + $0xc0] sm:$0xff]
  %v48 = vld [vmem:[%s0 + $0xc8] sm:$0xff]
  %v49 = vld [vmem:[%s0 + $0xd0] sm:$0xff]
  %v50 = vld [vmem:[%s0 + $0xd8] sm:$0xff]
  %v51 = vld [vmem:[%s0 + $0xe0] sm:$0xff]
  %v52 = vld [vmem:[%s0 + $0xe8] sm:$0xff]
  %v53 = vld [vmem:[%s0 + $0xf0] sm:$0xff]
  %v54 = vld [vmem:[%s0 + $0xf8] sm:$0xff]
  %v55 = vld [vmem:[%s1] sm:$0x1]
  %57 = vset.pattern.permute.xlu0 0
  %58 = vperm.xlu0 %57, %v23
  %v59 = vpop.permute.xlu0 %58
  %62 = vset.pattern.permute.xlu0 0
  %63 = vperm.xlu0 %62, %v24
  %v64 = vpop.permute.xlu0 %63
  %67 = vset.pattern.permute.xlu0 0
  %68 = vperm.xlu0 %67, %v25
  %v69 = vpop.permute.xlu0 %68
  %72 = vset.pattern.permute.xlu0 0
  %73 = vperm.xlu0 %72, %v26
  %v74 = vpop.permute.xlu0 %73
  %77 = vset.pattern.permute.xlu0 0
  %78 = vperm.xlu0 %77, %v27
  %v79 = vpop.permute.xlu0 %78
  %82 = vset.pattern.permute.xlu0 0
  %83 = vperm.xlu0 %82, %v28
  %v84 = vpop.permute.xlu0 %83
  %87 = vset.pattern.permute.xlu0 0
  %88 = vperm.xlu0 %87, %v29
  %v89 = vpop.permute.xlu0 %88
  %92 = vset.pattern.permute.xlu0 0
  %93 = vperm.xlu0 %92, %v30
  %v94 = vpop.permute.xlu0 %93
  %97 = vset.pattern.permute.xlu0 0
  %98 = vperm.xlu0 %97, %v31
  %v99 = vpop.permute.xlu0 %98
  %102 = vset.pattern.permute.xlu0 0
  %103 = vperm.xlu0 %102, %v32
  %v104 = vpop.permute.xlu0 %103
  %107 = vset.pattern.permute.xlu0 0
  %108 = vperm.xlu0 %107, %v33
  %v109 = vpop.permute.xlu0 %108
  %112 = vset.pattern.permute.xlu0 0
  %113 = vperm.xlu0 %112, %v34
  %v114 = vpop.permute.xlu0 %113
  %117 = vset.pattern.permute.xlu0 0
  %118 = vperm.xlu0 %117, %v35
  %v119 = vpop.permute.xlu0 %118
  %122 = vset.pattern.permute.xlu0 0
  %123 = vperm.xlu0 %122, %v36
  %v124 = vpop.permute.xlu0 %123
  %127 = vset.pattern.permute.xlu0 0
  %128 = vperm.xlu0 %127, %v37
  %v129 = vpop.permute.xlu0 %128
  %132 = vset.pattern.permute.xlu0 0
  %133 = vperm.xlu0 %132, %v38
  %v134 = vpop.permute.xlu0 %133
  %137 = vset.pattern.permute.xlu0 0
  %138 = vperm.xlu0 %137, %v39
  %v139 = vpop.permute.xlu0 %138
  %142 = vset.pattern.permute.xlu0 0
  %143 = vperm.xlu0 %142, %v40
  %v144 = vpop.permute.xlu0 %143
  %147 = vset.pattern.permute.xlu0 0
  %148 = vperm.xlu0 %147, %v41
  %v149 = vpop.permute.xlu0 %148
  %152 = vset.pattern.permute.xlu0 0
  %153 = vperm.xlu0 %152, %v42
  %v154 = vpop.permute.xlu0 %153
  %157 = vset.pattern.permute.xlu0 0
  %158 = vperm.xlu0 %157, %v43
  %v159 = vpop.permute.xlu0 %158
  %162 = vset.pattern.permute.xlu0 0
  %163 = vperm.xlu0 %162, %v44
  %v164 = vpop.permute.xlu0 %163
  %167 = vset.pattern.permute.xlu0 0
  %168 = vperm.xlu0 %167, %v45
  %v169 = vpop.permute.xlu0 %168
  %172 = vset.pattern.permute.xlu0 0
  %173 = vperm.xlu0 %172, %v46
  %v174 = vpop.permute.xlu0 %173
  %177 = vset.pattern.permute.xlu0 0
  %178 = vperm.xlu0 %177, %v47
  %v179 = vpop.permute.xlu0 %178
  %182 = vset.pattern.permute.xlu0 0
  %183 = vperm.xlu0 %182, %v48
  %v184 = vpop.permute.xlu0 %183
  %187 = vset.pattern.permute.xlu0 0
  %188 = vperm.xlu0 %187, %v49
  %v189 = vpop.permute.xlu0 %188
  %192 = vset.pattern.permute.xlu0 0
  %193 = vperm.xlu0 %192, %v50
  %v194 = vpop.permute.xlu0 %193
  %197 = vset.pattern.permute.xlu0 0
  %198 = vperm.xlu0 %197, %v51
  %v199 = vpop.permute.xlu0 %198
  %202 = vset.pattern.permute.xlu0 0
  %203 = vperm.xlu0 %202, %v52
  %v204 = vpop.permute.xlu0 %203
  %207 = vset.pattern.permute.xlu0 0
  %208 = vperm.xlu0 %207, %v53
  %v209 = vpop.permute.xlu0 %208
  %212 = vset.pattern.permute.xlu0 0
  %213 = vperm.xlu0 %212, %v54
  %v214 = vpop.permute.xlu0 %213
  %v217 = vlaneseq
  %v218 = vshrl.u32 %v217, 7
  %v219 = vsub.s32 0, %v218
  %v220 = vrot.slane %v55, %v219
  %v222 = vmul.f32 %v59, %v220
  %v223 = vmul.f32 %v64, %v220
  %v224 = vmul.f32 %v69, %v220
  %v225 = vmul.f32 %v74, %v220
  %v226 = vmul.f32 %v79, %v220
  %v227 = vmul.f32 %v84, %v220
  %v228 = vmul.f32 %v89, %v220
  %v229 = vmul.f32 %v94, %v220
  %v230 = vmul.f32 %v99, %v220
  %v231 = vmul.f32 %v104, %v220
  %v232 = vmul.f32 %v109, %v220
  %v233 = vmul.f32 %v114, %v220
  %v234 = vmul.f32 %v119, %v220
  %v235 = vmul.f32 %v124, %v220
  %v236 = vmul.f32 %v129, %v220
  %v237 = vmul.f32 %v134, %v220
  %v238 = vmul.f32 %v139, %v220
  %v239 = vmul.f32 %v144, %v220
  %v240 = vmul.f32 %v149, %v220
  %v241 = vmul.f32 %v154, %v220
  %v242 = vmul.f32 %v159, %v220
  %v243 = vmul.f32 %v164, %v220
  %v244 = vmul.f32 %v169, %v220
  %v245 = vmul.f32 %v174, %v220
  %v246 = vmul.f32 %v179, %v220
  %v247 = vmul.f32 %v184, %v220
  %v248 = vmul.f32 %v189, %v220
  %v249 = vmul.f32 %v194, %v220
  %v250 = vmul.f32 %v199, %v220
  %v251 = vmul.f32 %v204, %v220
  %v252 = vmul.f32 %v209, %v220
  %v253 = vmul.f32 %v214, %v220
  %v254 = vlaneseq
  %v255 = vand.u32 %v254, 127
  %vm256 = vcmp.lt.s32.totalorder %v255, 16
  %v257 = vand.u32 2147483647, %v222
  %vm258 = vcmp.le.f32.partialorder %v257, 0.7853982
  %vm259 = vcmp.lt.s32.totalorder %v222, 0
  %v260 = vand.u32 %v222, 2139095040
  %v261 = vshrl.u32 %v260, 23
  %v262 = vsub.s32 %v261, 127
  %v263 = vand.u32 2147483647, %v222
  %v264 = vand.u32 %v263, 8388607
  %v265 = vor.u32 %v264, 8388608
  %v266 = vsub.s32 0, %v265
  %v267 = vadd.s32 %v262, 1
  %vm268 = vcmp.gt.s32.totalorder %v267, 0
  %v269 = vsel %vm268, %v267, 0
  %v270 = vshrl.u32 %v269, 5
  %v271 = vand.u32 %v269, 31
  %v272 = vsub.s32 32, %v271
  %v273 = vshrl.u32 683565275, %v272
  %v274 = vshll.u32 683565275, %v271
  %v275 = vshrl.u32 2475754826, %v272
  %v276 = vor.u32 %v274, %v275
  %v277 = vshll.u32 2475754826, %v271
  %v278 = vshrl.u32 2131351028, %v272
  %v279 = vor.u32 %v277, %v278
  %v280 = vshll.u32 2131351028, %v271
  %v281 = vshrl.u32 2102212464, %v272
  %v282 = vor.u32 %v280, %v281
  %v283 = vshll.u32 2102212464, %v271
  %v284 = vshrl.u32 920167782, %v272
  %v285 = vor.u32 %v283, %v284
  %v286 = vshll.u32 920167782, %v271
  %v287 = vshrl.u32 1326507024, %v272
  %v288 = vor.u32 %v286, %v287
  %vm289 = vcmp.lt.s32.totalorder %v270, 1
  %vm290 = vcmp.lt.s32.totalorder %v270, 2
  %vm291 = vcmp.lt.s32.totalorder %v270, 3
  %vm292 = vcmp.lt.s32.totalorder %v270, 4
  %v293 = vsel %vm289, %v273, %v276
  %v294 = vsel %vm292, %v282, 2102212464
  %v295 = vsel %vm291, %v279, %v294
  %v296 = vsel %vm290, %v293, %v295
  %v297 = vsel %vm289, %v276, %v279
  %v298 = vsel %vm292, %v285, 920167782
  %v299 = vsel %vm291, %v282, %v298
  %v300 = vsel %vm290, %v297, %v299
  %v301 = vsel %vm289, %v279, %v282
  %v302 = vsel %vm292, %v288, 1326507024
  %v303 = vsel %vm291, %v285, %v302
  %v304 = vsel %vm290, %v301, %v303
  %v305 = vshll.u32 %v265, 8
  %v306 = vmul.u32.u64.compose %v305, %v304
  %v307 = vextract.low.u32 %v306
  %v308 = vextract.high.u32 %v306
  %v309 = vmul.u32.u64.compose %v305, %v300
  %v310 = vextract.low.u32 %v309
  %v311 = vextract.high.u32 %v309
  %v312 = vmul.u32 %v305, %v296
  %v313 = vadd.s32 %v308, %v310
  %vm314 = vc.u32 %v308, %v310
  %v315 = vadd.s32 %v311, 1
  %v316 = vsel %vm314, %v315, %v311
  %v317 = vadd.s32 %v312, %v316
  %v318 = vadd.s32 %v317, 536870912
  %v319 = vshrl.u32 %v318, 30
  %v320 = vshll.u32 %v319, 30
  %v321 = vsub.s32 %v317, %v320
  %vm322 = vcmp.lt.s32.totalorder %v321, 0
  %v323 = vsub.s32 0, %v321
  %v324 = vsel %vm322, %v323, %v321
  %v325 = vclz %v324
  %v326 = vsub.s32 %v325, 2
  %vm327 = vcmp.gt.s32.totalorder 0, %v326
  %v328 = vsel %vm327, 0, %v326
  %v329 = vsub.s32 32, %v328
  %v330 = vshll.u32 %v321, %v328
  %v331 = vshrl.u32 %v313, %v329
  %v332 = vor.u32 %v330, %v331
  %v333 = vsub.s32 4294967266, %v328
  %v334 = vadd.s32 %v333, 127
  %v335 = vshll.u32 %v334, 23
  %v336 = vor.u32 4788187, %v335
  %v337 = vand.u32 2147483647, %v336
  %v339 = vcvt.s32.f32 %v332
  %v340 = vmul.f32 %v339, %v337
  %v341 = vxor.u32 %v340, 2147483648
  %v342 = vsel %vm259, %v341, %v340
  %v343 = vsub.s32 4, %v319
  %v344 = vsel %vm259, %v343, %v319
  %v345 = vsel %vm258, %v222, %v342
  %v346 = vsel %vm258, 0, %v344
  %v347 = vcosq.f32.pop %v345
  %v348 = vsinq.f32.pop %v345
  %vm349 = vweird.f32 %v222
  %v350 = vadd.s32 %v346, 3
  %v351 = vand.u32 %v350, 3
  %vm352 = vcmp.lt.s32.totalorder %v351, 2
  %vm353 = vcmp.eq.s32.totalorder %v351, 0
  %v354 = vxor.u32 %v348, 2147483648
  %v355 = vsel %vm353, %v347, %v354
  %vm356 = vcmp.eq.s32.totalorder %v351, 2
  %v357 = vxor.u32 %v347, 2147483648
  %v358 = vsel %vm356, %v357, %v348
  %v359 = vsel %vm352, %v355, %v358
  %v360 = vsel %vm349, nan, %v359
  %v361 = vand.u32 2147483647, %v223
  %vm362 = vcmp.le.f32.partialorder %v361, 0.7853982
  %vm363 = vcmp.lt.s32.totalorder %v223, 0
  %v364 = vand.u32 %v223, 2139095040
  %v365 = vshrl.u32 %v364, 23
  %v366 = vsub.s32 %v365, 127
  %v367 = vand.u32 2147483647, %v223
  %v368 = vand.u32 %v367, 8388607
  %v369 = vor.u32 %v368, 8388608
  %v370 = vsub.s32 0, %v369
  %v371 = vadd.s32 %v366, 1
  %vm372 = vcmp.gt.s32.totalorder %v371, 0
  %v373 = vsel %vm372, %v371, 0
  %v374 = vshrl.u32 %v373, 5
  %v375 = vand.u32 %v373, 31
  %v376 = vsub.s32 32, %v375
  %v377 = vshrl.u32 683565275, %v376
  %v378 = vshll.u32 683565275, %v375
  %v379 = vshrl.u32 2475754826, %v376
  %v380 = vor.u32 %v378, %v379
  %v381 = vshll.u32 2475754826, %v375
  %v382 = vshrl.u32 2131351028, %v376
  %v383 = vor.u32 %v381, %v382
  %v384 = vshll.u32 2131351028, %v375
  %v385 = vshrl.u32 2102212464, %v376
  %v386 = vor.u32 %v384, %v385
  %v387 = vshll.u32 2102212464, %v375
  %v388 = vshrl.u32 920167782, %v376
  %v389 = vor.u32 %v387, %v388
  %v390 = vshll.u32 920167782, %v375
  %v391 = vshrl.u32 1326507024, %v376
  %v392 = vor.u32 %v390, %v391
  %vm393 = vcmp.lt.s32.totalorder %v374, 1
  %vm394 = vcmp.lt.s32.totalorder %v374, 2
  %vm395 = vcmp.lt.s32.totalorder %v374, 3
  %vm396 = vcmp.lt.s32.totalorder %v374, 4
  %v397 = vsel %vm393, %v377, %v380
  %v398 = vsel %vm396, %v386, 2102212464
  %v399 = vsel %vm395, %v383, %v398
  %v400 = vsel %vm394, %v397, %v399
  %v401 = vsel %vm393, %v380, %v383
  %v402 = vsel %vm396, %v389, 920167782
  %v403 = vsel %vm395, %v386, %v402
  %v404 = vsel %vm394, %v401, %v403
  %v405 = vsel %vm393, %v383, %v386
  %v406 = vsel %vm396, %v392, 1326507024
  %v407 = vsel %vm395, %v389, %v406
  %v408 = vsel %vm394, %v405, %v407
  %v409 = vshll.u32 %v369, 8
  %v410 = vmul.u32.u64.compose %v409, %v408
  %v411 = vextract.low.u32 %v410
  %v412 = vextract.high.u32 %v410
  %v413 = vmul.u32.u64.compose %v409, %v404
  %v414 = vextract.low.u32 %v413
  %v415 = vextract.high.u32 %v413
  %v416 = vmul.u32 %v409, %v400
  %v417 = vadd.s32 %v412, %v414
  %vm418 = vc.u32 %v412, %v414
  %v419 = vadd.s32 %v415, 1
  %v420 = vsel %vm418, %v419, %v415
  %v421 = vadd.s32 %v416, %v420
  %v422 = vadd.s32 %v421, 536870912
  %v423 = vshrl.u32 %v422, 30
  %v424 = vshll.u32 %v423, 30
  %v425 = vsub.s32 %v421, %v424
  %vm426 = vcmp.lt.s32.totalorder %v425, 0
  %v427 = vsub.s32 0, %v425
  %v428 = vsel %vm426, %v427, %v425
  %v429 = vclz %v428
  %v430 = vsub.s32 %v429, 2
  %vm431 = vcmp.gt.s32.totalorder 0, %v430
  %v432 = vsel %vm431, 0, %v430
  %v433 = vsub.s32 32, %v432
  %v434 = vshll.u32 %v425, %v432
  %v435 = vshrl.u32 %v417, %v433
  %v436 = vor.u32 %v434, %v435
  %v437 = vsub.s32 4294967266, %v432
  %v438 = vadd.s32 %v437, 127
  %v439 = vshll.u32 %v438, 23
  %v440 = vor.u32 4788187, %v439
  %v441 = vand.u32 2147483647, %v440
  %v443 = vcvt.s32.f32 %v436
  %v444 = vmul.f32 %v443, %v441
  %v445 = vxor.u32 %v444, 2147483648
  %v446 = vsel %vm363, %v445, %v444
  %v447 = vsub.s32 4, %v423
  %v448 = vsel %vm363, %v447, %v423
  %v449 = vsel %vm362, %v223, %v446
  %v450 = vsel %vm362, 0, %v448
  %v451 = vcosq.f32.pop %v449
  %v452 = vsinq.f32.pop %v449
  %vm453 = vweird.f32 %v223
  %v454 = vadd.s32 %v450, 3
  %v455 = vand.u32 %v454, 3
  %vm456 = vcmp.lt.s32.totalorder %v455, 2
  %vm457 = vcmp.eq.s32.totalorder %v455, 0
  %v458 = vxor.u32 %v452, 2147483648
  %v459 = vsel %vm457, %v451, %v458
  %vm460 = vcmp.eq.s32.totalorder %v455, 2
  %v461 = vxor.u32 %v451, 2147483648
  %v462 = vsel %vm460, %v461, %v452
  %v463 = vsel %vm456, %v459, %v462
  %v464 = vsel %vm453, nan, %v463
  %v465 = vand.u32 2147483647, %v224
  %vm466 = vcmp.le.f32.partialorder %v465, 0.7853982
  %vm467 = vcmp.lt.s32.totalorder %v224, 0
  %v468 = vand.u32 %v224, 2139095040
  %v469 = vshrl.u32 %v468, 23
  %v470 = vsub.s32 %v469, 127
  %v471 = vand.u32 2147483647, %v224
  %v472 = vand.u32 %v471, 8388607
  %v473 = vor.u32 %v472, 8388608
  %v474 = vsub.s32 0, %v473
  %v475 = vadd.s32 %v470, 1
  %vm476 = vcmp.gt.s32.totalorder %v475, 0
  %v477 = vsel %vm476, %v475, 0
  %v478 = vshrl.u32 %v477, 5
  %v479 = vand.u32 %v477, 31
  %v480 = vsub.s32 32, %v479
  %v481 = vshrl.u32 683565275, %v480
  %v482 = vshll.u32 683565275, %v479
  %v483 = vshrl.u32 2475754826, %v480
  %v484 = vor.u32 %v482, %v483
  %v485 = vshll.u32 2475754826, %v479
  %v486 = vshrl.u32 2131351028, %v480
  %v487 = vor.u32 %v485, %v486
  %v488 = vshll.u32 2131351028, %v479
  %v489 = vshrl.u32 2102212464, %v480
  %v490 = vor.u32 %v488, %v489
  %v491 = vshll.u32 2102212464, %v479
  %v492 = vshrl.u32 920167782, %v480
  %v493 = vor.u32 %v491, %v492
  %v494 = vshll.u32 920167782, %v479
  %v495 = vshrl.u32 1326507024, %v480
  %v496 = vor.u32 %v494, %v495
  %vm497 = vcmp.lt.s32.totalorder %v478, 1
  %vm498 = vcmp.lt.s32.totalorder %v478, 2
  %vm499 = vcmp.lt.s32.totalorder %v478, 3
  %vm500 = vcmp.lt.s32.totalorder %v478, 4
  %v501 = vsel %vm497, %v481, %v484
  %v502 = vsel %vm500, %v490, 2102212464
  %v503 = vsel %vm499, %v487, %v502
  %v504 = vsel %vm498, %v501, %v503
  %v505 = vsel %vm497, %v484, %v487
  %v506 = vsel %vm500, %v493, 920167782
  %v507 = vsel %vm499, %v490, %v506
  %v508 = vsel %vm498, %v505, %v507
  %v509 = vsel %vm497, %v487, %v490
  %v510 = vsel %vm500, %v496, 1326507024
  %v511 = vsel %vm499, %v493, %v510
  %v512 = vsel %vm498, %v509, %v511
  %v513 = vshll.u32 %v473, 8
  %v514 = vmul.u32.u64.compose %v513, %v512
  %v515 = vextract.low.u32 %v514
  %v516 = vextract.high.u32 %v514
  %v517 = vmul.u32.u64.compose %v513, %v508
  %v518 = vextract.low.u32 %v517
  %v519 = vextract.high.u32 %v517
  %v520 = vmul.u32 %v513, %v504
  %v521 = vadd.s32 %v516, %v518
  %vm522 = vc.u32 %v516, %v518
  %v523 = vadd.s32 %v519, 1
  %v524 = vsel %vm522, %v523, %v519
  %v525 = vadd.s32 %v520, %v524
  %v526 = vadd.s32 %v525, 536870912
  %v527 = vshrl.u32 %v526, 30
  %v528 = vshll.u32 %v527, 30
  %v529 = vsub.s32 %v525, %v528
  %vm530 = vcmp.lt.s32.totalorder %v529, 0
  %v531 = vsub.s32 0, %v529
  %v532 = vsel %vm530, %v531, %v529
  %v533 = vclz %v532
  %v534 = vsub.s32 %v533, 2
  %vm535 = vcmp.gt.s32.totalorder 0, %v534
  %v536 = vsel %vm535, 0, %v534
  %v537 = vsub.s32 32, %v536
  %v538 = vshll.u32 %v529, %v536
  %v539 = vshrl.u32 %v521, %v537
  %v540 = vor.u32 %v538, %v539
  %v541 = vsub.s32 4294967266, %v536
  %v542 = vadd.s32 %v541, 127
  %v543 = vshll.u32 %v542, 23
  %v544 = vor.u32 4788187, %v543
  %v545 = vand.u32 2147483647, %v544
  %v547 = vcvt.s32.f32 %v540
  %v548 = vmul.f32 %v547, %v545
  %v549 = vxor.u32 %v548, 2147483648
  %v550 = vsel %vm467, %v549, %v548
  %v551 = vsub.s32 4, %v527
  %v552 = vsel %vm467, %v551, %v527
  %v553 = vsel %vm466, %v224, %v550
  %v554 = vsel %vm466, 0, %v552
  %v555 = vcosq.f32.pop %v553
  %v556 = vsinq.f32.pop %v553
  %vm557 = vweird.f32 %v224
  %v558 = vadd.s32 %v554, 3
  %v559 = vand.u32 %v558, 3
  %vm560 = vcmp.lt.s32.totalorder %v559, 2
  %vm561 = vcmp.eq.s32.totalorder %v559, 0
  %v562 = vxor.u32 %v556, 2147483648
  %v563 = vsel %vm561, %v555, %v562
  %vm564 = vcmp.eq.s32.totalorder %v559, 2
  %v565 = vxor.u32 %v555, 2147483648
  %v566 = vsel %vm564, %v565, %v556
  %v567 = vsel %vm560, %v563, %v566
  %v568 = vsel %vm557, nan, %v567
  %v569 = vand.u32 2147483647, %v225
  %vm570 = vcmp.le.f32.partialorder %v569, 0.7853982
  %vm571 = vcmp.lt.s32.totalorder %v225, 0
  %v572 = vand.u32 %v225, 2139095040
  %v573 = vshrl.u32 %v572, 23
  %v574 = vsub.s32 %v573, 127
  %v575 = vand.u32 2147483647, %v225
  %v576 = vand.u32 %v575, 8388607
  %v577 = vor.u32 %v576, 8388608
  %v578 = vsub.s32 0, %v577
  %v579 = vadd.s32 %v574, 1
  %vm580 = vcmp.gt.s32.totalorder %v579, 0
  %v581 = vsel %vm580, %v579, 0
  %v582 = vshrl.u32 %v581, 5
  %v583 = vand.u32 %v581, 31
  %v584 = vsub.s32 32, %v583
  %v585 = vshrl.u32 683565275, %v584
  %v586 = vshll.u32 683565275, %v583
  %v587 = vshrl.u32 2475754826, %v584
  %v588 = vor.u32 %v586, %v587
  %v589 = vshll.u32 2475754826, %v583
  %v590 = vshrl.u32 2131351028, %v584
  %v591 = vor.u32 %v589, %v590
  %v592 = vshll.u32 2131351028, %v583
  %v593 = vshrl.u32 2102212464, %v584
  %v594 = vor.u32 %v592, %v593
  %v595 = vshll.u32 2102212464, %v583
  %v596 = vshrl.u32 920167782, %v584
  %v597 = vor.u32 %v595, %v596
  %v598 = vshll.u32 920167782, %v583
  %v599 = vshrl.u32 1326507024, %v584
  %v600 = vor.u32 %v598, %v599
  %vm601 = vcmp.lt.s32.totalorder %v582, 1
  %vm602 = vcmp.lt.s32.totalorder %v582, 2
  %vm603 = vcmp.lt.s32.totalorder %v582, 3
  %vm604 = vcmp.lt.s32.totalorder %v582, 4
  %v605 = vsel %vm601, %v585, %v588
  %v606 = vsel %vm604, %v594, 2102212464
  %v607 = vsel %vm603, %v591, %v606
  %v608 = vsel %vm602, %v605, %v607
  %v609 = vsel %vm601, %v588, %v591
  %v610 = vsel %vm604, %v597, 920167782
  %v611 = vsel %vm603, %v594, %v610
  %v612 = vsel %vm602, %v609, %v611
  %v613 = vsel %vm601, %v591, %v594
  %v614 = vsel %vm604, %v600, 1326507024
  %v615 = vsel %vm603, %v597, %v614
  %v616 = vsel %vm602, %v613, %v615
  %v617 = vshll.u32 %v577, 8
  %v618 = vmul.u32.u64.compose %v617, %v616
  %v619 = vextract.low.u32 %v618
  %v620 = vextract.high.u32 %v618
  %v621 = vmul.u32.u64.compose %v617, %v612
  %v622 = vextract.low.u32 %v621
  %v623 = vextract.high.u32 %v621
  %v624 = vmul.u32 %v617, %v608
  %v625 = vadd.s32 %v620, %v622
  %vm626 = vc.u32 %v620, %v622
  %v627 = vadd.s32 %v623, 1
  %v628 = vsel %vm626, %v627, %v623
  %v629 = vadd.s32 %v624, %v628
  %v630 = vadd.s32 %v629, 536870912
  %v631 = vshrl.u32 %v630, 30
  %v632 = vshll.u32 %v631, 30
  %v633 = vsub.s32 %v629, %v632
  %vm634 = vcmp.lt.s32.totalorder %v633, 0
  %v635 = vsub.s32 0, %v633
  %v636 = vsel %vm634, %v635, %v633
  %v637 = vclz %v636
  %v638 = vsub.s32 %v637, 2
  %vm639 = vcmp.gt.s32.totalorder 0, %v638
  %v640 = vsel %vm639, 0, %v638
  %v641 = vsub.s32 32, %v640
  %v642 = vshll.u32 %v633, %v640
  %v643 = vshrl.u32 %v625, %v641
  %v644 = vor.u32 %v642, %v643
  %v645 = vsub.s32 4294967266, %v640
  %v646 = vadd.s32 %v645, 127
  %v647 = vshll.u32 %v646, 23
  %v648 = vor.u32 4788187, %v647
  %v649 = vand.u32 2147483647, %v648
  %v651 = vcvt.s32.f32 %v644
  %v652 = vmul.f32 %v651, %v649
  %v653 = vxor.u32 %v652, 2147483648
  %v654 = vsel %vm571, %v653, %v652
  %v655 = vsub.s32 4, %v631
  %v656 = vsel %vm571, %v655, %v631
  %v657 = vsel %vm570, %v225, %v654
  %v658 = vsel %vm570, 0, %v656
  %v659 = vcosq.f32.pop %v657
  %v660 = vsinq.f32.pop %v657
  %vm661 = vweird.f32 %v225
  %v662 = vadd.s32 %v658, 3
  %v663 = vand.u32 %v662, 3
  %vm664 = vcmp.lt.s32.totalorder %v663, 2
  %vm665 = vcmp.eq.s32.totalorder %v663, 0
  %v666 = vxor.u32 %v660, 2147483648
  %v667 = vsel %vm665, %v659, %v666
  %vm668 = vcmp.eq.s32.totalorder %v663, 2
  %v669 = vxor.u32 %v659, 2147483648
  %v670 = vsel %vm668, %v669, %v660
  %v671 = vsel %vm664, %v667, %v670
  %v672 = vsel %vm661, nan, %v671
  %v673 = vand.u32 2147483647, %v226
  %vm674 = vcmp.le.f32.partialorder %v673, 0.7853982
  %vm675 = vcmp.lt.s32.totalorder %v226, 0
  %v676 = vand.u32 %v226, 2139095040
  %v677 = vshrl.u32 %v676, 23
  %v678 = vsub.s32 %v677, 127
  %v679 = vand.u32 2147483647, %v226
  %v680 = vand.u32 %v679, 8388607
  %v681 = vor.u32 %v680, 8388608
  %v682 = vsub.s32 0, %v681
  %v683 = vadd.s32 %v678, 1
  %vm684 = vcmp.gt.s32.totalorder %v683, 0
  %v685 = vsel %vm684, %v683, 0
  %v686 = vshrl.u32 %v685, 5
  %v687 = vand.u32 %v685, 31
  %v688 = vsub.s32 32, %v687
  %v689 = vshrl.u32 683565275, %v688
  %v690 = vshll.u32 683565275, %v687
  %v691 = vshrl.u32 2475754826, %v688
  %v692 = vor.u32 %v690, %v691
  %v693 = vshll.u32 2475754826, %v687
  %v694 = vshrl.u32 2131351028, %v688
  %v695 = vor.u32 %v693, %v694
  %v696 = vshll.u32 2131351028, %v687
  %v697 = vshrl.u32 2102212464, %v688
  %v698 = vor.u32 %v696, %v697
  %v699 = vshll.u32 2102212464, %v687
  %v700 = vshrl.u32 920167782, %v688
  %v701 = vor.u32 %v699, %v700
  %v702 = vshll.u32 920167782, %v687
  %v703 = vshrl.u32 1326507024, %v688
  %v704 = vor.u32 %v702, %v703
  %vm705 = vcmp.lt.s32.totalorder %v686, 1
  %vm706 = vcmp.lt.s32.totalorder %v686, 2
  %vm707 = vcmp.lt.s32.totalorder %v686, 3
  %vm708 = vcmp.lt.s32.totalorder %v686, 4
  %v709 = vsel %vm705, %v689, %v692
  %v710 = vsel %vm708, %v698, 2102212464
  %v711 = vsel %vm707, %v695, %v710
  %v712 = vsel %vm706, %v709, %v711
  %v713 = vsel %vm705, %v692, %v695
  %v714 = vsel %vm708, %v701, 920167782
  %v715 = vsel %vm707, %v698, %v714
  %v716 = vsel %vm706, %v713, %v715
  %v717 = vsel %vm705, %v695, %v698
  %v718 = vsel %vm708, %v704, 1326507024
  %v719 = vsel %vm707, %v701, %v718
  %v720 = vsel %vm706, %v717, %v719
  %v721 = vshll.u32 %v681, 8
  %v722 = vmul.u32.u64.compose %v721, %v720
  %v723 = vextract.low.u32 %v722
  %v724 = vextract.high.u32 %v722
  %v725 = vmul.u32.u64.compose %v721, %v716
  %v726 = vextract.low.u32 %v725
  %v727 = vextract.high.u32 %v725
  %v728 = vmul.u32 %v721, %v712
  %v729 = vadd.s32 %v724, %v726
  %vm730 = vc.u32 %v724, %v726
  %v731 = vadd.s32 %v727, 1
  %v732 = vsel %vm730, %v731, %v727
  %v733 = vadd.s32 %v728, %v732
  %v734 = vadd.s32 %v733, 536870912
  %v735 = vshrl.u32 %v734, 30
  %v736 = vshll.u32 %v735, 30
  %v737 = vsub.s32 %v733, %v736
  %vm738 = vcmp.lt.s32.totalorder %v737, 0
  %v739 = vsub.s32 0, %v737
  %v740 = vsel %vm738, %v739, %v737
  %v741 = vclz %v740
  %v742 = vsub.s32 %v741, 2
  %vm743 = vcmp.gt.s32.totalorder 0, %v742
  %v744 = vsel %vm743, 0, %v742
  %v745 = vsub.s32 32, %v744
  %v746 = vshll.u32 %v737, %v744
  %v747 = vshrl.u32 %v729, %v745
  %v748 = vor.u32 %v746, %v747
  %v749 = vsub.s32 4294967266, %v744
  %v750 = vadd.s32 %v749, 127
  %v751 = vshll.u32 %v750, 23
  %v752 = vor.u32 4788187, %v751
  %v753 = vand.u32 2147483647, %v752
  %v755 = vcvt.s32.f32 %v748
  %v756 = vmul.f32 %v755, %v753
  %v757 = vxor.u32 %v756, 2147483648
  %v758 = vsel %vm675, %v757, %v756
  %v759 = vsub.s32 4, %v735
  %v760 = vsel %vm675, %v759, %v735
  %v761 = vsel %vm674, %v226, %v758
  %v762 = vsel %vm674, 0, %v760
  %v763 = vcosq.f32.pop %v761
  %v764 = vsinq.f32.pop %v761
  %vm765 = vweird.f32 %v226
  %v766 = vadd.s32 %v762, 3
  %v767 = vand.u32 %v766, 3
  %vm768 = vcmp.lt.s32.totalorder %v767, 2
  %vm769 = vcmp.eq.s32.totalorder %v767, 0
  %v770 = vxor.u32 %v764, 2147483648
  %v771 = vsel %vm769, %v763, %v770
  %vm772 = vcmp.eq.s32.totalorder %v767, 2
  %v773 = vxor.u32 %v763, 2147483648
  %v774 = vsel %vm772, %v773, %v764
  %v775 = vsel %vm768, %v771, %v774
  %v776 = vsel %vm765, nan, %v775
  %v777 = vand.u32 2147483647, %v227
  %vm778 = vcmp.le.f32.partialorder %v777, 0.7853982
  %vm779 = vcmp.lt.s32.totalorder %v227, 0
  %v780 = vand.u32 %v227, 2139095040
  %v781 = vshrl.u32 %v780, 23
  %v782 = vsub.s32 %v781, 127
  %v783 = vand.u32 2147483647, %v227
  %v784 = vand.u32 %v783, 8388607
  %v785 = vor.u32 %v784, 8388608
  %v786 = vsub.s32 0, %v785
  %v787 = vadd.s32 %v782, 1
  %vm788 = vcmp.gt.s32.totalorder %v787, 0
  %v789 = vsel %vm788, %v787, 0
  %v790 = vshrl.u32 %v789, 5
  %v791 = vand.u32 %v789, 31
  %v792 = vsub.s32 32, %v791
  %v793 = vshrl.u32 683565275, %v792
  %v794 = vshll.u32 683565275, %v791
  %v795 = vshrl.u32 2475754826, %v792
  %v796 = vor.u32 %v794, %v795
  %v797 = vshll.u32 2475754826, %v791
  %v798 = vshrl.u32 2131351028, %v792
  %v799 = vor.u32 %v797, %v798
  %v800 = vshll.u32 2131351028, %v791
  %v801 = vshrl.u32 2102212464, %v792
  %v802 = vor.u32 %v800, %v801
  %v803 = vshll.u32 2102212464, %v791
  %v804 = vshrl.u32 920167782, %v792
  %v805 = vor.u32 %v803, %v804
  %v806 = vshll.u32 920167782, %v791
  %v807 = vshrl.u32 1326507024, %v792
  %v808 = vor.u32 %v806, %v807
  %vm809 = vcmp.lt.s32.totalorder %v790, 1
  %vm810 = vcmp.lt.s32.totalorder %v790, 2
  %vm811 = vcmp.lt.s32.totalorder %v790, 3
  %vm812 = vcmp.lt.s32.totalorder %v790, 4
  %v813 = vsel %vm809, %v793, %v796
  %v814 = vsel %vm812, %v802, 2102212464
  %v815 = vsel %vm811, %v799, %v814
  %v816 = vsel %vm810, %v813, %v815
  %v817 = vsel %vm809, %v796, %v799
  %v818 = vsel %vm812, %v805, 920167782
  %v819 = vsel %vm811, %v802, %v818
  %v820 = vsel %vm810, %v817, %v819
  %v821 = vsel %vm809, %v799, %v802
  %v822 = vsel %vm812, %v808, 1326507024
  %v823 = vsel %vm811, %v805, %v822
  %v824 = vsel %vm810, %v821, %v823
  %v825 = vshll.u32 %v785, 8
  %v826 = vmul.u32.u64.compose %v825, %v824
  %v827 = vextract.low.u32 %v826
  %v828 = vextract.high.u32 %v826
  %v829 = vmul.u32.u64.compose %v825, %v820
  %v830 = vextract.low.u32 %v829
  %v831 = vextract.high.u32 %v829
  %v832 = vmul.u32 %v825, %v816
  %v833 = vadd.s32 %v828, %v830
  %vm834 = vc.u32 %v828, %v830
  %v835 = vadd.s32 %v831, 1
  %v836 = vsel %vm834, %v835, %v831
  %v837 = vadd.s32 %v832, %v836
  %v838 = vadd.s32 %v837, 536870912
  %v839 = vshrl.u32 %v838, 30
  %v840 = vshll.u32 %v839, 30
  %v841 = vsub.s32 %v837, %v840
  %vm842 = vcmp.lt.s32.totalorder %v841, 0
  %v843 = vsub.s32 0, %v841
  %v844 = vsel %vm842, %v843, %v841
  %v845 = vclz %v844
  %v846 = vsub.s32 %v845, 2
  %vm847 = vcmp.gt.s32.totalorder 0, %v846
  %v848 = vsel %vm847, 0, %v846
  %v849 = vsub.s32 32, %v848
  %v850 = vshll.u32 %v841, %v848
  %v851 = vshrl.u32 %v833, %v849
  %v852 = vor.u32 %v850, %v851
  %v853 = vsub.s32 4294967266, %v848
  %v854 = vadd.s32 %v853, 127
  %v855 = vshll.u32 %v854, 23
  %v856 = vor.u32 4788187, %v855
  %v857 = vand.u32 2147483647, %v856
  %v859 = vcvt.s32.f32 %v852
  %v860 = vmul.f32 %v859, %v857
  %v861 = vxor.u32 %v860, 2147483648
  %v862 = vsel %vm779, %v861, %v860
  %v863 = vsub.s32 4, %v839
  %v864 = vsel %vm779, %v863, %v839
  %v865 = vsel %vm778, %v227, %v862
  %v866 = vsel %vm778, 0, %v864
  %v867 = vcosq.f32.pop %v865
  %v868 = vsinq.f32.pop %v865
  %vm869 = vweird.f32 %v227
  %v870 = vadd.s32 %v866, 3
  %v871 = vand.u32 %v870, 3
  %vm872 = vcmp.lt.s32.totalorder %v871, 2
  %vm873 = vcmp.eq.s32.totalorder %v871, 0
  %v874 = vxor.u32 %v868, 2147483648
  %v875 = vsel %vm873, %v867, %v874
  %vm876 = vcmp.eq.s32.totalorder %v871, 2
  %v877 = vxor.u32 %v867, 2147483648
  %v878 = vsel %vm876, %v877, %v868
  %v879 = vsel %vm872, %v875, %v878
  %v880 = vsel %vm869, nan, %v879
  %v881 = vand.u32 2147483647, %v228
  %vm882 = vcmp.le.f32.partialorder %v881, 0.7853982
  %vm883 = vcmp.lt.s32.totalorder %v228, 0
  %v884 = vand.u32 %v228, 2139095040
  %v885 = vshrl.u32 %v884, 23
  %v886 = vsub.s32 %v885, 127
  %v887 = vand.u32 2147483647, %v228
  %v888 = vand.u32 %v887, 8388607
  %v889 = vor.u32 %v888, 8388608
  %v890 = vsub.s32 0, %v889
  %v891 = vadd.s32 %v886, 1
  %vm892 = vcmp.gt.s32.totalorder %v891, 0
  %v893 = vsel %vm892, %v891, 0
  %v894 = vshrl.u32 %v893, 5
  %v895 = vand.u32 %v893, 31
  %v896 = vsub.s32 32, %v895
  %v897 = vshrl.u32 683565275, %v896
  %v898 = vshll.u32 683565275, %v895
  %v899 = vshrl.u32 2475754826, %v896
  %v900 = vor.u32 %v898, %v899
  %v901 = vshll.u32 2475754826, %v895
  %v902 = vshrl.u32 2131351028, %v896
  %v903 = vor.u32 %v901, %v902
  %v904 = vshll.u32 2131351028, %v895
  %v905 = vshrl.u32 2102212464, %v896
  %v906 = vor.u32 %v904, %v905
  %v907 = vshll.u32 2102212464, %v895
  %v908 = vshrl.u32 920167782, %v896
  %v909 = vor.u32 %v907, %v908
  %v910 = vshll.u32 920167782, %v895
  %v911 = vshrl.u32 1326507024, %v896
  %v912 = vor.u32 %v910, %v911
  %vm913 = vcmp.lt.s32.totalorder %v894, 1
  %vm914 = vcmp.lt.s32.totalorder %v894, 2
  %vm915 = vcmp.lt.s32.totalorder %v894, 3
  %vm916 = vcmp.lt.s32.totalorder %v894, 4
  %v917 = vsel %vm913, %v897, %v900
  %v918 = vsel %vm916, %v906, 2102212464
  %v919 = vsel %vm915, %v903, %v918
  %v920 = vsel %vm914, %v917, %v919
  %v921 = vsel %vm913, %v900, %v903
  %v922 = vsel %vm916, %v909, 920167782
  %v923 = vsel %vm915, %v906, %v922
  %v924 = vsel %vm914, %v921, %v923
  %v925 = vsel %vm913, %v903, %v906
  %v926 = vsel %vm916, %v912, 1326507024
  %v927 = vsel %vm915, %v909, %v926
  %v928 = vsel %vm914, %v925, %v927
  %v929 = vshll.u32 %v889, 8
  %v930 = vmul.u32.u64.compose %v929, %v928
  %v931 = vextract.low.u32 %v930
  %v932 = vextract.high.u32 %v930
  %v933 = vmul.u32.u64.compose %v929, %v924
  %v934 = vextract.low.u32 %v933
  %v935 = vextract.high.u32 %v933
  %v936 = vmul.u32 %v929, %v920
  %v937 = vadd.s32 %v932, %v934
  %vm938 = vc.u32 %v932, %v934
  %v939 = vadd.s32 %v935, 1
  %v940 = vsel %vm938, %v939, %v935
  %v941 = vadd.s32 %v936, %v940
  %v942 = vadd.s32 %v941, 536870912
  %v943 = vshrl.u32 %v942, 30
  %v944 = vshll.u32 %v943, 30
  %v945 = vsub.s32 %v941, %v944
  %vm946 = vcmp.lt.s32.totalorder %v945, 0
  %v947 = vsub.s32 0, %v945
  %v948 = vsel %vm946, %v947, %v945
  %v949 = vclz %v948
  %v950 = vsub.s32 %v949, 2
  %vm951 = vcmp.gt.s32.totalorder 0, %v950
  %v952 = vsel %vm951, 0, %v950
  %v953 = vsub.s32 32, %v952
  %v954 = vshll.u32 %v945, %v952
  %v955 = vshrl.u32 %v937, %v953
  %v956 = vor.u32 %v954, %v955
  %v957 = vsub.s32 4294967266, %v952
  %v958 = vadd.s32 %v957, 127
  %v959 = vshll.u32 %v958, 23
  %v960 = vor.u32 4788187, %v959
  %v961 = vand.u32 2147483647, %v960
  %v963 = vcvt.s32.f32 %v956
  %v964 = vmul.f32 %v963, %v961
  %v965 = vxor.u32 %v964, 2147483648
  %v966 = vsel %vm883, %v965, %v964
  %v967 = vsub.s32 4, %v943
  %v968 = vsel %vm883, %v967, %v943
  %v969 = vsel %vm882, %v228, %v966
  %v970 = vsel %vm882, 0, %v968
  %v971 = vcosq.f32.pop %v969
  %v972 = vsinq.f32.pop %v969
  %vm973 = vweird.f32 %v228
  %v974 = vadd.s32 %v970, 3
  %v975 = vand.u32 %v974, 3
  %vm976 = vcmp.lt.s32.totalorder %v975, 2
  %vm977 = vcmp.eq.s32.totalorder %v975, 0
  %v978 = vxor.u32 %v972, 2147483648
  %v979 = vsel %vm977, %v971, %v978
  %vm980 = vcmp.eq.s32.totalorder %v975, 2
  %v981 = vxor.u32 %v971, 2147483648
  %v982 = vsel %vm980, %v981, %v972
  %v983 = vsel %vm976, %v979, %v982
  %v984 = vsel %vm973, nan, %v983
  %v985 = vand.u32 2147483647, %v229
  %vm986 = vcmp.le.f32.partialorder %v985, 0.7853982
  %vm987 = vcmp.lt.s32.totalorder %v229, 0
  %v988 = vand.u32 %v229, 2139095040
  %v989 = vshrl.u32 %v988, 23
  %v990 = vsub.s32 %v989, 127
  %v991 = vand.u32 2147483647, %v229
  %v992 = vand.u32 %v991, 8388607
  %v993 = vor.u32 %v992, 8388608
  %v994 = vsub.s32 0, %v993
  %v995 = vadd.s32 %v990, 1
  %vm996 = vcmp.gt.s32.totalorder %v995, 0
  %v997 = vsel %vm996, %v995, 0
  %v998 = vshrl.u32 %v997, 5
  %v999 = vand.u32 %v997, 31
  %v1000 = vsub.s32 32, %v999
  %v1001 = vshrl.u32 683565275, %v1000
  %v1002 = vshll.u32 683565275, %v999
  %v1003 = vshrl.u32 2475754826, %v1000
  %v1004 = vor.u32 %v1002, %v1003
  %v1005 = vshll.u32 2475754826, %v999
  %v1006 = vshrl.u32 2131351028, %v1000
  %v1007 = vor.u32 %v1005, %v1006
  %v1008 = vshll.u32 2131351028, %v999
  %v1009 = vshrl.u32 2102212464, %v1000
  %v1010 = vor.u32 %v1008, %v1009
  %v1011 = vshll.u32 2102212464, %v999
  %v1012 = vshrl.u32 920167782, %v1000
  %v1013 = vor.u32 %v1011, %v1012
  %v1014 = vshll.u32 920167782, %v999
  %v1015 = vshrl.u32 1326507024, %v1000
  %v1016 = vor.u32 %v1014, %v1015
  %vm1017 = vcmp.lt.s32.totalorder %v998, 1
  %vm1018 = vcmp.lt.s32.totalorder %v998, 2
  %vm1019 = vcmp.lt.s32.totalorder %v998, 3
  %vm1020 = vcmp.lt.s32.totalorder %v998, 4
  %v1021 = vsel %vm1017, %v1001, %v1004
  %v1022 = vsel %vm1020, %v1010, 2102212464
  %v1023 = vsel %vm1019, %v1007, %v1022
  %v1024 = vsel %vm1018, %v1021, %v1023
  %v1025 = vsel %vm1017, %v1004, %v1007
  %v1026 = vsel %vm1020, %v1013, 920167782
  %v1027 = vsel %vm1019, %v1010, %v1026
  %v1028 = vsel %vm1018, %v1025, %v1027
  %v1029 = vsel %vm1017, %v1007, %v1010
  %v1030 = vsel %vm1020, %v1016, 1326507024
  %v1031 = vsel %vm1019, %v1013, %v1030
  %v1032 = vsel %vm1018, %v1029, %v1031
  %v1033 = vshll.u32 %v993, 8
  %v1034 = vmul.u32.u64.compose %v1033, %v1032
  %v1035 = vextract.low.u32 %v1034
  %v1036 = vextract.high.u32 %v1034
  %v1037 = vmul.u32.u64.compose %v1033, %v1028
  %v1038 = vextract.low.u32 %v1037
  %v1039 = vextract.high.u32 %v1037
  %v1040 = vmul.u32 %v1033, %v1024
  %v1041 = vadd.s32 %v1036, %v1038
  %vm1042 = vc.u32 %v1036, %v1038
  %v1043 = vadd.s32 %v1039, 1
  %v1044 = vsel %vm1042, %v1043, %v1039
  %v1045 = vadd.s32 %v1040, %v1044
  %v1046 = vadd.s32 %v1045, 536870912
  %v1047 = vshrl.u32 %v1046, 30
  %v1048 = vshll.u32 %v1047, 30
  %v1049 = vsub.s32 %v1045, %v1048
  %vm1050 = vcmp.lt.s32.totalorder %v1049, 0
  %v1051 = vsub.s32 0, %v1049
  %v1052 = vsel %vm1050, %v1051, %v1049
  %v1053 = vclz %v1052
  %v1054 = vsub.s32 %v1053, 2
  %vm1055 = vcmp.gt.s32.totalorder 0, %v1054
  %v1056 = vsel %vm1055, 0, %v1054
  %v1057 = vsub.s32 32, %v1056
  %v1058 = vshll.u32 %v1049, %v1056
  %v1059 = vshrl.u32 %v1041, %v1057
  %v1060 = vor.u32 %v1058, %v1059
  %v1061 = vsub.s32 4294967266, %v1056
  %v1062 = vadd.s32 %v1061, 127
  %v1063 = vshll.u32 %v1062, 23
  %v1064 = vor.u32 4788187, %v1063
  %v1065 = vand.u32 2147483647, %v1064
  %v1067 = vcvt.s32.f32 %v1060
  %v1068 = vmul.f32 %v1067, %v1065
  %v1069 = vxor.u32 %v1068, 2147483648
  %v1070 = vsel %vm987, %v1069, %v1068
  %v1071 = vsub.s32 4, %v1047
  %v1072 = vsel %vm987, %v1071, %v1047
  %v1073 = vsel %vm986, %v229, %v1070
  %v1074 = vsel %vm986, 0, %v1072
  %v1075 = vcosq.f32.pop %v1073
  %v1076 = vsinq.f32.pop %v1073
  %vm1077 = vweird.f32 %v229
  %v1078 = vadd.s32 %v1074, 3
  %v1079 = vand.u32 %v1078, 3
  %vm1080 = vcmp.lt.s32.totalorder %v1079, 2
  %vm1081 = vcmp.eq.s32.totalorder %v1079, 0
  %v1082 = vxor.u32 %v1076, 2147483648
  %v1083 = vsel %vm1081, %v1075, %v1082
  %vm1084 = vcmp.eq.s32.totalorder %v1079, 2
  %v1085 = vxor.u32 %v1075, 2147483648
  %v1086 = vsel %vm1084, %v1085, %v1076
  %v1087 = vsel %vm1080, %v1083, %v1086
  %v1088 = vsel %vm1077, nan, %v1087
  %v1089 = vand.u32 2147483647, %v230
  %vm1090 = vcmp.le.f32.partialorder %v1089, 0.7853982
  %vm1091 = vcmp.lt.s32.totalorder %v230, 0
  %v1092 = vand.u32 %v230, 2139095040
  %v1093 = vshrl.u32 %v1092, 23
  %v1094 = vsub.s32 %v1093, 127
  %v1095 = vand.u32 2147483647, %v230
  %v1096 = vand.u32 %v1095, 8388607
  %v1097 = vor.u32 %v1096, 8388608
  %v1098 = vsub.s32 0, %v1097
  %v1099 = vadd.s32 %v1094, 1
  %vm1100 = vcmp.gt.s32.totalorder %v1099, 0
  %v1101 = vsel %vm1100, %v1099, 0
  %v1102 = vshrl.u32 %v1101, 5
  %v1103 = vand.u32 %v1101, 31
  %v1104 = vsub.s32 32, %v1103
  %v1105 = vshrl.u32 683565275, %v1104
  %v1106 = vshll.u32 683565275, %v1103
  %v1107 = vshrl.u32 2475754826, %v1104
  %v1108 = vor.u32 %v1106, %v1107
  %v1109 = vshll.u32 2475754826, %v1103
  %v1110 = vshrl.u32 2131351028, %v1104
  %v1111 = vor.u32 %v1109, %v1110
  %v1112 = vshll.u32 2131351028, %v1103
  %v1113 = vshrl.u32 2102212464, %v1104
  %v1114 = vor.u32 %v1112, %v1113
  %v1115 = vshll.u32 2102212464, %v1103
  %v1116 = vshrl.u32 920167782, %v1104
  %v1117 = vor.u32 %v1115, %v1116
  %v1118 = vshll.u32 920167782, %v1103
  %v1119 = vshrl.u32 1326507024, %v1104
  %v1120 = vor.u32 %v1118, %v1119
  %vm1121 = vcmp.lt.s32.totalorder %v1102, 1
  %vm1122 = vcmp.lt.s32.totalorder %v1102, 2
  %vm1123 = vcmp.lt.s32.totalorder %v1102, 3
  %vm1124 = vcmp.lt.s32.totalorder %v1102, 4
  %v1125 = vsel %vm1121, %v1105, %v1108
  %v1126 = vsel %vm1124, %v1114, 2102212464
  %v1127 = vsel %vm1123, %v1111, %v1126
  %v1128 = vsel %vm1122, %v1125, %v1127
  %v1129 = vsel %vm1121, %v1108, %v1111
  %v1130 = vsel %vm1124, %v1117, 920167782
  %v1131 = vsel %vm1123, %v1114, %v1130
  %v1132 = vsel %vm1122, %v1129, %v1131
  %v1133 = vsel %vm1121, %v1111, %v1114
  %v1134 = vsel %vm1124, %v1120, 1326507024
  %v1135 = vsel %vm1123, %v1117, %v1134
  %v1136 = vsel %vm1122, %v1133, %v1135
  %v1137 = vshll.u32 %v1097, 8
  %v1138 = vmul.u32.u64.compose %v1137, %v1136
  %v1139 = vextract.low.u32 %v1138
  %v1140 = vextract.high.u32 %v1138
  %v1141 = vmul.u32.u64.compose %v1137, %v1132
  %v1142 = vextract.low.u32 %v1141
  %v1143 = vextract.high.u32 %v1141
  %v1144 = vmul.u32 %v1137, %v1128
  %v1145 = vadd.s32 %v1140, %v1142
  %vm1146 = vc.u32 %v1140, %v1142
  %v1147 = vadd.s32 %v1143, 1
  %v1148 = vsel %vm1146, %v1147, %v1143
  %v1149 = vadd.s32 %v1144, %v1148
  %v1150 = vadd.s32 %v1149, 536870912
  %v1151 = vshrl.u32 %v1150, 30
  %v1152 = vshll.u32 %v1151, 30
  %v1153 = vsub.s32 %v1149, %v1152
  %vm1154 = vcmp.lt.s32.totalorder %v1153, 0
  %v1155 = vsub.s32 0, %v1153
  %v1156 = vsel %vm1154, %v1155, %v1153
  %v1157 = vclz %v1156
  %v1158 = vsub.s32 %v1157, 2
  %vm1159 = vcmp.gt.s32.totalorder 0, %v1158
  %v1160 = vsel %vm1159, 0, %v1158
  %v1161 = vsub.s32 32, %v1160
  %v1162 = vshll.u32 %v1153, %v1160
  %v1163 = vshrl.u32 %v1145, %v1161
  %v1164 = vor.u32 %v1162, %v1163
  %v1165 = vsub.s32 4294967266, %v1160
  %v1166 = vadd.s32 %v1165, 127
  %v1167 = vshll.u32 %v1166, 23
  %v1168 = vor.u32 4788187, %v1167
  %v1169 = vand.u32 2147483647, %v1168
  %v1171 = vcvt.s32.f32 %v1164
  %v1172 = vmul.f32 %v1171, %v1169
  %v1173 = vxor.u32 %v1172, 2147483648
  %v1174 = vsel %vm1091, %v1173, %v1172
  %v1175 = vsub.s32 4, %v1151
  %v1176 = vsel %vm1091, %v1175, %v1151
  %v1177 = vsel %vm1090, %v230, %v1174
  %v1178 = vsel %vm1090, 0, %v1176
  %v1179 = vcosq.f32.pop %v1177
  %v1180 = vsinq.f32.pop %v1177
  %vm1181 = vweird.f32 %v230
  %v1182 = vadd.s32 %v1178, 3
  %v1183 = vand.u32 %v1182, 3
  %vm1184 = vcmp.lt.s32.totalorder %v1183, 2
  %vm1185 = vcmp.eq.s32.totalorder %v1183, 0
  %v1186 = vxor.u32 %v1180, 2147483648
  %v1187 = vsel %vm1185, %v1179, %v1186
  %vm1188 = vcmp.eq.s32.totalorder %v1183, 2
  %v1189 = vxor.u32 %v1179, 2147483648
  %v1190 = vsel %vm1188, %v1189, %v1180
  %v1191 = vsel %vm1184, %v1187, %v1190
  %v1192 = vsel %vm1181, nan, %v1191
  %v1193 = vand.u32 2147483647, %v231
  %vm1194 = vcmp.le.f32.partialorder %v1193, 0.7853982
  %vm1195 = vcmp.lt.s32.totalorder %v231, 0
  %v1196 = vand.u32 %v231, 2139095040
  %v1197 = vshrl.u32 %v1196, 23
  %v1198 = vsub.s32 %v1197, 127
  %v1199 = vand.u32 2147483647, %v231
  %v1200 = vand.u32 %v1199, 8388607
  %v1201 = vor.u32 %v1200, 8388608
  %v1202 = vsub.s32 0, %v1201
  %v1203 = vadd.s32 %v1198, 1
  %vm1204 = vcmp.gt.s32.totalorder %v1203, 0
  %v1205 = vsel %vm1204, %v1203, 0
  %v1206 = vshrl.u32 %v1205, 5
  %v1207 = vand.u32 %v1205, 31
  %v1208 = vsub.s32 32, %v1207
  %v1209 = vshrl.u32 683565275, %v1208
  %v1210 = vshll.u32 683565275, %v1207
  %v1211 = vshrl.u32 2475754826, %v1208
  %v1212 = vor.u32 %v1210, %v1211
  %v1213 = vshll.u32 2475754826, %v1207
  %v1214 = vshrl.u32 2131351028, %v1208
  %v1215 = vor.u32 %v1213, %v1214
  %v1216 = vshll.u32 2131351028, %v1207
  %v1217 = vshrl.u32 2102212464, %v1208
  %v1218 = vor.u32 %v1216, %v1217
  %v1219 = vshll.u32 2102212464, %v1207
  %v1220 = vshrl.u32 920167782, %v1208
  %v1221 = vor.u32 %v1219, %v1220
  %v1222 = vshll.u32 920167782, %v1207
  %v1223 = vshrl.u32 1326507024, %v1208
  %v1224 = vor.u32 %v1222, %v1223
  %vm1225 = vcmp.lt.s32.totalorder %v1206, 1
  %vm1226 = vcmp.lt.s32.totalorder %v1206, 2
  %vm1227 = vcmp.lt.s32.totalorder %v1206, 3
  %vm1228 = vcmp.lt.s32.totalorder %v1206, 4
  %v1229 = vsel %vm1225, %v1209, %v1212
  %v1230 = vsel %vm1228, %v1218, 2102212464
  %v1231 = vsel %vm1227, %v1215, %v1230
  %v1232 = vsel %vm1226, %v1229, %v1231
  %v1233 = vsel %vm1225, %v1212, %v1215
  %v1234 = vsel %vm1228, %v1221, 920167782
  %v1235 = vsel %vm1227, %v1218, %v1234
  %v1236 = vsel %vm1226, %v1233, %v1235
  %v1237 = vsel %vm1225, %v1215, %v1218
  %v1238 = vsel %vm1228, %v1224, 1326507024
  %v1239 = vsel %vm1227, %v1221, %v1238
  %v1240 = vsel %vm1226, %v1237, %v1239
  %v1241 = vshll.u32 %v1201, 8
  %v1242 = vmul.u32.u64.compose %v1241, %v1240
  %v1243 = vextract.low.u32 %v1242
  %v1244 = vextract.high.u32 %v1242
  %v1245 = vmul.u32.u64.compose %v1241, %v1236
  %v1246 = vextract.low.u32 %v1245
  %v1247 = vextract.high.u32 %v1245
  %v1248 = vmul.u32 %v1241, %v1232
  %v1249 = vadd.s32 %v1244, %v1246
  %vm1250 = vc.u32 %v1244, %v1246
  %v1251 = vadd.s32 %v1247, 1
  %v1252 = vsel %vm1250, %v1251, %v1247
  %v1253 = vadd.s32 %v1248, %v1252
  %v1254 = vadd.s32 %v1253, 536870912
  %v1255 = vshrl.u32 %v1254, 30
  %v1256 = vshll.u32 %v1255, 30
  %v1257 = vsub.s32 %v1253, %v1256
  %vm1258 = vcmp.lt.s32.totalorder %v1257, 0
  %v1259 = vsub.s32 0, %v1257
  %v1260 = vsel %vm1258, %v1259, %v1257
  %v1261 = vclz %v1260
  %v1262 = vsub.s32 %v1261, 2
  %vm1263 = vcmp.gt.s32.totalorder 0, %v1262
  %v1264 = vsel %vm1263, 0, %v1262
  %v1265 = vsub.s32 32, %v1264
  %v1266 = vshll.u32 %v1257, %v1264
  %v1267 = vshrl.u32 %v1249, %v1265
  %v1268 = vor.u32 %v1266, %v1267
  %v1269 = vsub.s32 4294967266, %v1264
  %v1270 = vadd.s32 %v1269, 127
  %v1271 = vshll.u32 %v1270, 23
  %v1272 = vor.u32 4788187, %v1271
  %v1273 = vand.u32 2147483647, %v1272
  %v1275 = vcvt.s32.f32 %v1268
  %v1276 = vmul.f32 %v1275, %v1273
  %v1277 = vxor.u32 %v1276, 2147483648
  %v1278 = vsel %vm1195, %v1277, %v1276
  %v1279 = vsub.s32 4, %v1255
  %v1280 = vsel %vm1195, %v1279, %v1255
  %v1281 = vsel %vm1194, %v231, %v1278
  %v1282 = vsel %vm1194, 0, %v1280
  %v1283 = vcosq.f32.pop %v1281
  %v1284 = vsinq.f32.pop %v1281
  %vm1285 = vweird.f32 %v231
  %v1286 = vadd.s32 %v1282, 3
  %v1287 = vand.u32 %v1286, 3
  %vm1288 = vcmp.lt.s32.totalorder %v1287, 2
  %vm1289 = vcmp.eq.s32.totalorder %v1287, 0
  %v1290 = vxor.u32 %v1284, 2147483648
  %v1291 = vsel %vm1289, %v1283, %v1290
  %vm1292 = vcmp.eq.s32.totalorder %v1287, 2
  %v1293 = vxor.u32 %v1283, 2147483648
  %v1294 = vsel %vm1292, %v1293, %v1284
  %v1295 = vsel %vm1288, %v1291, %v1294
  %v1296 = vsel %vm1285, nan, %v1295
  %v1297 = vand.u32 2147483647, %v232
  %vm1298 = vcmp.le.f32.partialorder %v1297, 0.7853982
  %vm1299 = vcmp.lt.s32.totalorder %v232, 0
  %v1300 = vand.u32 %v232, 2139095040
  %v1301 = vshrl.u32 %v1300, 23
  %v1302 = vsub.s32 %v1301, 127
  %v1303 = vand.u32 2147483647, %v232
  %v1304 = vand.u32 %v1303, 8388607
  %v1305 = vor.u32 %v1304, 8388608
  %v1306 = vsub.s32 0, %v1305
  %v1307 = vadd.s32 %v1302, 1
  %vm1308 = vcmp.gt.s32.totalorder %v1307, 0
  %v1309 = vsel %vm1308, %v1307, 0
  %v1310 = vshrl.u32 %v1309, 5
  %v1311 = vand.u32 %v1309, 31
  %v1312 = vsub.s32 32, %v1311
  %v1313 = vshrl.u32 683565275, %v1312
  %v1314 = vshll.u32 683565275, %v1311
  %v1315 = vshrl.u32 2475754826, %v1312
  %v1316 = vor.u32 %v1314, %v1315
  %v1317 = vshll.u32 2475754826, %v1311
  %v1318 = vshrl.u32 2131351028, %v1312
  %v1319 = vor.u32 %v1317, %v1318
  %v1320 = vshll.u32 2131351028, %v1311
  %v1321 = vshrl.u32 2102212464, %v1312
  %v1322 = vor.u32 %v1320, %v1321
  %v1323 = vshll.u32 2102212464, %v1311
  %v1324 = vshrl.u32 920167782, %v1312
  %v1325 = vor.u32 %v1323, %v1324
  %v1326 = vshll.u32 920167782, %v1311
  %v1327 = vshrl.u32 1326507024, %v1312
  %v1328 = vor.u32 %v1326, %v1327
  %vm1329 = vcmp.lt.s32.totalorder %v1310, 1
  %vm1330 = vcmp.lt.s32.totalorder %v1310, 2
  %vm1331 = vcmp.lt.s32.totalorder %v1310, 3
  %vm1332 = vcmp.lt.s32.totalorder %v1310, 4
  %v1333 = vsel %vm1329, %v1313, %v1316
  %v1334 = vsel %vm1332, %v1322, 2102212464
  %v1335 = vsel %vm1331, %v1319, %v1334
  %v1336 = vsel %vm1330, %v1333, %v1335
  %v1337 = vsel %vm1329, %v1316, %v1319
  %v1338 = vsel %vm1332, %v1325, 920167782
  %v1339 = vsel %vm1331, %v1322, %v1338
  %v1340 = vsel %vm1330, %v1337, %v1339
  %v1341 = vsel %vm1329, %v1319, %v1322
  %v1342 = vsel %vm1332, %v1328, 1326507024
  %v1343 = vsel %vm1331, %v1325, %v1342
  %v1344 = vsel %vm1330, %v1341, %v1343
  %v1345 = vshll.u32 %v1305, 8
  %v1346 = vmul.u32.u64.compose %v1345, %v1344
  %v1347 = vextract.low.u32 %v1346
  %v1348 = vextract.high.u32 %v1346
  %v1349 = vmul.u32.u64.compose %v1345, %v1340
  %v1350 = vextract.low.u32 %v1349
  %v1351 = vextract.high.u32 %v1349
  %v1352 = vmul.u32 %v1345, %v1336
  %v1353 = vadd.s32 %v1348, %v1350
  %vm1354 = vc.u32 %v1348, %v1350
  %v1355 = vadd.s32 %v1351, 1
  %v1356 = vsel %vm1354, %v1355, %v1351
  %v1357 = vadd.s32 %v1352, %v1356
  %v1358 = vadd.s32 %v1357, 536870912
  %v1359 = vshrl.u32 %v1358, 30
  %v1360 = vshll.u32 %v1359, 30
  %v1361 = vsub.s32 %v1357, %v1360
  %vm1362 = vcmp.lt.s32.totalorder %v1361, 0
  %v1363 = vsub.s32 0, %v1361
  %v1364 = vsel %vm1362, %v1363, %v1361
  %v1365 = vclz %v1364
  %v1366 = vsub.s32 %v1365, 2
  %vm1367 = vcmp.gt.s32.totalorder 0, %v1366
  %v1368 = vsel %vm1367, 0, %v1366
  %v1369 = vsub.s32 32, %v1368
  %v1370 = vshll.u32 %v1361, %v1368
  %v1371 = vshrl.u32 %v1353, %v1369
  %v1372 = vor.u32 %v1370, %v1371
  %v1373 = vsub.s32 4294967266, %v1368
  %v1374 = vadd.s32 %v1373, 127
  %v1375 = vshll.u32 %v1374, 23
  %v1376 = vor.u32 4788187, %v1375
  %v1377 = vand.u32 2147483647, %v1376
  %v1379 = vcvt.s32.f32 %v1372
  %v1380 = vmul.f32 %v1379, %v1377
  %v1381 = vxor.u32 %v1380, 2147483648
  %v1382 = vsel %vm1299, %v1381, %v1380
  %v1383 = vsub.s32 4, %v1359
  %v1384 = vsel %vm1299, %v1383, %v1359
  %v1385 = vsel %vm1298, %v232, %v1382
  %v1386 = vsel %vm1298, 0, %v1384
  %v1387 = vcosq.f32.pop %v1385
  %v1388 = vsinq.f32.pop %v1385
  %vm1389 = vweird.f32 %v232
  %v1390 = vadd.s32 %v1386, 3
  %v1391 = vand.u32 %v1390, 3
  %vm1392 = vcmp.lt.s32.totalorder %v1391, 2
  %vm1393 = vcmp.eq.s32.totalorder %v1391, 0
  %v1394 = vxor.u32 %v1388, 2147483648
  %v1395 = vsel %vm1393, %v1387, %v1394
  %vm1396 = vcmp.eq.s32.totalorder %v1391, 2
  %v1397 = vxor.u32 %v1387, 2147483648
  %v1398 = vsel %vm1396, %v1397, %v1388
  %v1399 = vsel %vm1392, %v1395, %v1398
  %v1400 = vsel %vm1389, nan, %v1399
  %v1401 = vand.u32 2147483647, %v233
  %vm1402 = vcmp.le.f32.partialorder %v1401, 0.7853982
  %vm1403 = vcmp.lt.s32.totalorder %v233, 0
  %v1404 = vand.u32 %v233, 2139095040
  %v1405 = vshrl.u32 %v1404, 23
  %v1406 = vsub.s32 %v1405, 127
  %v1407 = vand.u32 2147483647, %v233
  %v1408 = vand.u32 %v1407, 8388607
  %v1409 = vor.u32 %v1408, 8388608
  %v1410 = vsub.s32 0, %v1409
  %v1411 = vadd.s32 %v1406, 1
  %vm1412 = vcmp.gt.s32.totalorder %v1411, 0
  %v1413 = vsel %vm1412, %v1411, 0
  %v1414 = vshrl.u32 %v1413, 5
  %v1415 = vand.u32 %v1413, 31
  %v1416 = vsub.s32 32, %v1415
  %v1417 = vshrl.u32 683565275, %v1416
  %v1418 = vshll.u32 683565275, %v1415
  %v1419 = vshrl.u32 2475754826, %v1416
  %v1420 = vor.u32 %v1418, %v1419
  %v1421 = vshll.u32 2475754826, %v1415
  %v1422 = vshrl.u32 2131351028, %v1416
  %v1423 = vor.u32 %v1421, %v1422
  %v1424 = vshll.u32 2131351028, %v1415
  %v1425 = vshrl.u32 2102212464, %v1416
  %v1426 = vor.u32 %v1424, %v1425
  %v1427 = vshll.u32 2102212464, %v1415
  %v1428 = vshrl.u32 920167782, %v1416
  %v1429 = vor.u32 %v1427, %v1428
  %v1430 = vshll.u32 920167782, %v1415
  %v1431 = vshrl.u32 1326507024, %v1416
  %v1432 = vor.u32 %v1430, %v1431
  %vm1433 = vcmp.lt.s32.totalorder %v1414, 1
  %vm1434 = vcmp.lt.s32.totalorder %v1414, 2
  %vm1435 = vcmp.lt.s32.totalorder %v1414, 3
  %vm1436 = vcmp.lt.s32.totalorder %v1414, 4
  %v1437 = vsel %vm1433, %v1417, %v1420
  %v1438 = vsel %vm1436, %v1426, 2102212464
  %v1439 = vsel %vm1435, %v1423, %v1438
  %v1440 = vsel %vm1434, %v1437, %v1439
  %v1441 = vsel %vm1433, %v1420, %v1423
  %v1442 = vsel %vm1436, %v1429, 920167782
  %v1443 = vsel %vm1435, %v1426, %v1442
  %v1444 = vsel %vm1434, %v1441, %v1443
  %v1445 = vsel %vm1433, %v1423, %v1426
  %v1446 = vsel %vm1436, %v1432, 1326507024
  %v1447 = vsel %vm1435, %v1429, %v1446
  %v1448 = vsel %vm1434, %v1445, %v1447
  %v1449 = vshll.u32 %v1409, 8
  %v1450 = vmul.u32.u64.compose %v1449, %v1448
  %v1451 = vextract.low.u32 %v1450
  %v1452 = vextract.high.u32 %v1450
  %v1453 = vmul.u32.u64.compose %v1449, %v1444
  %v1454 = vextract.low.u32 %v1453
  %v1455 = vextract.high.u32 %v1453
  %v1456 = vmul.u32 %v1449, %v1440
  %v1457 = vadd.s32 %v1452, %v1454
  %vm1458 = vc.u32 %v1452, %v1454
  %v1459 = vadd.s32 %v1455, 1
  %v1460 = vsel %vm1458, %v1459, %v1455
  %v1461 = vadd.s32 %v1456, %v1460
  %v1462 = vadd.s32 %v1461, 536870912
  %v1463 = vshrl.u32 %v1462, 30
  %v1464 = vshll.u32 %v1463, 30
  %v1465 = vsub.s32 %v1461, %v1464
  %vm1466 = vcmp.lt.s32.totalorder %v1465, 0
  %v1467 = vsub.s32 0, %v1465
  %v1468 = vsel %vm1466, %v1467, %v1465
  %v1469 = vclz %v1468
  %v1470 = vsub.s32 %v1469, 2
  %vm1471 = vcmp.gt.s32.totalorder 0, %v1470
  %v1472 = vsel %vm1471, 0, %v1470
  %v1473 = vsub.s32 32, %v1472
  %v1474 = vshll.u32 %v1465, %v1472
  %v1475 = vshrl.u32 %v1457, %v1473
  %v1476 = vor.u32 %v1474, %v1475
  %v1477 = vsub.s32 4294967266, %v1472
  %v1478 = vadd.s32 %v1477, 127
  %v1479 = vshll.u32 %v1478, 23
  %v1480 = vor.u32 4788187, %v1479
  %v1481 = vand.u32 2147483647, %v1480
  %v1483 = vcvt.s32.f32 %v1476
  %v1484 = vmul.f32 %v1483, %v1481
  %v1485 = vxor.u32 %v1484, 2147483648
  %v1486 = vsel %vm1403, %v1485, %v1484
  %v1487 = vsub.s32 4, %v1463
  %v1488 = vsel %vm1403, %v1487, %v1463
  %v1489 = vsel %vm1402, %v233, %v1486
  %v1490 = vsel %vm1402, 0, %v1488
  %v1491 = vcosq.f32.pop %v1489
  %v1492 = vsinq.f32.pop %v1489
  %vm1493 = vweird.f32 %v233
  %v1494 = vadd.s32 %v1490, 3
  %v1495 = vand.u32 %v1494, 3
  %vm1496 = vcmp.lt.s32.totalorder %v1495, 2
  %vm1497 = vcmp.eq.s32.totalorder %v1495, 0
  %v1498 = vxor.u32 %v1492, 2147483648
  %v1499 = vsel %vm1497, %v1491, %v1498
  %vm1500 = vcmp.eq.s32.totalorder %v1495, 2
  %v1501 = vxor.u32 %v1491, 2147483648
  %v1502 = vsel %vm1500, %v1501, %v1492
  %v1503 = vsel %vm1496, %v1499, %v1502
  %v1504 = vsel %vm1493, nan, %v1503
  %v1505 = vand.u32 2147483647, %v234
  %vm1506 = vcmp.le.f32.partialorder %v1505, 0.7853982
  %vm1507 = vcmp.lt.s32.totalorder %v234, 0
  %v1508 = vand.u32 %v234, 2139095040
  %v1509 = vshrl.u32 %v1508, 23
  %v1510 = vsub.s32 %v1509, 127
  %v1511 = vand.u32 2147483647, %v234
  %v1512 = vand.u32 %v1511, 8388607
  %v1513 = vor.u32 %v1512, 8388608
  %v1514 = vsub.s32 0, %v1513
  %v1515 = vadd.s32 %v1510, 1
  %vm1516 = vcmp.gt.s32.totalorder %v1515, 0
  %v1517 = vsel %vm1516, %v1515, 0
  %v1518 = vshrl.u32 %v1517, 5
  %v1519 = vand.u32 %v1517, 31
  %v1520 = vsub.s32 32, %v1519
  %v1521 = vshrl.u32 683565275, %v1520
  %v1522 = vshll.u32 683565275, %v1519
  %v1523 = vshrl.u32 2475754826, %v1520
  %v1524 = vor.u32 %v1522, %v1523
  %v1525 = vshll.u32 2475754826, %v1519
  %v1526 = vshrl.u32 2131351028, %v1520
  %v1527 = vor.u32 %v1525, %v1526
  %v1528 = vshll.u32 2131351028, %v1519
  %v1529 = vshrl.u32 2102212464, %v1520
  %v1530 = vor.u32 %v1528, %v1529
  %v1531 = vshll.u32 2102212464, %v1519
  %v1532 = vshrl.u32 920167782, %v1520
  %v1533 = vor.u32 %v1531, %v1532
  %v1534 = vshll.u32 920167782, %v1519
  %v1535 = vshrl.u32 1326507024, %v1520
  %v1536 = vor.u32 %v1534, %v1535
  %vm1537 = vcmp.lt.s32.totalorder %v1518, 1
  %vm1538 = vcmp.lt.s32.totalorder %v1518, 2
  %vm1539 = vcmp.lt.s32.totalorder %v1518, 3
  %vm1540 = vcmp.lt.s32.totalorder %v1518, 4
  %v1541 = vsel %vm1537, %v1521, %v1524
  %v1542 = vsel %vm1540, %v1530, 2102212464
  %v1543 = vsel %vm1539, %v1527, %v1542
  %v1544 = vsel %vm1538, %v1541, %v1543
  %v1545 = vsel %vm1537, %v1524, %v1527
  %v1546 = vsel %vm1540, %v1533, 920167782
  %v1547 = vsel %vm1539, %v1530, %v1546
  %v1548 = vsel %vm1538, %v1545, %v1547
  %v1549 = vsel %vm1537, %v1527, %v1530
  %v1550 = vsel %vm1540, %v1536, 1326507024
  %v1551 = vsel %vm1539, %v1533, %v1550
  %v1552 = vsel %vm1538, %v1549, %v1551
  %v1553 = vshll.u32 %v1513, 8
  %v1554 = vmul.u32.u64.compose %v1553, %v1552
  %v1555 = vextract.low.u32 %v1554
  %v1556 = vextract.high.u32 %v1554
  %v1557 = vmul.u32.u64.compose %v1553, %v1548
  %v1558 = vextract.low.u32 %v1557
  %v1559 = vextract.high.u32 %v1557
  %v1560 = vmul.u32 %v1553, %v1544
  %v1561 = vadd.s32 %v1556, %v1558
  %vm1562 = vc.u32 %v1556, %v1558
  %v1563 = vadd.s32 %v1559, 1
  %v1564 = vsel %vm1562, %v1563, %v1559
  %v1565 = vadd.s32 %v1560, %v1564
  %v1566 = vadd.s32 %v1565, 536870912
  %v1567 = vshrl.u32 %v1566, 30
  %v1568 = vshll.u32 %v1567, 30
  %v1569 = vsub.s32 %v1565, %v1568
  %vm1570 = vcmp.lt.s32.totalorder %v1569, 0
  %v1571 = vsub.s32 0, %v1569
  %v1572 = vsel %vm1570, %v1571, %v1569
  %v1573 = vclz %v1572
  %v1574 = vsub.s32 %v1573, 2
  %vm1575 = vcmp.gt.s32.totalorder 0, %v1574
  %v1576 = vsel %vm1575, 0, %v1574
  %v1577 = vsub.s32 32, %v1576
  %v1578 = vshll.u32 %v1569, %v1576
  %v1579 = vshrl.u32 %v1561, %v1577
  %v1580 = vor.u32 %v1578, %v1579
  %v1581 = vsub.s32 4294967266, %v1576
  %v1582 = vadd.s32 %v1581, 127
  %v1583 = vshll.u32 %v1582, 23
  %v1584 = vor.u32 4788187, %v1583
  %v1585 = vand.u32 2147483647, %v1584
  %v1587 = vcvt.s32.f32 %v1580
  %v1588 = vmul.f32 %v1587, %v1585
  %v1589 = vxor.u32 %v1588, 2147483648
  %v1590 = vsel %vm1507, %v1589, %v1588
  %v1591 = vsub.s32 4, %v1567
  %v1592 = vsel %vm1507, %v1591, %v1567
  %v1593 = vsel %vm1506, %v234, %v1590
  %v1594 = vsel %vm1506, 0, %v1592
  %v1595 = vcosq.f32.pop %v1593
  %v1596 = vsinq.f32.pop %v1593
  %vm1597 = vweird.f32 %v234
  %v1598 = vadd.s32 %v1594, 3
  %v1599 = vand.u32 %v1598, 3
  %vm1600 = vcmp.lt.s32.totalorder %v1599, 2
  %vm1601 = vcmp.eq.s32.totalorder %v1599, 0
  %v1602 = vxor.u32 %v1596, 2147483648
  %v1603 = vsel %vm1601, %v1595, %v1602
  %vm1604 = vcmp.eq.s32.totalorder %v1599, 2
  %v1605 = vxor.u32 %v1595, 2147483648
  %v1606 = vsel %vm1604, %v1605, %v1596
  %v1607 = vsel %vm1600, %v1603, %v1606
  %v1608 = vsel %vm1597, nan, %v1607
  %v1609 = vand.u32 2147483647, %v235
  %vm1610 = vcmp.le.f32.partialorder %v1609, 0.7853982
  %vm1611 = vcmp.lt.s32.totalorder %v235, 0
  %v1612 = vand.u32 %v235, 2139095040
  %v1613 = vshrl.u32 %v1612, 23
  %v1614 = vsub.s32 %v1613, 127
  %v1615 = vand.u32 2147483647, %v235
  %v1616 = vand.u32 %v1615, 8388607
  %v1617 = vor.u32 %v1616, 8388608
  %v1618 = vsub.s32 0, %v1617
  %v1619 = vadd.s32 %v1614, 1
  %vm1620 = vcmp.gt.s32.totalorder %v1619, 0
  %v1621 = vsel %vm1620, %v1619, 0
  %v1622 = vshrl.u32 %v1621, 5
  %v1623 = vand.u32 %v1621, 31
  %v1624 = vsub.s32 32, %v1623
  %v1625 = vshrl.u32 683565275, %v1624
  %v1626 = vshll.u32 683565275, %v1623
  %v1627 = vshrl.u32 2475754826, %v1624
  %v1628 = vor.u32 %v1626, %v1627
  %v1629 = vshll.u32 2475754826, %v1623
  %v1630 = vshrl.u32 2131351028, %v1624
  %v1631 = vor.u32 %v1629, %v1630
  %v1632 = vshll.u32 2131351028, %v1623
  %v1633 = vshrl.u32 2102212464, %v1624
  %v1634 = vor.u32 %v1632, %v1633
  %v1635 = vshll.u32 2102212464, %v1623
  %v1636 = vshrl.u32 920167782, %v1624
  %v1637 = vor.u32 %v1635, %v1636
  %v1638 = vshll.u32 920167782, %v1623
  %v1639 = vshrl.u32 1326507024, %v1624
  %v1640 = vor.u32 %v1638, %v1639
  %vm1641 = vcmp.lt.s32.totalorder %v1622, 1
  %vm1642 = vcmp.lt.s32.totalorder %v1622, 2
  %vm1643 = vcmp.lt.s32.totalorder %v1622, 3
  %vm1644 = vcmp.lt.s32.totalorder %v1622, 4
  %v1645 = vsel %vm1641, %v1625, %v1628
  %v1646 = vsel %vm1644, %v1634, 2102212464
  %v1647 = vsel %vm1643, %v1631, %v1646
  %v1648 = vsel %vm1642, %v1645, %v1647
  %v1649 = vsel %vm1641, %v1628, %v1631
  %v1650 = vsel %vm1644, %v1637, 920167782
  %v1651 = vsel %vm1643, %v1634, %v1650
  %v1652 = vsel %vm1642, %v1649, %v1651
  %v1653 = vsel %vm1641, %v1631, %v1634
  %v1654 = vsel %vm1644, %v1640, 1326507024
  %v1655 = vsel %vm1643, %v1637, %v1654
  %v1656 = vsel %vm1642, %v1653, %v1655
  %v1657 = vshll.u32 %v1617, 8
  %v1658 = vmul.u32.u64.compose %v1657, %v1656
  %v1659 = vextract.low.u32 %v1658
  %v1660 = vextract.high.u32 %v1658
  %v1661 = vmul.u32.u64.compose %v1657, %v1652
  %v1662 = vextract.low.u32 %v1661
  %v1663 = vextract.high.u32 %v1661
  %v1664 = vmul.u32 %v1657, %v1648
  %v1665 = vadd.s32 %v1660, %v1662
  %vm1666 = vc.u32 %v1660, %v1662
  %v1667 = vadd.s32 %v1663, 1
  %v1668 = vsel %vm1666, %v1667, %v1663
  %v1669 = vadd.s32 %v1664, %v1668
  %v1670 = vadd.s32 %v1669, 536870912
  %v1671 = vshrl.u32 %v1670, 30
  %v1672 = vshll.u32 %v1671, 30
  %v1673 = vsub.s32 %v1669, %v1672
  %vm1674 = vcmp.lt.s32.totalorder %v1673, 0
  %v1675 = vsub.s32 0, %v1673
  %v1676 = vsel %vm1674, %v1675, %v1673
  %v1677 = vclz %v1676
  %v1678 = vsub.s32 %v1677, 2
  %vm1679 = vcmp.gt.s32.totalorder 0, %v1678
  %v1680 = vsel %vm1679, 0, %v1678
  %v1681 = vsub.s32 32, %v1680
  %v1682 = vshll.u32 %v1673, %v1680
  %v1683 = vshrl.u32 %v1665, %v1681
  %v1684 = vor.u32 %v1682, %v1683
  %v1685 = vsub.s32 4294967266, %v1680
  %v1686 = vadd.s32 %v1685, 127
  %v1687 = vshll.u32 %v1686, 23
  %v1688 = vor.u32 4788187, %v1687
  %v1689 = vand.u32 2147483647, %v1688
  %v1691 = vcvt.s32.f32 %v1684
  %v1692 = vmul.f32 %v1691, %v1689
  %v1693 = vxor.u32 %v1692, 2147483648
  %v1694 = vsel %vm1611, %v1693, %v1692
  %v1695 = vsub.s32 4, %v1671
  %v1696 = vsel %vm1611, %v1695, %v1671
  %v1697 = vsel %vm1610, %v235, %v1694
  %v1698 = vsel %vm1610, 0, %v1696
  %v1699 = vcosq.f32.pop %v1697
  %v1700 = vsinq.f32.pop %v1697
  %vm1701 = vweird.f32 %v235
  %v1702 = vadd.s32 %v1698, 3
  %v1703 = vand.u32 %v1702, 3
  %vm1704 = vcmp.lt.s32.totalorder %v1703, 2
  %vm1705 = vcmp.eq.s32.totalorder %v1703, 0
  %v1706 = vxor.u32 %v1700, 2147483648
  %v1707 = vsel %vm1705, %v1699, %v1706
  %vm1708 = vcmp.eq.s32.totalorder %v1703, 2
  %v1709 = vxor.u32 %v1699, 2147483648
  %v1710 = vsel %vm1708, %v1709, %v1700
  %v1711 = vsel %vm1704, %v1707, %v1710
  %v1712 = vsel %vm1701, nan, %v1711
  %v1713 = vand.u32 2147483647, %v236
  %vm1714 = vcmp.le.f32.partialorder %v1713, 0.7853982
  %vm1715 = vcmp.lt.s32.totalorder %v236, 0
  %v1716 = vand.u32 %v236, 2139095040
  %v1717 = vshrl.u32 %v1716, 23
  %v1718 = vsub.s32 %v1717, 127
  %v1719 = vand.u32 2147483647, %v236
  %v1720 = vand.u32 %v1719, 8388607
  %v1721 = vor.u32 %v1720, 8388608
  %v1722 = vsub.s32 0, %v1721
  %v1723 = vadd.s32 %v1718, 1
  %vm1724 = vcmp.gt.s32.totalorder %v1723, 0
  %v1725 = vsel %vm1724, %v1723, 0
  %v1726 = vshrl.u32 %v1725, 5
  %v1727 = vand.u32 %v1725, 31
  %v1728 = vsub.s32 32, %v1727
  %v1729 = vshrl.u32 683565275, %v1728
  %v1730 = vshll.u32 683565275, %v1727
  %v1731 = vshrl.u32 2475754826, %v1728
  %v1732 = vor.u32 %v1730, %v1731
  %v1733 = vshll.u32 2475754826, %v1727
  %v1734 = vshrl.u32 2131351028, %v1728
  %v1735 = vor.u32 %v1733, %v1734
  %v1736 = vshll.u32 2131351028, %v1727
  %v1737 = vshrl.u32 2102212464, %v1728
  %v1738 = vor.u32 %v1736, %v1737
  %v1739 = vshll.u32 2102212464, %v1727
  %v1740 = vshrl.u32 920167782, %v1728
  %v1741 = vor.u32 %v1739, %v1740
  %v1742 = vshll.u32 920167782, %v1727
  %v1743 = vshrl.u32 1326507024, %v1728
  %v1744 = vor.u32 %v1742, %v1743
  %vm1745 = vcmp.lt.s32.totalorder %v1726, 1
  %vm1746 = vcmp.lt.s32.totalorder %v1726, 2
  %vm1747 = vcmp.lt.s32.totalorder %v1726, 3
  %vm1748 = vcmp.lt.s32.totalorder %v1726, 4
  %v1749 = vsel %vm1745, %v1729, %v1732
  %v1750 = vsel %vm1748, %v1738, 2102212464
  %v1751 = vsel %vm1747, %v1735, %v1750
  %v1752 = vsel %vm1746, %v1749, %v1751
  %v1753 = vsel %vm1745, %v1732, %v1735
  %v1754 = vsel %vm1748, %v1741, 920167782
  %v1755 = vsel %vm1747, %v1738, %v1754
  %v1756 = vsel %vm1746, %v1753, %v1755
  %v1757 = vsel %vm1745, %v1735, %v1738
  %v1758 = vsel %vm1748, %v1744, 1326507024
  %v1759 = vsel %vm1747, %v1741, %v1758
  %v1760 = vsel %vm1746, %v1757, %v1759
  %v1761 = vshll.u32 %v1721, 8
  %v1762 = vmul.u32.u64.compose %v1761, %v1760
  %v1763 = vextract.low.u32 %v1762
  %v1764 = vextract.high.u32 %v1762
  %v1765 = vmul.u32.u64.compose %v1761, %v1756
  %v1766 = vextract.low.u32 %v1765
  %v1767 = vextract.high.u32 %v1765
  %v1768 = vmul.u32 %v1761, %v1752
  %v1769 = vadd.s32 %v1764, %v1766
  %vm1770 = vc.u32 %v1764, %v1766
  %v1771 = vadd.s32 %v1767, 1
  %v1772 = vsel %vm1770, %v1771, %v1767
  %v1773 = vadd.s32 %v1768, %v1772
  %v1774 = vadd.s32 %v1773, 536870912
  %v1775 = vshrl.u32 %v1774, 30
  %v1776 = vshll.u32 %v1775, 30
  %v1777 = vsub.s32 %v1773, %v1776
  %vm1778 = vcmp.lt.s32.totalorder %v1777, 0
  %v1779 = vsub.s32 0, %v1777
  %v1780 = vsel %vm1778, %v1779, %v1777
  %v1781 = vclz %v1780
  %v1782 = vsub.s32 %v1781, 2
  %vm1783 = vcmp.gt.s32.totalorder 0, %v1782
  %v1784 = vsel %vm1783, 0, %v1782
  %v1785 = vsub.s32 32, %v1784
  %v1786 = vshll.u32 %v1777, %v1784
  %v1787 = vshrl.u32 %v1769, %v1785
  %v1788 = vor.u32 %v1786, %v1787
  %v1789 = vsub.s32 4294967266, %v1784
  %v1790 = vadd.s32 %v1789, 127
  %v1791 = vshll.u32 %v1790, 23
  %v1792 = vor.u32 4788187, %v1791
  %v1793 = vand.u32 2147483647, %v1792
  %v1795 = vcvt.s32.f32 %v1788
  %v1796 = vmul.f32 %v1795, %v1793
  %v1797 = vxor.u32 %v1796, 2147483648
  %v1798 = vsel %vm1715, %v1797, %v1796
  %v1799 = vsub.s32 4, %v1775
  %v1800 = vsel %vm1715, %v1799, %v1775
  %v1801 = vsel %vm1714, %v236, %v1798
  %v1802 = vsel %vm1714, 0, %v1800
  %v1803 = vcosq.f32.pop %v1801
  %v1804 = vsinq.f32.pop %v1801
  %vm1805 = vweird.f32 %v236
  %v1806 = vadd.s32 %v1802, 3
  %v1807 = vand.u32 %v1806, 3
  %vm1808 = vcmp.lt.s32.totalorder %v1807, 2
  %vm1809 = vcmp.eq.s32.totalorder %v1807, 0
  %v1810 = vxor.u32 %v1804, 2147483648
  %v1811 = vsel %vm1809, %v1803, %v1810
  %vm1812 = vcmp.eq.s32.totalorder %v1807, 2
  %v1813 = vxor.u32 %v1803, 2147483648
  %v1814 = vsel %vm1812, %v1813, %v1804
  %v1815 = vsel %vm1808, %v1811, %v1814
  %v1816 = vsel %vm1805, nan, %v1815
  %v1817 = vand.u32 2147483647, %v237
  %vm1818 = vcmp.le.f32.partialorder %v1817, 0.7853982
  %vm1819 = vcmp.lt.s32.totalorder %v237, 0
  %v1820 = vand.u32 %v237, 2139095040
  %v1821 = vshrl.u32 %v1820, 23
  %v1822 = vsub.s32 %v1821, 127
  %v1823 = vand.u32 2147483647, %v237
  %v1824 = vand.u32 %v1823, 8388607
  %v1825 = vor.u32 %v1824, 8388608
  %v1826 = vsub.s32 0, %v1825
  %v1827 = vadd.s32 %v1822, 1
  %vm1828 = vcmp.gt.s32.totalorder %v1827, 0
  %v1829 = vsel %vm1828, %v1827, 0
  %v1830 = vshrl.u32 %v1829, 5
  %v1831 = vand.u32 %v1829, 31
  %v1832 = vsub.s32 32, %v1831
  %v1833 = vshrl.u32 683565275, %v1832
  %v1834 = vshll.u32 683565275, %v1831
  %v1835 = vshrl.u32 2475754826, %v1832
  %v1836 = vor.u32 %v1834, %v1835
  %v1837 = vshll.u32 2475754826, %v1831
  %v1838 = vshrl.u32 2131351028, %v1832
  %v1839 = vor.u32 %v1837, %v1838
  %v1840 = vshll.u32 2131351028, %v1831
  %v1841 = vshrl.u32 2102212464, %v1832
  %v1842 = vor.u32 %v1840, %v1841
  %v1843 = vshll.u32 2102212464, %v1831
  %v1844 = vshrl.u32 920167782, %v1832
  %v1845 = vor.u32 %v1843, %v1844
  %v1846 = vshll.u32 920167782, %v1831
  %v1847 = vshrl.u32 1326507024, %v1832
  %v1848 = vor.u32 %v1846, %v1847
  %vm1849 = vcmp.lt.s32.totalorder %v1830, 1
  %vm1850 = vcmp.lt.s32.totalorder %v1830, 2
  %vm1851 = vcmp.lt.s32.totalorder %v1830, 3
  %vm1852 = vcmp.lt.s32.totalorder %v1830, 4
  %v1853 = vsel %vm1849, %v1833, %v1836
  %v1854 = vsel %vm1852, %v1842, 2102212464
  %v1855 = vsel %vm1851, %v1839, %v1854
  %v1856 = vsel %vm1850, %v1853, %v1855
  %v1857 = vsel %vm1849, %v1836, %v1839
  %v1858 = vsel %vm1852, %v1845, 920167782
  %v1859 = vsel %vm1851, %v1842, %v1858
  %v1860 = vsel %vm1850, %v1857, %v1859
  %v1861 = vsel %vm1849, %v1839, %v1842
  %v1862 = vsel %vm1852, %v1848, 1326507024
  %v1863 = vsel %vm1851, %v1845, %v1862
  %v1864 = vsel %vm1850, %v1861, %v1863
  %v1865 = vshll.u32 %v1825, 8
  %v1866 = vmul.u32.u64.compose %v1865, %v1864
  %v1867 = vextract.low.u32 %v1866
  %v1868 = vextract.high.u32 %v1866
  %v1869 = vmul.u32.u64.compose %v1865, %v1860
  %v1870 = vextract.low.u32 %v1869
  %v1871 = vextract.high.u32 %v1869
  %v1872 = vmul.u32 %v1865, %v1856
  %v1873 = vadd.s32 %v1868, %v1870
  %vm1874 = vc.u32 %v1868, %v1870
  %v1875 = vadd.s32 %v1871, 1
  %v1876 = vsel %vm1874, %v1875, %v1871
  %v1877 = vadd.s32 %v1872, %v1876
  %v1878 = vadd.s32 %v1877, 536870912
  %v1879 = vshrl.u32 %v1878, 30
  %v1880 = vshll.u32 %v1879, 30
  %v1881 = vsub.s32 %v1877, %v1880
  %vm1882 = vcmp.lt.s32.totalorder %v1881, 0
  %v1883 = vsub.s32 0, %v1881
  %v1884 = vsel %vm1882, %v1883, %v1881
  %v1885 = vclz %v1884
  %v1886 = vsub.s32 %v1885, 2
  %vm1887 = vcmp.gt.s32.totalorder 0, %v1886
  %v1888 = vsel %vm1887, 0, %v1886
  %v1889 = vsub.s32 32, %v1888
  %v1890 = vshll.u32 %v1881, %v1888
  %v1891 = vshrl.u32 %v1873, %v1889
  %v1892 = vor.u32 %v1890, %v1891
  %v1893 = vsub.s32 4294967266, %v1888
  %v1894 = vadd.s32 %v1893, 127
  %v1895 = vshll.u32 %v1894, 23
  %v1896 = vor.u32 4788187, %v1895
  %v1897 = vand.u32 2147483647, %v1896
  %v1899 = vcvt.s32.f32 %v1892
  %v1900 = vmul.f32 %v1899, %v1897
  %v1901 = vxor.u32 %v1900, 2147483648
  %v1902 = vsel %vm1819, %v1901, %v1900
  %v1903 = vsub.s32 4, %v1879
  %v1904 = vsel %vm1819, %v1903, %v1879
  %v1905 = vsel %vm1818, %v237, %v1902
  %v1906 = vsel %vm1818, 0, %v1904
  %v1907 = vcosq.f32.pop %v1905
  %v1908 = vsinq.f32.pop %v1905
  %vm1909 = vweird.f32 %v237
  %v1910 = vadd.s32 %v1906, 3
  %v1911 = vand.u32 %v1910, 3
  %vm1912 = vcmp.lt.s32.totalorder %v1911, 2
  %vm1913 = vcmp.eq.s32.totalorder %v1911, 0
  %v1914 = vxor.u32 %v1908, 2147483648
  %v1915 = vsel %vm1913, %v1907, %v1914
  %vm1916 = vcmp.eq.s32.totalorder %v1911, 2
  %v1917 = vxor.u32 %v1907, 2147483648
  %v1918 = vsel %vm1916, %v1917, %v1908
  %v1919 = vsel %vm1912, %v1915, %v1918
  %v1920 = vsel %vm1909, nan, %v1919
  %v1921 = vand.u32 2147483647, %v238
  %vm1922 = vcmp.le.f32.partialorder %v1921, 0.7853982
  %vm1923 = vcmp.lt.s32.totalorder %v238, 0
  %v1924 = vand.u32 %v238, 2139095040
  %v1925 = vshrl.u32 %v1924, 23
  %v1926 = vsub.s32 %v1925, 127
  %v1927 = vand.u32 2147483647, %v238
  %v1928 = vand.u32 %v1927, 8388607
  %v1929 = vor.u32 %v1928, 8388608
  %v1930 = vsub.s32 0, %v1929
  %v1931 = vadd.s32 %v1926, 1
  %vm1932 = vcmp.gt.s32.totalorder %v1931, 0
  %v1933 = vsel %vm1932, %v1931, 0
  %v1934 = vshrl.u32 %v1933, 5
  %v1935 = vand.u32 %v1933, 31
  %v1936 = vsub.s32 32, %v1935
  %v1937 = vshrl.u32 683565275, %v1936
  %v1938 = vshll.u32 683565275, %v1935
  %v1939 = vshrl.u32 2475754826, %v1936
  %v1940 = vor.u32 %v1938, %v1939
  %v1941 = vshll.u32 2475754826, %v1935
  %v1942 = vshrl.u32 2131351028, %v1936
  %v1943 = vor.u32 %v1941, %v1942
  %v1944 = vshll.u32 2131351028, %v1935
  %v1945 = vshrl.u32 2102212464, %v1936
  %v1946 = vor.u32 %v1944, %v1945
  %v1947 = vshll.u32 2102212464, %v1935
  %v1948 = vshrl.u32 920167782, %v1936
  %v1949 = vor.u32 %v1947, %v1948
  %v1950 = vshll.u32 920167782, %v1935
  %v1951 = vshrl.u32 1326507024, %v1936
  %v1952 = vor.u32 %v1950, %v1951
  %vm1953 = vcmp.lt.s32.totalorder %v1934, 1
  %vm1954 = vcmp.lt.s32.totalorder %v1934, 2
  %vm1955 = vcmp.lt.s32.totalorder %v1934, 3
  %vm1956 = vcmp.lt.s32.totalorder %v1934, 4
  %v1957 = vsel %vm1953, %v1937, %v1940
  %v1958 = vsel %vm1956, %v1946, 2102212464
  %v1959 = vsel %vm1955, %v1943, %v1958
  %v1960 = vsel %vm1954, %v1957, %v1959
  %v1961 = vsel %vm1953, %v1940, %v1943
  %v1962 = vsel %vm1956, %v1949, 920167782
  %v1963 = vsel %vm1955, %v1946, %v1962
  %v1964 = vsel %vm1954, %v1961, %v1963
  %v1965 = vsel %vm1953, %v1943, %v1946
  %v1966 = vsel %vm1956, %v1952, 1326507024
  %v1967 = vsel %vm1955, %v1949, %v1966
  %v1968 = vsel %vm1954, %v1965, %v1967
  %v1969 = vshll.u32 %v1929, 8
  %v1970 = vmul.u32.u64.compose %v1969, %v1968
  %v1971 = vextract.low.u32 %v1970
  %v1972 = vextract.high.u32 %v1970
  %v1973 = vmul.u32.u64.compose %v1969, %v1964
  %v1974 = vextract.low.u32 %v1973
  %v1975 = vextract.high.u32 %v1973
  %v1976 = vmul.u32 %v1969, %v1960
  %v1977 = vadd.s32 %v1972, %v1974
  %vm1978 = vc.u32 %v1972, %v1974
  %v1979 = vadd.s32 %v1975, 1
  %v1980 = vsel %vm1978, %v1979, %v1975
  %v1981 = vadd.s32 %v1976, %v1980
  %v1982 = vadd.s32 %v1981, 536870912
  %v1983 = vshrl.u32 %v1982, 30
  %v1984 = vshll.u32 %v1983, 30
  %v1985 = vsub.s32 %v1981, %v1984
  %vm1986 = vcmp.lt.s32.totalorder %v1985, 0
  %v1987 = vsub.s32 0, %v1985
  %v1988 = vsel %vm1986, %v1987, %v1985
  %v1989 = vclz %v1988
  %v1990 = vsub.s32 %v1989, 2
  %vm1991 = vcmp.gt.s32.totalorder 0, %v1990
  %v1992 = vsel %vm1991, 0, %v1990
  %v1993 = vsub.s32 32, %v1992
  %v1994 = vshll.u32 %v1985, %v1992
  %v1995 = vshrl.u32 %v1977, %v1993
  %v1996 = vor.u32 %v1994, %v1995
  %v1997 = vsub.s32 4294967266, %v1992
  %v1998 = vadd.s32 %v1997, 127
  %v1999 = vshll.u32 %v1998, 23
  %v2000 = vor.u32 4788187, %v1999
  %v2001 = vand.u32 2147483647, %v2000
  %v2003 = vcvt.s32.f32 %v1996
  %v2004 = vmul.f32 %v2003, %v2001
  %v2005 = vxor.u32 %v2004, 2147483648
  %v2006 = vsel %vm1923, %v2005, %v2004
  %v2007 = vsub.s32 4, %v1983
  %v2008 = vsel %vm1923, %v2007, %v1983
  %v2009 = vsel %vm1922, %v238, %v2006
  %v2010 = vsel %vm1922, 0, %v2008
  %v2011 = vcosq.f32.pop %v2009
  %v2012 = vsinq.f32.pop %v2009
  %vm2013 = vweird.f32 %v238
  %v2014 = vadd.s32 %v2010, 3
  %v2015 = vand.u32 %v2014, 3
  %vm2016 = vcmp.lt.s32.totalorder %v2015, 2
  %vm2017 = vcmp.eq.s32.totalorder %v2015, 0
  %v2018 = vxor.u32 %v2012, 2147483648
  %v2019 = vsel %vm2017, %v2011, %v2018
  %vm2020 = vcmp.eq.s32.totalorder %v2015, 2
  %v2021 = vxor.u32 %v2011, 2147483648
  %v2022 = vsel %vm2020, %v2021, %v2012
  %v2023 = vsel %vm2016, %v2019, %v2022
  %v2024 = vsel %vm2013, nan, %v2023
  %v2025 = vand.u32 2147483647, %v239
  %vm2026 = vcmp.le.f32.partialorder %v2025, 0.7853982
  %vm2027 = vcmp.lt.s32.totalorder %v239, 0
  %v2028 = vand.u32 %v239, 2139095040
  %v2029 = vshrl.u32 %v2028, 23
  %v2030 = vsub.s32 %v2029, 127
  %v2031 = vand.u32 2147483647, %v239
  %v2032 = vand.u32 %v2031, 8388607
  %v2033 = vor.u32 %v2032, 8388608
  %v2034 = vsub.s32 0, %v2033
  %v2035 = vadd.s32 %v2030, 1
  %vm2036 = vcmp.gt.s32.totalorder %v2035, 0
  %v2037 = vsel %vm2036, %v2035, 0
  %v2038 = vshrl.u32 %v2037, 5
  %v2039 = vand.u32 %v2037, 31
  %v2040 = vsub.s32 32, %v2039
  %v2041 = vshrl.u32 683565275, %v2040
  %v2042 = vshll.u32 683565275, %v2039
  %v2043 = vshrl.u32 2475754826, %v2040
  %v2044 = vor.u32 %v2042, %v2043
  %v2045 = vshll.u32 2475754826, %v2039
  %v2046 = vshrl.u32 2131351028, %v2040
  %v2047 = vor.u32 %v2045, %v2046
  %v2048 = vshll.u32 2131351028, %v2039
  %v2049 = vshrl.u32 2102212464, %v2040
  %v2050 = vor.u32 %v2048, %v2049
  %v2051 = vshll.u32 2102212464, %v2039
  %v2052 = vshrl.u32 920167782, %v2040
  %v2053 = vor.u32 %v2051, %v2052
  %v2054 = vshll.u32 920167782, %v2039
  %v2055 = vshrl.u32 1326507024, %v2040
  %v2056 = vor.u32 %v2054, %v2055
  %vm2057 = vcmp.lt.s32.totalorder %v2038, 1
  %vm2058 = vcmp.lt.s32.totalorder %v2038, 2
  %vm2059 = vcmp.lt.s32.totalorder %v2038, 3
  %vm2060 = vcmp.lt.s32.totalorder %v2038, 4
  %v2061 = vsel %vm2057, %v2041, %v2044
  %v2062 = vsel %vm2060, %v2050, 2102212464
  %v2063 = vsel %vm2059, %v2047, %v2062
  %v2064 = vsel %vm2058, %v2061, %v2063
  %v2065 = vsel %vm2057, %v2044, %v2047
  %v2066 = vsel %vm2060, %v2053, 920167782
  %v2067 = vsel %vm2059, %v2050, %v2066
  %v2068 = vsel %vm2058, %v2065, %v2067
  %v2069 = vsel %vm2057, %v2047, %v2050
  %v2070 = vsel %vm2060, %v2056, 1326507024
  %v2071 = vsel %vm2059, %v2053, %v2070
  %v2072 = vsel %vm2058, %v2069, %v2071
  %v2073 = vshll.u32 %v2033, 8
  %v2074 = vmul.u32.u64.compose %v2073, %v2072
  %v2075 = vextract.low.u32 %v2074
  %v2076 = vextract.high.u32 %v2074
  %v2077 = vmul.u32.u64.compose %v2073, %v2068
  %v2078 = vextract.low.u32 %v2077
  %v2079 = vextract.high.u32 %v2077
  %v2080 = vmul.u32 %v2073, %v2064
  %v2081 = vadd.s32 %v2076, %v2078
  %vm2082 = vc.u32 %v2076, %v2078
  %v2083 = vadd.s32 %v2079, 1
  %v2084 = vsel %vm2082, %v2083, %v2079
  %v2085 = vadd.s32 %v2080, %v2084
  %v2086 = vadd.s32 %v2085, 536870912
  %v2087 = vshrl.u32 %v2086, 30
  %v2088 = vshll.u32 %v2087, 30
  %v2089 = vsub.s32 %v2085, %v2088
  %vm2090 = vcmp.lt.s32.totalorder %v2089, 0
  %v2091 = vsub.s32 0, %v2089
  %v2092 = vsel %vm2090, %v2091, %v2089
  %v2093 = vclz %v2092
  %v2094 = vsub.s32 %v2093, 2
  %vm2095 = vcmp.gt.s32.totalorder 0, %v2094
  %v2096 = vsel %vm2095, 0, %v2094
  %v2097 = vsub.s32 32, %v2096
  %v2098 = vshll.u32 %v2089, %v2096
  %v2099 = vshrl.u32 %v2081, %v2097
  %v2100 = vor.u32 %v2098, %v2099
  %v2101 = vsub.s32 4294967266, %v2096
  %v2102 = vadd.s32 %v2101, 127
  %v2103 = vshll.u32 %v2102, 23
  %v2104 = vor.u32 4788187, %v2103
  %v2105 = vand.u32 2147483647, %v2104
  %v2107 = vcvt.s32.f32 %v2100
  %v2108 = vmul.f32 %v2107, %v2105
  %v2109 = vxor.u32 %v2108, 2147483648
  %v2110 = vsel %vm2027, %v2109, %v2108
  %v2111 = vsub.s32 4, %v2087
  %v2112 = vsel %vm2027, %v2111, %v2087
  %v2113 = vsel %vm2026, %v239, %v2110
  %v2114 = vsel %vm2026, 0, %v2112
  %v2115 = vcosq.f32.pop %v2113
  %v2116 = vsinq.f32.pop %v2113
  %vm2117 = vweird.f32 %v239
  %v2118 = vadd.s32 %v2114, 3
  %v2119 = vand.u32 %v2118, 3
  %vm2120 = vcmp.lt.s32.totalorder %v2119, 2
  %vm2121 = vcmp.eq.s32.totalorder %v2119, 0
  %v2122 = vxor.u32 %v2116, 2147483648
  %v2123 = vsel %vm2121, %v2115, %v2122
  %vm2124 = vcmp.eq.s32.totalorder %v2119, 2
  %v2125 = vxor.u32 %v2115, 2147483648
  %v2126 = vsel %vm2124, %v2125, %v2116
  %v2127 = vsel %vm2120, %v2123, %v2126
  %v2128 = vsel %vm2117, nan, %v2127
  %v2129 = vand.u32 2147483647, %v240
  %vm2130 = vcmp.le.f32.partialorder %v2129, 0.7853982
  %vm2131 = vcmp.lt.s32.totalorder %v240, 0
  %v2132 = vand.u32 %v240, 2139095040
  %v2133 = vshrl.u32 %v2132, 23
  %v2134 = vsub.s32 %v2133, 127
  %v2135 = vand.u32 2147483647, %v240
  %v2136 = vand.u32 %v2135, 8388607
  %v2137 = vor.u32 %v2136, 8388608
  %v2138 = vsub.s32 0, %v2137
  %v2139 = vadd.s32 %v2134, 1
  %vm2140 = vcmp.gt.s32.totalorder %v2139, 0
  %v2141 = vsel %vm2140, %v2139, 0
  %v2142 = vshrl.u32 %v2141, 5
  %v2143 = vand.u32 %v2141, 31
  %v2144 = vsub.s32 32, %v2143
  %v2145 = vshrl.u32 683565275, %v2144
  %v2146 = vshll.u32 683565275, %v2143
  %v2147 = vshrl.u32 2475754826, %v2144
  %v2148 = vor.u32 %v2146, %v2147
  %v2149 = vshll.u32 2475754826, %v2143
  %v2150 = vshrl.u32 2131351028, %v2144
  %v2151 = vor.u32 %v2149, %v2150
  %v2152 = vshll.u32 2131351028, %v2143
  %v2153 = vshrl.u32 2102212464, %v2144
  %v2154 = vor.u32 %v2152, %v2153
  %v2155 = vshll.u32 2102212464, %v2143
  %v2156 = vshrl.u32 920167782, %v2144
  %v2157 = vor.u32 %v2155, %v2156
  %v2158 = vshll.u32 920167782, %v2143
  %v2159 = vshrl.u32 1326507024, %v2144
  %v2160 = vor.u32 %v2158, %v2159
  %vm2161 = vcmp.lt.s32.totalorder %v2142, 1
  %vm2162 = vcmp.lt.s32.totalorder %v2142, 2
  %vm2163 = vcmp.lt.s32.totalorder %v2142, 3
  %vm2164 = vcmp.lt.s32.totalorder %v2142, 4
  %v2165 = vsel %vm2161, %v2145, %v2148
  %v2166 = vsel %vm2164, %v2154, 2102212464
  %v2167 = vsel %vm2163, %v2151, %v2166
  %v2168 = vsel %vm2162, %v2165, %v2167
  %v2169 = vsel %vm2161, %v2148, %v2151
  %v2170 = vsel %vm2164, %v2157, 920167782
  %v2171 = vsel %vm2163, %v2154, %v2170
  %v2172 = vsel %vm2162, %v2169, %v2171
  %v2173 = vsel %vm2161, %v2151, %v2154
  %v2174 = vsel %vm2164, %v2160, 1326507024
  %v2175 = vsel %vm2163, %v2157, %v2174
  %v2176 = vsel %vm2162, %v2173, %v2175
  %v2177 = vshll.u32 %v2137, 8
  %v2178 = vmul.u32.u64.compose %v2177, %v2176
  %v2179 = vextract.low.u32 %v2178
  %v2180 = vextract.high.u32 %v2178
  %v2181 = vmul.u32.u64.compose %v2177, %v2172
  %v2182 = vextract.low.u32 %v2181
  %v2183 = vextract.high.u32 %v2181
  %v2184 = vmul.u32 %v2177, %v2168
  %v2185 = vadd.s32 %v2180, %v2182
  %vm2186 = vc.u32 %v2180, %v2182
  %v2187 = vadd.s32 %v2183, 1
  %v2188 = vsel %vm2186, %v2187, %v2183
  %v2189 = vadd.s32 %v2184, %v2188
  %v2190 = vadd.s32 %v2189, 536870912
  %v2191 = vshrl.u32 %v2190, 30
  %v2192 = vshll.u32 %v2191, 30
  %v2193 = vsub.s32 %v2189, %v2192
  %vm2194 = vcmp.lt.s32.totalorder %v2193, 0
  %v2195 = vsub.s32 0, %v2193
  %v2196 = vsel %vm2194, %v2195, %v2193
  %v2197 = vclz %v2196
  %v2198 = vsub.s32 %v2197, 2
  %vm2199 = vcmp.gt.s32.totalorder 0, %v2198
  %v2200 = vsel %vm2199, 0, %v2198
  %v2201 = vsub.s32 32, %v2200
  %v2202 = vshll.u32 %v2193, %v2200
  %v2203 = vshrl.u32 %v2185, %v2201
  %v2204 = vor.u32 %v2202, %v2203
  %v2205 = vsub.s32 4294967266, %v2200
  %v2206 = vadd.s32 %v2205, 127
  %v2207 = vshll.u32 %v2206, 23
  %v2208 = vor.u32 4788187, %v2207
  %v2209 = vand.u32 2147483647, %v2208
  %v2211 = vcvt.s32.f32 %v2204
  %v2212 = vmul.f32 %v2211, %v2209
  %v2213 = vxor.u32 %v2212, 2147483648
  %v2214 = vsel %vm2131, %v2213, %v2212
  %v2215 = vsub.s32 4, %v2191
  %v2216 = vsel %vm2131, %v2215, %v2191
  %v2217 = vsel %vm2130, %v240, %v2214
  %v2218 = vsel %vm2130, 0, %v2216
  %v2219 = vcosq.f32.pop %v2217
  %v2220 = vsinq.f32.pop %v2217
  %vm2221 = vweird.f32 %v240
  %v2222 = vadd.s32 %v2218, 3
  %v2223 = vand.u32 %v2222, 3
  %vm2224 = vcmp.lt.s32.totalorder %v2223, 2
  %vm2225 = vcmp.eq.s32.totalorder %v2223, 0
  %v2226 = vxor.u32 %v2220, 2147483648
  %v2227 = vsel %vm2225, %v2219, %v2226
  %vm2228 = vcmp.eq.s32.totalorder %v2223, 2
  %v2229 = vxor.u32 %v2219, 2147483648
  %v2230 = vsel %vm2228, %v2229, %v2220
  %v2231 = vsel %vm2224, %v2227, %v2230
  %v2232 = vsel %vm2221, nan, %v2231
  %v2233 = vand.u32 2147483647, %v241
  %vm2234 = vcmp.le.f32.partialorder %v2233, 0.7853982
  %vm2235 = vcmp.lt.s32.totalorder %v241, 0
  %v2236 = vand.u32 %v241, 2139095040
  %v2237 = vshrl.u32 %v2236, 23
  %v2238 = vsub.s32 %v2237, 127
  %v2239 = vand.u32 2147483647, %v241
  %v2240 = vand.u32 %v2239, 8388607
  %v2241 = vor.u32 %v2240, 8388608
  %v2242 = vsub.s32 0, %v2241
  %v2243 = vadd.s32 %v2238, 1
  %vm2244 = vcmp.gt.s32.totalorder %v2243, 0
  %v2245 = vsel %vm2244, %v2243, 0
  %v2246 = vshrl.u32 %v2245, 5
  %v2247 = vand.u32 %v2245, 31
  %v2248 = vsub.s32 32, %v2247
  %v2249 = vshrl.u32 683565275, %v2248
  %v2250 = vshll.u32 683565275, %v2247
  %v2251 = vshrl.u32 2475754826, %v2248
  %v2252 = vor.u32 %v2250, %v2251
  %v2253 = vshll.u32 2475754826, %v2247
  %v2254 = vshrl.u32 2131351028, %v2248
  %v2255 = vor.u32 %v2253, %v2254
  %v2256 = vshll.u32 2131351028, %v2247
  %v2257 = vshrl.u32 2102212464, %v2248
  %v2258 = vor.u32 %v2256, %v2257
  %v2259 = vshll.u32 2102212464, %v2247
  %v2260 = vshrl.u32 920167782, %v2248
  %v2261 = vor.u32 %v2259, %v2260
  %v2262 = vshll.u32 920167782, %v2247
  %v2263 = vshrl.u32 1326507024, %v2248
  %v2264 = vor.u32 %v2262, %v2263
  %vm2265 = vcmp.lt.s32.totalorder %v2246, 1
  %vm2266 = vcmp.lt.s32.totalorder %v2246, 2
  %vm2267 = vcmp.lt.s32.totalorder %v2246, 3
  %vm2268 = vcmp.lt.s32.totalorder %v2246, 4
  %v2269 = vsel %vm2265, %v2249, %v2252
  %v2270 = vsel %vm2268, %v2258, 2102212464
  %v2271 = vsel %vm2267, %v2255, %v2270
  %v2272 = vsel %vm2266, %v2269, %v2271
  %v2273 = vsel %vm2265, %v2252, %v2255
  %v2274 = vsel %vm2268, %v2261, 920167782
  %v2275 = vsel %vm2267, %v2258, %v2274
  %v2276 = vsel %vm2266, %v2273, %v2275
  %v2277 = vsel %vm2265, %v2255, %v2258
  %v2278 = vsel %vm2268, %v2264, 1326507024
  %v2279 = vsel %vm2267, %v2261, %v2278
  %v2280 = vsel %vm2266, %v2277, %v2279
  %v2281 = vshll.u32 %v2241, 8
  %v2282 = vmul.u32.u64.compose %v2281, %v2280
  %v2283 = vextract.low.u32 %v2282
  %v2284 = vextract.high.u32 %v2282
  %v2285 = vmul.u32.u64.compose %v2281, %v2276
  %v2286 = vextract.low.u32 %v2285
  %v2287 = vextract.high.u32 %v2285
  %v2288 = vmul.u32 %v2281, %v2272
  %v2289 = vadd.s32 %v2284, %v2286
  %vm2290 = vc.u32 %v2284, %v2286
  %v2291 = vadd.s32 %v2287, 1
  %v2292 = vsel %vm2290, %v2291, %v2287
  %v2293 = vadd.s32 %v2288, %v2292
  %v2294 = vadd.s32 %v2293, 536870912
  %v2295 = vshrl.u32 %v2294, 30
  %v2296 = vshll.u32 %v2295, 30
  %v2297 = vsub.s32 %v2293, %v2296
  %vm2298 = vcmp.lt.s32.totalorder %v2297, 0
  %v2299 = vsub.s32 0, %v2297
  %v2300 = vsel %vm2298, %v2299, %v2297
  %v2301 = vclz %v2300
  %v2302 = vsub.s32 %v2301, 2
  %vm2303 = vcmp.gt.s32.totalorder 0, %v2302
  %v2304 = vsel %vm2303, 0, %v2302
  %v2305 = vsub.s32 32, %v2304
  %v2306 = vshll.u32 %v2297, %v2304
  %v2307 = vshrl.u32 %v2289, %v2305
  %v2308 = vor.u32 %v2306, %v2307
  %v2309 = vsub.s32 4294967266, %v2304
  %v2310 = vadd.s32 %v2309, 127
  %v2311 = vshll.u32 %v2310, 23
  %v2312 = vor.u32 4788187, %v2311
  %v2313 = vand.u32 2147483647, %v2312
  %v2315 = vcvt.s32.f32 %v2308
  %v2316 = vmul.f32 %v2315, %v2313
  %v2317 = vxor.u32 %v2316, 2147483648
  %v2318 = vsel %vm2235, %v2317, %v2316
  %v2319 = vsub.s32 4, %v2295
  %v2320 = vsel %vm2235, %v2319, %v2295
  %v2321 = vsel %vm2234, %v241, %v2318
  %v2322 = vsel %vm2234, 0, %v2320
  %v2323 = vcosq.f32.pop %v2321
  %v2324 = vsinq.f32.pop %v2321
  %vm2325 = vweird.f32 %v241
  %v2326 = vadd.s32 %v2322, 3
  %v2327 = vand.u32 %v2326, 3
  %vm2328 = vcmp.lt.s32.totalorder %v2327, 2
  %vm2329 = vcmp.eq.s32.totalorder %v2327, 0
  %v2330 = vxor.u32 %v2324, 2147483648
  %v2331 = vsel %vm2329, %v2323, %v2330
  %vm2332 = vcmp.eq.s32.totalorder %v2327, 2
  %v2333 = vxor.u32 %v2323, 2147483648
  %v2334 = vsel %vm2332, %v2333, %v2324
  %v2335 = vsel %vm2328, %v2331, %v2334
  %v2336 = vsel %vm2325, nan, %v2335
  %v2337 = vand.u32 2147483647, %v242
  %vm2338 = vcmp.le.f32.partialorder %v2337, 0.7853982
  %vm2339 = vcmp.lt.s32.totalorder %v242, 0
  %v2340 = vand.u32 %v242, 2139095040
  %v2341 = vshrl.u32 %v2340, 23
  %v2342 = vsub.s32 %v2341, 127
  %v2343 = vand.u32 2147483647, %v242
  %v2344 = vand.u32 %v2343, 8388607
  %v2345 = vor.u32 %v2344, 8388608
  %v2346 = vsub.s32 0, %v2345
  %v2347 = vadd.s32 %v2342, 1
  %vm2348 = vcmp.gt.s32.totalorder %v2347, 0
  %v2349 = vsel %vm2348, %v2347, 0
  %v2350 = vshrl.u32 %v2349, 5
  %v2351 = vand.u32 %v2349, 31
  %v2352 = vsub.s32 32, %v2351
  %v2353 = vshrl.u32 683565275, %v2352
  %v2354 = vshll.u32 683565275, %v2351
  %v2355 = vshrl.u32 2475754826, %v2352
  %v2356 = vor.u32 %v2354, %v2355
  %v2357 = vshll.u32 2475754826, %v2351
  %v2358 = vshrl.u32 2131351028, %v2352
  %v2359 = vor.u32 %v2357, %v2358
  %v2360 = vshll.u32 2131351028, %v2351
  %v2361 = vshrl.u32 2102212464, %v2352
  %v2362 = vor.u32 %v2360, %v2361
  %v2363 = vshll.u32 2102212464, %v2351
  %v2364 = vshrl.u32 920167782, %v2352
  %v2365 = vor.u32 %v2363, %v2364
  %v2366 = vshll.u32 920167782, %v2351
  %v2367 = vshrl.u32 1326507024, %v2352
  %v2368 = vor.u32 %v2366, %v2367
  %vm2369 = vcmp.lt.s32.totalorder %v2350, 1
  %vm2370 = vcmp.lt.s32.totalorder %v2350, 2
  %vm2371 = vcmp.lt.s32.totalorder %v2350, 3
  %vm2372 = vcmp.lt.s32.totalorder %v2350, 4
  %v2373 = vsel %vm2369, %v2353, %v2356
  %v2374 = vsel %vm2372, %v2362, 2102212464
  %v2375 = vsel %vm2371, %v2359, %v2374
  %v2376 = vsel %vm2370, %v2373, %v2375
  %v2377 = vsel %vm2369, %v2356, %v2359
  %v2378 = vsel %vm2372, %v2365, 920167782
  %v2379 = vsel %vm2371, %v2362, %v2378
  %v2380 = vsel %vm2370, %v2377, %v2379
  %v2381 = vsel %vm2369, %v2359, %v2362
  %v2382 = vsel %vm2372, %v2368, 1326507024
  %v2383 = vsel %vm2371, %v2365, %v2382
  %v2384 = vsel %vm2370, %v2381, %v2383
  %v2385 = vshll.u32 %v2345, 8
  %v2386 = vmul.u32.u64.compose %v2385, %v2384
  %v2387 = vextract.low.u32 %v2386
  %v2388 = vextract.high.u32 %v2386
  %v2389 = vmul.u32.u64.compose %v2385, %v2380
  %v2390 = vextract.low.u32 %v2389
  %v2391 = vextract.high.u32 %v2389
  %v2392 = vmul.u32 %v2385, %v2376
  %v2393 = vadd.s32 %v2388, %v2390
  %vm2394 = vc.u32 %v2388, %v2390
  %v2395 = vadd.s32 %v2391, 1
  %v2396 = vsel %vm2394, %v2395, %v2391
  %v2397 = vadd.s32 %v2392, %v2396
  %v2398 = vadd.s32 %v2397, 536870912
  %v2399 = vshrl.u32 %v2398, 30
  %v2400 = vshll.u32 %v2399, 30
  %v2401 = vsub.s32 %v2397, %v2400
  %vm2402 = vcmp.lt.s32.totalorder %v2401, 0
  %v2403 = vsub.s32 0, %v2401
  %v2404 = vsel %vm2402, %v2403, %v2401
  %v2405 = vclz %v2404
  %v2406 = vsub.s32 %v2405, 2
  %vm2407 = vcmp.gt.s32.totalorder 0, %v2406
  %v2408 = vsel %vm2407, 0, %v2406
  %v2409 = vsub.s32 32, %v2408
  %v2410 = vshll.u32 %v2401, %v2408
  %v2411 = vshrl.u32 %v2393, %v2409
  %v2412 = vor.u32 %v2410, %v2411
  %v2413 = vsub.s32 4294967266, %v2408
  %v2414 = vadd.s32 %v2413, 127
  %v2415 = vshll.u32 %v2414, 23
  %v2416 = vor.u32 4788187, %v2415
  %v2417 = vand.u32 2147483647, %v2416
  %v2419 = vcvt.s32.f32 %v2412
  %v2420 = vmul.f32 %v2419, %v2417
  %v2421 = vxor.u32 %v2420, 2147483648
  %v2422 = vsel %vm2339, %v2421, %v2420
  %v2423 = vsub.s32 4, %v2399
  %v2424 = vsel %vm2339, %v2423, %v2399
  %v2425 = vsel %vm2338, %v242, %v2422
  %v2426 = vsel %vm2338, 0, %v2424
  %v2427 = vcosq.f32.pop %v2425
  %v2428 = vsinq.f32.pop %v2425
  %vm2429 = vweird.f32 %v242
  %v2430 = vadd.s32 %v2426, 3
  %v2431 = vand.u32 %v2430, 3
  %vm2432 = vcmp.lt.s32.totalorder %v2431, 2
  %vm2433 = vcmp.eq.s32.totalorder %v2431, 0
  %v2434 = vxor.u32 %v2428, 2147483648
  %v2435 = vsel %vm2433, %v2427, %v2434
  %vm2436 = vcmp.eq.s32.totalorder %v2431, 2
  %v2437 = vxor.u32 %v2427, 2147483648
  %v2438 = vsel %vm2436, %v2437, %v2428
  %v2439 = vsel %vm2432, %v2435, %v2438
  %v2440 = vsel %vm2429, nan, %v2439
  %v2441 = vand.u32 2147483647, %v243
  %vm2442 = vcmp.le.f32.partialorder %v2441, 0.7853982
  %vm2443 = vcmp.lt.s32.totalorder %v243, 0
  %v2444 = vand.u32 %v243, 2139095040
  %v2445 = vshrl.u32 %v2444, 23
  %v2446 = vsub.s32 %v2445, 127
  %v2447 = vand.u32 2147483647, %v243
  %v2448 = vand.u32 %v2447, 8388607
  %v2449 = vor.u32 %v2448, 8388608
  %v2450 = vsub.s32 0, %v2449
  %v2451 = vadd.s32 %v2446, 1
  %vm2452 = vcmp.gt.s32.totalorder %v2451, 0
  %v2453 = vsel %vm2452, %v2451, 0
  %v2454 = vshrl.u32 %v2453, 5
  %v2455 = vand.u32 %v2453, 31
  %v2456 = vsub.s32 32, %v2455
  %v2457 = vshrl.u32 683565275, %v2456
  %v2458 = vshll.u32 683565275, %v2455
  %v2459 = vshrl.u32 2475754826, %v2456
  %v2460 = vor.u32 %v2458, %v2459
  %v2461 = vshll.u32 2475754826, %v2455
  %v2462 = vshrl.u32 2131351028, %v2456
  %v2463 = vor.u32 %v2461, %v2462
  %v2464 = vshll.u32 2131351028, %v2455
  %v2465 = vshrl.u32 2102212464, %v2456
  %v2466 = vor.u32 %v2464, %v2465
  %v2467 = vshll.u32 2102212464, %v2455
  %v2468 = vshrl.u32 920167782, %v2456
  %v2469 = vor.u32 %v2467, %v2468
  %v2470 = vshll.u32 920167782, %v2455
  %v2471 = vshrl.u32 1326507024, %v2456
  %v2472 = vor.u32 %v2470, %v2471
  %vm2473 = vcmp.lt.s32.totalorder %v2454, 1
  %vm2474 = vcmp.lt.s32.totalorder %v2454, 2
  %vm2475 = vcmp.lt.s32.totalorder %v2454, 3
  %vm2476 = vcmp.lt.s32.totalorder %v2454, 4
  %v2477 = vsel %vm2473, %v2457, %v2460
  %v2478 = vsel %vm2476, %v2466, 2102212464
  %v2479 = vsel %vm2475, %v2463, %v2478
  %v2480 = vsel %vm2474, %v2477, %v2479
  %v2481 = vsel %vm2473, %v2460, %v2463
  %v2482 = vsel %vm2476, %v2469, 920167782
  %v2483 = vsel %vm2475, %v2466, %v2482
  %v2484 = vsel %vm2474, %v2481, %v2483
  %v2485 = vsel %vm2473, %v2463, %v2466
  %v2486 = vsel %vm2476, %v2472, 1326507024
  %v2487 = vsel %vm2475, %v2469, %v2486
  %v2488 = vsel %vm2474, %v2485, %v2487
  %v2489 = vshll.u32 %v2449, 8
  %v2490 = vmul.u32.u64.compose %v2489, %v2488
  %v2491 = vextract.low.u32 %v2490
  %v2492 = vextract.high.u32 %v2490
  %v2493 = vmul.u32.u64.compose %v2489, %v2484
  %v2494 = vextract.low.u32 %v2493
  %v2495 = vextract.high.u32 %v2493
  %v2496 = vmul.u32 %v2489, %v2480
  %v2497 = vadd.s32 %v2492, %v2494
  %vm2498 = vc.u32 %v2492, %v2494
  %v2499 = vadd.s32 %v2495, 1
  %v2500 = vsel %vm2498, %v2499, %v2495
  %v2501 = vadd.s32 %v2496, %v2500
  %v2502 = vadd.s32 %v2501, 536870912
  %v2503 = vshrl.u32 %v2502, 30
  %v2504 = vshll.u32 %v2503, 30
  %v2505 = vsub.s32 %v2501, %v2504
  %vm2506 = vcmp.lt.s32.totalorder %v2505, 0
  %v2507 = vsub.s32 0, %v2505
  %v2508 = vsel %vm2506, %v2507, %v2505
  %v2509 = vclz %v2508
  %v2510 = vsub.s32 %v2509, 2
  %vm2511 = vcmp.gt.s32.totalorder 0, %v2510
  %v2512 = vsel %vm2511, 0, %v2510
  %v2513 = vsub.s32 32, %v2512
  %v2514 = vshll.u32 %v2505, %v2512
  %v2515 = vshrl.u32 %v2497, %v2513
  %v2516 = vor.u32 %v2514, %v2515
  %v2517 = vsub.s32 4294967266, %v2512
  %v2518 = vadd.s32 %v2517, 127
  %v2519 = vshll.u32 %v2518, 23
  %v2520 = vor.u32 4788187, %v2519
  %v2521 = vand.u32 2147483647, %v2520
  %v2523 = vcvt.s32.f32 %v2516
  %v2524 = vmul.f32 %v2523, %v2521
  %v2525 = vxor.u32 %v2524, 2147483648
  %v2526 = vsel %vm2443, %v2525, %v2524
  %v2527 = vsub.s32 4, %v2503
  %v2528 = vsel %vm2443, %v2527, %v2503
  %v2529 = vsel %vm2442, %v243, %v2526
  %v2530 = vsel %vm2442, 0, %v2528
  %v2531 = vcosq.f32.pop %v2529
  %v2532 = vsinq.f32.pop %v2529
  %vm2533 = vweird.f32 %v243
  %v2534 = vadd.s32 %v2530, 3
  %v2535 = vand.u32 %v2534, 3
  %vm2536 = vcmp.lt.s32.totalorder %v2535, 2
  %vm2537 = vcmp.eq.s32.totalorder %v2535, 0
  %v2538 = vxor.u32 %v2532, 2147483648
  %v2539 = vsel %vm2537, %v2531, %v2538
  %vm2540 = vcmp.eq.s32.totalorder %v2535, 2
  %v2541 = vxor.u32 %v2531, 2147483648
  %v2542 = vsel %vm2540, %v2541, %v2532
  %v2543 = vsel %vm2536, %v2539, %v2542
  %v2544 = vsel %vm2533, nan, %v2543
  %v2545 = vand.u32 2147483647, %v244
  %vm2546 = vcmp.le.f32.partialorder %v2545, 0.7853982
  %vm2547 = vcmp.lt.s32.totalorder %v244, 0
  %v2548 = vand.u32 %v244, 2139095040
  %v2549 = vshrl.u32 %v2548, 23
  %v2550 = vsub.s32 %v2549, 127
  %v2551 = vand.u32 2147483647, %v244
  %v2552 = vand.u32 %v2551, 8388607
  %v2553 = vor.u32 %v2552, 8388608
  %v2554 = vsub.s32 0, %v2553
  %v2555 = vadd.s32 %v2550, 1
  %vm2556 = vcmp.gt.s32.totalorder %v2555, 0
  %v2557 = vsel %vm2556, %v2555, 0
  %v2558 = vshrl.u32 %v2557, 5
  %v2559 = vand.u32 %v2557, 31
  %v2560 = vsub.s32 32, %v2559
  %v2561 = vshrl.u32 683565275, %v2560
  %v2562 = vshll.u32 683565275, %v2559
  %v2563 = vshrl.u32 2475754826, %v2560
  %v2564 = vor.u32 %v2562, %v2563
  %v2565 = vshll.u32 2475754826, %v2559
  %v2566 = vshrl.u32 2131351028, %v2560
  %v2567 = vor.u32 %v2565, %v2566
  %v2568 = vshll.u32 2131351028, %v2559
  %v2569 = vshrl.u32 2102212464, %v2560
  %v2570 = vor.u32 %v2568, %v2569
  %v2571 = vshll.u32 2102212464, %v2559
  %v2572 = vshrl.u32 920167782, %v2560
  %v2573 = vor.u32 %v2571, %v2572
  %v2574 = vshll.u32 920167782, %v2559
  %v2575 = vshrl.u32 1326507024, %v2560
  %v2576 = vor.u32 %v2574, %v2575
  %vm2577 = vcmp.lt.s32.totalorder %v2558, 1
  %vm2578 = vcmp.lt.s32.totalorder %v2558, 2
  %vm2579 = vcmp.lt.s32.totalorder %v2558, 3
  %vm2580 = vcmp.lt.s32.totalorder %v2558, 4
  %v2581 = vsel %vm2577, %v2561, %v2564
  %v2582 = vsel %vm2580, %v2570, 2102212464
  %v2583 = vsel %vm2579, %v2567, %v2582
  %v2584 = vsel %vm2578, %v2581, %v2583
  %v2585 = vsel %vm2577, %v2564, %v2567
  %v2586 = vsel %vm2580, %v2573, 920167782
  %v2587 = vsel %vm2579, %v2570, %v2586
  %v2588 = vsel %vm2578, %v2585, %v2587
  %v2589 = vsel %vm2577, %v2567, %v2570
  %v2590 = vsel %vm2580, %v2576, 1326507024
  %v2591 = vsel %vm2579, %v2573, %v2590
  %v2592 = vsel %vm2578, %v2589, %v2591
  %v2593 = vshll.u32 %v2553, 8
  %v2594 = vmul.u32.u64.compose %v2593, %v2592
  %v2595 = vextract.low.u32 %v2594
  %v2596 = vextract.high.u32 %v2594
  %v2597 = vmul.u32.u64.compose %v2593, %v2588
  %v2598 = vextract.low.u32 %v2597
  %v2599 = vextract.high.u32 %v2597
  %v2600 = vmul.u32 %v2593, %v2584
  %v2601 = vadd.s32 %v2596, %v2598
  %vm2602 = vc.u32 %v2596, %v2598
  %v2603 = vadd.s32 %v2599, 1
  %v2604 = vsel %vm2602, %v2603, %v2599
  %v2605 = vadd.s32 %v2600, %v2604
  %v2606 = vadd.s32 %v2605, 536870912
  %v2607 = vshrl.u32 %v2606, 30
  %v2608 = vshll.u32 %v2607, 30
  %v2609 = vsub.s32 %v2605, %v2608
  %vm2610 = vcmp.lt.s32.totalorder %v2609, 0
  %v2611 = vsub.s32 0, %v2609
  %v2612 = vsel %vm2610, %v2611, %v2609
  %v2613 = vclz %v2612
  %v2614 = vsub.s32 %v2613, 2
  %vm2615 = vcmp.gt.s32.totalorder 0, %v2614
  %v2616 = vsel %vm2615, 0, %v2614
  %v2617 = vsub.s32 32, %v2616
  %v2618 = vshll.u32 %v2609, %v2616
  %v2619 = vshrl.u32 %v2601, %v2617
  %v2620 = vor.u32 %v2618, %v2619
  %v2621 = vsub.s32 4294967266, %v2616
  %v2622 = vadd.s32 %v2621, 127
  %v2623 = vshll.u32 %v2622, 23
  %v2624 = vor.u32 4788187, %v2623
  %v2625 = vand.u32 2147483647, %v2624
  %v2627 = vcvt.s32.f32 %v2620
  %v2628 = vmul.f32 %v2627, %v2625
  %v2629 = vxor.u32 %v2628, 2147483648
  %v2630 = vsel %vm2547, %v2629, %v2628
  %v2631 = vsub.s32 4, %v2607
  %v2632 = vsel %vm2547, %v2631, %v2607
  %v2633 = vsel %vm2546, %v244, %v2630
  %v2634 = vsel %vm2546, 0, %v2632
  %v2635 = vcosq.f32.pop %v2633
  %v2636 = vsinq.f32.pop %v2633
  %vm2637 = vweird.f32 %v244
  %v2638 = vadd.s32 %v2634, 3
  %v2639 = vand.u32 %v2638, 3
  %vm2640 = vcmp.lt.s32.totalorder %v2639, 2
  %vm2641 = vcmp.eq.s32.totalorder %v2639, 0
  %v2642 = vxor.u32 %v2636, 2147483648
  %v2643 = vsel %vm2641, %v2635, %v2642
  %vm2644 = vcmp.eq.s32.totalorder %v2639, 2
  %v2645 = vxor.u32 %v2635, 2147483648
  %v2646 = vsel %vm2644, %v2645, %v2636
  %v2647 = vsel %vm2640, %v2643, %v2646
  %v2648 = vsel %vm2637, nan, %v2647
  %v2649 = vand.u32 2147483647, %v245
  %vm2650 = vcmp.le.f32.partialorder %v2649, 0.7853982
  %vm2651 = vcmp.lt.s32.totalorder %v245, 0
  %v2652 = vand.u32 %v245, 2139095040
  %v2653 = vshrl.u32 %v2652, 23
  %v2654 = vsub.s32 %v2653, 127
  %v2655 = vand.u32 2147483647, %v245
  %v2656 = vand.u32 %v2655, 8388607
  %v2657 = vor.u32 %v2656, 8388608
  %v2658 = vsub.s32 0, %v2657
  %v2659 = vadd.s32 %v2654, 1
  %vm2660 = vcmp.gt.s32.totalorder %v2659, 0
  %v2661 = vsel %vm2660, %v2659, 0
  %v2662 = vshrl.u32 %v2661, 5
  %v2663 = vand.u32 %v2661, 31
  %v2664 = vsub.s32 32, %v2663
  %v2665 = vshrl.u32 683565275, %v2664
  %v2666 = vshll.u32 683565275, %v2663
  %v2667 = vshrl.u32 2475754826, %v2664
  %v2668 = vor.u32 %v2666, %v2667
  %v2669 = vshll.u32 2475754826, %v2663
  %v2670 = vshrl.u32 2131351028, %v2664
  %v2671 = vor.u32 %v2669, %v2670
  %v2672 = vshll.u32 2131351028, %v2663
  %v2673 = vshrl.u32 2102212464, %v2664
  %v2674 = vor.u32 %v2672, %v2673
  %v2675 = vshll.u32 2102212464, %v2663
  %v2676 = vshrl.u32 920167782, %v2664
  %v2677 = vor.u32 %v2675, %v2676
  %v2678 = vshll.u32 920167782, %v2663
  %v2679 = vshrl.u32 1326507024, %v2664
  %v2680 = vor.u32 %v2678, %v2679
  %vm2681 = vcmp.lt.s32.totalorder %v2662, 1
  %vm2682 = vcmp.lt.s32.totalorder %v2662, 2
  %vm2683 = vcmp.lt.s32.totalorder %v2662, 3
  %vm2684 = vcmp.lt.s32.totalorder %v2662, 4
  %v2685 = vsel %vm2681, %v2665, %v2668
  %v2686 = vsel %vm2684, %v2674, 2102212464
  %v2687 = vsel %vm2683, %v2671, %v2686
  %v2688 = vsel %vm2682, %v2685, %v2687
  %v2689 = vsel %vm2681, %v2668, %v2671
  %v2690 = vsel %vm2684, %v2677, 920167782
  %v2691 = vsel %vm2683, %v2674, %v2690
  %v2692 = vsel %vm2682, %v2689, %v2691
  %v2693 = vsel %vm2681, %v2671, %v2674
  %v2694 = vsel %vm2684, %v2680, 1326507024
  %v2695 = vsel %vm2683, %v2677, %v2694
  %v2696 = vsel %vm2682, %v2693, %v2695
  %v2697 = vshll.u32 %v2657, 8
  %v2698 = vmul.u32.u64.compose %v2697, %v2696
  %v2699 = vextract.low.u32 %v2698
  %v2700 = vextract.high.u32 %v2698
  %v2701 = vmul.u32.u64.compose %v2697, %v2692
  %v2702 = vextract.low.u32 %v2701
  %v2703 = vextract.high.u32 %v2701
  %v2704 = vmul.u32 %v2697, %v2688
  %v2705 = vadd.s32 %v2700, %v2702
  %vm2706 = vc.u32 %v2700, %v2702
  %v2707 = vadd.s32 %v2703, 1
  %v2708 = vsel %vm2706, %v2707, %v2703
  %v2709 = vadd.s32 %v2704, %v2708
  %v2710 = vadd.s32 %v2709, 536870912
  %v2711 = vshrl.u32 %v2710, 30
  %v2712 = vshll.u32 %v2711, 30
  %v2713 = vsub.s32 %v2709, %v2712
  %vm2714 = vcmp.lt.s32.totalorder %v2713, 0
  %v2715 = vsub.s32 0, %v2713
  %v2716 = vsel %vm2714, %v2715, %v2713
  %v2717 = vclz %v2716
  %v2718 = vsub.s32 %v2717, 2
  %vm2719 = vcmp.gt.s32.totalorder 0, %v2718
  %v2720 = vsel %vm2719, 0, %v2718
  %v2721 = vsub.s32 32, %v2720
  %v2722 = vshll.u32 %v2713, %v2720
  %v2723 = vshrl.u32 %v2705, %v2721
  %v2724 = vor.u32 %v2722, %v2723
  %v2725 = vsub.s32 4294967266, %v2720
  %v2726 = vadd.s32 %v2725, 127
  %v2727 = vshll.u32 %v2726, 23
  %v2728 = vor.u32 4788187, %v2727
  %v2729 = vand.u32 2147483647, %v2728
  %v2731 = vcvt.s32.f32 %v2724
  %v2732 = vmul.f32 %v2731, %v2729
  %v2733 = vxor.u32 %v2732, 2147483648
  %v2734 = vsel %vm2651, %v2733, %v2732
  %v2735 = vsub.s32 4, %v2711
  %v2736 = vsel %vm2651, %v2735, %v2711
  %v2737 = vsel %vm2650, %v245, %v2734
  %v2738 = vsel %vm2650, 0, %v2736
  %v2739 = vcosq.f32.pop %v2737
  %v2740 = vsinq.f32.pop %v2737
  %vm2741 = vweird.f32 %v245
  %v2742 = vadd.s32 %v2738, 3
  %v2743 = vand.u32 %v2742, 3
  %vm2744 = vcmp.lt.s32.totalorder %v2743, 2
  %vm2745 = vcmp.eq.s32.totalorder %v2743, 0
  %v2746 = vxor.u32 %v2740, 2147483648
  %v2747 = vsel %vm2745, %v2739, %v2746
  %vm2748 = vcmp.eq.s32.totalorder %v2743, 2
  %v2749 = vxor.u32 %v2739, 2147483648
  %v2750 = vsel %vm2748, %v2749, %v2740
  %v2751 = vsel %vm2744, %v2747, %v2750
  %v2752 = vsel %vm2741, nan, %v2751
  %v2753 = vand.u32 2147483647, %v246
  %vm2754 = vcmp.le.f32.partialorder %v2753, 0.7853982
  %vm2755 = vcmp.lt.s32.totalorder %v246, 0
  %v2756 = vand.u32 %v246, 2139095040
  %v2757 = vshrl.u32 %v2756, 23
  %v2758 = vsub.s32 %v2757, 127
  %v2759 = vand.u32 2147483647, %v246
  %v2760 = vand.u32 %v2759, 8388607
  %v2761 = vor.u32 %v2760, 8388608
  %v2762 = vsub.s32 0, %v2761
  %v2763 = vadd.s32 %v2758, 1
  %vm2764 = vcmp.gt.s32.totalorder %v2763, 0
  %v2765 = vsel %vm2764, %v2763, 0
  %v2766 = vshrl.u32 %v2765, 5
  %v2767 = vand.u32 %v2765, 31
  %v2768 = vsub.s32 32, %v2767
  %v2769 = vshrl.u32 683565275, %v2768
  %v2770 = vshll.u32 683565275, %v2767
  %v2771 = vshrl.u32 2475754826, %v2768
  %v2772 = vor.u32 %v2770, %v2771
  %v2773 = vshll.u32 2475754826, %v2767
  %v2774 = vshrl.u32 2131351028, %v2768
  %v2775 = vor.u32 %v2773, %v2774
  %v2776 = vshll.u32 2131351028, %v2767
  %v2777 = vshrl.u32 2102212464, %v2768
  %v2778 = vor.u32 %v2776, %v2777
  %v2779 = vshll.u32 2102212464, %v2767
  %v2780 = vshrl.u32 920167782, %v2768
  %v2781 = vor.u32 %v2779, %v2780
  %v2782 = vshll.u32 920167782, %v2767
  %v2783 = vshrl.u32 1326507024, %v2768
  %v2784 = vor.u32 %v2782, %v2783
  %vm2785 = vcmp.lt.s32.totalorder %v2766, 1
  %vm2786 = vcmp.lt.s32.totalorder %v2766, 2
  %vm2787 = vcmp.lt.s32.totalorder %v2766, 3
  %vm2788 = vcmp.lt.s32.totalorder %v2766, 4
  %v2789 = vsel %vm2785, %v2769, %v2772
  %v2790 = vsel %vm2788, %v2778, 2102212464
  %v2791 = vsel %vm2787, %v2775, %v2790
  %v2792 = vsel %vm2786, %v2789, %v2791
  %v2793 = vsel %vm2785, %v2772, %v2775
  %v2794 = vsel %vm2788, %v2781, 920167782
  %v2795 = vsel %vm2787, %v2778, %v2794
  %v2796 = vsel %vm2786, %v2793, %v2795
  %v2797 = vsel %vm2785, %v2775, %v2778
  %v2798 = vsel %vm2788, %v2784, 1326507024
  %v2799 = vsel %vm2787, %v2781, %v2798
  %v2800 = vsel %vm2786, %v2797, %v2799
  %v2801 = vshll.u32 %v2761, 8
  %v2802 = vmul.u32.u64.compose %v2801, %v2800
  %v2803 = vextract.low.u32 %v2802
  %v2804 = vextract.high.u32 %v2802
  %v2805 = vmul.u32.u64.compose %v2801, %v2796
  %v2806 = vextract.low.u32 %v2805
  %v2807 = vextract.high.u32 %v2805
  %v2808 = vmul.u32 %v2801, %v2792
  %v2809 = vadd.s32 %v2804, %v2806
  %vm2810 = vc.u32 %v2804, %v2806
  %v2811 = vadd.s32 %v2807, 1
  %v2812 = vsel %vm2810, %v2811, %v2807
  %v2813 = vadd.s32 %v2808, %v2812
  %v2814 = vadd.s32 %v2813, 536870912
  %v2815 = vshrl.u32 %v2814, 30
  %v2816 = vshll.u32 %v2815, 30
  %v2817 = vsub.s32 %v2813, %v2816
  %vm2818 = vcmp.lt.s32.totalorder %v2817, 0
  %v2819 = vsub.s32 0, %v2817
  %v2820 = vsel %vm2818, %v2819, %v2817
  %v2821 = vclz %v2820
  %v2822 = vsub.s32 %v2821, 2
  %vm2823 = vcmp.gt.s32.totalorder 0, %v2822
  %v2824 = vsel %vm2823, 0, %v2822
  %v2825 = vsub.s32 32, %v2824
  %v2826 = vshll.u32 %v2817, %v2824
  %v2827 = vshrl.u32 %v2809, %v2825
  %v2828 = vor.u32 %v2826, %v2827
  %v2829 = vsub.s32 4294967266, %v2824
  %v2830 = vadd.s32 %v2829, 127
  %v2831 = vshll.u32 %v2830, 23
  %v2832 = vor.u32 4788187, %v2831
  %v2833 = vand.u32 2147483647, %v2832
  %v2835 = vcvt.s32.f32 %v2828
  %v2836 = vmul.f32 %v2835, %v2833
  %v2837 = vxor.u32 %v2836, 2147483648
  %v2838 = vsel %vm2755, %v2837, %v2836
  %v2839 = vsub.s32 4, %v2815
  %v2840 = vsel %vm2755, %v2839, %v2815
  %v2841 = vsel %vm2754, %v246, %v2838
  %v2842 = vsel %vm2754, 0, %v2840
  %v2843 = vcosq.f32.pop %v2841
  %v2844 = vsinq.f32.pop %v2841
  %vm2845 = vweird.f32 %v246
  %v2846 = vadd.s32 %v2842, 3
  %v2847 = vand.u32 %v2846, 3
  %vm2848 = vcmp.lt.s32.totalorder %v2847, 2
  %vm2849 = vcmp.eq.s32.totalorder %v2847, 0
  %v2850 = vxor.u32 %v2844, 2147483648
  %v2851 = vsel %vm2849, %v2843, %v2850
  %vm2852 = vcmp.eq.s32.totalorder %v2847, 2
  %v2853 = vxor.u32 %v2843, 2147483648
  %v2854 = vsel %vm2852, %v2853, %v2844
  %v2855 = vsel %vm2848, %v2851, %v2854
  %v2856 = vsel %vm2845, nan, %v2855
  %v2857 = vand.u32 2147483647, %v247
  %vm2858 = vcmp.le.f32.partialorder %v2857, 0.7853982
  %vm2859 = vcmp.lt.s32.totalorder %v247, 0
  %v2860 = vand.u32 %v247, 2139095040
  %v2861 = vshrl.u32 %v2860, 23
  %v2862 = vsub.s32 %v2861, 127
  %v2863 = vand.u32 2147483647, %v247
  %v2864 = vand.u32 %v2863, 8388607
  %v2865 = vor.u32 %v2864, 8388608
  %v2866 = vsub.s32 0, %v2865
  %v2867 = vadd.s32 %v2862, 1
  %vm2868 = vcmp.gt.s32.totalorder %v2867, 0
  %v2869 = vsel %vm2868, %v2867, 0
  %v2870 = vshrl.u32 %v2869, 5
  %v2871 = vand.u32 %v2869, 31
  %v2872 = vsub.s32 32, %v2871
  %v2873 = vshrl.u32 683565275, %v2872
  %v2874 = vshll.u32 683565275, %v2871
  %v2875 = vshrl.u32 2475754826, %v2872
  %v2876 = vor.u32 %v2874, %v2875
  %v2877 = vshll.u32 2475754826, %v2871
  %v2878 = vshrl.u32 2131351028, %v2872
  %v2879 = vor.u32 %v2877, %v2878
  %v2880 = vshll.u32 2131351028, %v2871
  %v2881 = vshrl.u32 2102212464, %v2872
  %v2882 = vor.u32 %v2880, %v2881
  %v2883 = vshll.u32 2102212464, %v2871
  %v2884 = vshrl.u32 920167782, %v2872
  %v2885 = vor.u32 %v2883, %v2884
  %v2886 = vshll.u32 920167782, %v2871
  %v2887 = vshrl.u32 1326507024, %v2872
  %v2888 = vor.u32 %v2886, %v2887
  %vm2889 = vcmp.lt.s32.totalorder %v2870, 1
  %vm2890 = vcmp.lt.s32.totalorder %v2870, 2
  %vm2891 = vcmp.lt.s32.totalorder %v2870, 3
  %vm2892 = vcmp.lt.s32.totalorder %v2870, 4
  %v2893 = vsel %vm2889, %v2873, %v2876
  %v2894 = vsel %vm2892, %v2882, 2102212464
  %v2895 = vsel %vm2891, %v2879, %v2894
  %v2896 = vsel %vm2890, %v2893, %v2895
  %v2897 = vsel %vm2889, %v2876, %v2879
  %v2898 = vsel %vm2892, %v2885, 920167782
  %v2899 = vsel %vm2891, %v2882, %v2898
  %v2900 = vsel %vm2890, %v2897, %v2899
  %v2901 = vsel %vm2889, %v2879, %v2882
  %v2902 = vsel %vm2892, %v2888, 1326507024
  %v2903 = vsel %vm2891, %v2885, %v2902
  %v2904 = vsel %vm2890, %v2901, %v2903
  %v2905 = vshll.u32 %v2865, 8
  %v2906 = vmul.u32.u64.compose %v2905, %v2904
  %v2907 = vextract.low.u32 %v2906
  %v2908 = vextract.high.u32 %v2906
  %v2909 = vmul.u32.u64.compose %v2905, %v2900
  %v2910 = vextract.low.u32 %v2909
  %v2911 = vextract.high.u32 %v2909
  %v2912 = vmul.u32 %v2905, %v2896
  %v2913 = vadd.s32 %v2908, %v2910
  %vm2914 = vc.u32 %v2908, %v2910
  %v2915 = vadd.s32 %v2911, 1
  %v2916 = vsel %vm2914, %v2915, %v2911
  %v2917 = vadd.s32 %v2912, %v2916
  %v2918 = vadd.s32 %v2917, 536870912
  %v2919 = vshrl.u32 %v2918, 30
  %v2920 = vshll.u32 %v2919, 30
  %v2921 = vsub.s32 %v2917, %v2920
  %vm2922 = vcmp.lt.s32.totalorder %v2921, 0
  %v2923 = vsub.s32 0, %v2921
  %v2924 = vsel %vm2922, %v2923, %v2921
  %v2925 = vclz %v2924
  %v2926 = vsub.s32 %v2925, 2
  %vm2927 = vcmp.gt.s32.totalorder 0, %v2926
  %v2928 = vsel %vm2927, 0, %v2926
  %v2929 = vsub.s32 32, %v2928
  %v2930 = vshll.u32 %v2921, %v2928
  %v2931 = vshrl.u32 %v2913, %v2929
  %v2932 = vor.u32 %v2930, %v2931
  %v2933 = vsub.s32 4294967266, %v2928
  %v2934 = vadd.s32 %v2933, 127
  %v2935 = vshll.u32 %v2934, 23
  %v2936 = vor.u32 4788187, %v2935
  %v2937 = vand.u32 2147483647, %v2936
  %v2939 = vcvt.s32.f32 %v2932
  %v2940 = vmul.f32 %v2939, %v2937
  %v2941 = vxor.u32 %v2940, 2147483648
  %v2942 = vsel %vm2859, %v2941, %v2940
  %v2943 = vsub.s32 4, %v2919
  %v2944 = vsel %vm2859, %v2943, %v2919
  %v2945 = vsel %vm2858, %v247, %v2942
  %v2946 = vsel %vm2858, 0, %v2944
  %v2947 = vcosq.f32.pop %v2945
  %v2948 = vsinq.f32.pop %v2945
  %vm2949 = vweird.f32 %v247
  %v2950 = vadd.s32 %v2946, 3
  %v2951 = vand.u32 %v2950, 3
  %vm2952 = vcmp.lt.s32.totalorder %v2951, 2
  %vm2953 = vcmp.eq.s32.totalorder %v2951, 0
  %v2954 = vxor.u32 %v2948, 2147483648
  %v2955 = vsel %vm2953, %v2947, %v2954
  %vm2956 = vcmp.eq.s32.totalorder %v2951, 2
  %v2957 = vxor.u32 %v2947, 2147483648
  %v2958 = vsel %vm2956, %v2957, %v2948
  %v2959 = vsel %vm2952, %v2955, %v2958
  %v2960 = vsel %vm2949, nan, %v2959
  %v2961 = vand.u32 2147483647, %v248
  %vm2962 = vcmp.le.f32.partialorder %v2961, 0.7853982
  %vm2963 = vcmp.lt.s32.totalorder %v248, 0
  %v2964 = vand.u32 %v248, 2139095040
  %v2965 = vshrl.u32 %v2964, 23
  %v2966 = vsub.s32 %v2965, 127
  %v2967 = vand.u32 2147483647, %v248
  %v2968 = vand.u32 %v2967, 8388607
  %v2969 = vor.u32 %v2968, 8388608
  %v2970 = vsub.s32 0, %v2969
  %v2971 = vadd.s32 %v2966, 1
  %vm2972 = vcmp.gt.s32.totalorder %v2971, 0
  %v2973 = vsel %vm2972, %v2971, 0
  %v2974 = vshrl.u32 %v2973, 5
  %v2975 = vand.u32 %v2973, 31
  %v2976 = vsub.s32 32, %v2975
  %v2977 = vshrl.u32 683565275, %v2976
  %v2978 = vshll.u32 683565275, %v2975
  %v2979 = vshrl.u32 2475754826, %v2976
  %v2980 = vor.u32 %v2978, %v2979
  %v2981 = vshll.u32 2475754826, %v2975
  %v2982 = vshrl.u32 2131351028, %v2976
  %v2983 = vor.u32 %v2981, %v2982
  %v2984 = vshll.u32 2131351028, %v2975
  %v2985 = vshrl.u32 2102212464, %v2976
  %v2986 = vor.u32 %v2984, %v2985
  %v2987 = vshll.u32 2102212464, %v2975
  %v2988 = vshrl.u32 920167782, %v2976
  %v2989 = vor.u32 %v2987, %v2988
  %v2990 = vshll.u32 920167782, %v2975
  %v2991 = vshrl.u32 1326507024, %v2976
  %v2992 = vor.u32 %v2990, %v2991
  %vm2993 = vcmp.lt.s32.totalorder %v2974, 1
  %vm2994 = vcmp.lt.s32.totalorder %v2974, 2
  %vm2995 = vcmp.lt.s32.totalorder %v2974, 3
  %vm2996 = vcmp.lt.s32.totalorder %v2974, 4
  %v2997 = vsel %vm2993, %v2977, %v2980
  %v2998 = vsel %vm2996, %v2986, 2102212464
  %v2999 = vsel %vm2995, %v2983, %v2998
  %v3000 = vsel %vm2994, %v2997, %v2999
  %v3001 = vsel %vm2993, %v2980, %v2983
  %v3002 = vsel %vm2996, %v2989, 920167782
  %v3003 = vsel %vm2995, %v2986, %v3002
  %v3004 = vsel %vm2994, %v3001, %v3003
  %v3005 = vsel %vm2993, %v2983, %v2986
  %v3006 = vsel %vm2996, %v2992, 1326507024
  %v3007 = vsel %vm2995, %v2989, %v3006
  %v3008 = vsel %vm2994, %v3005, %v3007
  %v3009 = vshll.u32 %v2969, 8
  %v3010 = vmul.u32.u64.compose %v3009, %v3008
  %v3011 = vextract.low.u32 %v3010
  %v3012 = vextract.high.u32 %v3010
  %v3013 = vmul.u32.u64.compose %v3009, %v3004
  %v3014 = vextract.low.u32 %v3013
  %v3015 = vextract.high.u32 %v3013
  %v3016 = vmul.u32 %v3009, %v3000
  %v3017 = vadd.s32 %v3012, %v3014
  %vm3018 = vc.u32 %v3012, %v3014
  %v3019 = vadd.s32 %v3015, 1
  %v3020 = vsel %vm3018, %v3019, %v3015
  %v3021 = vadd.s32 %v3016, %v3020
  %v3022 = vadd.s32 %v3021, 536870912
  %v3023 = vshrl.u32 %v3022, 30
  %v3024 = vshll.u32 %v3023, 30
  %v3025 = vsub.s32 %v3021, %v3024
  %vm3026 = vcmp.lt.s32.totalorder %v3025, 0
  %v3027 = vsub.s32 0, %v3025
  %v3028 = vsel %vm3026, %v3027, %v3025
  %v3029 = vclz %v3028
  %v3030 = vsub.s32 %v3029, 2
  %vm3031 = vcmp.gt.s32.totalorder 0, %v3030
  %v3032 = vsel %vm3031, 0, %v3030
  %v3033 = vsub.s32 32, %v3032
  %v3034 = vshll.u32 %v3025, %v3032
  %v3035 = vshrl.u32 %v3017, %v3033
  %v3036 = vor.u32 %v3034, %v3035
  %v3037 = vsub.s32 4294967266, %v3032
  %v3038 = vadd.s32 %v3037, 127
  %v3039 = vshll.u32 %v3038, 23
  %v3040 = vor.u32 4788187, %v3039
  %v3041 = vand.u32 2147483647, %v3040
  %v3043 = vcvt.s32.f32 %v3036
  %v3044 = vmul.f32 %v3043, %v3041
  %v3045 = vxor.u32 %v3044, 2147483648
  %v3046 = vsel %vm2963, %v3045, %v3044
  %v3047 = vsub.s32 4, %v3023
  %v3048 = vsel %vm2963, %v3047, %v3023
  %v3049 = vsel %vm2962, %v248, %v3046
  %v3050 = vsel %vm2962, 0, %v3048
  %v3051 = vcosq.f32.pop %v3049
  %v3052 = vsinq.f32.pop %v3049
  %vm3053 = vweird.f32 %v248
  %v3054 = vadd.s32 %v3050, 3
  %v3055 = vand.u32 %v3054, 3
  %vm3056 = vcmp.lt.s32.totalorder %v3055, 2
  %vm3057 = vcmp.eq.s32.totalorder %v3055, 0
  %v3058 = vxor.u32 %v3052, 2147483648
  %v3059 = vsel %vm3057, %v3051, %v3058
  %vm3060 = vcmp.eq.s32.totalorder %v3055, 2
  %v3061 = vxor.u32 %v3051, 2147483648
  %v3062 = vsel %vm3060, %v3061, %v3052
  %v3063 = vsel %vm3056, %v3059, %v3062
  %v3064 = vsel %vm3053, nan, %v3063
  %v3065 = vand.u32 2147483647, %v249
  %vm3066 = vcmp.le.f32.partialorder %v3065, 0.7853982
  %vm3067 = vcmp.lt.s32.totalorder %v249, 0
  %v3068 = vand.u32 %v249, 2139095040
  %v3069 = vshrl.u32 %v3068, 23
  %v3070 = vsub.s32 %v3069, 127
  %v3071 = vand.u32 2147483647, %v249
  %v3072 = vand.u32 %v3071, 8388607
  %v3073 = vor.u32 %v3072, 8388608
  %v3074 = vsub.s32 0, %v3073
  %v3075 = vadd.s32 %v3070, 1
  %vm3076 = vcmp.gt.s32.totalorder %v3075, 0
  %v3077 = vsel %vm3076, %v3075, 0
  %v3078 = vshrl.u32 %v3077, 5
  %v3079 = vand.u32 %v3077, 31
  %v3080 = vsub.s32 32, %v3079
  %v3081 = vshrl.u32 683565275, %v3080
  %v3082 = vshll.u32 683565275, %v3079
  %v3083 = vshrl.u32 2475754826, %v3080
  %v3084 = vor.u32 %v3082, %v3083
  %v3085 = vshll.u32 2475754826, %v3079
  %v3086 = vshrl.u32 2131351028, %v3080
  %v3087 = vor.u32 %v3085, %v3086
  %v3088 = vshll.u32 2131351028, %v3079
  %v3089 = vshrl.u32 2102212464, %v3080
  %v3090 = vor.u32 %v3088, %v3089
  %v3091 = vshll.u32 2102212464, %v3079
  %v3092 = vshrl.u32 920167782, %v3080
  %v3093 = vor.u32 %v3091, %v3092
  %v3094 = vshll.u32 920167782, %v3079
  %v3095 = vshrl.u32 1326507024, %v3080
  %v3096 = vor.u32 %v3094, %v3095
  %vm3097 = vcmp.lt.s32.totalorder %v3078, 1
  %vm3098 = vcmp.lt.s32.totalorder %v3078, 2
  %vm3099 = vcmp.lt.s32.totalorder %v3078, 3
  %vm3100 = vcmp.lt.s32.totalorder %v3078, 4
  %v3101 = vsel %vm3097, %v3081, %v3084
  %v3102 = vsel %vm3100, %v3090, 2102212464
  %v3103 = vsel %vm3099, %v3087, %v3102
  %v3104 = vsel %vm3098, %v3101, %v3103
  %v3105 = vsel %vm3097, %v3084, %v3087
  %v3106 = vsel %vm3100, %v3093, 920167782
  %v3107 = vsel %vm3099, %v3090, %v3106
  %v3108 = vsel %vm3098, %v3105, %v3107
  %v3109 = vsel %vm3097, %v3087, %v3090
  %v3110 = vsel %vm3100, %v3096, 1326507024
  %v3111 = vsel %vm3099, %v3093, %v3110
  %v3112 = vsel %vm3098, %v3109, %v3111
  %v3113 = vshll.u32 %v3073, 8
  %v3114 = vmul.u32.u64.compose %v3113, %v3112
  %v3115 = vextract.low.u32 %v3114
  %v3116 = vextract.high.u32 %v3114
  %v3117 = vmul.u32.u64.compose %v3113, %v3108
  %v3118 = vextract.low.u32 %v3117
  %v3119 = vextract.high.u32 %v3117
  %v3120 = vmul.u32 %v3113, %v3104
  %v3121 = vadd.s32 %v3116, %v3118
  %vm3122 = vc.u32 %v3116, %v3118
  %v3123 = vadd.s32 %v3119, 1
  %v3124 = vsel %vm3122, %v3123, %v3119
  %v3125 = vadd.s32 %v3120, %v3124
  %v3126 = vadd.s32 %v3125, 536870912
  %v3127 = vshrl.u32 %v3126, 30
  %v3128 = vshll.u32 %v3127, 30
  %v3129 = vsub.s32 %v3125, %v3128
  %vm3130 = vcmp.lt.s32.totalorder %v3129, 0
  %v3131 = vsub.s32 0, %v3129
  %v3132 = vsel %vm3130, %v3131, %v3129
  %v3133 = vclz %v3132
  %v3134 = vsub.s32 %v3133, 2
  %vm3135 = vcmp.gt.s32.totalorder 0, %v3134
  %v3136 = vsel %vm3135, 0, %v3134
  %v3137 = vsub.s32 32, %v3136
  %v3138 = vshll.u32 %v3129, %v3136
  %v3139 = vshrl.u32 %v3121, %v3137
  %v3140 = vor.u32 %v3138, %v3139
  %v3141 = vsub.s32 4294967266, %v3136
  %v3142 = vadd.s32 %v3141, 127
  %v3143 = vshll.u32 %v3142, 23
  %v3144 = vor.u32 4788187, %v3143
  %v3145 = vand.u32 2147483647, %v3144
  %v3147 = vcvt.s32.f32 %v3140
  %v3148 = vmul.f32 %v3147, %v3145
  %v3149 = vxor.u32 %v3148, 2147483648
  %v3150 = vsel %vm3067, %v3149, %v3148
  %v3151 = vsub.s32 4, %v3127
  %v3152 = vsel %vm3067, %v3151, %v3127
  %v3153 = vsel %vm3066, %v249, %v3150
  %v3154 = vsel %vm3066, 0, %v3152
  %v3155 = vcosq.f32.pop %v3153
  %v3156 = vsinq.f32.pop %v3153
  %vm3157 = vweird.f32 %v249
  %v3158 = vadd.s32 %v3154, 3
  %v3159 = vand.u32 %v3158, 3
  %vm3160 = vcmp.lt.s32.totalorder %v3159, 2
  %vm3161 = vcmp.eq.s32.totalorder %v3159, 0
  %v3162 = vxor.u32 %v3156, 2147483648
  %v3163 = vsel %vm3161, %v3155, %v3162
  %vm3164 = vcmp.eq.s32.totalorder %v3159, 2
  %v3165 = vxor.u32 %v3155, 2147483648
  %v3166 = vsel %vm3164, %v3165, %v3156
  %v3167 = vsel %vm3160, %v3163, %v3166
  %v3168 = vsel %vm3157, nan, %v3167
  %v3169 = vand.u32 2147483647, %v250
  %vm3170 = vcmp.le.f32.partialorder %v3169, 0.7853982
  %vm3171 = vcmp.lt.s32.totalorder %v250, 0
  %v3172 = vand.u32 %v250, 2139095040
  %v3173 = vshrl.u32 %v3172, 23
  %v3174 = vsub.s32 %v3173, 127
  %v3175 = vand.u32 2147483647, %v250
  %v3176 = vand.u32 %v3175, 8388607
  %v3177 = vor.u32 %v3176, 8388608
  %v3178 = vsub.s32 0, %v3177
  %v3179 = vadd.s32 %v3174, 1
  %vm3180 = vcmp.gt.s32.totalorder %v3179, 0
  %v3181 = vsel %vm3180, %v3179, 0
  %v3182 = vshrl.u32 %v3181, 5
  %v3183 = vand.u32 %v3181, 31
  %v3184 = vsub.s32 32, %v3183
  %v3185 = vshrl.u32 683565275, %v3184
  %v3186 = vshll.u32 683565275, %v3183
  %v3187 = vshrl.u32 2475754826, %v3184
  %v3188 = vor.u32 %v3186, %v3187
  %v3189 = vshll.u32 2475754826, %v3183
  %v3190 = vshrl.u32 2131351028, %v3184
  %v3191 = vor.u32 %v3189, %v3190
  %v3192 = vshll.u32 2131351028, %v3183
  %v3193 = vshrl.u32 2102212464, %v3184
  %v3194 = vor.u32 %v3192, %v3193
  %v3195 = vshll.u32 2102212464, %v3183
  %v3196 = vshrl.u32 920167782, %v3184
  %v3197 = vor.u32 %v3195, %v3196
  %v3198 = vshll.u32 920167782, %v3183
  %v3199 = vshrl.u32 1326507024, %v3184
  %v3200 = vor.u32 %v3198, %v3199
  %vm3201 = vcmp.lt.s32.totalorder %v3182, 1
  %vm3202 = vcmp.lt.s32.totalorder %v3182, 2
  %vm3203 = vcmp.lt.s32.totalorder %v3182, 3
  %vm3204 = vcmp.lt.s32.totalorder %v3182, 4
  %v3205 = vsel %vm3201, %v3185, %v3188
  %v3206 = vsel %vm3204, %v3194, 2102212464
  %v3207 = vsel %vm3203, %v3191, %v3206
  %v3208 = vsel %vm3202, %v3205, %v3207
  %v3209 = vsel %vm3201, %v3188, %v3191
  %v3210 = vsel %vm3204, %v3197, 920167782
  %v3211 = vsel %vm3203, %v3194, %v3210
  %v3212 = vsel %vm3202, %v3209, %v3211
  %v3213 = vsel %vm3201, %v3191, %v3194
  %v3214 = vsel %vm3204, %v3200, 1326507024
  %v3215 = vsel %vm3203, %v3197, %v3214
  %v3216 = vsel %vm3202, %v3213, %v3215
  %v3217 = vshll.u32 %v3177, 8
  %v3218 = vmul.u32.u64.compose %v3217, %v3216
  %v3219 = vextract.low.u32 %v3218
  %v3220 = vextract.high.u32 %v3218
  %v3221 = vmul.u32.u64.compose %v3217, %v3212
  %v3222 = vextract.low.u32 %v3221
  %v3223 = vextract.high.u32 %v3221
  %v3224 = vmul.u32 %v3217, %v3208
  %v3225 = vadd.s32 %v3220, %v3222
  %vm3226 = vc.u32 %v3220, %v3222
  %v3227 = vadd.s32 %v3223, 1
  %v3228 = vsel %vm3226, %v3227, %v3223
  %v3229 = vadd.s32 %v3224, %v3228
  %v3230 = vadd.s32 %v3229, 536870912
  %v3231 = vshrl.u32 %v3230, 30
  %v3232 = vshll.u32 %v3231, 30
  %v3233 = vsub.s32 %v3229, %v3232
  %vm3234 = vcmp.lt.s32.totalorder %v3233, 0
  %v3235 = vsub.s32 0, %v3233
  %v3236 = vsel %vm3234, %v3235, %v3233
  %v3237 = vclz %v3236
  %v3238 = vsub.s32 %v3237, 2
  %vm3239 = vcmp.gt.s32.totalorder 0, %v3238
  %v3240 = vsel %vm3239, 0, %v3238
  %v3241 = vsub.s32 32, %v3240
  %v3242 = vshll.u32 %v3233, %v3240
  %v3243 = vshrl.u32 %v3225, %v3241
  %v3244 = vor.u32 %v3242, %v3243
  %v3245 = vsub.s32 4294967266, %v3240
  %v3246 = vadd.s32 %v3245, 127
  %v3247 = vshll.u32 %v3246, 23
  %v3248 = vor.u32 4788187, %v3247
  %v3249 = vand.u32 2147483647, %v3248
  %v3251 = vcvt.s32.f32 %v3244
  %v3252 = vmul.f32 %v3251, %v3249
  %v3253 = vxor.u32 %v3252, 2147483648
  %v3254 = vsel %vm3171, %v3253, %v3252
  %v3255 = vsub.s32 4, %v3231
  %v3256 = vsel %vm3171, %v3255, %v3231
  %v3257 = vsel %vm3170, %v250, %v3254
  %v3258 = vsel %vm3170, 0, %v3256
  %v3259 = vcosq.f32.pop %v3257
  %v3260 = vsinq.f32.pop %v3257
  %vm3261 = vweird.f32 %v250
  %v3262 = vadd.s32 %v3258, 3
  %v3263 = vand.u32 %v3262, 3
  %vm3264 = vcmp.lt.s32.totalorder %v3263, 2
  %vm3265 = vcmp.eq.s32.totalorder %v3263, 0
  %v3266 = vxor.u32 %v3260, 2147483648
  %v3267 = vsel %vm3265, %v3259, %v3266
  %vm3268 = vcmp.eq.s32.totalorder %v3263, 2
  %v3269 = vxor.u32 %v3259, 2147483648
  %v3270 = vsel %vm3268, %v3269, %v3260
  %v3271 = vsel %vm3264, %v3267, %v3270
  %v3272 = vsel %vm3261, nan, %v3271
  %v3273 = vand.u32 2147483647, %v251
  %vm3274 = vcmp.le.f32.partialorder %v3273, 0.7853982
  %vm3275 = vcmp.lt.s32.totalorder %v251, 0
  %v3276 = vand.u32 %v251, 2139095040
  %v3277 = vshrl.u32 %v3276, 23
  %v3278 = vsub.s32 %v3277, 127
  %v3279 = vand.u32 2147483647, %v251
  %v3280 = vand.u32 %v3279, 8388607
  %v3281 = vor.u32 %v3280, 8388608
  %v3282 = vsub.s32 0, %v3281
  %v3283 = vadd.s32 %v3278, 1
  %vm3284 = vcmp.gt.s32.totalorder %v3283, 0
  %v3285 = vsel %vm3284, %v3283, 0
  %v3286 = vshrl.u32 %v3285, 5
  %v3287 = vand.u32 %v3285, 31
  %v3288 = vsub.s32 32, %v3287
  %v3289 = vshrl.u32 683565275, %v3288
  %v3290 = vshll.u32 683565275, %v3287
  %v3291 = vshrl.u32 2475754826, %v3288
  %v3292 = vor.u32 %v3290, %v3291
  %v3293 = vshll.u32 2475754826, %v3287
  %v3294 = vshrl.u32 2131351028, %v3288
  %v3295 = vor.u32 %v3293, %v3294
  %v3296 = vshll.u32 2131351028, %v3287
  %v3297 = vshrl.u32 2102212464, %v3288
  %v3298 = vor.u32 %v3296, %v3297
  %v3299 = vshll.u32 2102212464, %v3287
  %v3300 = vshrl.u32 920167782, %v3288
  %v3301 = vor.u32 %v3299, %v3300
  %v3302 = vshll.u32 920167782, %v3287
  %v3303 = vshrl.u32 1326507024, %v3288
  %v3304 = vor.u32 %v3302, %v3303
  %vm3305 = vcmp.lt.s32.totalorder %v3286, 1
  %vm3306 = vcmp.lt.s32.totalorder %v3286, 2
  %vm3307 = vcmp.lt.s32.totalorder %v3286, 3
  %vm3308 = vcmp.lt.s32.totalorder %v3286, 4
  %v3309 = vsel %vm3305, %v3289, %v3292
  %v3310 = vsel %vm3308, %v3298, 2102212464
  %v3311 = vsel %vm3307, %v3295, %v3310
  %v3312 = vsel %vm3306, %v3309, %v3311
  %v3313 = vsel %vm3305, %v3292, %v3295
  %v3314 = vsel %vm3308, %v3301, 920167782
  %v3315 = vsel %vm3307, %v3298, %v3314
  %v3316 = vsel %vm3306, %v3313, %v3315
  %v3317 = vsel %vm3305, %v3295, %v3298
  %v3318 = vsel %vm3308, %v3304, 1326507024
  %v3319 = vsel %vm3307, %v3301, %v3318
  %v3320 = vsel %vm3306, %v3317, %v3319
  %v3321 = vshll.u32 %v3281, 8
  %v3322 = vmul.u32.u64.compose %v3321, %v3320
  %v3323 = vextract.low.u32 %v3322
  %v3324 = vextract.high.u32 %v3322
  %v3325 = vmul.u32.u64.compose %v3321, %v3316
  %v3326 = vextract.low.u32 %v3325
  %v3327 = vextract.high.u32 %v3325
  %v3328 = vmul.u32 %v3321, %v3312
  %v3329 = vadd.s32 %v3324, %v3326
  %vm3330 = vc.u32 %v3324, %v3326
  %v3331 = vadd.s32 %v3327, 1
  %v3332 = vsel %vm3330, %v3331, %v3327
  %v3333 = vadd.s32 %v3328, %v3332
  %v3334 = vadd.s32 %v3333, 536870912
  %v3335 = vshrl.u32 %v3334, 30
  %v3336 = vshll.u32 %v3335, 30
  %v3337 = vsub.s32 %v3333, %v3336
  %vm3338 = vcmp.lt.s32.totalorder %v3337, 0
  %v3339 = vsub.s32 0, %v3337
  %v3340 = vsel %vm3338, %v3339, %v3337
  %v3341 = vclz %v3340
  %v3342 = vsub.s32 %v3341, 2
  %vm3343 = vcmp.gt.s32.totalorder 0, %v3342
  %v3344 = vsel %vm3343, 0, %v3342
  %v3345 = vsub.s32 32, %v3344
  %v3346 = vshll.u32 %v3337, %v3344
  %v3347 = vshrl.u32 %v3329, %v3345
  %v3348 = vor.u32 %v3346, %v3347
  %v3349 = vsub.s32 4294967266, %v3344
  %v3350 = vadd.s32 %v3349, 127
  %v3351 = vshll.u32 %v3350, 23
  %v3352 = vor.u32 4788187, %v3351
  %v3353 = vand.u32 2147483647, %v3352
  %v3355 = vcvt.s32.f32 %v3348
  %v3356 = vmul.f32 %v3355, %v3353
  %v3357 = vxor.u32 %v3356, 2147483648
  %v3358 = vsel %vm3275, %v3357, %v3356
  %v3359 = vsub.s32 4, %v3335
  %v3360 = vsel %vm3275, %v3359, %v3335
  %v3361 = vsel %vm3274, %v251, %v3358
  %v3362 = vsel %vm3274, 0, %v3360
  %v3363 = vcosq.f32.pop %v3361
  %v3364 = vsinq.f32.pop %v3361
  %vm3365 = vweird.f32 %v251
  %v3366 = vadd.s32 %v3362, 3
  %v3367 = vand.u32 %v3366, 3
  %vm3368 = vcmp.lt.s32.totalorder %v3367, 2
  %vm3369 = vcmp.eq.s32.totalorder %v3367, 0
  %v3370 = vxor.u32 %v3364, 2147483648
  %v3371 = vsel %vm3369, %v3363, %v3370
  %vm3372 = vcmp.eq.s32.totalorder %v3367, 2
  %v3373 = vxor.u32 %v3363, 2147483648
  %v3374 = vsel %vm3372, %v3373, %v3364
  %v3375 = vsel %vm3368, %v3371, %v3374
  %v3376 = vsel %vm3365, nan, %v3375
  %v3377 = vand.u32 2147483647, %v252
  %vm3378 = vcmp.le.f32.partialorder %v3377, 0.7853982
  %vm3379 = vcmp.lt.s32.totalorder %v252, 0
  %v3380 = vand.u32 %v252, 2139095040
  %v3381 = vshrl.u32 %v3380, 23
  %v3382 = vsub.s32 %v3381, 127
  %v3383 = vand.u32 2147483647, %v252
  %v3384 = vand.u32 %v3383, 8388607
  %v3385 = vor.u32 %v3384, 8388608
  %v3386 = vsub.s32 0, %v3385
  %v3387 = vadd.s32 %v3382, 1
  %vm3388 = vcmp.gt.s32.totalorder %v3387, 0
  %v3389 = vsel %vm3388, %v3387, 0
  %v3390 = vshrl.u32 %v3389, 5
  %v3391 = vand.u32 %v3389, 31
  %v3392 = vsub.s32 32, %v3391
  %v3393 = vshrl.u32 683565275, %v3392
  %v3394 = vshll.u32 683565275, %v3391
  %v3395 = vshrl.u32 2475754826, %v3392
  %v3396 = vor.u32 %v3394, %v3395
  %v3397 = vshll.u32 2475754826, %v3391
  %v3398 = vshrl.u32 2131351028, %v3392
  %v3399 = vor.u32 %v3397, %v3398
  %v3400 = vshll.u32 2131351028, %v3391
  %v3401 = vshrl.u32 2102212464, %v3392
  %v3402 = vor.u32 %v3400, %v3401
  %v3403 = vshll.u32 2102212464, %v3391
  %v3404 = vshrl.u32 920167782, %v3392
  %v3405 = vor.u32 %v3403, %v3404
  %v3406 = vshll.u32 920167782, %v3391
  %v3407 = vshrl.u32 1326507024, %v3392
  %v3408 = vor.u32 %v3406, %v3407
  %vm3409 = vcmp.lt.s32.totalorder %v3390, 1
  %vm3410 = vcmp.lt.s32.totalorder %v3390, 2
  %vm3411 = vcmp.lt.s32.totalorder %v3390, 3
  %vm3412 = vcmp.lt.s32.totalorder %v3390, 4
  %v3413 = vsel %vm3409, %v3393, %v3396
  %v3414 = vsel %vm3412, %v3402, 2102212464
  %v3415 = vsel %vm3411, %v3399, %v3414
  %v3416 = vsel %vm3410, %v3413, %v3415
  %v3417 = vsel %vm3409, %v3396, %v3399
  %v3418 = vsel %vm3412, %v3405, 920167782
  %v3419 = vsel %vm3411, %v3402, %v3418
  %v3420 = vsel %vm3410, %v3417, %v3419
  %v3421 = vsel %vm3409, %v3399, %v3402
  %v3422 = vsel %vm3412, %v3408, 1326507024
  %v3423 = vsel %vm3411, %v3405, %v3422
  %v3424 = vsel %vm3410, %v3421, %v3423
  %v3425 = vshll.u32 %v3385, 8
  %v3426 = vmul.u32.u64.compose %v3425, %v3424
  %v3427 = vextract.low.u32 %v3426
  %v3428 = vextract.high.u32 %v3426
  %v3429 = vmul.u32.u64.compose %v3425, %v3420
  %v3430 = vextract.low.u32 %v3429
  %v3431 = vextract.high.u32 %v3429
  %v3432 = vmul.u32 %v3425, %v3416
  %v3433 = vadd.s32 %v3428, %v3430
  %vm3434 = vc.u32 %v3428, %v3430
  %v3435 = vadd.s32 %v3431, 1
  %v3436 = vsel %vm3434, %v3435, %v3431
  %v3437 = vadd.s32 %v3432, %v3436
  %v3438 = vadd.s32 %v3437, 536870912
  %v3439 = vshrl.u32 %v3438, 30
  %v3440 = vshll.u32 %v3439, 30
  %v3441 = vsub.s32 %v3437, %v3440
  %vm3442 = vcmp.lt.s32.totalorder %v3441, 0
  %v3443 = vsub.s32 0, %v3441
  %v3444 = vsel %vm3442, %v3443, %v3441
  %v3445 = vclz %v3444
  %v3446 = vsub.s32 %v3445, 2
  %vm3447 = vcmp.gt.s32.totalorder 0, %v3446
  %v3448 = vsel %vm3447, 0, %v3446
  %v3449 = vsub.s32 32, %v3448
  %v3450 = vshll.u32 %v3441, %v3448
  %v3451 = vshrl.u32 %v3433, %v3449
  %v3452 = vor.u32 %v3450, %v3451
  %v3453 = vsub.s32 4294967266, %v3448
  %v3454 = vadd.s32 %v3453, 127
  %v3455 = vshll.u32 %v3454, 23
  %v3456 = vor.u32 4788187, %v3455
  %v3457 = vand.u32 2147483647, %v3456
  %v3459 = vcvt.s32.f32 %v3452
  %v3460 = vmul.f32 %v3459, %v3457
  %v3461 = vxor.u32 %v3460, 2147483648
  %v3462 = vsel %vm3379, %v3461, %v3460
  %v3463 = vsub.s32 4, %v3439
  %v3464 = vsel %vm3379, %v3463, %v3439
  %v3465 = vsel %vm3378, %v252, %v3462
  %v3466 = vsel %vm3378, 0, %v3464
  %v3467 = vcosq.f32.pop %v3465
  %v3468 = vsinq.f32.pop %v3465
  %vm3469 = vweird.f32 %v252
  %v3470 = vadd.s32 %v3466, 3
  %v3471 = vand.u32 %v3470, 3
  %vm3472 = vcmp.lt.s32.totalorder %v3471, 2
  %vm3473 = vcmp.eq.s32.totalorder %v3471, 0
  %v3474 = vxor.u32 %v3468, 2147483648
  %v3475 = vsel %vm3473, %v3467, %v3474
  %vm3476 = vcmp.eq.s32.totalorder %v3471, 2
  %v3477 = vxor.u32 %v3467, 2147483648
  %v3478 = vsel %vm3476, %v3477, %v3468
  %v3479 = vsel %vm3472, %v3475, %v3478
  %v3480 = vsel %vm3469, nan, %v3479
  %v3481 = vand.u32 2147483647, %v253
  %vm3482 = vcmp.le.f32.partialorder %v3481, 0.7853982
  %vm3483 = vcmp.lt.s32.totalorder %v253, 0
  %v3484 = vand.u32 %v253, 2139095040
  %v3485 = vshrl.u32 %v3484, 23
  %v3486 = vsub.s32 %v3485, 127
  %v3487 = vand.u32 2147483647, %v253
  %v3488 = vand.u32 %v3487, 8388607
  %v3489 = vor.u32 %v3488, 8388608
  %v3490 = vsub.s32 0, %v3489
  %v3491 = vadd.s32 %v3486, 1
  %vm3492 = vcmp.gt.s32.totalorder %v3491, 0
  %v3493 = vsel %vm3492, %v3491, 0
  %v3494 = vshrl.u32 %v3493, 5
  %v3495 = vand.u32 %v3493, 31
  %v3496 = vsub.s32 32, %v3495
  %v3497 = vshrl.u32 683565275, %v3496
  %v3498 = vshll.u32 683565275, %v3495
  %v3499 = vshrl.u32 2475754826, %v3496
  %v3500 = vor.u32 %v3498, %v3499
  %v3501 = vshll.u32 2475754826, %v3495
  %v3502 = vshrl.u32 2131351028, %v3496
  %v3503 = vor.u32 %v3501, %v3502
  %v3504 = vshll.u32 2131351028, %v3495
  %v3505 = vshrl.u32 2102212464, %v3496
  %v3506 = vor.u32 %v3504, %v3505
  %v3507 = vshll.u32 2102212464, %v3495
  %v3508 = vshrl.u32 920167782, %v3496
  %v3509 = vor.u32 %v3507, %v3508
  %v3510 = vshll.u32 920167782, %v3495
  %v3511 = vshrl.u32 1326507024, %v3496
  %v3512 = vor.u32 %v3510, %v3511
  %vm3513 = vcmp.lt.s32.totalorder %v3494, 1
  %vm3514 = vcmp.lt.s32.totalorder %v3494, 2
  %vm3515 = vcmp.lt.s32.totalorder %v3494, 3
  %vm3516 = vcmp.lt.s32.totalorder %v3494, 4
  %v3517 = vsel %vm3513, %v3497, %v3500
  %v3518 = vsel %vm3516, %v3506, 2102212464
  %v3519 = vsel %vm3515, %v3503, %v3518
  %v3520 = vsel %vm3514, %v3517, %v3519
  %v3521 = vsel %vm3513, %v3500, %v3503
  %v3522 = vsel %vm3516, %v3509, 920167782
  %v3523 = vsel %vm3515, %v3506, %v3522
  %v3524 = vsel %vm3514, %v3521, %v3523
  %v3525 = vsel %vm3513, %v3503, %v3506
  %v3526 = vsel %vm3516, %v3512, 1326507024
  %v3527 = vsel %vm3515, %v3509, %v3526
  %v3528 = vsel %vm3514, %v3525, %v3527
  %v3529 = vshll.u32 %v3489, 8
  %v3530 = vmul.u32.u64.compose %v3529, %v3528
  %v3531 = vextract.low.u32 %v3530
  %v3532 = vextract.high.u32 %v3530
  %v3533 = vmul.u32.u64.compose %v3529, %v3524
  %v3534 = vextract.low.u32 %v3533
  %v3535 = vextract.high.u32 %v3533
  %v3536 = vmul.u32 %v3529, %v3520
  %v3537 = vadd.s32 %v3532, %v3534
  %vm3538 = vc.u32 %v3532, %v3534
  %v3539 = vadd.s32 %v3535, 1
  %v3540 = vsel %vm3538, %v3539, %v3535
  %v3541 = vadd.s32 %v3536, %v3540
  %v3542 = vadd.s32 %v3541, 536870912
  %v3543 = vshrl.u32 %v3542, 30
  %v3544 = vshll.u32 %v3543, 30
  %v3545 = vsub.s32 %v3541, %v3544
  %vm3546 = vcmp.lt.s32.totalorder %v3545, 0
  %v3547 = vsub.s32 0, %v3545
  %v3548 = vsel %vm3546, %v3547, %v3545
  %v3549 = vclz %v3548
  %v3550 = vsub.s32 %v3549, 2
  %vm3551 = vcmp.gt.s32.totalorder 0, %v3550
  %v3552 = vsel %vm3551, 0, %v3550
  %v3553 = vsub.s32 32, %v3552
  %v3554 = vshll.u32 %v3545, %v3552
  %v3555 = vshrl.u32 %v3537, %v3553
  %v3556 = vor.u32 %v3554, %v3555
  %v3557 = vsub.s32 4294967266, %v3552
  %v3558 = vadd.s32 %v3557, 127
  %v3559 = vshll.u32 %v3558, 23
  %v3560 = vor.u32 4788187, %v3559
  %v3561 = vand.u32 2147483647, %v3560
  %v3563 = vcvt.s32.f32 %v3556
  %v3564 = vmul.f32 %v3563, %v3561
  %v3565 = vxor.u32 %v3564, 2147483648
  %v3566 = vsel %vm3483, %v3565, %v3564
  %v3567 = vsub.s32 4, %v3543
  %v3568 = vsel %vm3483, %v3567, %v3543
  %v3569 = vsel %vm3482, %v253, %v3566
  %v3570 = vsel %vm3482, 0, %v3568
  %v3571 = vcosq.f32.pop %v3569
  %v3572 = vsinq.f32.pop %v3569
  %vm3573 = vweird.f32 %v253
  %v3574 = vadd.s32 %v3570, 3
  %v3575 = vand.u32 %v3574, 3
  %vm3576 = vcmp.lt.s32.totalorder %v3575, 2
  %vm3577 = vcmp.eq.s32.totalorder %v3575, 0
  %v3578 = vxor.u32 %v3572, 2147483648
  %v3579 = vsel %vm3577, %v3571, %v3578
  %vm3580 = vcmp.eq.s32.totalorder %v3575, 2
  %v3581 = vxor.u32 %v3571, 2147483648
  %v3582 = vsel %vm3580, %v3581, %v3572
  %v3583 = vsel %vm3576, %v3579, %v3582
  %v3584 = vsel %vm3573, nan, %v3583
  %v3585 = vand.u32 2147483647, %v222
  %vm3586 = vcmp.le.f32.partialorder %v3585, 0.7853982
  %vm3587 = vcmp.lt.s32.totalorder %v222, 0
  %v3588 = vand.u32 %v222, 2139095040
  %v3589 = vshrl.u32 %v3588, 23
  %v3590 = vsub.s32 %v3589, 127
  %v3591 = vand.u32 2147483647, %v222
  %v3592 = vand.u32 %v3591, 8388607
  %v3593 = vor.u32 %v3592, 8388608
  %v3594 = vsub.s32 0, %v3593
  %v3595 = vadd.s32 %v3590, 1
  %vm3596 = vcmp.gt.s32.totalorder %v3595, 0
  %v3597 = vsel %vm3596, %v3595, 0
  %v3598 = vshrl.u32 %v3597, 5
  %v3599 = vand.u32 %v3597, 31
  %v3600 = vsub.s32 32, %v3599
  %v3601 = vshrl.u32 683565275, %v3600
  %v3602 = vshll.u32 683565275, %v3599
  %v3603 = vshrl.u32 2475754826, %v3600
  %v3604 = vor.u32 %v3602, %v3603
  %v3605 = vshll.u32 2475754826, %v3599
  %v3606 = vshrl.u32 2131351028, %v3600
  %v3607 = vor.u32 %v3605, %v3606
  %v3608 = vshll.u32 2131351028, %v3599
  %v3609 = vshrl.u32 2102212464, %v3600
  %v3610 = vor.u32 %v3608, %v3609
  %v3611 = vshll.u32 2102212464, %v3599
  %v3612 = vshrl.u32 920167782, %v3600
  %v3613 = vor.u32 %v3611, %v3612
  %v3614 = vshll.u32 920167782, %v3599
  %v3615 = vshrl.u32 1326507024, %v3600
  %v3616 = vor.u32 %v3614, %v3615
  %vm3617 = vcmp.lt.s32.totalorder %v3598, 1
  %vm3618 = vcmp.lt.s32.totalorder %v3598, 2
  %vm3619 = vcmp.lt.s32.totalorder %v3598, 3
  %vm3620 = vcmp.lt.s32.totalorder %v3598, 4
  %v3621 = vsel %vm3617, %v3601, %v3604
  %v3622 = vsel %vm3620, %v3610, 2102212464
  %v3623 = vsel %vm3619, %v3607, %v3622
  %v3624 = vsel %vm3618, %v3621, %v3623
  %v3625 = vsel %vm3617, %v3604, %v3607
  %v3626 = vsel %vm3620, %v3613, 920167782
  %v3627 = vsel %vm3619, %v3610, %v3626
  %v3628 = vsel %vm3618, %v3625, %v3627
  %v3629 = vsel %vm3617, %v3607, %v3610
  %v3630 = vsel %vm3620, %v3616, 1326507024
  %v3631 = vsel %vm3619, %v3613, %v3630
  %v3632 = vsel %vm3618, %v3629, %v3631
  %v3633 = vshll.u32 %v3593, 8
  %v3634 = vmul.u32.u64.compose %v3633, %v3632
  %v3635 = vextract.low.u32 %v3634
  %v3636 = vextract.high.u32 %v3634
  %v3637 = vmul.u32.u64.compose %v3633, %v3628
  %v3638 = vextract.low.u32 %v3637
  %v3639 = vextract.high.u32 %v3637
  %v3640 = vmul.u32 %v3633, %v3624
  %v3641 = vadd.s32 %v3636, %v3638
  %vm3642 = vc.u32 %v3636, %v3638
  %v3643 = vadd.s32 %v3639, 1
  %v3644 = vsel %vm3642, %v3643, %v3639
  %v3645 = vadd.s32 %v3640, %v3644
  %v3646 = vadd.s32 %v3645, 536870912
  %v3647 = vshrl.u32 %v3646, 30
  %v3648 = vshll.u32 %v3647, 30
  %v3649 = vsub.s32 %v3645, %v3648
  %vm3650 = vcmp.lt.s32.totalorder %v3649, 0
  %v3651 = vsub.s32 0, %v3649
  %v3652 = vsel %vm3650, %v3651, %v3649
  %v3653 = vclz %v3652
  %v3654 = vsub.s32 %v3653, 2
  %vm3655 = vcmp.gt.s32.totalorder 0, %v3654
  %v3656 = vsel %vm3655, 0, %v3654
  %v3657 = vsub.s32 32, %v3656
  %v3658 = vshll.u32 %v3649, %v3656
  %v3659 = vshrl.u32 %v3641, %v3657
  %v3660 = vor.u32 %v3658, %v3659
  %v3661 = vsub.s32 4294967266, %v3656
  %v3662 = vadd.s32 %v3661, 127
  %v3663 = vshll.u32 %v3662, 23
  %v3664 = vor.u32 4788187, %v3663
  %v3665 = vand.u32 2147483647, %v3664
  %v3667 = vcvt.s32.f32 %v3660
  %v3668 = vmul.f32 %v3667, %v3665
  %v3669 = vxor.u32 %v3668, 2147483648
  %v3670 = vsel %vm3587, %v3669, %v3668
  %v3671 = vsub.s32 4, %v3647
  %v3672 = vsel %vm3587, %v3671, %v3647
  %v3673 = vsel %vm3586, %v222, %v3670
  %v3674 = vsel %vm3586, 0, %v3672
  %v3675 = vcosq.f32.pop %v3673
  %v3676 = vsinq.f32.pop %v3673
  %vm3677 = vweird.f32 %v222
  %v3678 = vand.u32 %v3674, 3
  %vm3679 = vcmp.lt.s32.totalorder %v3678, 2
  %vm3680 = vcmp.eq.s32.totalorder %v3678, 0
  %v3681 = vxor.u32 %v3676, 2147483648
  %v3682 = vsel %vm3680, %v3675, %v3681
  %vm3683 = vcmp.eq.s32.totalorder %v3678, 2
  %v3684 = vxor.u32 %v3675, 2147483648
  %v3685 = vsel %vm3683, %v3684, %v3676
  %v3686 = vsel %vm3679, %v3682, %v3685
  %v3687 = vsel %vm3677, nan, %v3686
  %v3688 = vand.u32 2147483647, %v223
  %vm3689 = vcmp.le.f32.partialorder %v3688, 0.7853982
  %vm3690 = vcmp.lt.s32.totalorder %v223, 0
  %v3691 = vand.u32 %v223, 2139095040
  %v3692 = vshrl.u32 %v3691, 23
  %v3693 = vsub.s32 %v3692, 127
  %v3694 = vand.u32 2147483647, %v223
  %v3695 = vand.u32 %v3694, 8388607
  %v3696 = vor.u32 %v3695, 8388608
  %v3697 = vsub.s32 0, %v3696
  %v3698 = vadd.s32 %v3693, 1
  %vm3699 = vcmp.gt.s32.totalorder %v3698, 0
  %v3700 = vsel %vm3699, %v3698, 0
  %v3701 = vshrl.u32 %v3700, 5
  %v3702 = vand.u32 %v3700, 31
  %v3703 = vsub.s32 32, %v3702
  %v3704 = vshrl.u32 683565275, %v3703
  %v3705 = vshll.u32 683565275, %v3702
  %v3706 = vshrl.u32 2475754826, %v3703
  %v3707 = vor.u32 %v3705, %v3706
  %v3708 = vshll.u32 2475754826, %v3702
  %v3709 = vshrl.u32 2131351028, %v3703
  %v3710 = vor.u32 %v3708, %v3709
  %v3711 = vshll.u32 2131351028, %v3702
  %v3712 = vshrl.u32 2102212464, %v3703
  %v3713 = vor.u32 %v3711, %v3712
  %v3714 = vshll.u32 2102212464, %v3702
  %v3715 = vshrl.u32 920167782, %v3703
  %v3716 = vor.u32 %v3714, %v3715
  %v3717 = vshll.u32 920167782, %v3702
  %v3718 = vshrl.u32 1326507024, %v3703
  %v3719 = vor.u32 %v3717, %v3718
  %vm3720 = vcmp.lt.s32.totalorder %v3701, 1
  %vm3721 = vcmp.lt.s32.totalorder %v3701, 2
  %vm3722 = vcmp.lt.s32.totalorder %v3701, 3
  %vm3723 = vcmp.lt.s32.totalorder %v3701, 4
  %v3724 = vsel %vm3720, %v3704, %v3707
  %v3725 = vsel %vm3723, %v3713, 2102212464
  %v3726 = vsel %vm3722, %v3710, %v3725
  %v3727 = vsel %vm3721, %v3724, %v3726
  %v3728 = vsel %vm3720, %v3707, %v3710
  %v3729 = vsel %vm3723, %v3716, 920167782
  %v3730 = vsel %vm3722, %v3713, %v3729
  %v3731 = vsel %vm3721, %v3728, %v3730
  %v3732 = vsel %vm3720, %v3710, %v3713
  %v3733 = vsel %vm3723, %v3719, 1326507024
  %v3734 = vsel %vm3722, %v3716, %v3733
  %v3735 = vsel %vm3721, %v3732, %v3734
  %v3736 = vshll.u32 %v3696, 8
  %v3737 = vmul.u32.u64.compose %v3736, %v3735
  %v3738 = vextract.low.u32 %v3737
  %v3739 = vextract.high.u32 %v3737
  %v3740 = vmul.u32.u64.compose %v3736, %v3731
  %v3741 = vextract.low.u32 %v3740
  %v3742 = vextract.high.u32 %v3740
  %v3743 = vmul.u32 %v3736, %v3727
  %v3744 = vadd.s32 %v3739, %v3741
  %vm3745 = vc.u32 %v3739, %v3741
  %v3746 = vadd.s32 %v3742, 1
  %v3747 = vsel %vm3745, %v3746, %v3742
  %v3748 = vadd.s32 %v3743, %v3747
  %v3749 = vadd.s32 %v3748, 536870912
  %v3750 = vshrl.u32 %v3749, 30
  %v3751 = vshll.u32 %v3750, 30
  %v3752 = vsub.s32 %v3748, %v3751
  %vm3753 = vcmp.lt.s32.totalorder %v3752, 0
  %v3754 = vsub.s32 0, %v3752
  %v3755 = vsel %vm3753, %v3754, %v3752
  %v3756 = vclz %v3755
  %v3757 = vsub.s32 %v3756, 2
  %vm3758 = vcmp.gt.s32.totalorder 0, %v3757
  %v3759 = vsel %vm3758, 0, %v3757
  %v3760 = vsub.s32 32, %v3759
  %v3761 = vshll.u32 %v3752, %v3759
  %v3762 = vshrl.u32 %v3744, %v3760
  %v3763 = vor.u32 %v3761, %v3762
  %v3764 = vsub.s32 4294967266, %v3759
  %v3765 = vadd.s32 %v3764, 127
  %v3766 = vshll.u32 %v3765, 23
  %v3767 = vor.u32 4788187, %v3766
  %v3768 = vand.u32 2147483647, %v3767
  %v3770 = vcvt.s32.f32 %v3763
  %v3771 = vmul.f32 %v3770, %v3768
  %v3772 = vxor.u32 %v3771, 2147483648
  %v3773 = vsel %vm3690, %v3772, %v3771
  %v3774 = vsub.s32 4, %v3750
  %v3775 = vsel %vm3690, %v3774, %v3750
  %v3776 = vsel %vm3689, %v223, %v3773
  %v3777 = vsel %vm3689, 0, %v3775
  %v3778 = vcosq.f32.pop %v3776
  %v3779 = vsinq.f32.pop %v3776
  %vm3780 = vweird.f32 %v223
  %v3781 = vand.u32 %v3777, 3
  %vm3782 = vcmp.lt.s32.totalorder %v3781, 2
  %vm3783 = vcmp.eq.s32.totalorder %v3781, 0
  %v3784 = vxor.u32 %v3779, 2147483648
  %v3785 = vsel %vm3783, %v3778, %v3784
  %vm3786 = vcmp.eq.s32.totalorder %v3781, 2
  %v3787 = vxor.u32 %v3778, 2147483648
  %v3788 = vsel %vm3786, %v3787, %v3779
  %v3789 = vsel %vm3782, %v3785, %v3788
  %v3790 = vsel %vm3780, nan, %v3789
  %v3791 = vand.u32 2147483647, %v224
  %vm3792 = vcmp.le.f32.partialorder %v3791, 0.7853982
  %vm3793 = vcmp.lt.s32.totalorder %v224, 0
  %v3794 = vand.u32 %v224, 2139095040
  %v3795 = vshrl.u32 %v3794, 23
  %v3796 = vsub.s32 %v3795, 127
  %v3797 = vand.u32 2147483647, %v224
  %v3798 = vand.u32 %v3797, 8388607
  %v3799 = vor.u32 %v3798, 8388608
  %v3800 = vsub.s32 0, %v3799
  %v3801 = vadd.s32 %v3796, 1
  %vm3802 = vcmp.gt.s32.totalorder %v3801, 0
  %v3803 = vsel %vm3802, %v3801, 0
  %v3804 = vshrl.u32 %v3803, 5
  %v3805 = vand.u32 %v3803, 31
  %v3806 = vsub.s32 32, %v3805
  %v3807 = vshrl.u32 683565275, %v3806
  %v3808 = vshll.u32 683565275, %v3805
  %v3809 = vshrl.u32 2475754826, %v3806
  %v3810 = vor.u32 %v3808, %v3809
  %v3811 = vshll.u32 2475754826, %v3805
  %v3812 = vshrl.u32 2131351028, %v3806
  %v3813 = vor.u32 %v3811, %v3812
  %v3814 = vshll.u32 2131351028, %v3805
  %v3815 = vshrl.u32 2102212464, %v3806
  %v3816 = vor.u32 %v3814, %v3815
  %v3817 = vshll.u32 2102212464, %v3805
  %v3818 = vshrl.u32 920167782, %v3806
  %v3819 = vor.u32 %v3817, %v3818
  %v3820 = vshll.u32 920167782, %v3805
  %v3821 = vshrl.u32 1326507024, %v3806
  %v3822 = vor.u32 %v3820, %v3821
  %vm3823 = vcmp.lt.s32.totalorder %v3804, 1
  %vm3824 = vcmp.lt.s32.totalorder %v3804, 2
  %vm3825 = vcmp.lt.s32.totalorder %v3804, 3
  %vm3826 = vcmp.lt.s32.totalorder %v3804, 4
  %v3827 = vsel %vm3823, %v3807, %v3810
  %v3828 = vsel %vm3826, %v3816, 2102212464
  %v3829 = vsel %vm3825, %v3813, %v3828
  %v3830 = vsel %vm3824, %v3827, %v3829
  %v3831 = vsel %vm3823, %v3810, %v3813
  %v3832 = vsel %vm3826, %v3819, 920167782
  %v3833 = vsel %vm3825, %v3816, %v3832
  %v3834 = vsel %vm3824, %v3831, %v3833
  %v3835 = vsel %vm3823, %v3813, %v3816
  %v3836 = vsel %vm3826, %v3822, 1326507024
  %v3837 = vsel %vm3825, %v3819, %v3836
  %v3838 = vsel %vm3824, %v3835, %v3837
  %v3839 = vshll.u32 %v3799, 8
  %v3840 = vmul.u32.u64.compose %v3839, %v3838
  %v3841 = vextract.low.u32 %v3840
  %v3842 = vextract.high.u32 %v3840
  %v3843 = vmul.u32.u64.compose %v3839, %v3834
  %v3844 = vextract.low.u32 %v3843
  %v3845 = vextract.high.u32 %v3843
  %v3846 = vmul.u32 %v3839, %v3830
  %v3847 = vadd.s32 %v3842, %v3844
  %vm3848 = vc.u32 %v3842, %v3844
  %v3849 = vadd.s32 %v3845, 1
  %v3850 = vsel %vm3848, %v3849, %v3845
  %v3851 = vadd.s32 %v3846, %v3850
  %v3852 = vadd.s32 %v3851, 536870912
  %v3853 = vshrl.u32 %v3852, 30
  %v3854 = vshll.u32 %v3853, 30
  %v3855 = vsub.s32 %v3851, %v3854
  %vm3856 = vcmp.lt.s32.totalorder %v3855, 0
  %v3857 = vsub.s32 0, %v3855
  %v3858 = vsel %vm3856, %v3857, %v3855
  %v3859 = vclz %v3858
  %v3860 = vsub.s32 %v3859, 2
  %vm3861 = vcmp.gt.s32.totalorder 0, %v3860
  %v3862 = vsel %vm3861, 0, %v3860
  %v3863 = vsub.s32 32, %v3862
  %v3864 = vshll.u32 %v3855, %v3862
  %v3865 = vshrl.u32 %v3847, %v3863
  %v3866 = vor.u32 %v3864, %v3865
  %v3867 = vsub.s32 4294967266, %v3862
  %v3868 = vadd.s32 %v3867, 127
  %v3869 = vshll.u32 %v3868, 23
  %v3870 = vor.u32 4788187, %v3869
  %v3871 = vand.u32 2147483647, %v3870
  %v3873 = vcvt.s32.f32 %v3866
  %v3874 = vmul.f32 %v3873, %v3871
  %v3875 = vxor.u32 %v3874, 2147483648
  %v3876 = vsel %vm3793, %v3875, %v3874
  %v3877 = vsub.s32 4, %v3853
  %v3878 = vsel %vm3793, %v3877, %v3853
  %v3879 = vsel %vm3792, %v224, %v3876
  %v3880 = vsel %vm3792, 0, %v3878
  %v3881 = vcosq.f32.pop %v3879
  %v3882 = vsinq.f32.pop %v3879
  %vm3883 = vweird.f32 %v224
  %v3884 = vand.u32 %v3880, 3
  %vm3885 = vcmp.lt.s32.totalorder %v3884, 2
  %vm3886 = vcmp.eq.s32.totalorder %v3884, 0
  %v3887 = vxor.u32 %v3882, 2147483648
  %v3888 = vsel %vm3886, %v3881, %v3887
  %vm3889 = vcmp.eq.s32.totalorder %v3884, 2
  %v3890 = vxor.u32 %v3881, 2147483648
  %v3891 = vsel %vm3889, %v3890, %v3882
  %v3892 = vsel %vm3885, %v3888, %v3891
  %v3893 = vsel %vm3883, nan, %v3892
  %v3894 = vand.u32 2147483647, %v225
  %vm3895 = vcmp.le.f32.partialorder %v3894, 0.7853982
  %vm3896 = vcmp.lt.s32.totalorder %v225, 0
  %v3897 = vand.u32 %v225, 2139095040
  %v3898 = vshrl.u32 %v3897, 23
  %v3899 = vsub.s32 %v3898, 127
  %v3900 = vand.u32 2147483647, %v225
  %v3901 = vand.u32 %v3900, 8388607
  %v3902 = vor.u32 %v3901, 8388608
  %v3903 = vsub.s32 0, %v3902
  %v3904 = vadd.s32 %v3899, 1
  %vm3905 = vcmp.gt.s32.totalorder %v3904, 0
  %v3906 = vsel %vm3905, %v3904, 0
  %v3907 = vshrl.u32 %v3906, 5
  %v3908 = vand.u32 %v3906, 31
  %v3909 = vsub.s32 32, %v3908
  %v3910 = vshrl.u32 683565275, %v3909
  %v3911 = vshll.u32 683565275, %v3908
  %v3912 = vshrl.u32 2475754826, %v3909
  %v3913 = vor.u32 %v3911, %v3912
  %v3914 = vshll.u32 2475754826, %v3908
  %v3915 = vshrl.u32 2131351028, %v3909
  %v3916 = vor.u32 %v3914, %v3915
  %v3917 = vshll.u32 2131351028, %v3908
  %v3918 = vshrl.u32 2102212464, %v3909
  %v3919 = vor.u32 %v3917, %v3918
  %v3920 = vshll.u32 2102212464, %v3908
  %v3921 = vshrl.u32 920167782, %v3909
  %v3922 = vor.u32 %v3920, %v3921
  %v3923 = vshll.u32 920167782, %v3908
  %v3924 = vshrl.u32 1326507024, %v3909
  %v3925 = vor.u32 %v3923, %v3924
  %vm3926 = vcmp.lt.s32.totalorder %v3907, 1
  %vm3927 = vcmp.lt.s32.totalorder %v3907, 2
  %vm3928 = vcmp.lt.s32.totalorder %v3907, 3
  %vm3929 = vcmp.lt.s32.totalorder %v3907, 4
  %v3930 = vsel %vm3926, %v3910, %v3913
  %v3931 = vsel %vm3929, %v3919, 2102212464
  %v3932 = vsel %vm3928, %v3916, %v3931
  %v3933 = vsel %vm3927, %v3930, %v3932
  %v3934 = vsel %vm3926, %v3913, %v3916
  %v3935 = vsel %vm3929, %v3922, 920167782
  %v3936 = vsel %vm3928, %v3919, %v3935
  %v3937 = vsel %vm3927, %v3934, %v3936
  %v3938 = vsel %vm3926, %v3916, %v3919
  %v3939 = vsel %vm3929, %v3925, 1326507024
  %v3940 = vsel %vm3928, %v3922, %v3939
  %v3941 = vsel %vm3927, %v3938, %v3940
  %v3942 = vshll.u32 %v3902, 8
  %v3943 = vmul.u32.u64.compose %v3942, %v3941
  %v3944 = vextract.low.u32 %v3943
  %v3945 = vextract.high.u32 %v3943
  %v3946 = vmul.u32.u64.compose %v3942, %v3937
  %v3947 = vextract.low.u32 %v3946
  %v3948 = vextract.high.u32 %v3946
  %v3949 = vmul.u32 %v3942, %v3933
  %v3950 = vadd.s32 %v3945, %v3947
  %vm3951 = vc.u32 %v3945, %v3947
  %v3952 = vadd.s32 %v3948, 1
  %v3953 = vsel %vm3951, %v3952, %v3948
  %v3954 = vadd.s32 %v3949, %v3953
  %v3955 = vadd.s32 %v3954, 536870912
  %v3956 = vshrl.u32 %v3955, 30
  %v3957 = vshll.u32 %v3956, 30
  %v3958 = vsub.s32 %v3954, %v3957
  %vm3959 = vcmp.lt.s32.totalorder %v3958, 0
  %v3960 = vsub.s32 0, %v3958
  %v3961 = vsel %vm3959, %v3960, %v3958
  %v3962 = vclz %v3961
  %v3963 = vsub.s32 %v3962, 2
  %vm3964 = vcmp.gt.s32.totalorder 0, %v3963
  %v3965 = vsel %vm3964, 0, %v3963
  %v3966 = vsub.s32 32, %v3965
  %v3967 = vshll.u32 %v3958, %v3965
  %v3968 = vshrl.u32 %v3950, %v3966
  %v3969 = vor.u32 %v3967, %v3968
  %v3970 = vsub.s32 4294967266, %v3965
  %v3971 = vadd.s32 %v3970, 127
  %v3972 = vshll.u32 %v3971, 23
  %v3973 = vor.u32 4788187, %v3972
  %v3974 = vand.u32 2147483647, %v3973
  %v3976 = vcvt.s32.f32 %v3969
  %v3977 = vmul.f32 %v3976, %v3974
  %v3978 = vxor.u32 %v3977, 2147483648
  %v3979 = vsel %vm3896, %v3978, %v3977
  %v3980 = vsub.s32 4, %v3956
  %v3981 = vsel %vm3896, %v3980, %v3956
  %v3982 = vsel %vm3895, %v225, %v3979
  %v3983 = vsel %vm3895, 0, %v3981
  %v3984 = vcosq.f32.pop %v3982
  %v3985 = vsinq.f32.pop %v3982
  %vm3986 = vweird.f32 %v225
  %v3987 = vand.u32 %v3983, 3
  %vm3988 = vcmp.lt.s32.totalorder %v3987, 2
  %vm3989 = vcmp.eq.s32.totalorder %v3987, 0
  %v3990 = vxor.u32 %v3985, 2147483648
  %v3991 = vsel %vm3989, %v3984, %v3990
  %vm3992 = vcmp.eq.s32.totalorder %v3987, 2
  %v3993 = vxor.u32 %v3984, 2147483648
  %v3994 = vsel %vm3992, %v3993, %v3985
  %v3995 = vsel %vm3988, %v3991, %v3994
  %v3996 = vsel %vm3986, nan, %v3995
  %v3997 = vand.u32 2147483647, %v226
  %vm3998 = vcmp.le.f32.partialorder %v3997, 0.7853982
  %vm3999 = vcmp.lt.s32.totalorder %v226, 0
  %v4000 = vand.u32 %v226, 2139095040
  %v4001 = vshrl.u32 %v4000, 23
  %v4002 = vsub.s32 %v4001, 127
  %v4003 = vand.u32 2147483647, %v226
  %v4004 = vand.u32 %v4003, 8388607
  %v4005 = vor.u32 %v4004, 8388608
  %v4006 = vsub.s32 0, %v4005
  %v4007 = vadd.s32 %v4002, 1
  %vm4008 = vcmp.gt.s32.totalorder %v4007, 0
  %v4009 = vsel %vm4008, %v4007, 0
  %v4010 = vshrl.u32 %v4009, 5
  %v4011 = vand.u32 %v4009, 31
  %v4012 = vsub.s32 32, %v4011
  %v4013 = vshrl.u32 683565275, %v4012
  %v4014 = vshll.u32 683565275, %v4011
  %v4015 = vshrl.u32 2475754826, %v4012
  %v4016 = vor.u32 %v4014, %v4015
  %v4017 = vshll.u32 2475754826, %v4011
  %v4018 = vshrl.u32 2131351028, %v4012
  %v4019 = vor.u32 %v4017, %v4018
  %v4020 = vshll.u32 2131351028, %v4011
  %v4021 = vshrl.u32 2102212464, %v4012
  %v4022 = vor.u32 %v4020, %v4021
  %v4023 = vshll.u32 2102212464, %v4011
  %v4024 = vshrl.u32 920167782, %v4012
  %v4025 = vor.u32 %v4023, %v4024
  %v4026 = vshll.u32 920167782, %v4011
  %v4027 = vshrl.u32 1326507024, %v4012
  %v4028 = vor.u32 %v4026, %v4027
  %vm4029 = vcmp.lt.s32.totalorder %v4010, 1
  %vm4030 = vcmp.lt.s32.totalorder %v4010, 2
  %vm4031 = vcmp.lt.s32.totalorder %v4010, 3
  %vm4032 = vcmp.lt.s32.totalorder %v4010, 4
  %v4033 = vsel %vm4029, %v4013, %v4016
  %v4034 = vsel %vm4032, %v4022, 2102212464
  %v4035 = vsel %vm4031, %v4019, %v4034
  %v4036 = vsel %vm4030, %v4033, %v4035
  %v4037 = vsel %vm4029, %v4016, %v4019
  %v4038 = vsel %vm4032, %v4025, 920167782
  %v4039 = vsel %vm4031, %v4022, %v4038
  %v4040 = vsel %vm4030, %v4037, %v4039
  %v4041 = vsel %vm4029, %v4019, %v4022
  %v4042 = vsel %vm4032, %v4028, 1326507024
  %v4043 = vsel %vm4031, %v4025, %v4042
  %v4044 = vsel %vm4030, %v4041, %v4043
  %v4045 = vshll.u32 %v4005, 8
  %v4046 = vmul.u32.u64.compose %v4045, %v4044
  %v4047 = vextract.low.u32 %v4046
  %v4048 = vextract.high.u32 %v4046
  %v4049 = vmul.u32.u64.compose %v4045, %v4040
  %v4050 = vextract.low.u32 %v4049
  %v4051 = vextract.high.u32 %v4049
  %v4052 = vmul.u32 %v4045, %v4036
  %v4053 = vadd.s32 %v4048, %v4050
  %vm4054 = vc.u32 %v4048, %v4050
  %v4055 = vadd.s32 %v4051, 1
  %v4056 = vsel %vm4054, %v4055, %v4051
  %v4057 = vadd.s32 %v4052, %v4056
  %v4058 = vadd.s32 %v4057, 536870912
  %v4059 = vshrl.u32 %v4058, 30
  %v4060 = vshll.u32 %v4059, 30
  %v4061 = vsub.s32 %v4057, %v4060
  %vm4062 = vcmp.lt.s32.totalorder %v4061, 0
  %v4063 = vsub.s32 0, %v4061
  %v4064 = vsel %vm4062, %v4063, %v4061
  %v4065 = vclz %v4064
  %v4066 = vsub.s32 %v4065, 2
  %vm4067 = vcmp.gt.s32.totalorder 0, %v4066
  %v4068 = vsel %vm4067, 0, %v4066
  %v4069 = vsub.s32 32, %v4068
  %v4070 = vshll.u32 %v4061, %v4068
  %v4071 = vshrl.u32 %v4053, %v4069
  %v4072 = vor.u32 %v4070, %v4071
  %v4073 = vsub.s32 4294967266, %v4068
  %v4074 = vadd.s32 %v4073, 127
  %v4075 = vshll.u32 %v4074, 23
  %v4076 = vor.u32 4788187, %v4075
  %v4077 = vand.u32 2147483647, %v4076
  %v4079 = vcvt.s32.f32 %v4072
  %v4080 = vmul.f32 %v4079, %v4077
  %v4081 = vxor.u32 %v4080, 2147483648
  %v4082 = vsel %vm3999, %v4081, %v4080
  %v4083 = vsub.s32 4, %v4059
  %v4084 = vsel %vm3999, %v4083, %v4059
  %v4085 = vsel %vm3998, %v226, %v4082
  %v4086 = vsel %vm3998, 0, %v4084
  %v4087 = vcosq.f32.pop %v4085
  %v4088 = vsinq.f32.pop %v4085
  %vm4089 = vweird.f32 %v226
  %v4090 = vand.u32 %v4086, 3
  %vm4091 = vcmp.lt.s32.totalorder %v4090, 2
  %vm4092 = vcmp.eq.s32.totalorder %v4090, 0
  %v4093 = vxor.u32 %v4088, 2147483648
  %v4094 = vsel %vm4092, %v4087, %v4093
  %vm4095 = vcmp.eq.s32.totalorder %v4090, 2
  %v4096 = vxor.u32 %v4087, 2147483648
  %v4097 = vsel %vm4095, %v4096, %v4088
  %v4098 = vsel %vm4091, %v4094, %v4097
  %v4099 = vsel %vm4089, nan, %v4098
  %v4100 = vand.u32 2147483647, %v227
  %vm4101 = vcmp.le.f32.partialorder %v4100, 0.7853982
  %vm4102 = vcmp.lt.s32.totalorder %v227, 0
  %v4103 = vand.u32 %v227, 2139095040
  %v4104 = vshrl.u32 %v4103, 23
  %v4105 = vsub.s32 %v4104, 127
  %v4106 = vand.u32 2147483647, %v227
  %v4107 = vand.u32 %v4106, 8388607
  %v4108 = vor.u32 %v4107, 8388608
  %v4109 = vsub.s32 0, %v4108
  %v4110 = vadd.s32 %v4105, 1
  %vm4111 = vcmp.gt.s32.totalorder %v4110, 0
  %v4112 = vsel %vm4111, %v4110, 0
  %v4113 = vshrl.u32 %v4112, 5
  %v4114 = vand.u32 %v4112, 31
  %v4115 = vsub.s32 32, %v4114
  %v4116 = vshrl.u32 683565275, %v4115
  %v4117 = vshll.u32 683565275, %v4114
  %v4118 = vshrl.u32 2475754826, %v4115
  %v4119 = vor.u32 %v4117, %v4118
  %v4120 = vshll.u32 2475754826, %v4114
  %v4121 = vshrl.u32 2131351028, %v4115
  %v4122 = vor.u32 %v4120, %v4121
  %v4123 = vshll.u32 2131351028, %v4114
  %v4124 = vshrl.u32 2102212464, %v4115
  %v4125 = vor.u32 %v4123, %v4124
  %v4126 = vshll.u32 2102212464, %v4114
  %v4127 = vshrl.u32 920167782, %v4115
  %v4128 = vor.u32 %v4126, %v4127
  %v4129 = vshll.u32 920167782, %v4114
  %v4130 = vshrl.u32 1326507024, %v4115
  %v4131 = vor.u32 %v4129, %v4130
  %vm4132 = vcmp.lt.s32.totalorder %v4113, 1
  %vm4133 = vcmp.lt.s32.totalorder %v4113, 2
  %vm4134 = vcmp.lt.s32.totalorder %v4113, 3
  %vm4135 = vcmp.lt.s32.totalorder %v4113, 4
  %v4136 = vsel %vm4132, %v4116, %v4119
  %v4137 = vsel %vm4135, %v4125, 2102212464
  %v4138 = vsel %vm4134, %v4122, %v4137
  %v4139 = vsel %vm4133, %v4136, %v4138
  %v4140 = vsel %vm4132, %v4119, %v4122
  %v4141 = vsel %vm4135, %v4128, 920167782
  %v4142 = vsel %vm4134, %v4125, %v4141
  %v4143 = vsel %vm4133, %v4140, %v4142
  %v4144 = vsel %vm4132, %v4122, %v4125
  %v4145 = vsel %vm4135, %v4131, 1326507024
  %v4146 = vsel %vm4134, %v4128, %v4145
  %v4147 = vsel %vm4133, %v4144, %v4146
  %v4148 = vshll.u32 %v4108, 8
  %v4149 = vmul.u32.u64.compose %v4148, %v4147
  %v4150 = vextract.low.u32 %v4149
  %v4151 = vextract.high.u32 %v4149
  %v4152 = vmul.u32.u64.compose %v4148, %v4143
  %v4153 = vextract.low.u32 %v4152
  %v4154 = vextract.high.u32 %v4152
  %v4155 = vmul.u32 %v4148, %v4139
  %v4156 = vadd.s32 %v4151, %v4153
  %vm4157 = vc.u32 %v4151, %v4153
  %v4158 = vadd.s32 %v4154, 1
  %v4159 = vsel %vm4157, %v4158, %v4154
  %v4160 = vadd.s32 %v4155, %v4159
  %v4161 = vadd.s32 %v4160, 536870912
  %v4162 = vshrl.u32 %v4161, 30
  %v4163 = vshll.u32 %v4162, 30
  %v4164 = vsub.s32 %v4160, %v4163
  %vm4165 = vcmp.lt.s32.totalorder %v4164, 0
  %v4166 = vsub.s32 0, %v4164
  %v4167 = vsel %vm4165, %v4166, %v4164
  %v4168 = vclz %v4167
  %v4169 = vsub.s32 %v4168, 2
  %vm4170 = vcmp.gt.s32.totalorder 0, %v4169
  %v4171 = vsel %vm4170, 0, %v4169
  %v4172 = vsub.s32 32, %v4171
  %v4173 = vshll.u32 %v4164, %v4171
  %v4174 = vshrl.u32 %v4156, %v4172
  %v4175 = vor.u32 %v4173, %v4174
  %v4176 = vsub.s32 4294967266, %v4171
  %v4177 = vadd.s32 %v4176, 127
  %v4178 = vshll.u32 %v4177, 23
  %v4179 = vor.u32 4788187, %v4178
  %v4180 = vand.u32 2147483647, %v4179
  %v4182 = vcvt.s32.f32 %v4175
  %v4183 = vmul.f32 %v4182, %v4180
  %v4184 = vxor.u32 %v4183, 2147483648
  %v4185 = vsel %vm4102, %v4184, %v4183
  %v4186 = vsub.s32 4, %v4162
  %v4187 = vsel %vm4102, %v4186, %v4162
  %v4188 = vsel %vm4101, %v227, %v4185
  %v4189 = vsel %vm4101, 0, %v4187
  %v4190 = vcosq.f32.pop %v4188
  %v4191 = vsinq.f32.pop %v4188
  %vm4192 = vweird.f32 %v227
  %v4193 = vand.u32 %v4189, 3
  %vm4194 = vcmp.lt.s32.totalorder %v4193, 2
  %vm4195 = vcmp.eq.s32.totalorder %v4193, 0
  %v4196 = vxor.u32 %v4191, 2147483648
  %v4197 = vsel %vm4195, %v4190, %v4196
  %vm4198 = vcmp.eq.s32.totalorder %v4193, 2
  %v4199 = vxor.u32 %v4190, 2147483648
  %v4200 = vsel %vm4198, %v4199, %v4191
  %v4201 = vsel %vm4194, %v4197, %v4200
  %v4202 = vsel %vm4192, nan, %v4201
  %v4203 = vand.u32 2147483647, %v228
  %vm4204 = vcmp.le.f32.partialorder %v4203, 0.7853982
  %vm4205 = vcmp.lt.s32.totalorder %v228, 0
  %v4206 = vand.u32 %v228, 2139095040
  %v4207 = vshrl.u32 %v4206, 23
  %v4208 = vsub.s32 %v4207, 127
  %v4209 = vand.u32 2147483647, %v228
  %v4210 = vand.u32 %v4209, 8388607
  %v4211 = vor.u32 %v4210, 8388608
  %v4212 = vsub.s32 0, %v4211
  %v4213 = vadd.s32 %v4208, 1
  %vm4214 = vcmp.gt.s32.totalorder %v4213, 0
  %v4215 = vsel %vm4214, %v4213, 0
  %v4216 = vshrl.u32 %v4215, 5
  %v4217 = vand.u32 %v4215, 31
  %v4218 = vsub.s32 32, %v4217
  %v4219 = vshrl.u32 683565275, %v4218
  %v4220 = vshll.u32 683565275, %v4217
  %v4221 = vshrl.u32 2475754826, %v4218
  %v4222 = vor.u32 %v4220, %v4221
  %v4223 = vshll.u32 2475754826, %v4217
  %v4224 = vshrl.u32 2131351028, %v4218
  %v4225 = vor.u32 %v4223, %v4224
  %v4226 = vshll.u32 2131351028, %v4217
  %v4227 = vshrl.u32 2102212464, %v4218
  %v4228 = vor.u32 %v4226, %v4227
  %v4229 = vshll.u32 2102212464, %v4217
  %v4230 = vshrl.u32 920167782, %v4218
  %v4231 = vor.u32 %v4229, %v4230
  %v4232 = vshll.u32 920167782, %v4217
  %v4233 = vshrl.u32 1326507024, %v4218
  %v4234 = vor.u32 %v4232, %v4233
  %vm4235 = vcmp.lt.s32.totalorder %v4216, 1
  %vm4236 = vcmp.lt.s32.totalorder %v4216, 2
  %vm4237 = vcmp.lt.s32.totalorder %v4216, 3
  %vm4238 = vcmp.lt.s32.totalorder %v4216, 4
  %v4239 = vsel %vm4235, %v4219, %v4222
  %v4240 = vsel %vm4238, %v4228, 2102212464
  %v4241 = vsel %vm4237, %v4225, %v4240
  %v4242 = vsel %vm4236, %v4239, %v4241
  %v4243 = vsel %vm4235, %v4222, %v4225
  %v4244 = vsel %vm4238, %v4231, 920167782
  %v4245 = vsel %vm4237, %v4228, %v4244
  %v4246 = vsel %vm4236, %v4243, %v4245
  %v4247 = vsel %vm4235, %v4225, %v4228
  %v4248 = vsel %vm4238, %v4234, 1326507024
  %v4249 = vsel %vm4237, %v4231, %v4248
  %v4250 = vsel %vm4236, %v4247, %v4249
  %v4251 = vshll.u32 %v4211, 8
  %v4252 = vmul.u32.u64.compose %v4251, %v4250
  %v4253 = vextract.low.u32 %v4252
  %v4254 = vextract.high.u32 %v4252
  %v4255 = vmul.u32.u64.compose %v4251, %v4246
  %v4256 = vextract.low.u32 %v4255
  %v4257 = vextract.high.u32 %v4255
  %v4258 = vmul.u32 %v4251, %v4242
  %v4259 = vadd.s32 %v4254, %v4256
  %vm4260 = vc.u32 %v4254, %v4256
  %v4261 = vadd.s32 %v4257, 1
  %v4262 = vsel %vm4260, %v4261, %v4257
  %v4263 = vadd.s32 %v4258, %v4262
  %v4264 = vadd.s32 %v4263, 536870912
  %v4265 = vshrl.u32 %v4264, 30
  %v4266 = vshll.u32 %v4265, 30
  %v4267 = vsub.s32 %v4263, %v4266
  %vm4268 = vcmp.lt.s32.totalorder %v4267, 0
  %v4269 = vsub.s32 0, %v4267
  %v4270 = vsel %vm4268, %v4269, %v4267
  %v4271 = vclz %v4270
  %v4272 = vsub.s32 %v4271, 2
  %vm4273 = vcmp.gt.s32.totalorder 0, %v4272
  %v4274 = vsel %vm4273, 0, %v4272
  %v4275 = vsub.s32 32, %v4274
  %v4276 = vshll.u32 %v4267, %v4274
  %v4277 = vshrl.u32 %v4259, %v4275
  %v4278 = vor.u32 %v4276, %v4277
  %v4279 = vsub.s32 4294967266, %v4274
  %v4280 = vadd.s32 %v4279, 127
  %v4281 = vshll.u32 %v4280, 23
  %v4282 = vor.u32 4788187, %v4281
  %v4283 = vand.u32 2147483647, %v4282
  %v4285 = vcvt.s32.f32 %v4278
  %v4286 = vmul.f32 %v4285, %v4283
  %v4287 = vxor.u32 %v4286, 2147483648
  %v4288 = vsel %vm4205, %v4287, %v4286
  %v4289 = vsub.s32 4, %v4265
  %v4290 = vsel %vm4205, %v4289, %v4265
  %v4291 = vsel %vm4204, %v228, %v4288
  %v4292 = vsel %vm4204, 0, %v4290
  %v4293 = vcosq.f32.pop %v4291
  %v4294 = vsinq.f32.pop %v4291
  %vm4295 = vweird.f32 %v228
  %v4296 = vand.u32 %v4292, 3
  %vm4297 = vcmp.lt.s32.totalorder %v4296, 2
  %vm4298 = vcmp.eq.s32.totalorder %v4296, 0
  %v4299 = vxor.u32 %v4294, 2147483648
  %v4300 = vsel %vm4298, %v4293, %v4299
  %vm4301 = vcmp.eq.s32.totalorder %v4296, 2
  %v4302 = vxor.u32 %v4293, 2147483648
  %v4303 = vsel %vm4301, %v4302, %v4294
  %v4304 = vsel %vm4297, %v4300, %v4303
  %v4305 = vsel %vm4295, nan, %v4304
  %v4306 = vand.u32 2147483647, %v229
  %vm4307 = vcmp.le.f32.partialorder %v4306, 0.7853982
  %vm4308 = vcmp.lt.s32.totalorder %v229, 0
  %v4309 = vand.u32 %v229, 2139095040
  %v4310 = vshrl.u32 %v4309, 23
  %v4311 = vsub.s32 %v4310, 127
  %v4312 = vand.u32 2147483647, %v229
  %v4313 = vand.u32 %v4312, 8388607
  %v4314 = vor.u32 %v4313, 8388608
  %v4315 = vsub.s32 0, %v4314
  %v4316 = vadd.s32 %v4311, 1
  %vm4317 = vcmp.gt.s32.totalorder %v4316, 0
  %v4318 = vsel %vm4317, %v4316, 0
  %v4319 = vshrl.u32 %v4318, 5
  %v4320 = vand.u32 %v4318, 31
  %v4321 = vsub.s32 32, %v4320
  %v4322 = vshrl.u32 683565275, %v4321
  %v4323 = vshll.u32 683565275, %v4320
  %v4324 = vshrl.u32 2475754826, %v4321
  %v4325 = vor.u32 %v4323, %v4324
  %v4326 = vshll.u32 2475754826, %v4320
  %v4327 = vshrl.u32 2131351028, %v4321
  %v4328 = vor.u32 %v4326, %v4327
  %v4329 = vshll.u32 2131351028, %v4320
  %v4330 = vshrl.u32 2102212464, %v4321
  %v4331 = vor.u32 %v4329, %v4330
  %v4332 = vshll.u32 2102212464, %v4320
  %v4333 = vshrl.u32 920167782, %v4321
  %v4334 = vor.u32 %v4332, %v4333
  %v4335 = vshll.u32 920167782, %v4320
  %v4336 = vshrl.u32 1326507024, %v4321
  %v4337 = vor.u32 %v4335, %v4336
  %vm4338 = vcmp.lt.s32.totalorder %v4319, 1
  %vm4339 = vcmp.lt.s32.totalorder %v4319, 2
  %vm4340 = vcmp.lt.s32.totalorder %v4319, 3
  %vm4341 = vcmp.lt.s32.totalorder %v4319, 4
  %v4342 = vsel %vm4338, %v4322, %v4325
  %v4343 = vsel %vm4341, %v4331, 2102212464
  %v4344 = vsel %vm4340, %v4328, %v4343
  %v4345 = vsel %vm4339, %v4342, %v4344
  %v4346 = vsel %vm4338, %v4325, %v4328
  %v4347 = vsel %vm4341, %v4334, 920167782
  %v4348 = vsel %vm4340, %v4331, %v4347
  %v4349 = vsel %vm4339, %v4346, %v4348
  %v4350 = vsel %vm4338, %v4328, %v4331
  %v4351 = vsel %vm4341, %v4337, 1326507024
  %v4352 = vsel %vm4340, %v4334, %v4351
  %v4353 = vsel %vm4339, %v4350, %v4352
  %v4354 = vshll.u32 %v4314, 8
  %v4355 = vmul.u32.u64.compose %v4354, %v4353
  %v4356 = vextract.low.u32 %v4355
  %v4357 = vextract.high.u32 %v4355
  %v4358 = vmul.u32.u64.compose %v4354, %v4349
  %v4359 = vextract.low.u32 %v4358
  %v4360 = vextract.high.u32 %v4358
  %v4361 = vmul.u32 %v4354, %v4345
  %v4362 = vadd.s32 %v4357, %v4359
  %vm4363 = vc.u32 %v4357, %v4359
  %v4364 = vadd.s32 %v4360, 1
  %v4365 = vsel %vm4363, %v4364, %v4360
  %v4366 = vadd.s32 %v4361, %v4365
  %v4367 = vadd.s32 %v4366, 536870912
  %v4368 = vshrl.u32 %v4367, 30
  %v4369 = vshll.u32 %v4368, 30
  %v4370 = vsub.s32 %v4366, %v4369
  %vm4371 = vcmp.lt.s32.totalorder %v4370, 0
  %v4372 = vsub.s32 0, %v4370
  %v4373 = vsel %vm4371, %v4372, %v4370
  %v4374 = vclz %v4373
  %v4375 = vsub.s32 %v4374, 2
  %vm4376 = vcmp.gt.s32.totalorder 0, %v4375
  %v4377 = vsel %vm4376, 0, %v4375
  %v4378 = vsub.s32 32, %v4377
  %v4379 = vshll.u32 %v4370, %v4377
  %v4380 = vshrl.u32 %v4362, %v4378
  %v4381 = vor.u32 %v4379, %v4380
  %v4382 = vsub.s32 4294967266, %v4377
  %v4383 = vadd.s32 %v4382, 127
  %v4384 = vshll.u32 %v4383, 23
  %v4385 = vor.u32 4788187, %v4384
  %v4386 = vand.u32 2147483647, %v4385
  %v4388 = vcvt.s32.f32 %v4381
  %v4389 = vmul.f32 %v4388, %v4386
  %v4390 = vxor.u32 %v4389, 2147483648
  %v4391 = vsel %vm4308, %v4390, %v4389
  %v4392 = vsub.s32 4, %v4368
  %v4393 = vsel %vm4308, %v4392, %v4368
  %v4394 = vsel %vm4307, %v229, %v4391
  %v4395 = vsel %vm4307, 0, %v4393
  %v4396 = vcosq.f32.pop %v4394
  %v4397 = vsinq.f32.pop %v4394
  %vm4398 = vweird.f32 %v229
  %v4399 = vand.u32 %v4395, 3
  %vm4400 = vcmp.lt.s32.totalorder %v4399, 2
  %vm4401 = vcmp.eq.s32.totalorder %v4399, 0
  %v4402 = vxor.u32 %v4397, 2147483648
  %v4403 = vsel %vm4401, %v4396, %v4402
  %vm4404 = vcmp.eq.s32.totalorder %v4399, 2
  %v4405 = vxor.u32 %v4396, 2147483648
  %v4406 = vsel %vm4404, %v4405, %v4397
  %v4407 = vsel %vm4400, %v4403, %v4406
  %v4408 = vsel %vm4398, nan, %v4407
  %v4409 = vand.u32 2147483647, %v230
  %vm4410 = vcmp.le.f32.partialorder %v4409, 0.7853982
  %vm4411 = vcmp.lt.s32.totalorder %v230, 0
  %v4412 = vand.u32 %v230, 2139095040
  %v4413 = vshrl.u32 %v4412, 23
  %v4414 = vsub.s32 %v4413, 127
  %v4415 = vand.u32 2147483647, %v230
  %v4416 = vand.u32 %v4415, 8388607
  %v4417 = vor.u32 %v4416, 8388608
  %v4418 = vsub.s32 0, %v4417
  %v4419 = vadd.s32 %v4414, 1
  %vm4420 = vcmp.gt.s32.totalorder %v4419, 0
  %v4421 = vsel %vm4420, %v4419, 0
  %v4422 = vshrl.u32 %v4421, 5
  %v4423 = vand.u32 %v4421, 31
  %v4424 = vsub.s32 32, %v4423
  %v4425 = vshrl.u32 683565275, %v4424
  %v4426 = vshll.u32 683565275, %v4423
  %v4427 = vshrl.u32 2475754826, %v4424
  %v4428 = vor.u32 %v4426, %v4427
  %v4429 = vshll.u32 2475754826, %v4423
  %v4430 = vshrl.u32 2131351028, %v4424
  %v4431 = vor.u32 %v4429, %v4430
  %v4432 = vshll.u32 2131351028, %v4423
  %v4433 = vshrl.u32 2102212464, %v4424
  %v4434 = vor.u32 %v4432, %v4433
  %v4435 = vshll.u32 2102212464, %v4423
  %v4436 = vshrl.u32 920167782, %v4424
  %v4437 = vor.u32 %v4435, %v4436
  %v4438 = vshll.u32 920167782, %v4423
  %v4439 = vshrl.u32 1326507024, %v4424
  %v4440 = vor.u32 %v4438, %v4439
  %vm4441 = vcmp.lt.s32.totalorder %v4422, 1
  %vm4442 = vcmp.lt.s32.totalorder %v4422, 2
  %vm4443 = vcmp.lt.s32.totalorder %v4422, 3
  %vm4444 = vcmp.lt.s32.totalorder %v4422, 4
  %v4445 = vsel %vm4441, %v4425, %v4428
  %v4446 = vsel %vm4444, %v4434, 2102212464
  %v4447 = vsel %vm4443, %v4431, %v4446
  %v4448 = vsel %vm4442, %v4445, %v4447
  %v4449 = vsel %vm4441, %v4428, %v4431
  %v4450 = vsel %vm4444, %v4437, 920167782
  %v4451 = vsel %vm4443, %v4434, %v4450
  %v4452 = vsel %vm4442, %v4449, %v4451
  %v4453 = vsel %vm4441, %v4431, %v4434
  %v4454 = vsel %vm4444, %v4440, 1326507024
  %v4455 = vsel %vm4443, %v4437, %v4454
  %v4456 = vsel %vm4442, %v4453, %v4455
  %v4457 = vshll.u32 %v4417, 8
  %v4458 = vmul.u32.u64.compose %v4457, %v4456
  %v4459 = vextract.low.u32 %v4458
  %v4460 = vextract.high.u32 %v4458
  %v4461 = vmul.u32.u64.compose %v4457, %v4452
  %v4462 = vextract.low.u32 %v4461
  %v4463 = vextract.high.u32 %v4461
  %v4464 = vmul.u32 %v4457, %v4448
  %v4465 = vadd.s32 %v4460, %v4462
  %vm4466 = vc.u32 %v4460, %v4462
  %v4467 = vadd.s32 %v4463, 1
  %v4468 = vsel %vm4466, %v4467, %v4463
  %v4469 = vadd.s32 %v4464, %v4468
  %v4470 = vadd.s32 %v4469, 536870912
  %v4471 = vshrl.u32 %v4470, 30
  %v4472 = vshll.u32 %v4471, 30
  %v4473 = vsub.s32 %v4469, %v4472
  %vm4474 = vcmp.lt.s32.totalorder %v4473, 0
  %v4475 = vsub.s32 0, %v4473
  %v4476 = vsel %vm4474, %v4475, %v4473
  %v4477 = vclz %v4476
  %v4478 = vsub.s32 %v4477, 2
  %vm4479 = vcmp.gt.s32.totalorder 0, %v4478
  %v4480 = vsel %vm4479, 0, %v4478
  %v4481 = vsub.s32 32, %v4480
  %v4482 = vshll.u32 %v4473, %v4480
  %v4483 = vshrl.u32 %v4465, %v4481
  %v4484 = vor.u32 %v4482, %v4483
  %v4485 = vsub.s32 4294967266, %v4480
  %v4486 = vadd.s32 %v4485, 127
  %v4487 = vshll.u32 %v4486, 23
  %v4488 = vor.u32 4788187, %v4487
  %v4489 = vand.u32 2147483647, %v4488
  %v4491 = vcvt.s32.f32 %v4484
  %v4492 = vmul.f32 %v4491, %v4489
  %v4493 = vxor.u32 %v4492, 2147483648
  %v4494 = vsel %vm4411, %v4493, %v4492
  %v4495 = vsub.s32 4, %v4471
  %v4496 = vsel %vm4411, %v4495, %v4471
  %v4497 = vsel %vm4410, %v230, %v4494
  %v4498 = vsel %vm4410, 0, %v4496
  %v4499 = vcosq.f32.pop %v4497
  %v4500 = vsinq.f32.pop %v4497
  %vm4501 = vweird.f32 %v230
  %v4502 = vand.u32 %v4498, 3
  %vm4503 = vcmp.lt.s32.totalorder %v4502, 2
  %vm4504 = vcmp.eq.s32.totalorder %v4502, 0
  %v4505 = vxor.u32 %v4500, 2147483648
  %v4506 = vsel %vm4504, %v4499, %v4505
  %vm4507 = vcmp.eq.s32.totalorder %v4502, 2
  %v4508 = vxor.u32 %v4499, 2147483648
  %v4509 = vsel %vm4507, %v4508, %v4500
  %v4510 = vsel %vm4503, %v4506, %v4509
  %v4511 = vsel %vm4501, nan, %v4510
  %v4512 = vand.u32 2147483647, %v231
  %vm4513 = vcmp.le.f32.partialorder %v4512, 0.7853982
  %vm4514 = vcmp.lt.s32.totalorder %v231, 0
  %v4515 = vand.u32 %v231, 2139095040
  %v4516 = vshrl.u32 %v4515, 23
  %v4517 = vsub.s32 %v4516, 127
  %v4518 = vand.u32 2147483647, %v231
  %v4519 = vand.u32 %v4518, 8388607
  %v4520 = vor.u32 %v4519, 8388608
  %v4521 = vsub.s32 0, %v4520
  %v4522 = vadd.s32 %v4517, 1
  %vm4523 = vcmp.gt.s32.totalorder %v4522, 0
  %v4524 = vsel %vm4523, %v4522, 0
  %v4525 = vshrl.u32 %v4524, 5
  %v4526 = vand.u32 %v4524, 31
  %v4527 = vsub.s32 32, %v4526
  %v4528 = vshrl.u32 683565275, %v4527
  %v4529 = vshll.u32 683565275, %v4526
  %v4530 = vshrl.u32 2475754826, %v4527
  %v4531 = vor.u32 %v4529, %v4530
  %v4532 = vshll.u32 2475754826, %v4526
  %v4533 = vshrl.u32 2131351028, %v4527
  %v4534 = vor.u32 %v4532, %v4533
  %v4535 = vshll.u32 2131351028, %v4526
  %v4536 = vshrl.u32 2102212464, %v4527
  %v4537 = vor.u32 %v4535, %v4536
  %v4538 = vshll.u32 2102212464, %v4526
  %v4539 = vshrl.u32 920167782, %v4527
  %v4540 = vor.u32 %v4538, %v4539
  %v4541 = vshll.u32 920167782, %v4526
  %v4542 = vshrl.u32 1326507024, %v4527
  %v4543 = vor.u32 %v4541, %v4542
  %vm4544 = vcmp.lt.s32.totalorder %v4525, 1
  %vm4545 = vcmp.lt.s32.totalorder %v4525, 2
  %vm4546 = vcmp.lt.s32.totalorder %v4525, 3
  %vm4547 = vcmp.lt.s32.totalorder %v4525, 4
  %v4548 = vsel %vm4544, %v4528, %v4531
  %v4549 = vsel %vm4547, %v4537, 2102212464
  %v4550 = vsel %vm4546, %v4534, %v4549
  %v4551 = vsel %vm4545, %v4548, %v4550
  %v4552 = vsel %vm4544, %v4531, %v4534
  %v4553 = vsel %vm4547, %v4540, 920167782
  %v4554 = vsel %vm4546, %v4537, %v4553
  %v4555 = vsel %vm4545, %v4552, %v4554
  %v4556 = vsel %vm4544, %v4534, %v4537
  %v4557 = vsel %vm4547, %v4543, 1326507024
  %v4558 = vsel %vm4546, %v4540, %v4557
  %v4559 = vsel %vm4545, %v4556, %v4558
  %v4560 = vshll.u32 %v4520, 8
  %v4561 = vmul.u32.u64.compose %v4560, %v4559
  %v4562 = vextract.low.u32 %v4561
  %v4563 = vextract.high.u32 %v4561
  %v4564 = vmul.u32.u64.compose %v4560, %v4555
  %v4565 = vextract.low.u32 %v4564
  %v4566 = vextract.high.u32 %v4564
  %v4567 = vmul.u32 %v4560, %v4551
  %v4568 = vadd.s32 %v4563, %v4565
  %vm4569 = vc.u32 %v4563, %v4565
  %v4570 = vadd.s32 %v4566, 1
  %v4571 = vsel %vm4569, %v4570, %v4566
  %v4572 = vadd.s32 %v4567, %v4571
  %v4573 = vadd.s32 %v4572, 536870912
  %v4574 = vshrl.u32 %v4573, 30
  %v4575 = vshll.u32 %v4574, 30
  %v4576 = vsub.s32 %v4572, %v4575
  %vm4577 = vcmp.lt.s32.totalorder %v4576, 0
  %v4578 = vsub.s32 0, %v4576
  %v4579 = vsel %vm4577, %v4578, %v4576
  %v4580 = vclz %v4579
  %v4581 = vsub.s32 %v4580, 2
  %vm4582 = vcmp.gt.s32.totalorder 0, %v4581
  %v4583 = vsel %vm4582, 0, %v4581
  %v4584 = vsub.s32 32, %v4583
  %v4585 = vshll.u32 %v4576, %v4583
  %v4586 = vshrl.u32 %v4568, %v4584
  %v4587 = vor.u32 %v4585, %v4586
  %v4588 = vsub.s32 4294967266, %v4583
  %v4589 = vadd.s32 %v4588, 127
  %v4590 = vshll.u32 %v4589, 23
  %v4591 = vor.u32 4788187, %v4590
  %v4592 = vand.u32 2147483647, %v4591
  %v4594 = vcvt.s32.f32 %v4587
  %v4595 = vmul.f32 %v4594, %v4592
  %v4596 = vxor.u32 %v4595, 2147483648
  %v4597 = vsel %vm4514, %v4596, %v4595
  %v4598 = vsub.s32 4, %v4574
  %v4599 = vsel %vm4514, %v4598, %v4574
  %v4600 = vsel %vm4513, %v231, %v4597
  %v4601 = vsel %vm4513, 0, %v4599
  %v4602 = vcosq.f32.pop %v4600
  %v4603 = vsinq.f32.pop %v4600
  %vm4604 = vweird.f32 %v231
  %v4605 = vand.u32 %v4601, 3
  %vm4606 = vcmp.lt.s32.totalorder %v4605, 2
  %vm4607 = vcmp.eq.s32.totalorder %v4605, 0
  %v4608 = vxor.u32 %v4603, 2147483648
  %v4609 = vsel %vm4607, %v4602, %v4608
  %vm4610 = vcmp.eq.s32.totalorder %v4605, 2
  %v4611 = vxor.u32 %v4602, 2147483648
  %v4612 = vsel %vm4610, %v4611, %v4603
  %v4613 = vsel %vm4606, %v4609, %v4612
  %v4614 = vsel %vm4604, nan, %v4613
  %v4615 = vand.u32 2147483647, %v232
  %vm4616 = vcmp.le.f32.partialorder %v4615, 0.7853982
  %vm4617 = vcmp.lt.s32.totalorder %v232, 0
  %v4618 = vand.u32 %v232, 2139095040
  %v4619 = vshrl.u32 %v4618, 23
  %v4620 = vsub.s32 %v4619, 127
  %v4621 = vand.u32 2147483647, %v232
  %v4622 = vand.u32 %v4621, 8388607
  %v4623 = vor.u32 %v4622, 8388608
  %v4624 = vsub.s32 0, %v4623
  %v4625 = vadd.s32 %v4620, 1
  %vm4626 = vcmp.gt.s32.totalorder %v4625, 0
  %v4627 = vsel %vm4626, %v4625, 0
  %v4628 = vshrl.u32 %v4627, 5
  %v4629 = vand.u32 %v4627, 31
  %v4630 = vsub.s32 32, %v4629
  %v4631 = vshrl.u32 683565275, %v4630
  %v4632 = vshll.u32 683565275, %v4629
  %v4633 = vshrl.u32 2475754826, %v4630
  %v4634 = vor.u32 %v4632, %v4633
  %v4635 = vshll.u32 2475754826, %v4629
  %v4636 = vshrl.u32 2131351028, %v4630
  %v4637 = vor.u32 %v4635, %v4636
  %v4638 = vshll.u32 2131351028, %v4629
  %v4639 = vshrl.u32 2102212464, %v4630
  %v4640 = vor.u32 %v4638, %v4639
  %v4641 = vshll.u32 2102212464, %v4629
  %v4642 = vshrl.u32 920167782, %v4630
  %v4643 = vor.u32 %v4641, %v4642
  %v4644 = vshll.u32 920167782, %v4629
  %v4645 = vshrl.u32 1326507024, %v4630
  %v4646 = vor.u32 %v4644, %v4645
  %vm4647 = vcmp.lt.s32.totalorder %v4628, 1
  %vm4648 = vcmp.lt.s32.totalorder %v4628, 2
  %vm4649 = vcmp.lt.s32.totalorder %v4628, 3
  %vm4650 = vcmp.lt.s32.totalorder %v4628, 4
  %v4651 = vsel %vm4647, %v4631, %v4634
  %v4652 = vsel %vm4650, %v4640, 2102212464
  %v4653 = vsel %vm4649, %v4637, %v4652
  %v4654 = vsel %vm4648, %v4651, %v4653
  %v4655 = vsel %vm4647, %v4634, %v4637
  %v4656 = vsel %vm4650, %v4643, 920167782
  %v4657 = vsel %vm4649, %v4640, %v4656
  %v4658 = vsel %vm4648, %v4655, %v4657
  %v4659 = vsel %vm4647, %v4637, %v4640
  %v4660 = vsel %vm4650, %v4646, 1326507024
  %v4661 = vsel %vm4649, %v4643, %v4660
  %v4662 = vsel %vm4648, %v4659, %v4661
  %v4663 = vshll.u32 %v4623, 8
  %v4664 = vmul.u32.u64.compose %v4663, %v4662
  %v4665 = vextract.low.u32 %v4664
  %v4666 = vextract.high.u32 %v4664
  %v4667 = vmul.u32.u64.compose %v4663, %v4658
  %v4668 = vextract.low.u32 %v4667
  %v4669 = vextract.high.u32 %v4667
  %v4670 = vmul.u32 %v4663, %v4654
  %v4671 = vadd.s32 %v4666, %v4668
  %vm4672 = vc.u32 %v4666, %v4668
  %v4673 = vadd.s32 %v4669, 1
  %v4674 = vsel %vm4672, %v4673, %v4669
  %v4675 = vadd.s32 %v4670, %v4674
  %v4676 = vadd.s32 %v4675, 536870912
  %v4677 = vshrl.u32 %v4676, 30
  %v4678 = vshll.u32 %v4677, 30
  %v4679 = vsub.s32 %v4675, %v4678
  %vm4680 = vcmp.lt.s32.totalorder %v4679, 0
  %v4681 = vsub.s32 0, %v4679
  %v4682 = vsel %vm4680, %v4681, %v4679
  %v4683 = vclz %v4682
  %v4684 = vsub.s32 %v4683, 2
  %vm4685 = vcmp.gt.s32.totalorder 0, %v4684
  %v4686 = vsel %vm4685, 0, %v4684
  %v4687 = vsub.s32 32, %v4686
  %v4688 = vshll.u32 %v4679, %v4686
  %v4689 = vshrl.u32 %v4671, %v4687
  %v4690 = vor.u32 %v4688, %v4689
  %v4691 = vsub.s32 4294967266, %v4686
  %v4692 = vadd.s32 %v4691, 127
  %v4693 = vshll.u32 %v4692, 23
  %v4694 = vor.u32 4788187, %v4693
  %v4695 = vand.u32 2147483647, %v4694
  %v4697 = vcvt.s32.f32 %v4690
  %v4698 = vmul.f32 %v4697, %v4695
  %v4699 = vxor.u32 %v4698, 2147483648
  %v4700 = vsel %vm4617, %v4699, %v4698
  %v4701 = vsub.s32 4, %v4677
  %v4702 = vsel %vm4617, %v4701, %v4677
  %v4703 = vsel %vm4616, %v232, %v4700
  %v4704 = vsel %vm4616, 0, %v4702
  %v4705 = vcosq.f32.pop %v4703
  %v4706 = vsinq.f32.pop %v4703
  %vm4707 = vweird.f32 %v232
  %v4708 = vand.u32 %v4704, 3
  %vm4709 = vcmp.lt.s32.totalorder %v4708, 2
  %vm4710 = vcmp.eq.s32.totalorder %v4708, 0
  %v4711 = vxor.u32 %v4706, 2147483648
  %v4712 = vsel %vm4710, %v4705, %v4711
  %vm4713 = vcmp.eq.s32.totalorder %v4708, 2
  %v4714 = vxor.u32 %v4705, 2147483648
  %v4715 = vsel %vm4713, %v4714, %v4706
  %v4716 = vsel %vm4709, %v4712, %v4715
  %v4717 = vsel %vm4707, nan, %v4716
  %v4718 = vand.u32 2147483647, %v233
  %vm4719 = vcmp.le.f32.partialorder %v4718, 0.7853982
  %vm4720 = vcmp.lt.s32.totalorder %v233, 0
  %v4721 = vand.u32 %v233, 2139095040
  %v4722 = vshrl.u32 %v4721, 23
  %v4723 = vsub.s32 %v4722, 127
  %v4724 = vand.u32 2147483647, %v233
  %v4725 = vand.u32 %v4724, 8388607
  %v4726 = vor.u32 %v4725, 8388608
  %v4727 = vsub.s32 0, %v4726
  %v4728 = vadd.s32 %v4723, 1
  %vm4729 = vcmp.gt.s32.totalorder %v4728, 0
  %v4730 = vsel %vm4729, %v4728, 0
  %v4731 = vshrl.u32 %v4730, 5
  %v4732 = vand.u32 %v4730, 31
  %v4733 = vsub.s32 32, %v4732
  %v4734 = vshrl.u32 683565275, %v4733
  %v4735 = vshll.u32 683565275, %v4732
  %v4736 = vshrl.u32 2475754826, %v4733
  %v4737 = vor.u32 %v4735, %v4736
  %v4738 = vshll.u32 2475754826, %v4732
  %v4739 = vshrl.u32 2131351028, %v4733
  %v4740 = vor.u32 %v4738, %v4739
  %v4741 = vshll.u32 2131351028, %v4732
  %v4742 = vshrl.u32 2102212464, %v4733
  %v4743 = vor.u32 %v4741, %v4742
  %v4744 = vshll.u32 2102212464, %v4732
  %v4745 = vshrl.u32 920167782, %v4733
  %v4746 = vor.u32 %v4744, %v4745
  %v4747 = vshll.u32 920167782, %v4732
  %v4748 = vshrl.u32 1326507024, %v4733
  %v4749 = vor.u32 %v4747, %v4748
  %vm4750 = vcmp.lt.s32.totalorder %v4731, 1
  %vm4751 = vcmp.lt.s32.totalorder %v4731, 2
  %vm4752 = vcmp.lt.s32.totalorder %v4731, 3
  %vm4753 = vcmp.lt.s32.totalorder %v4731, 4
  %v4754 = vsel %vm4750, %v4734, %v4737
  %v4755 = vsel %vm4753, %v4743, 2102212464
  %v4756 = vsel %vm4752, %v4740, %v4755
  %v4757 = vsel %vm4751, %v4754, %v4756
  %v4758 = vsel %vm4750, %v4737, %v4740
  %v4759 = vsel %vm4753, %v4746, 920167782
  %v4760 = vsel %vm4752, %v4743, %v4759
  %v4761 = vsel %vm4751, %v4758, %v4760
  %v4762 = vsel %vm4750, %v4740, %v4743
  %v4763 = vsel %vm4753, %v4749, 1326507024
  %v4764 = vsel %vm4752, %v4746, %v4763
  %v4765 = vsel %vm4751, %v4762, %v4764
  %v4766 = vshll.u32 %v4726, 8
  %v4767 = vmul.u32.u64.compose %v4766, %v4765
  %v4768 = vextract.low.u32 %v4767
  %v4769 = vextract.high.u32 %v4767
  %v4770 = vmul.u32.u64.compose %v4766, %v4761
  %v4771 = vextract.low.u32 %v4770
  %v4772 = vextract.high.u32 %v4770
  %v4773 = vmul.u32 %v4766, %v4757
  %v4774 = vadd.s32 %v4769, %v4771
  %vm4775 = vc.u32 %v4769, %v4771
  %v4776 = vadd.s32 %v4772, 1
  %v4777 = vsel %vm4775, %v4776, %v4772
  %v4778 = vadd.s32 %v4773, %v4777
  %v4779 = vadd.s32 %v4778, 536870912
  %v4780 = vshrl.u32 %v4779, 30
  %v4781 = vshll.u32 %v4780, 30
  %v4782 = vsub.s32 %v4778, %v4781
  %vm4783 = vcmp.lt.s32.totalorder %v4782, 0
  %v4784 = vsub.s32 0, %v4782
  %v4785 = vsel %vm4783, %v4784, %v4782
  %v4786 = vclz %v4785
  %v4787 = vsub.s32 %v4786, 2
  %vm4788 = vcmp.gt.s32.totalorder 0, %v4787
  %v4789 = vsel %vm4788, 0, %v4787
  %v4790 = vsub.s32 32, %v4789
  %v4791 = vshll.u32 %v4782, %v4789
  %v4792 = vshrl.u32 %v4774, %v4790
  %v4793 = vor.u32 %v4791, %v4792
  %v4794 = vsub.s32 4294967266, %v4789
  %v4795 = vadd.s32 %v4794, 127
  %v4796 = vshll.u32 %v4795, 23
  %v4797 = vor.u32 4788187, %v4796
  %v4798 = vand.u32 2147483647, %v4797
  %v4800 = vcvt.s32.f32 %v4793
  %v4801 = vmul.f32 %v4800, %v4798
  %v4802 = vxor.u32 %v4801, 2147483648
  %v4803 = vsel %vm4720, %v4802, %v4801
  %v4804 = vsub.s32 4, %v4780
  %v4805 = vsel %vm4720, %v4804, %v4780
  %v4806 = vsel %vm4719, %v233, %v4803
  %v4807 = vsel %vm4719, 0, %v4805
  %v4808 = vcosq.f32.pop %v4806
  %v4809 = vsinq.f32.pop %v4806
  %vm4810 = vweird.f32 %v233
  %v4811 = vand.u32 %v4807, 3
  %vm4812 = vcmp.lt.s32.totalorder %v4811, 2
  %vm4813 = vcmp.eq.s32.totalorder %v4811, 0
  %v4814 = vxor.u32 %v4809, 2147483648
  %v4815 = vsel %vm4813, %v4808, %v4814
  %vm4816 = vcmp.eq.s32.totalorder %v4811, 2
  %v4817 = vxor.u32 %v4808, 2147483648
  %v4818 = vsel %vm4816, %v4817, %v4809
  %v4819 = vsel %vm4812, %v4815, %v4818
  %v4820 = vsel %vm4810, nan, %v4819
  %v4821 = vand.u32 2147483647, %v234
  %vm4822 = vcmp.le.f32.partialorder %v4821, 0.7853982
  %vm4823 = vcmp.lt.s32.totalorder %v234, 0
  %v4824 = vand.u32 %v234, 2139095040
  %v4825 = vshrl.u32 %v4824, 23
  %v4826 = vsub.s32 %v4825, 127
  %v4827 = vand.u32 2147483647, %v234
  %v4828 = vand.u32 %v4827, 8388607
  %v4829 = vor.u32 %v4828, 8388608
  %v4830 = vsub.s32 0, %v4829
  %v4831 = vadd.s32 %v4826, 1
  %vm4832 = vcmp.gt.s32.totalorder %v4831, 0
  %v4833 = vsel %vm4832, %v4831, 0
  %v4834 = vshrl.u32 %v4833, 5
  %v4835 = vand.u32 %v4833, 31
  %v4836 = vsub.s32 32, %v4835
  %v4837 = vshrl.u32 683565275, %v4836
  %v4838 = vshll.u32 683565275, %v4835
  %v4839 = vshrl.u32 2475754826, %v4836
  %v4840 = vor.u32 %v4838, %v4839
  %v4841 = vshll.u32 2475754826, %v4835
  %v4842 = vshrl.u32 2131351028, %v4836
  %v4843 = vor.u32 %v4841, %v4842
  %v4844 = vshll.u32 2131351028, %v4835
  %v4845 = vshrl.u32 2102212464, %v4836
  %v4846 = vor.u32 %v4844, %v4845
  %v4847 = vshll.u32 2102212464, %v4835
  %v4848 = vshrl.u32 920167782, %v4836
  %v4849 = vor.u32 %v4847, %v4848
  %v4850 = vshll.u32 920167782, %v4835
  %v4851 = vshrl.u32 1326507024, %v4836
  %v4852 = vor.u32 %v4850, %v4851
  %vm4853 = vcmp.lt.s32.totalorder %v4834, 1
  %vm4854 = vcmp.lt.s32.totalorder %v4834, 2
  %vm4855 = vcmp.lt.s32.totalorder %v4834, 3
  %vm4856 = vcmp.lt.s32.totalorder %v4834, 4
  %v4857 = vsel %vm4853, %v4837, %v4840
  %v4858 = vsel %vm4856, %v4846, 2102212464
  %v4859 = vsel %vm4855, %v4843, %v4858
  %v4860 = vsel %vm4854, %v4857, %v4859
  %v4861 = vsel %vm4853, %v4840, %v4843
  %v4862 = vsel %vm4856, %v4849, 920167782
  %v4863 = vsel %vm4855, %v4846, %v4862
  %v4864 = vsel %vm4854, %v4861, %v4863
  %v4865 = vsel %vm4853, %v4843, %v4846
  %v4866 = vsel %vm4856, %v4852, 1326507024
  %v4867 = vsel %vm4855, %v4849, %v4866
  %v4868 = vsel %vm4854, %v4865, %v4867
  %v4869 = vshll.u32 %v4829, 8
  %v4870 = vmul.u32.u64.compose %v4869, %v4868
  %v4871 = vextract.low.u32 %v4870
  %v4872 = vextract.high.u32 %v4870
  %v4873 = vmul.u32.u64.compose %v4869, %v4864
  %v4874 = vextract.low.u32 %v4873
  %v4875 = vextract.high.u32 %v4873
  %v4876 = vmul.u32 %v4869, %v4860
  %v4877 = vadd.s32 %v4872, %v4874
  %vm4878 = vc.u32 %v4872, %v4874
  %v4879 = vadd.s32 %v4875, 1
  %v4880 = vsel %vm4878, %v4879, %v4875
  %v4881 = vadd.s32 %v4876, %v4880
  %v4882 = vadd.s32 %v4881, 536870912
  %v4883 = vshrl.u32 %v4882, 30
  %v4884 = vshll.u32 %v4883, 30
  %v4885 = vsub.s32 %v4881, %v4884
  %vm4886 = vcmp.lt.s32.totalorder %v4885, 0
  %v4887 = vsub.s32 0, %v4885
  %v4888 = vsel %vm4886, %v4887, %v4885
  %v4889 = vclz %v4888
  %v4890 = vsub.s32 %v4889, 2
  %vm4891 = vcmp.gt.s32.totalorder 0, %v4890
  %v4892 = vsel %vm4891, 0, %v4890
  %v4893 = vsub.s32 32, %v4892
  %v4894 = vshll.u32 %v4885, %v4892
  %v4895 = vshrl.u32 %v4877, %v4893
  %v4896 = vor.u32 %v4894, %v4895
  %v4897 = vsub.s32 4294967266, %v4892
  %v4898 = vadd.s32 %v4897, 127
  %v4899 = vshll.u32 %v4898, 23
  %v4900 = vor.u32 4788187, %v4899
  %v4901 = vand.u32 2147483647, %v4900
  %v4903 = vcvt.s32.f32 %v4896
  %v4904 = vmul.f32 %v4903, %v4901
  %v4905 = vxor.u32 %v4904, 2147483648
  %v4906 = vsel %vm4823, %v4905, %v4904
  %v4907 = vsub.s32 4, %v4883
  %v4908 = vsel %vm4823, %v4907, %v4883
  %v4909 = vsel %vm4822, %v234, %v4906
  %v4910 = vsel %vm4822, 0, %v4908
  %v4911 = vcosq.f32.pop %v4909
  %v4912 = vsinq.f32.pop %v4909
  %vm4913 = vweird.f32 %v234
  %v4914 = vand.u32 %v4910, 3
  %vm4915 = vcmp.lt.s32.totalorder %v4914, 2
  %vm4916 = vcmp.eq.s32.totalorder %v4914, 0
  %v4917 = vxor.u32 %v4912, 2147483648
  %v4918 = vsel %vm4916, %v4911, %v4917
  %vm4919 = vcmp.eq.s32.totalorder %v4914, 2
  %v4920 = vxor.u32 %v4911, 2147483648
  %v4921 = vsel %vm4919, %v4920, %v4912
  %v4922 = vsel %vm4915, %v4918, %v4921
  %v4923 = vsel %vm4913, nan, %v4922
  %v4924 = vand.u32 2147483647, %v235
  %vm4925 = vcmp.le.f32.partialorder %v4924, 0.7853982
  %vm4926 = vcmp.lt.s32.totalorder %v235, 0
  %v4927 = vand.u32 %v235, 2139095040
  %v4928 = vshrl.u32 %v4927, 23
  %v4929 = vsub.s32 %v4928, 127
  %v4930 = vand.u32 2147483647, %v235
  %v4931 = vand.u32 %v4930, 8388607
  %v4932 = vor.u32 %v4931, 8388608
  %v4933 = vsub.s32 0, %v4932
  %v4934 = vadd.s32 %v4929, 1
  %vm4935 = vcmp.gt.s32.totalorder %v4934, 0
  %v4936 = vsel %vm4935, %v4934, 0
  %v4937 = vshrl.u32 %v4936, 5
  %v4938 = vand.u32 %v4936, 31
  %v4939 = vsub.s32 32, %v4938
  %v4940 = vshrl.u32 683565275, %v4939
  %v4941 = vshll.u32 683565275, %v4938
  %v4942 = vshrl.u32 2475754826, %v4939
  %v4943 = vor.u32 %v4941, %v4942
  %v4944 = vshll.u32 2475754826, %v4938
  %v4945 = vshrl.u32 2131351028, %v4939
  %v4946 = vor.u32 %v4944, %v4945
  %v4947 = vshll.u32 2131351028, %v4938
  %v4948 = vshrl.u32 2102212464, %v4939
  %v4949 = vor.u32 %v4947, %v4948
  %v4950 = vshll.u32 2102212464, %v4938
  %v4951 = vshrl.u32 920167782, %v4939
  %v4952 = vor.u32 %v4950, %v4951
  %v4953 = vshll.u32 920167782, %v4938
  %v4954 = vshrl.u32 1326507024, %v4939
  %v4955 = vor.u32 %v4953, %v4954
  %vm4956 = vcmp.lt.s32.totalorder %v4937, 1
  %vm4957 = vcmp.lt.s32.totalorder %v4937, 2
  %vm4958 = vcmp.lt.s32.totalorder %v4937, 3
  %vm4959 = vcmp.lt.s32.totalorder %v4937, 4
  %v4960 = vsel %vm4956, %v4940, %v4943
  %v4961 = vsel %vm4959, %v4949, 2102212464
  %v4962 = vsel %vm4958, %v4946, %v4961
  %v4963 = vsel %vm4957, %v4960, %v4962
  %v4964 = vsel %vm4956, %v4943, %v4946
  %v4965 = vsel %vm4959, %v4952, 920167782
  %v4966 = vsel %vm4958, %v4949, %v4965
  %v4967 = vsel %vm4957, %v4964, %v4966
  %v4968 = vsel %vm4956, %v4946, %v4949
  %v4969 = vsel %vm4959, %v4955, 1326507024
  %v4970 = vsel %vm4958, %v4952, %v4969
  %v4971 = vsel %vm4957, %v4968, %v4970
  %v4972 = vshll.u32 %v4932, 8
  %v4973 = vmul.u32.u64.compose %v4972, %v4971
  %v4974 = vextract.low.u32 %v4973
  %v4975 = vextract.high.u32 %v4973
  %v4976 = vmul.u32.u64.compose %v4972, %v4967
  %v4977 = vextract.low.u32 %v4976
  %v4978 = vextract.high.u32 %v4976
  %v4979 = vmul.u32 %v4972, %v4963
  %v4980 = vadd.s32 %v4975, %v4977
  %vm4981 = vc.u32 %v4975, %v4977
  %v4982 = vadd.s32 %v4978, 1
  %v4983 = vsel %vm4981, %v4982, %v4978
  %v4984 = vadd.s32 %v4979, %v4983
  %v4985 = vadd.s32 %v4984, 536870912
  %v4986 = vshrl.u32 %v4985, 30
  %v4987 = vshll.u32 %v4986, 30
  %v4988 = vsub.s32 %v4984, %v4987
  %vm4989 = vcmp.lt.s32.totalorder %v4988, 0
  %v4990 = vsub.s32 0, %v4988
  %v4991 = vsel %vm4989, %v4990, %v4988
  %v4992 = vclz %v4991
  %v4993 = vsub.s32 %v4992, 2
  %vm4994 = vcmp.gt.s32.totalorder 0, %v4993
  %v4995 = vsel %vm4994, 0, %v4993
  %v4996 = vsub.s32 32, %v4995
  %v4997 = vshll.u32 %v4988, %v4995
  %v4998 = vshrl.u32 %v4980, %v4996
  %v4999 = vor.u32 %v4997, %v4998
  %v5000 = vsub.s32 4294967266, %v4995
  %v5001 = vadd.s32 %v5000, 127
  %v5002 = vshll.u32 %v5001, 23
  %v5003 = vor.u32 4788187, %v5002
  %v5004 = vand.u32 2147483647, %v5003
  %v5006 = vcvt.s32.f32 %v4999
  %v5007 = vmul.f32 %v5006, %v5004
  %v5008 = vxor.u32 %v5007, 2147483648
  %v5009 = vsel %vm4926, %v5008, %v5007
  %v5010 = vsub.s32 4, %v4986
  %v5011 = vsel %vm4926, %v5010, %v4986
  %v5012 = vsel %vm4925, %v235, %v5009
  %v5013 = vsel %vm4925, 0, %v5011
  %v5014 = vcosq.f32.pop %v5012
  %v5015 = vsinq.f32.pop %v5012
  %vm5016 = vweird.f32 %v235
  %v5017 = vand.u32 %v5013, 3
  %vm5018 = vcmp.lt.s32.totalorder %v5017, 2
  %vm5019 = vcmp.eq.s32.totalorder %v5017, 0
  %v5020 = vxor.u32 %v5015, 2147483648
  %v5021 = vsel %vm5019, %v5014, %v5020
  %vm5022 = vcmp.eq.s32.totalorder %v5017, 2
  %v5023 = vxor.u32 %v5014, 2147483648
  %v5024 = vsel %vm5022, %v5023, %v5015
  %v5025 = vsel %vm5018, %v5021, %v5024
  %v5026 = vsel %vm5016, nan, %v5025
  %v5027 = vand.u32 2147483647, %v236
  %vm5028 = vcmp.le.f32.partialorder %v5027, 0.7853982
  %vm5029 = vcmp.lt.s32.totalorder %v236, 0
  %v5030 = vand.u32 %v236, 2139095040
  %v5031 = vshrl.u32 %v5030, 23
  %v5032 = vsub.s32 %v5031, 127
  %v5033 = vand.u32 2147483647, %v236
  %v5034 = vand.u32 %v5033, 8388607
  %v5035 = vor.u32 %v5034, 8388608
  %v5036 = vsub.s32 0, %v5035
  %v5037 = vadd.s32 %v5032, 1
  %vm5038 = vcmp.gt.s32.totalorder %v5037, 0
  %v5039 = vsel %vm5038, %v5037, 0
  %v5040 = vshrl.u32 %v5039, 5
  %v5041 = vand.u32 %v5039, 31
  %v5042 = vsub.s32 32, %v5041
  %v5043 = vshrl.u32 683565275, %v5042
  %v5044 = vshll.u32 683565275, %v5041
  %v5045 = vshrl.u32 2475754826, %v5042
  %v5046 = vor.u32 %v5044, %v5045
  %v5047 = vshll.u32 2475754826, %v5041
  %v5048 = vshrl.u32 2131351028, %v5042
  %v5049 = vor.u32 %v5047, %v5048
  %v5050 = vshll.u32 2131351028, %v5041
  %v5051 = vshrl.u32 2102212464, %v5042
  %v5052 = vor.u32 %v5050, %v5051
  %v5053 = vshll.u32 2102212464, %v5041
  %v5054 = vshrl.u32 920167782, %v5042
  %v5055 = vor.u32 %v5053, %v5054
  %v5056 = vshll.u32 920167782, %v5041
  %v5057 = vshrl.u32 1326507024, %v5042
  %v5058 = vor.u32 %v5056, %v5057
  %vm5059 = vcmp.lt.s32.totalorder %v5040, 1
  %vm5060 = vcmp.lt.s32.totalorder %v5040, 2
  %vm5061 = vcmp.lt.s32.totalorder %v5040, 3
  %vm5062 = vcmp.lt.s32.totalorder %v5040, 4
  %v5063 = vsel %vm5059, %v5043, %v5046
  %v5064 = vsel %vm5062, %v5052, 2102212464
  %v5065 = vsel %vm5061, %v5049, %v5064
  %v5066 = vsel %vm5060, %v5063, %v5065
  %v5067 = vsel %vm5059, %v5046, %v5049
  %v5068 = vsel %vm5062, %v5055, 920167782
  %v5069 = vsel %vm5061, %v5052, %v5068
  %v5070 = vsel %vm5060, %v5067, %v5069
  %v5071 = vsel %vm5059, %v5049, %v5052
  %v5072 = vsel %vm5062, %v5058, 1326507024
  %v5073 = vsel %vm5061, %v5055, %v5072
  %v5074 = vsel %vm5060, %v5071, %v5073
  %v5075 = vshll.u32 %v5035, 8
  %v5076 = vmul.u32.u64.compose %v5075, %v5074
  %v5077 = vextract.low.u32 %v5076
  %v5078 = vextract.high.u32 %v5076
  %v5079 = vmul.u32.u64.compose %v5075, %v5070
  %v5080 = vextract.low.u32 %v5079
  %v5081 = vextract.high.u32 %v5079
  %v5082 = vmul.u32 %v5075, %v5066
  %v5083 = vadd.s32 %v5078, %v5080
  %vm5084 = vc.u32 %v5078, %v5080
  %v5085 = vadd.s32 %v5081, 1
  %v5086 = vsel %vm5084, %v5085, %v5081
  %v5087 = vadd.s32 %v5082, %v5086
  %v5088 = vadd.s32 %v5087, 536870912
  %v5089 = vshrl.u32 %v5088, 30
  %v5090 = vshll.u32 %v5089, 30
  %v5091 = vsub.s32 %v5087, %v5090
  %vm5092 = vcmp.lt.s32.totalorder %v5091, 0
  %v5093 = vsub.s32 0, %v5091
  %v5094 = vsel %vm5092, %v5093, %v5091
  %v5095 = vclz %v5094
  %v5096 = vsub.s32 %v5095, 2
  %vm5097 = vcmp.gt.s32.totalorder 0, %v5096
  %v5098 = vsel %vm5097, 0, %v5096
  %v5099 = vsub.s32 32, %v5098
  %v5100 = vshll.u32 %v5091, %v5098
  %v5101 = vshrl.u32 %v5083, %v5099
  %v5102 = vor.u32 %v5100, %v5101
  %v5103 = vsub.s32 4294967266, %v5098
  %v5104 = vadd.s32 %v5103, 127
  %v5105 = vshll.u32 %v5104, 23
  %v5106 = vor.u32 4788187, %v5105
  %v5107 = vand.u32 2147483647, %v5106
  %v5109 = vcvt.s32.f32 %v5102
  %v5110 = vmul.f32 %v5109, %v5107
  %v5111 = vxor.u32 %v5110, 2147483648
  %v5112 = vsel %vm5029, %v5111, %v5110
  %v5113 = vsub.s32 4, %v5089
  %v5114 = vsel %vm5029, %v5113, %v5089
  %v5115 = vsel %vm5028, %v236, %v5112
  %v5116 = vsel %vm5028, 0, %v5114
  %v5117 = vcosq.f32.pop %v5115
  %v5118 = vsinq.f32.pop %v5115
  %vm5119 = vweird.f32 %v236
  %v5120 = vand.u32 %v5116, 3
  %vm5121 = vcmp.lt.s32.totalorder %v5120, 2
  %vm5122 = vcmp.eq.s32.totalorder %v5120, 0
  %v5123 = vxor.u32 %v5118, 2147483648
  %v5124 = vsel %vm5122, %v5117, %v5123
  %vm5125 = vcmp.eq.s32.totalorder %v5120, 2
  %v5126 = vxor.u32 %v5117, 2147483648
  %v5127 = vsel %vm5125, %v5126, %v5118
  %v5128 = vsel %vm5121, %v5124, %v5127
  %v5129 = vsel %vm5119, nan, %v5128
  %v5130 = vand.u32 2147483647, %v237
  %vm5131 = vcmp.le.f32.partialorder %v5130, 0.7853982
  %vm5132 = vcmp.lt.s32.totalorder %v237, 0
  %v5133 = vand.u32 %v237, 2139095040
  %v5134 = vshrl.u32 %v5133, 23
  %v5135 = vsub.s32 %v5134, 127
  %v5136 = vand.u32 2147483647, %v237
  %v5137 = vand.u32 %v5136, 8388607
  %v5138 = vor.u32 %v5137, 8388608
  %v5139 = vsub.s32 0, %v5138
  %v5140 = vadd.s32 %v5135, 1
  %vm5141 = vcmp.gt.s32.totalorder %v5140, 0
  %v5142 = vsel %vm5141, %v5140, 0
  %v5143 = vshrl.u32 %v5142, 5
  %v5144 = vand.u32 %v5142, 31
  %v5145 = vsub.s32 32, %v5144
  %v5146 = vshrl.u32 683565275, %v5145
  %v5147 = vshll.u32 683565275, %v5144
  %v5148 = vshrl.u32 2475754826, %v5145
  %v5149 = vor.u32 %v5147, %v5148
  %v5150 = vshll.u32 2475754826, %v5144
  %v5151 = vshrl.u32 2131351028, %v5145
  %v5152 = vor.u32 %v5150, %v5151
  %v5153 = vshll.u32 2131351028, %v5144
  %v5154 = vshrl.u32 2102212464, %v5145
  %v5155 = vor.u32 %v5153, %v5154
  %v5156 = vshll.u32 2102212464, %v5144
  %v5157 = vshrl.u32 920167782, %v5145
  %v5158 = vor.u32 %v5156, %v5157
  %v5159 = vshll.u32 920167782, %v5144
  %v5160 = vshrl.u32 1326507024, %v5145
  %v5161 = vor.u32 %v5159, %v5160
  %vm5162 = vcmp.lt.s32.totalorder %v5143, 1
  %vm5163 = vcmp.lt.s32.totalorder %v5143, 2
  %vm5164 = vcmp.lt.s32.totalorder %v5143, 3
  %vm5165 = vcmp.lt.s32.totalorder %v5143, 4
  %v5166 = vsel %vm5162, %v5146, %v5149
  %v5167 = vsel %vm5165, %v5155, 2102212464
  %v5168 = vsel %vm5164, %v5152, %v5167
  %v5169 = vsel %vm5163, %v5166, %v5168
  %v5170 = vsel %vm5162, %v5149, %v5152
  %v5171 = vsel %vm5165, %v5158, 920167782
  %v5172 = vsel %vm5164, %v5155, %v5171
  %v5173 = vsel %vm5163, %v5170, %v5172
  %v5174 = vsel %vm5162, %v5152, %v5155
  %v5175 = vsel %vm5165, %v5161, 1326507024
  %v5176 = vsel %vm5164, %v5158, %v5175
  %v5177 = vsel %vm5163, %v5174, %v5176
  %v5178 = vshll.u32 %v5138, 8
  %v5179 = vmul.u32.u64.compose %v5178, %v5177
  %v5180 = vextract.low.u32 %v5179
  %v5181 = vextract.high.u32 %v5179
  %v5182 = vmul.u32.u64.compose %v5178, %v5173
  %v5183 = vextract.low.u32 %v5182
  %v5184 = vextract.high.u32 %v5182
  %v5185 = vmul.u32 %v5178, %v5169
  %v5186 = vadd.s32 %v5181, %v5183
  %vm5187 = vc.u32 %v5181, %v5183
  %v5188 = vadd.s32 %v5184, 1
  %v5189 = vsel %vm5187, %v5188, %v5184
  %v5190 = vadd.s32 %v5185, %v5189
  %v5191 = vadd.s32 %v5190, 536870912
  %v5192 = vshrl.u32 %v5191, 30
  %v5193 = vshll.u32 %v5192, 30
  %v5194 = vsub.s32 %v5190, %v5193
  %vm5195 = vcmp.lt.s32.totalorder %v5194, 0
  %v5196 = vsub.s32 0, %v5194
  %v5197 = vsel %vm5195, %v5196, %v5194
  %v5198 = vclz %v5197
  %v5199 = vsub.s32 %v5198, 2
  %vm5200 = vcmp.gt.s32.totalorder 0, %v5199
  %v5201 = vsel %vm5200, 0, %v5199
  %v5202 = vsub.s32 32, %v5201
  %v5203 = vshll.u32 %v5194, %v5201
  %v5204 = vshrl.u32 %v5186, %v5202
  %v5205 = vor.u32 %v5203, %v5204
  %v5206 = vsub.s32 4294967266, %v5201
  %v5207 = vadd.s32 %v5206, 127
  %v5208 = vshll.u32 %v5207, 23
  %v5209 = vor.u32 4788187, %v5208
  %v5210 = vand.u32 2147483647, %v5209
  %v5212 = vcvt.s32.f32 %v5205
  %v5213 = vmul.f32 %v5212, %v5210
  %v5214 = vxor.u32 %v5213, 2147483648
  %v5215 = vsel %vm5132, %v5214, %v5213
  %v5216 = vsub.s32 4, %v5192
  %v5217 = vsel %vm5132, %v5216, %v5192
  %v5218 = vsel %vm5131, %v237, %v5215
  %v5219 = vsel %vm5131, 0, %v5217
  %v5220 = vcosq.f32.pop %v5218
  %v5221 = vsinq.f32.pop %v5218
  %vm5222 = vweird.f32 %v237
  %v5223 = vand.u32 %v5219, 3
  %vm5224 = vcmp.lt.s32.totalorder %v5223, 2
  %vm5225 = vcmp.eq.s32.totalorder %v5223, 0
  %v5226 = vxor.u32 %v5221, 2147483648
  %v5227 = vsel %vm5225, %v5220, %v5226
  %vm5228 = vcmp.eq.s32.totalorder %v5223, 2
  %v5229 = vxor.u32 %v5220, 2147483648
  %v5230 = vsel %vm5228, %v5229, %v5221
  %v5231 = vsel %vm5224, %v5227, %v5230
  %v5232 = vsel %vm5222, nan, %v5231
  %v5233 = vand.u32 2147483647, %v238
  %vm5234 = vcmp.le.f32.partialorder %v5233, 0.7853982
  %vm5235 = vcmp.lt.s32.totalorder %v238, 0
  %v5236 = vand.u32 %v238, 2139095040
  %v5237 = vshrl.u32 %v5236, 23
  %v5238 = vsub.s32 %v5237, 127
  %v5239 = vand.u32 2147483647, %v238
  %v5240 = vand.u32 %v5239, 8388607
  %v5241 = vor.u32 %v5240, 8388608
  %v5242 = vsub.s32 0, %v5241
  %v5243 = vadd.s32 %v5238, 1
  %vm5244 = vcmp.gt.s32.totalorder %v5243, 0
  %v5245 = vsel %vm5244, %v5243, 0
  %v5246 = vshrl.u32 %v5245, 5
  %v5247 = vand.u32 %v5245, 31
  %v5248 = vsub.s32 32, %v5247
  %v5249 = vshrl.u32 683565275, %v5248
  %v5250 = vshll.u32 683565275, %v5247
  %v5251 = vshrl.u32 2475754826, %v5248
  %v5252 = vor.u32 %v5250, %v5251
  %v5253 = vshll.u32 2475754826, %v5247
  %v5254 = vshrl.u32 2131351028, %v5248
  %v5255 = vor.u32 %v5253, %v5254
  %v5256 = vshll.u32 2131351028, %v5247
  %v5257 = vshrl.u32 2102212464, %v5248
  %v5258 = vor.u32 %v5256, %v5257
  %v5259 = vshll.u32 2102212464, %v5247
  %v5260 = vshrl.u32 920167782, %v5248
  %v5261 = vor.u32 %v5259, %v5260
  %v5262 = vshll.u32 920167782, %v5247
  %v5263 = vshrl.u32 1326507024, %v5248
  %v5264 = vor.u32 %v5262, %v5263
  %vm5265 = vcmp.lt.s32.totalorder %v5246, 1
  %vm5266 = vcmp.lt.s32.totalorder %v5246, 2
  %vm5267 = vcmp.lt.s32.totalorder %v5246, 3
  %vm5268 = vcmp.lt.s32.totalorder %v5246, 4
  %v5269 = vsel %vm5265, %v5249, %v5252
  %v5270 = vsel %vm5268, %v5258, 2102212464
  %v5271 = vsel %vm5267, %v5255, %v5270
  %v5272 = vsel %vm5266, %v5269, %v5271
  %v5273 = vsel %vm5265, %v5252, %v5255
  %v5274 = vsel %vm5268, %v5261, 920167782
  %v5275 = vsel %vm5267, %v5258, %v5274
  %v5276 = vsel %vm5266, %v5273, %v5275
  %v5277 = vsel %vm5265, %v5255, %v5258
  %v5278 = vsel %vm5268, %v5264, 1326507024
  %v5279 = vsel %vm5267, %v5261, %v5278
  %v5280 = vsel %vm5266, %v5277, %v5279
  %v5281 = vshll.u32 %v5241, 8
  %v5282 = vmul.u32.u64.compose %v5281, %v5280
  %v5283 = vextract.low.u32 %v5282
  %v5284 = vextract.high.u32 %v5282
  %v5285 = vmul.u32.u64.compose %v5281, %v5276
  %v5286 = vextract.low.u32 %v5285
  %v5287 = vextract.high.u32 %v5285
  %v5288 = vmul.u32 %v5281, %v5272
  %v5289 = vadd.s32 %v5284, %v5286
  %vm5290 = vc.u32 %v5284, %v5286
  %v5291 = vadd.s32 %v5287, 1
  %v5292 = vsel %vm5290, %v5291, %v5287
  %v5293 = vadd.s32 %v5288, %v5292
  %v5294 = vadd.s32 %v5293, 536870912
  %v5295 = vshrl.u32 %v5294, 30
  %v5296 = vshll.u32 %v5295, 30
  %v5297 = vsub.s32 %v5293, %v5296
  %vm5298 = vcmp.lt.s32.totalorder %v5297, 0
  %v5299 = vsub.s32 0, %v5297
  %v5300 = vsel %vm5298, %v5299, %v5297
  %v5301 = vclz %v5300
  %v5302 = vsub.s32 %v5301, 2
  %vm5303 = vcmp.gt.s32.totalorder 0, %v5302
  %v5304 = vsel %vm5303, 0, %v5302
  %v5305 = vsub.s32 32, %v5304
  %v5306 = vshll.u32 %v5297, %v5304
  %v5307 = vshrl.u32 %v5289, %v5305
  %v5308 = vor.u32 %v5306, %v5307
  %v5309 = vsub.s32 4294967266, %v5304
  %v5310 = vadd.s32 %v5309, 127
  %v5311 = vshll.u32 %v5310, 23
  %v5312 = vor.u32 4788187, %v5311
  %v5313 = vand.u32 2147483647, %v5312
  %v5315 = vcvt.s32.f32 %v5308
  %v5316 = vmul.f32 %v5315, %v5313
  %v5317 = vxor.u32 %v5316, 2147483648
  %v5318 = vsel %vm5235, %v5317, %v5316
  %v5319 = vsub.s32 4, %v5295
  %v5320 = vsel %vm5235, %v5319, %v5295
  %v5321 = vsel %vm5234, %v238, %v5318
  %v5322 = vsel %vm5234, 0, %v5320
  %v5323 = vcosq.f32.pop %v5321
  %v5324 = vsinq.f32.pop %v5321
  %vm5325 = vweird.f32 %v238
  %v5326 = vand.u32 %v5322, 3
  %vm5327 = vcmp.lt.s32.totalorder %v5326, 2
  %vm5328 = vcmp.eq.s32.totalorder %v5326, 0
  %v5329 = vxor.u32 %v5324, 2147483648
  %v5330 = vsel %vm5328, %v5323, %v5329
  %vm5331 = vcmp.eq.s32.totalorder %v5326, 2
  %v5332 = vxor.u32 %v5323, 2147483648
  %v5333 = vsel %vm5331, %v5332, %v5324
  %v5334 = vsel %vm5327, %v5330, %v5333
  %v5335 = vsel %vm5325, nan, %v5334
  %v5336 = vand.u32 2147483647, %v239
  %vm5337 = vcmp.le.f32.partialorder %v5336, 0.7853982
  %vm5338 = vcmp.lt.s32.totalorder %v239, 0
  %v5339 = vand.u32 %v239, 2139095040
  %v5340 = vshrl.u32 %v5339, 23
  %v5341 = vsub.s32 %v5340, 127
  %v5342 = vand.u32 2147483647, %v239
  %v5343 = vand.u32 %v5342, 8388607
  %v5344 = vor.u32 %v5343, 8388608
  %v5345 = vsub.s32 0, %v5344
  %v5346 = vadd.s32 %v5341, 1
  %vm5347 = vcmp.gt.s32.totalorder %v5346, 0
  %v5348 = vsel %vm5347, %v5346, 0
  %v5349 = vshrl.u32 %v5348, 5
  %v5350 = vand.u32 %v5348, 31
  %v5351 = vsub.s32 32, %v5350
  %v5352 = vshrl.u32 683565275, %v5351
  %v5353 = vshll.u32 683565275, %v5350
  %v5354 = vshrl.u32 2475754826, %v5351
  %v5355 = vor.u32 %v5353, %v5354
  %v5356 = vshll.u32 2475754826, %v5350
  %v5357 = vshrl.u32 2131351028, %v5351
  %v5358 = vor.u32 %v5356, %v5357
  %v5359 = vshll.u32 2131351028, %v5350
  %v5360 = vshrl.u32 2102212464, %v5351
  %v5361 = vor.u32 %v5359, %v5360
  %v5362 = vshll.u32 2102212464, %v5350
  %v5363 = vshrl.u32 920167782, %v5351
  %v5364 = vor.u32 %v5362, %v5363
  %v5365 = vshll.u32 920167782, %v5350
  %v5366 = vshrl.u32 1326507024, %v5351
  %v5367 = vor.u32 %v5365, %v5366
  %vm5368 = vcmp.lt.s32.totalorder %v5349, 1
  %vm5369 = vcmp.lt.s32.totalorder %v5349, 2
  %vm5370 = vcmp.lt.s32.totalorder %v5349, 3
  %vm5371 = vcmp.lt.s32.totalorder %v5349, 4
  %v5372 = vsel %vm5368, %v5352, %v5355
  %v5373 = vsel %vm5371, %v5361, 2102212464
  %v5374 = vsel %vm5370, %v5358, %v5373
  %v5375 = vsel %vm5369, %v5372, %v5374
  %v5376 = vsel %vm5368, %v5355, %v5358
  %v5377 = vsel %vm5371, %v5364, 920167782
  %v5378 = vsel %vm5370, %v5361, %v5377
  %v5379 = vsel %vm5369, %v5376, %v5378
  %v5380 = vsel %vm5368, %v5358, %v5361
  %v5381 = vsel %vm5371, %v5367, 1326507024
  %v5382 = vsel %vm5370, %v5364, %v5381
  %v5383 = vsel %vm5369, %v5380, %v5382
  %v5384 = vshll.u32 %v5344, 8
  %v5385 = vmul.u32.u64.compose %v5384, %v5383
  %v5386 = vextract.low.u32 %v5385
  %v5387 = vextract.high.u32 %v5385
  %v5388 = vmul.u32.u64.compose %v5384, %v5379
  %v5389 = vextract.low.u32 %v5388
  %v5390 = vextract.high.u32 %v5388
  %v5391 = vmul.u32 %v5384, %v5375
  %v5392 = vadd.s32 %v5387, %v5389
  %vm5393 = vc.u32 %v5387, %v5389
  %v5394 = vadd.s32 %v5390, 1
  %v5395 = vsel %vm5393, %v5394, %v5390
  %v5396 = vadd.s32 %v5391, %v5395
  %v5397 = vadd.s32 %v5396, 536870912
  %v5398 = vshrl.u32 %v5397, 30
  %v5399 = vshll.u32 %v5398, 30
  %v5400 = vsub.s32 %v5396, %v5399
  %vm5401 = vcmp.lt.s32.totalorder %v5400, 0
  %v5402 = vsub.s32 0, %v5400
  %v5403 = vsel %vm5401, %v5402, %v5400
  %v5404 = vclz %v5403
  %v5405 = vsub.s32 %v5404, 2
  %vm5406 = vcmp.gt.s32.totalorder 0, %v5405
  %v5407 = vsel %vm5406, 0, %v5405
  %v5408 = vsub.s32 32, %v5407
  %v5409 = vshll.u32 %v5400, %v5407
  %v5410 = vshrl.u32 %v5392, %v5408
  %v5411 = vor.u32 %v5409, %v5410
  %v5412 = vsub.s32 4294967266, %v5407
  %v5413 = vadd.s32 %v5412, 127
  %v5414 = vshll.u32 %v5413, 23
  %v5415 = vor.u32 4788187, %v5414
  %v5416 = vand.u32 2147483647, %v5415
  %v5418 = vcvt.s32.f32 %v5411
  %v5419 = vmul.f32 %v5418, %v5416
  %v5420 = vxor.u32 %v5419, 2147483648
  %v5421 = vsel %vm5338, %v5420, %v5419
  %v5422 = vsub.s32 4, %v5398
  %v5423 = vsel %vm5338, %v5422, %v5398
  %v5424 = vsel %vm5337, %v239, %v5421
  %v5425 = vsel %vm5337, 0, %v5423
  %v5426 = vcosq.f32.pop %v5424
  %v5427 = vsinq.f32.pop %v5424
  %vm5428 = vweird.f32 %v239
  %v5429 = vand.u32 %v5425, 3
  %vm5430 = vcmp.lt.s32.totalorder %v5429, 2
  %vm5431 = vcmp.eq.s32.totalorder %v5429, 0
  %v5432 = vxor.u32 %v5427, 2147483648
  %v5433 = vsel %vm5431, %v5426, %v5432
  %vm5434 = vcmp.eq.s32.totalorder %v5429, 2
  %v5435 = vxor.u32 %v5426, 2147483648
  %v5436 = vsel %vm5434, %v5435, %v5427
  %v5437 = vsel %vm5430, %v5433, %v5436
  %v5438 = vsel %vm5428, nan, %v5437
  %v5439 = vand.u32 2147483647, %v240
  %vm5440 = vcmp.le.f32.partialorder %v5439, 0.7853982
  %vm5441 = vcmp.lt.s32.totalorder %v240, 0
  %v5442 = vand.u32 %v240, 2139095040
  %v5443 = vshrl.u32 %v5442, 23
  %v5444 = vsub.s32 %v5443, 127
  %v5445 = vand.u32 2147483647, %v240
  %v5446 = vand.u32 %v5445, 8388607
  %v5447 = vor.u32 %v5446, 8388608
  %v5448 = vsub.s32 0, %v5447
  %v5449 = vadd.s32 %v5444, 1
  %vm5450 = vcmp.gt.s32.totalorder %v5449, 0
  %v5451 = vsel %vm5450, %v5449, 0
  %v5452 = vshrl.u32 %v5451, 5
  %v5453 = vand.u32 %v5451, 31
  %v5454 = vsub.s32 32, %v5453
  %v5455 = vshrl.u32 683565275, %v5454
  %v5456 = vshll.u32 683565275, %v5453
  %v5457 = vshrl.u32 2475754826, %v5454
  %v5458 = vor.u32 %v5456, %v5457
  %v5459 = vshll.u32 2475754826, %v5453
  %v5460 = vshrl.u32 2131351028, %v5454
  %v5461 = vor.u32 %v5459, %v5460
  %v5462 = vshll.u32 2131351028, %v5453
  %v5463 = vshrl.u32 2102212464, %v5454
  %v5464 = vor.u32 %v5462, %v5463
  %v5465 = vshll.u32 2102212464, %v5453
  %v5466 = vshrl.u32 920167782, %v5454
  %v5467 = vor.u32 %v5465, %v5466
  %v5468 = vshll.u32 920167782, %v5453
  %v5469 = vshrl.u32 1326507024, %v5454
  %v5470 = vor.u32 %v5468, %v5469
  %vm5471 = vcmp.lt.s32.totalorder %v5452, 1
  %vm5472 = vcmp.lt.s32.totalorder %v5452, 2
  %vm5473 = vcmp.lt.s32.totalorder %v5452, 3
  %vm5474 = vcmp.lt.s32.totalorder %v5452, 4
  %v5475 = vsel %vm5471, %v5455, %v5458
  %v5476 = vsel %vm5474, %v5464, 2102212464
  %v5477 = vsel %vm5473, %v5461, %v5476
  %v5478 = vsel %vm5472, %v5475, %v5477
  %v5479 = vsel %vm5471, %v5458, %v5461
  %v5480 = vsel %vm5474, %v5467, 920167782
  %v5481 = vsel %vm5473, %v5464, %v5480
  %v5482 = vsel %vm5472, %v5479, %v5481
  %v5483 = vsel %vm5471, %v5461, %v5464
  %v5484 = vsel %vm5474, %v5470, 1326507024
  %v5485 = vsel %vm5473, %v5467, %v5484
  %v5486 = vsel %vm5472, %v5483, %v5485
  %v5487 = vshll.u32 %v5447, 8
  %v5488 = vmul.u32.u64.compose %v5487, %v5486
  %v5489 = vextract.low.u32 %v5488
  %v5490 = vextract.high.u32 %v5488
  %v5491 = vmul.u32.u64.compose %v5487, %v5482
  %v5492 = vextract.low.u32 %v5491
  %v5493 = vextract.high.u32 %v5491
  %v5494 = vmul.u32 %v5487, %v5478
  %v5495 = vadd.s32 %v5490, %v5492
  %vm5496 = vc.u32 %v5490, %v5492
  %v5497 = vadd.s32 %v5493, 1
  %v5498 = vsel %vm5496, %v5497, %v5493
  %v5499 = vadd.s32 %v5494, %v5498
  %v5500 = vadd.s32 %v5499, 536870912
  %v5501 = vshrl.u32 %v5500, 30
  %v5502 = vshll.u32 %v5501, 30
  %v5503 = vsub.s32 %v5499, %v5502
  %vm5504 = vcmp.lt.s32.totalorder %v5503, 0
  %v5505 = vsub.s32 0, %v5503
  %v5506 = vsel %vm5504, %v5505, %v5503
  %v5507 = vclz %v5506
  %v5508 = vsub.s32 %v5507, 2
  %vm5509 = vcmp.gt.s32.totalorder 0, %v5508
  %v5510 = vsel %vm5509, 0, %v5508
  %v5511 = vsub.s32 32, %v5510
  %v5512 = vshll.u32 %v5503, %v5510
  %v5513 = vshrl.u32 %v5495, %v5511
  %v5514 = vor.u32 %v5512, %v5513
  %v5515 = vsub.s32 4294967266, %v5510
  %v5516 = vadd.s32 %v5515, 127
  %v5517 = vshll.u32 %v5516, 23
  %v5518 = vor.u32 4788187, %v5517
  %v5519 = vand.u32 2147483647, %v5518
  %v5521 = vcvt.s32.f32 %v5514
  %v5522 = vmul.f32 %v5521, %v5519
  %v5523 = vxor.u32 %v5522, 2147483648
  %v5524 = vsel %vm5441, %v5523, %v5522
  %v5525 = vsub.s32 4, %v5501
  %v5526 = vsel %vm5441, %v5525, %v5501
  %v5527 = vsel %vm5440, %v240, %v5524
  %v5528 = vsel %vm5440, 0, %v5526
  %v5529 = vcosq.f32.pop %v5527
  %v5530 = vsinq.f32.pop %v5527
  %vm5531 = vweird.f32 %v240
  %v5532 = vand.u32 %v5528, 3
  %vm5533 = vcmp.lt.s32.totalorder %v5532, 2
  %vm5534 = vcmp.eq.s32.totalorder %v5532, 0
  %v5535 = vxor.u32 %v5530, 2147483648
  %v5536 = vsel %vm5534, %v5529, %v5535
  %vm5537 = vcmp.eq.s32.totalorder %v5532, 2
  %v5538 = vxor.u32 %v5529, 2147483648
  %v5539 = vsel %vm5537, %v5538, %v5530
  %v5540 = vsel %vm5533, %v5536, %v5539
  %v5541 = vsel %vm5531, nan, %v5540
  %v5542 = vand.u32 2147483647, %v241
  %vm5543 = vcmp.le.f32.partialorder %v5542, 0.7853982
  %vm5544 = vcmp.lt.s32.totalorder %v241, 0
  %v5545 = vand.u32 %v241, 2139095040
  %v5546 = vshrl.u32 %v5545, 23
  %v5547 = vsub.s32 %v5546, 127
  %v5548 = vand.u32 2147483647, %v241
  %v5549 = vand.u32 %v5548, 8388607
  %v5550 = vor.u32 %v5549, 8388608
  %v5551 = vsub.s32 0, %v5550
  %v5552 = vadd.s32 %v5547, 1
  %vm5553 = vcmp.gt.s32.totalorder %v5552, 0
  %v5554 = vsel %vm5553, %v5552, 0
  %v5555 = vshrl.u32 %v5554, 5
  %v5556 = vand.u32 %v5554, 31
  %v5557 = vsub.s32 32, %v5556
  %v5558 = vshrl.u32 683565275, %v5557
  %v5559 = vshll.u32 683565275, %v5556
  %v5560 = vshrl.u32 2475754826, %v5557
  %v5561 = vor.u32 %v5559, %v5560
  %v5562 = vshll.u32 2475754826, %v5556
  %v5563 = vshrl.u32 2131351028, %v5557
  %v5564 = vor.u32 %v5562, %v5563
  %v5565 = vshll.u32 2131351028, %v5556
  %v5566 = vshrl.u32 2102212464, %v5557
  %v5567 = vor.u32 %v5565, %v5566
  %v5568 = vshll.u32 2102212464, %v5556
  %v5569 = vshrl.u32 920167782, %v5557
  %v5570 = vor.u32 %v5568, %v5569
  %v5571 = vshll.u32 920167782, %v5556
  %v5572 = vshrl.u32 1326507024, %v5557
  %v5573 = vor.u32 %v5571, %v5572
  %vm5574 = vcmp.lt.s32.totalorder %v5555, 1
  %vm5575 = vcmp.lt.s32.totalorder %v5555, 2
  %vm5576 = vcmp.lt.s32.totalorder %v5555, 3
  %vm5577 = vcmp.lt.s32.totalorder %v5555, 4
  %v5578 = vsel %vm5574, %v5558, %v5561
  %v5579 = vsel %vm5577, %v5567, 2102212464
  %v5580 = vsel %vm5576, %v5564, %v5579
  %v5581 = vsel %vm5575, %v5578, %v5580
  %v5582 = vsel %vm5574, %v5561, %v5564
  %v5583 = vsel %vm5577, %v5570, 920167782
  %v5584 = vsel %vm5576, %v5567, %v5583
  %v5585 = vsel %vm5575, %v5582, %v5584
  %v5586 = vsel %vm5574, %v5564, %v5567
  %v5587 = vsel %vm5577, %v5573, 1326507024
  %v5588 = vsel %vm5576, %v5570, %v5587
  %v5589 = vsel %vm5575, %v5586, %v5588
  %v5590 = vshll.u32 %v5550, 8
  %v5591 = vmul.u32.u64.compose %v5590, %v5589
  %v5592 = vextract.low.u32 %v5591
  %v5593 = vextract.high.u32 %v5591
  %v5594 = vmul.u32.u64.compose %v5590, %v5585
  %v5595 = vextract.low.u32 %v5594
  %v5596 = vextract.high.u32 %v5594
  %v5597 = vmul.u32 %v5590, %v5581
  %v5598 = vadd.s32 %v5593, %v5595
  %vm5599 = vc.u32 %v5593, %v5595
  %v5600 = vadd.s32 %v5596, 1
  %v5601 = vsel %vm5599, %v5600, %v5596
  %v5602 = vadd.s32 %v5597, %v5601
  %v5603 = vadd.s32 %v5602, 536870912
  %v5604 = vshrl.u32 %v5603, 30
  %v5605 = vshll.u32 %v5604, 30
  %v5606 = vsub.s32 %v5602, %v5605
  %vm5607 = vcmp.lt.s32.totalorder %v5606, 0
  %v5608 = vsub.s32 0, %v5606
  %v5609 = vsel %vm5607, %v5608, %v5606
  %v5610 = vclz %v5609
  %v5611 = vsub.s32 %v5610, 2
  %vm5612 = vcmp.gt.s32.totalorder 0, %v5611
  %v5613 = vsel %vm5612, 0, %v5611
  %v5614 = vsub.s32 32, %v5613
  %v5615 = vshll.u32 %v5606, %v5613
  %v5616 = vshrl.u32 %v5598, %v5614
  %v5617 = vor.u32 %v5615, %v5616
  %v5618 = vsub.s32 4294967266, %v5613
  %v5619 = vadd.s32 %v5618, 127
  %v5620 = vshll.u32 %v5619, 23
  %v5621 = vor.u32 4788187, %v5620
  %v5622 = vand.u32 2147483647, %v5621
  %v5624 = vcvt.s32.f32 %v5617
  %v5625 = vmul.f32 %v5624, %v5622
  %v5626 = vxor.u32 %v5625, 2147483648
  %v5627 = vsel %vm5544, %v5626, %v5625
  %v5628 = vsub.s32 4, %v5604
  %v5629 = vsel %vm5544, %v5628, %v5604
  %v5630 = vsel %vm5543, %v241, %v5627
  %v5631 = vsel %vm5543, 0, %v5629
  %v5632 = vcosq.f32.pop %v5630
  %v5633 = vsinq.f32.pop %v5630
  %vm5634 = vweird.f32 %v241
  %v5635 = vand.u32 %v5631, 3
  %vm5636 = vcmp.lt.s32.totalorder %v5635, 2
  %vm5637 = vcmp.eq.s32.totalorder %v5635, 0
  %v5638 = vxor.u32 %v5633, 2147483648
  %v5639 = vsel %vm5637, %v5632, %v5638
  %vm5640 = vcmp.eq.s32.totalorder %v5635, 2
  %v5641 = vxor.u32 %v5632, 2147483648
  %v5642 = vsel %vm5640, %v5641, %v5633
  %v5643 = vsel %vm5636, %v5639, %v5642
  %v5644 = vsel %vm5634, nan, %v5643
  %v5645 = vand.u32 2147483647, %v242
  %vm5646 = vcmp.le.f32.partialorder %v5645, 0.7853982
  %vm5647 = vcmp.lt.s32.totalorder %v242, 0
  %v5648 = vand.u32 %v242, 2139095040
  %v5649 = vshrl.u32 %v5648, 23
  %v5650 = vsub.s32 %v5649, 127
  %v5651 = vand.u32 2147483647, %v242
  %v5652 = vand.u32 %v5651, 8388607
  %v5653 = vor.u32 %v5652, 8388608
  %v5654 = vsub.s32 0, %v5653
  %v5655 = vadd.s32 %v5650, 1
  %vm5656 = vcmp.gt.s32.totalorder %v5655, 0
  %v5657 = vsel %vm5656, %v5655, 0
  %v5658 = vshrl.u32 %v5657, 5
  %v5659 = vand.u32 %v5657, 31
  %v5660 = vsub.s32 32, %v5659
  %v5661 = vshrl.u32 683565275, %v5660
  %v5662 = vshll.u32 683565275, %v5659
  %v5663 = vshrl.u32 2475754826, %v5660
  %v5664 = vor.u32 %v5662, %v5663
  %v5665 = vshll.u32 2475754826, %v5659
  %v5666 = vshrl.u32 2131351028, %v5660
  %v5667 = vor.u32 %v5665, %v5666
  %v5668 = vshll.u32 2131351028, %v5659
  %v5669 = vshrl.u32 2102212464, %v5660
  %v5670 = vor.u32 %v5668, %v5669
  %v5671 = vshll.u32 2102212464, %v5659
  %v5672 = vshrl.u32 920167782, %v5660
  %v5673 = vor.u32 %v5671, %v5672
  %v5674 = vshll.u32 920167782, %v5659
  %v5675 = vshrl.u32 1326507024, %v5660
  %v5676 = vor.u32 %v5674, %v5675
  %vm5677 = vcmp.lt.s32.totalorder %v5658, 1
  %vm5678 = vcmp.lt.s32.totalorder %v5658, 2
  %vm5679 = vcmp.lt.s32.totalorder %v5658, 3
  %vm5680 = vcmp.lt.s32.totalorder %v5658, 4
  %v5681 = vsel %vm5677, %v5661, %v5664
  %v5682 = vsel %vm5680, %v5670, 2102212464
  %v5683 = vsel %vm5679, %v5667, %v5682
  %v5684 = vsel %vm5678, %v5681, %v5683
  %v5685 = vsel %vm5677, %v5664, %v5667
  %v5686 = vsel %vm5680, %v5673, 920167782
  %v5687 = vsel %vm5679, %v5670, %v5686
  %v5688 = vsel %vm5678, %v5685, %v5687
  %v5689 = vsel %vm5677, %v5667, %v5670
  %v5690 = vsel %vm5680, %v5676, 1326507024
  %v5691 = vsel %vm5679, %v5673, %v5690
  %v5692 = vsel %vm5678, %v5689, %v5691
  %v5693 = vshll.u32 %v5653, 8
  %v5694 = vmul.u32.u64.compose %v5693, %v5692
  %v5695 = vextract.low.u32 %v5694
  %v5696 = vextract.high.u32 %v5694
  %v5697 = vmul.u32.u64.compose %v5693, %v5688
  %v5698 = vextract.low.u32 %v5697
  %v5699 = vextract.high.u32 %v5697
  %v5700 = vmul.u32 %v5693, %v5684
  %v5701 = vadd.s32 %v5696, %v5698
  %vm5702 = vc.u32 %v5696, %v5698
  %v5703 = vadd.s32 %v5699, 1
  %v5704 = vsel %vm5702, %v5703, %v5699
  %v5705 = vadd.s32 %v5700, %v5704
  %v5706 = vadd.s32 %v5705, 536870912
  %v5707 = vshrl.u32 %v5706, 30
  %v5708 = vshll.u32 %v5707, 30
  %v5709 = vsub.s32 %v5705, %v5708
  %vm5710 = vcmp.lt.s32.totalorder %v5709, 0
  %v5711 = vsub.s32 0, %v5709
  %v5712 = vsel %vm5710, %v5711, %v5709
  %v5713 = vclz %v5712
  %v5714 = vsub.s32 %v5713, 2
  %vm5715 = vcmp.gt.s32.totalorder 0, %v5714
  %v5716 = vsel %vm5715, 0, %v5714
  %v5717 = vsub.s32 32, %v5716
  %v5718 = vshll.u32 %v5709, %v5716
  %v5719 = vshrl.u32 %v5701, %v5717
  %v5720 = vor.u32 %v5718, %v5719
  %v5721 = vsub.s32 4294967266, %v5716
  %v5722 = vadd.s32 %v5721, 127
  %v5723 = vshll.u32 %v5722, 23
  %v5724 = vor.u32 4788187, %v5723
  %v5725 = vand.u32 2147483647, %v5724
  %v5727 = vcvt.s32.f32 %v5720
  %v5728 = vmul.f32 %v5727, %v5725
  %v5729 = vxor.u32 %v5728, 2147483648
  %v5730 = vsel %vm5647, %v5729, %v5728
  %v5731 = vsub.s32 4, %v5707
  %v5732 = vsel %vm5647, %v5731, %v5707
  %v5733 = vsel %vm5646, %v242, %v5730
  %v5734 = vsel %vm5646, 0, %v5732
  %v5735 = vcosq.f32.pop %v5733
  %v5736 = vsinq.f32.pop %v5733
  %vm5737 = vweird.f32 %v242
  %v5738 = vand.u32 %v5734, 3
  %vm5739 = vcmp.lt.s32.totalorder %v5738, 2
  %vm5740 = vcmp.eq.s32.totalorder %v5738, 0
  %v5741 = vxor.u32 %v5736, 2147483648
  %v5742 = vsel %vm5740, %v5735, %v5741
  %vm5743 = vcmp.eq.s32.totalorder %v5738, 2
  %v5744 = vxor.u32 %v5735, 2147483648
  %v5745 = vsel %vm5743, %v5744, %v5736
  %v5746 = vsel %vm5739, %v5742, %v5745
  %v5747 = vsel %vm5737, nan, %v5746
  %v5748 = vand.u32 2147483647, %v243
  %vm5749 = vcmp.le.f32.partialorder %v5748, 0.7853982
  %vm5750 = vcmp.lt.s32.totalorder %v243, 0
  %v5751 = vand.u32 %v243, 2139095040
  %v5752 = vshrl.u32 %v5751, 23
  %v5753 = vsub.s32 %v5752, 127
  %v5754 = vand.u32 2147483647, %v243
  %v5755 = vand.u32 %v5754, 8388607
  %v5756 = vor.u32 %v5755, 8388608
  %v5757 = vsub.s32 0, %v5756
  %v5758 = vadd.s32 %v5753, 1
  %vm5759 = vcmp.gt.s32.totalorder %v5758, 0
  %v5760 = vsel %vm5759, %v5758, 0
  %v5761 = vshrl.u32 %v5760, 5
  %v5762 = vand.u32 %v5760, 31
  %v5763 = vsub.s32 32, %v5762
  %v5764 = vshrl.u32 683565275, %v5763
  %v5765 = vshll.u32 683565275, %v5762
  %v5766 = vshrl.u32 2475754826, %v5763
  %v5767 = vor.u32 %v5765, %v5766
  %v5768 = vshll.u32 2475754826, %v5762
  %v5769 = vshrl.u32 2131351028, %v5763
  %v5770 = vor.u32 %v5768, %v5769
  %v5771 = vshll.u32 2131351028, %v5762
  %v5772 = vshrl.u32 2102212464, %v5763
  %v5773 = vor.u32 %v5771, %v5772
  %v5774 = vshll.u32 2102212464, %v5762
  %v5775 = vshrl.u32 920167782, %v5763
  %v5776 = vor.u32 %v5774, %v5775
  %v5777 = vshll.u32 920167782, %v5762
  %v5778 = vshrl.u32 1326507024, %v5763
  %v5779 = vor.u32 %v5777, %v5778
  %vm5780 = vcmp.lt.s32.totalorder %v5761, 1
  %vm5781 = vcmp.lt.s32.totalorder %v5761, 2
  %vm5782 = vcmp.lt.s32.totalorder %v5761, 3
  %vm5783 = vcmp.lt.s32.totalorder %v5761, 4
  %v5784 = vsel %vm5780, %v5764, %v5767
  %v5785 = vsel %vm5783, %v5773, 2102212464
  %v5786 = vsel %vm5782, %v5770, %v5785
  %v5787 = vsel %vm5781, %v5784, %v5786
  %v5788 = vsel %vm5780, %v5767, %v5770
  %v5789 = vsel %vm5783, %v5776, 920167782
  %v5790 = vsel %vm5782, %v5773, %v5789
  %v5791 = vsel %vm5781, %v5788, %v5790
  %v5792 = vsel %vm5780, %v5770, %v5773
  %v5793 = vsel %vm5783, %v5779, 1326507024
  %v5794 = vsel %vm5782, %v5776, %v5793
  %v5795 = vsel %vm5781, %v5792, %v5794
  %v5796 = vshll.u32 %v5756, 8
  %v5797 = vmul.u32.u64.compose %v5796, %v5795
  %v5798 = vextract.low.u32 %v5797
  %v5799 = vextract.high.u32 %v5797
  %v5800 = vmul.u32.u64.compose %v5796, %v5791
  %v5801 = vextract.low.u32 %v5800
  %v5802 = vextract.high.u32 %v5800
  %v5803 = vmul.u32 %v5796, %v5787
  %v5804 = vadd.s32 %v5799, %v5801
  %vm5805 = vc.u32 %v5799, %v5801
  %v5806 = vadd.s32 %v5802, 1
  %v5807 = vsel %vm5805, %v5806, %v5802
  %v5808 = vadd.s32 %v5803, %v5807
  %v5809 = vadd.s32 %v5808, 536870912
  %v5810 = vshrl.u32 %v5809, 30
  %v5811 = vshll.u32 %v5810, 30
  %v5812 = vsub.s32 %v5808, %v5811
  %vm5813 = vcmp.lt.s32.totalorder %v5812, 0
  %v5814 = vsub.s32 0, %v5812
  %v5815 = vsel %vm5813, %v5814, %v5812
  %v5816 = vclz %v5815
  %v5817 = vsub.s32 %v5816, 2
  %vm5818 = vcmp.gt.s32.totalorder 0, %v5817
  %v5819 = vsel %vm5818, 0, %v5817
  %v5820 = vsub.s32 32, %v5819
  %v5821 = vshll.u32 %v5812, %v5819
  %v5822 = vshrl.u32 %v5804, %v5820
  %v5823 = vor.u32 %v5821, %v5822
  %v5824 = vsub.s32 4294967266, %v5819
  %v5825 = vadd.s32 %v5824, 127
  %v5826 = vshll.u32 %v5825, 23
  %v5827 = vor.u32 4788187, %v5826
  %v5828 = vand.u32 2147483647, %v5827
  %v5830 = vcvt.s32.f32 %v5823
  %v5831 = vmul.f32 %v5830, %v5828
  %v5832 = vxor.u32 %v5831, 2147483648
  %v5833 = vsel %vm5750, %v5832, %v5831
  %v5834 = vsub.s32 4, %v5810
  %v5835 = vsel %vm5750, %v5834, %v5810
  %v5836 = vsel %vm5749, %v243, %v5833
  %v5837 = vsel %vm5749, 0, %v5835
  %v5838 = vcosq.f32.pop %v5836
  %v5839 = vsinq.f32.pop %v5836
  %vm5840 = vweird.f32 %v243
  %v5841 = vand.u32 %v5837, 3
  %vm5842 = vcmp.lt.s32.totalorder %v5841, 2
  %vm5843 = vcmp.eq.s32.totalorder %v5841, 0
  %v5844 = vxor.u32 %v5839, 2147483648
  %v5845 = vsel %vm5843, %v5838, %v5844
  %vm5846 = vcmp.eq.s32.totalorder %v5841, 2
  %v5847 = vxor.u32 %v5838, 2147483648
  %v5848 = vsel %vm5846, %v5847, %v5839
  %v5849 = vsel %vm5842, %v5845, %v5848
  %v5850 = vsel %vm5840, nan, %v5849
  %v5851 = vand.u32 2147483647, %v244
  %vm5852 = vcmp.le.f32.partialorder %v5851, 0.7853982
  %vm5853 = vcmp.lt.s32.totalorder %v244, 0
  %v5854 = vand.u32 %v244, 2139095040
  %v5855 = vshrl.u32 %v5854, 23
  %v5856 = vsub.s32 %v5855, 127
  %v5857 = vand.u32 2147483647, %v244
  %v5858 = vand.u32 %v5857, 8388607
  %v5859 = vor.u32 %v5858, 8388608
  %v5860 = vsub.s32 0, %v5859
  %v5861 = vadd.s32 %v5856, 1
  %vm5862 = vcmp.gt.s32.totalorder %v5861, 0
  %v5863 = vsel %vm5862, %v5861, 0
  %v5864 = vshrl.u32 %v5863, 5
  %v5865 = vand.u32 %v5863, 31
  %v5866 = vsub.s32 32, %v5865
  %v5867 = vshrl.u32 683565275, %v5866
  %v5868 = vshll.u32 683565275, %v5865
  %v5869 = vshrl.u32 2475754826, %v5866
  %v5870 = vor.u32 %v5868, %v5869
  %v5871 = vshll.u32 2475754826, %v5865
  %v5872 = vshrl.u32 2131351028, %v5866
  %v5873 = vor.u32 %v5871, %v5872
  %v5874 = vshll.u32 2131351028, %v5865
  %v5875 = vshrl.u32 2102212464, %v5866
  %v5876 = vor.u32 %v5874, %v5875
  %v5877 = vshll.u32 2102212464, %v5865
  %v5878 = vshrl.u32 920167782, %v5866
  %v5879 = vor.u32 %v5877, %v5878
  %v5880 = vshll.u32 920167782, %v5865
  %v5881 = vshrl.u32 1326507024, %v5866
  %v5882 = vor.u32 %v5880, %v5881
  %vm5883 = vcmp.lt.s32.totalorder %v5864, 1
  %vm5884 = vcmp.lt.s32.totalorder %v5864, 2
  %vm5885 = vcmp.lt.s32.totalorder %v5864, 3
  %vm5886 = vcmp.lt.s32.totalorder %v5864, 4
  %v5887 = vsel %vm5883, %v5867, %v5870
  %v5888 = vsel %vm5886, %v5876, 2102212464
  %v5889 = vsel %vm5885, %v5873, %v5888
  %v5890 = vsel %vm5884, %v5887, %v5889
  %v5891 = vsel %vm5883, %v5870, %v5873
  %v5892 = vsel %vm5886, %v5879, 920167782
  %v5893 = vsel %vm5885, %v5876, %v5892
  %v5894 = vsel %vm5884, %v5891, %v5893
  %v5895 = vsel %vm5883, %v5873, %v5876
  %v5896 = vsel %vm5886, %v5882, 1326507024
  %v5897 = vsel %vm5885, %v5879, %v5896
  %v5898 = vsel %vm5884, %v5895, %v5897
  %v5899 = vshll.u32 %v5859, 8
  %v5900 = vmul.u32.u64.compose %v5899, %v5898
  %v5901 = vextract.low.u32 %v5900
  %v5902 = vextract.high.u32 %v5900
  %v5903 = vmul.u32.u64.compose %v5899, %v5894
  %v5904 = vextract.low.u32 %v5903
  %v5905 = vextract.high.u32 %v5903
  %v5906 = vmul.u32 %v5899, %v5890
  %v5907 = vadd.s32 %v5902, %v5904
  %vm5908 = vc.u32 %v5902, %v5904
  %v5909 = vadd.s32 %v5905, 1
  %v5910 = vsel %vm5908, %v5909, %v5905
  %v5911 = vadd.s32 %v5906, %v5910
  %v5912 = vadd.s32 %v5911, 536870912
  %v5913 = vshrl.u32 %v5912, 30
  %v5914 = vshll.u32 %v5913, 30
  %v5915 = vsub.s32 %v5911, %v5914
  %vm5916 = vcmp.lt.s32.totalorder %v5915, 0
  %v5917 = vsub.s32 0, %v5915
  %v5918 = vsel %vm5916, %v5917, %v5915
  %v5919 = vclz %v5918
  %v5920 = vsub.s32 %v5919, 2
  %vm5921 = vcmp.gt.s32.totalorder 0, %v5920
  %v5922 = vsel %vm5921, 0, %v5920
  %v5923 = vsub.s32 32, %v5922
  %v5924 = vshll.u32 %v5915, %v5922
  %v5925 = vshrl.u32 %v5907, %v5923
  %v5926 = vor.u32 %v5924, %v5925
  %v5927 = vsub.s32 4294967266, %v5922
  %v5928 = vadd.s32 %v5927, 127
  %v5929 = vshll.u32 %v5928, 23
  %v5930 = vor.u32 4788187, %v5929
  %v5931 = vand.u32 2147483647, %v5930
  %v5933 = vcvt.s32.f32 %v5926
  %v5934 = vmul.f32 %v5933, %v5931
  %v5935 = vxor.u32 %v5934, 2147483648
  %v5936 = vsel %vm5853, %v5935, %v5934
  %v5937 = vsub.s32 4, %v5913
  %v5938 = vsel %vm5853, %v5937, %v5913
  %v5939 = vsel %vm5852, %v244, %v5936
  %v5940 = vsel %vm5852, 0, %v5938
  %v5941 = vcosq.f32.pop %v5939
  %v5942 = vsinq.f32.pop %v5939
  %vm5943 = vweird.f32 %v244
  %v5944 = vand.u32 %v5940, 3
  %vm5945 = vcmp.lt.s32.totalorder %v5944, 2
  %vm5946 = vcmp.eq.s32.totalorder %v5944, 0
  %v5947 = vxor.u32 %v5942, 2147483648
  %v5948 = vsel %vm5946, %v5941, %v5947
  %vm5949 = vcmp.eq.s32.totalorder %v5944, 2
  %v5950 = vxor.u32 %v5941, 2147483648
  %v5951 = vsel %vm5949, %v5950, %v5942
  %v5952 = vsel %vm5945, %v5948, %v5951
  %v5953 = vsel %vm5943, nan, %v5952
  %v5954 = vand.u32 2147483647, %v245
  %vm5955 = vcmp.le.f32.partialorder %v5954, 0.7853982
  %vm5956 = vcmp.lt.s32.totalorder %v245, 0
  %v5957 = vand.u32 %v245, 2139095040
  %v5958 = vshrl.u32 %v5957, 23
  %v5959 = vsub.s32 %v5958, 127
  %v5960 = vand.u32 2147483647, %v245
  %v5961 = vand.u32 %v5960, 8388607
  %v5962 = vor.u32 %v5961, 8388608
  %v5963 = vsub.s32 0, %v5962
  %v5964 = vadd.s32 %v5959, 1
  %vm5965 = vcmp.gt.s32.totalorder %v5964, 0
  %v5966 = vsel %vm5965, %v5964, 0
  %v5967 = vshrl.u32 %v5966, 5
  %v5968 = vand.u32 %v5966, 31
  %v5969 = vsub.s32 32, %v5968
  %v5970 = vshrl.u32 683565275, %v5969
  %v5971 = vshll.u32 683565275, %v5968
  %v5972 = vshrl.u32 2475754826, %v5969
  %v5973 = vor.u32 %v5971, %v5972
  %v5974 = vshll.u32 2475754826, %v5968
  %v5975 = vshrl.u32 2131351028, %v5969
  %v5976 = vor.u32 %v5974, %v5975
  %v5977 = vshll.u32 2131351028, %v5968
  %v5978 = vshrl.u32 2102212464, %v5969
  %v5979 = vor.u32 %v5977, %v5978
  %v5980 = vshll.u32 2102212464, %v5968
  %v5981 = vshrl.u32 920167782, %v5969
  %v5982 = vor.u32 %v5980, %v5981
  %v5983 = vshll.u32 920167782, %v5968
  %v5984 = vshrl.u32 1326507024, %v5969
  %v5985 = vor.u32 %v5983, %v5984
  %vm5986 = vcmp.lt.s32.totalorder %v5967, 1
  %vm5987 = vcmp.lt.s32.totalorder %v5967, 2
  %vm5988 = vcmp.lt.s32.totalorder %v5967, 3
  %vm5989 = vcmp.lt.s32.totalorder %v5967, 4
  %v5990 = vsel %vm5986, %v5970, %v5973
  %v5991 = vsel %vm5989, %v5979, 2102212464
  %v5992 = vsel %vm5988, %v5976, %v5991
  %v5993 = vsel %vm5987, %v5990, %v5992
  %v5994 = vsel %vm5986, %v5973, %v5976
  %v5995 = vsel %vm5989, %v5982, 920167782
  %v5996 = vsel %vm5988, %v5979, %v5995
  %v5997 = vsel %vm5987, %v5994, %v5996
  %v5998 = vsel %vm5986, %v5976, %v5979
  %v5999 = vsel %vm5989, %v5985, 1326507024
  %v6000 = vsel %vm5988, %v5982, %v5999
  %v6001 = vsel %vm5987, %v5998, %v6000
  %v6002 = vshll.u32 %v5962, 8
  %v6003 = vmul.u32.u64.compose %v6002, %v6001
  %v6004 = vextract.low.u32 %v6003
  %v6005 = vextract.high.u32 %v6003
  %v6006 = vmul.u32.u64.compose %v6002, %v5997
  %v6007 = vextract.low.u32 %v6006
  %v6008 = vextract.high.u32 %v6006
  %v6009 = vmul.u32 %v6002, %v5993
  %v6010 = vadd.s32 %v6005, %v6007
  %vm6011 = vc.u32 %v6005, %v6007
  %v6012 = vadd.s32 %v6008, 1
  %v6013 = vsel %vm6011, %v6012, %v6008
  %v6014 = vadd.s32 %v6009, %v6013
  %v6015 = vadd.s32 %v6014, 536870912
  %v6016 = vshrl.u32 %v6015, 30
  %v6017 = vshll.u32 %v6016, 30
  %v6018 = vsub.s32 %v6014, %v6017
  %vm6019 = vcmp.lt.s32.totalorder %v6018, 0
  %v6020 = vsub.s32 0, %v6018
  %v6021 = vsel %vm6019, %v6020, %v6018
  %v6022 = vclz %v6021
  %v6023 = vsub.s32 %v6022, 2
  %vm6024 = vcmp.gt.s32.totalorder 0, %v6023
  %v6025 = vsel %vm6024, 0, %v6023
  %v6026 = vsub.s32 32, %v6025
  %v6027 = vshll.u32 %v6018, %v6025
  %v6028 = vshrl.u32 %v6010, %v6026
  %v6029 = vor.u32 %v6027, %v6028
  %v6030 = vsub.s32 4294967266, %v6025
  %v6031 = vadd.s32 %v6030, 127
  %v6032 = vshll.u32 %v6031, 23
  %v6033 = vor.u32 4788187, %v6032
  %v6034 = vand.u32 2147483647, %v6033
  %v6036 = vcvt.s32.f32 %v6029
  %v6037 = vmul.f32 %v6036, %v6034
  %v6038 = vxor.u32 %v6037, 2147483648
  %v6039 = vsel %vm5956, %v6038, %v6037
  %v6040 = vsub.s32 4, %v6016
  %v6041 = vsel %vm5956, %v6040, %v6016
  %v6042 = vsel %vm5955, %v245, %v6039
  %v6043 = vsel %vm5955, 0, %v6041
  %v6044 = vcosq.f32.pop %v6042
  %v6045 = vsinq.f32.pop %v6042
  %vm6046 = vweird.f32 %v245
  %v6047 = vand.u32 %v6043, 3
  %vm6048 = vcmp.lt.s32.totalorder %v6047, 2
  %vm6049 = vcmp.eq.s32.totalorder %v6047, 0
  %v6050 = vxor.u32 %v6045, 2147483648
  %v6051 = vsel %vm6049, %v6044, %v6050
  %vm6052 = vcmp.eq.s32.totalorder %v6047, 2
  %v6053 = vxor.u32 %v6044, 2147483648
  %v6054 = vsel %vm6052, %v6053, %v6045
  %v6055 = vsel %vm6048, %v6051, %v6054
  %v6056 = vsel %vm6046, nan, %v6055
  %v6057 = vand.u32 2147483647, %v246
  %vm6058 = vcmp.le.f32.partialorder %v6057, 0.7853982
  %vm6059 = vcmp.lt.s32.totalorder %v246, 0
  %v6060 = vand.u32 %v246, 2139095040
  %v6061 = vshrl.u32 %v6060, 23
  %v6062 = vsub.s32 %v6061, 127
  %v6063 = vand.u32 2147483647, %v246
  %v6064 = vand.u32 %v6063, 8388607
  %v6065 = vor.u32 %v6064, 8388608
  %v6066 = vsub.s32 0, %v6065
  %v6067 = vadd.s32 %v6062, 1
  %vm6068 = vcmp.gt.s32.totalorder %v6067, 0
  %v6069 = vsel %vm6068, %v6067, 0
  %v6070 = vshrl.u32 %v6069, 5
  %v6071 = vand.u32 %v6069, 31
  %v6072 = vsub.s32 32, %v6071
  %v6073 = vshrl.u32 683565275, %v6072
  %v6074 = vshll.u32 683565275, %v6071
  %v6075 = vshrl.u32 2475754826, %v6072
  %v6076 = vor.u32 %v6074, %v6075
  %v6077 = vshll.u32 2475754826, %v6071
  %v6078 = vshrl.u32 2131351028, %v6072
  %v6079 = vor.u32 %v6077, %v6078
  %v6080 = vshll.u32 2131351028, %v6071
  %v6081 = vshrl.u32 2102212464, %v6072
  %v6082 = vor.u32 %v6080, %v6081
  %v6083 = vshll.u32 2102212464, %v6071
  %v6084 = vshrl.u32 920167782, %v6072
  %v6085 = vor.u32 %v6083, %v6084
  %v6086 = vshll.u32 920167782, %v6071
  %v6087 = vshrl.u32 1326507024, %v6072
  %v6088 = vor.u32 %v6086, %v6087
  %vm6089 = vcmp.lt.s32.totalorder %v6070, 1
  %vm6090 = vcmp.lt.s32.totalorder %v6070, 2
  %vm6091 = vcmp.lt.s32.totalorder %v6070, 3
  %vm6092 = vcmp.lt.s32.totalorder %v6070, 4
  %v6093 = vsel %vm6089, %v6073, %v6076
  %v6094 = vsel %vm6092, %v6082, 2102212464
  %v6095 = vsel %vm6091, %v6079, %v6094
  %v6096 = vsel %vm6090, %v6093, %v6095
  %v6097 = vsel %vm6089, %v6076, %v6079
  %v6098 = vsel %vm6092, %v6085, 920167782
  %v6099 = vsel %vm6091, %v6082, %v6098
  %v6100 = vsel %vm6090, %v6097, %v6099
  %v6101 = vsel %vm6089, %v6079, %v6082
  %v6102 = vsel %vm6092, %v6088, 1326507024
  %v6103 = vsel %vm6091, %v6085, %v6102
  %v6104 = vsel %vm6090, %v6101, %v6103
  %v6105 = vshll.u32 %v6065, 8
  %v6106 = vmul.u32.u64.compose %v6105, %v6104
  %v6107 = vextract.low.u32 %v6106
  %v6108 = vextract.high.u32 %v6106
  %v6109 = vmul.u32.u64.compose %v6105, %v6100
  %v6110 = vextract.low.u32 %v6109
  %v6111 = vextract.high.u32 %v6109
  %v6112 = vmul.u32 %v6105, %v6096
  %v6113 = vadd.s32 %v6108, %v6110
  %vm6114 = vc.u32 %v6108, %v6110
  %v6115 = vadd.s32 %v6111, 1
  %v6116 = vsel %vm6114, %v6115, %v6111
  %v6117 = vadd.s32 %v6112, %v6116
  %v6118 = vadd.s32 %v6117, 536870912
  %v6119 = vshrl.u32 %v6118, 30
  %v6120 = vshll.u32 %v6119, 30
  %v6121 = vsub.s32 %v6117, %v6120
  %vm6122 = vcmp.lt.s32.totalorder %v6121, 0
  %v6123 = vsub.s32 0, %v6121
  %v6124 = vsel %vm6122, %v6123, %v6121
  %v6125 = vclz %v6124
  %v6126 = vsub.s32 %v6125, 2
  %vm6127 = vcmp.gt.s32.totalorder 0, %v6126
  %v6128 = vsel %vm6127, 0, %v6126
  %v6129 = vsub.s32 32, %v6128
  %v6130 = vshll.u32 %v6121, %v6128
  %v6131 = vshrl.u32 %v6113, %v6129
  %v6132 = vor.u32 %v6130, %v6131
  %v6133 = vsub.s32 4294967266, %v6128
  %v6134 = vadd.s32 %v6133, 127
  %v6135 = vshll.u32 %v6134, 23
  %v6136 = vor.u32 4788187, %v6135
  %v6137 = vand.u32 2147483647, %v6136
  %v6139 = vcvt.s32.f32 %v6132
  %v6140 = vmul.f32 %v6139, %v6137
  %v6141 = vxor.u32 %v6140, 2147483648
  %v6142 = vsel %vm6059, %v6141, %v6140
  %v6143 = vsub.s32 4, %v6119
  %v6144 = vsel %vm6059, %v6143, %v6119
  %v6145 = vsel %vm6058, %v246, %v6142
  %v6146 = vsel %vm6058, 0, %v6144
  %v6147 = vcosq.f32.pop %v6145
  %v6148 = vsinq.f32.pop %v6145
  %vm6149 = vweird.f32 %v246
  %v6150 = vand.u32 %v6146, 3
  %vm6151 = vcmp.lt.s32.totalorder %v6150, 2
  %vm6152 = vcmp.eq.s32.totalorder %v6150, 0
  %v6153 = vxor.u32 %v6148, 2147483648
  %v6154 = vsel %vm6152, %v6147, %v6153
  %vm6155 = vcmp.eq.s32.totalorder %v6150, 2
  %v6156 = vxor.u32 %v6147, 2147483648
  %v6157 = vsel %vm6155, %v6156, %v6148
  %v6158 = vsel %vm6151, %v6154, %v6157
  %v6159 = vsel %vm6149, nan, %v6158
  %v6160 = vand.u32 2147483647, %v247
  %vm6161 = vcmp.le.f32.partialorder %v6160, 0.7853982
  %vm6162 = vcmp.lt.s32.totalorder %v247, 0
  %v6163 = vand.u32 %v247, 2139095040
  %v6164 = vshrl.u32 %v6163, 23
  %v6165 = vsub.s32 %v6164, 127
  %v6166 = vand.u32 2147483647, %v247
  %v6167 = vand.u32 %v6166, 8388607
  %v6168 = vor.u32 %v6167, 8388608
  %v6169 = vsub.s32 0, %v6168
  %v6170 = vadd.s32 %v6165, 1
  %vm6171 = vcmp.gt.s32.totalorder %v6170, 0
  %v6172 = vsel %vm6171, %v6170, 0
  %v6173 = vshrl.u32 %v6172, 5
  %v6174 = vand.u32 %v6172, 31
  %v6175 = vsub.s32 32, %v6174
  %v6176 = vshrl.u32 683565275, %v6175
  %v6177 = vshll.u32 683565275, %v6174
  %v6178 = vshrl.u32 2475754826, %v6175
  %v6179 = vor.u32 %v6177, %v6178
  %v6180 = vshll.u32 2475754826, %v6174
  %v6181 = vshrl.u32 2131351028, %v6175
  %v6182 = vor.u32 %v6180, %v6181
  %v6183 = vshll.u32 2131351028, %v6174
  %v6184 = vshrl.u32 2102212464, %v6175
  %v6185 = vor.u32 %v6183, %v6184
  %v6186 = vshll.u32 2102212464, %v6174
  %v6187 = vshrl.u32 920167782, %v6175
  %v6188 = vor.u32 %v6186, %v6187
  %v6189 = vshll.u32 920167782, %v6174
  %v6190 = vshrl.u32 1326507024, %v6175
  %v6191 = vor.u32 %v6189, %v6190
  %vm6192 = vcmp.lt.s32.totalorder %v6173, 1
  %vm6193 = vcmp.lt.s32.totalorder %v6173, 2
  %vm6194 = vcmp.lt.s32.totalorder %v6173, 3
  %vm6195 = vcmp.lt.s32.totalorder %v6173, 4
  %v6196 = vsel %vm6192, %v6176, %v6179
  %v6197 = vsel %vm6195, %v6185, 2102212464
  %v6198 = vsel %vm6194, %v6182, %v6197
  %v6199 = vsel %vm6193, %v6196, %v6198
  %v6200 = vsel %vm6192, %v6179, %v6182
  %v6201 = vsel %vm6195, %v6188, 920167782
  %v6202 = vsel %vm6194, %v6185, %v6201
  %v6203 = vsel %vm6193, %v6200, %v6202
  %v6204 = vsel %vm6192, %v6182, %v6185
  %v6205 = vsel %vm6195, %v6191, 1326507024
  %v6206 = vsel %vm6194, %v6188, %v6205
  %v6207 = vsel %vm6193, %v6204, %v6206
  %v6208 = vshll.u32 %v6168, 8
  %v6209 = vmul.u32.u64.compose %v6208, %v6207
  %v6210 = vextract.low.u32 %v6209
  %v6211 = vextract.high.u32 %v6209
  %v6212 = vmul.u32.u64.compose %v6208, %v6203
  %v6213 = vextract.low.u32 %v6212
  %v6214 = vextract.high.u32 %v6212
  %v6215 = vmul.u32 %v6208, %v6199
  %v6216 = vadd.s32 %v6211, %v6213
  %vm6217 = vc.u32 %v6211, %v6213
  %v6218 = vadd.s32 %v6214, 1
  %v6219 = vsel %vm6217, %v6218, %v6214
  %v6220 = vadd.s32 %v6215, %v6219
  %v6221 = vadd.s32 %v6220, 536870912
  %v6222 = vshrl.u32 %v6221, 30
  %v6223 = vshll.u32 %v6222, 30
  %v6224 = vsub.s32 %v6220, %v6223
  %vm6225 = vcmp.lt.s32.totalorder %v6224, 0
  %v6226 = vsub.s32 0, %v6224
  %v6227 = vsel %vm6225, %v6226, %v6224
  %v6228 = vclz %v6227
  %v6229 = vsub.s32 %v6228, 2
  %vm6230 = vcmp.gt.s32.totalorder 0, %v6229
  %v6231 = vsel %vm6230, 0, %v6229
  %v6232 = vsub.s32 32, %v6231
  %v6233 = vshll.u32 %v6224, %v6231
  %v6234 = vshrl.u32 %v6216, %v6232
  %v6235 = vor.u32 %v6233, %v6234
  %v6236 = vsub.s32 4294967266, %v6231
  %v6237 = vadd.s32 %v6236, 127
  %v6238 = vshll.u32 %v6237, 23
  %v6239 = vor.u32 4788187, %v6238
  %v6240 = vand.u32 2147483647, %v6239
  %v6242 = vcvt.s32.f32 %v6235
  %v6243 = vmul.f32 %v6242, %v6240
  %v6244 = vxor.u32 %v6243, 2147483648
  %v6245 = vsel %vm6162, %v6244, %v6243
  %v6246 = vsub.s32 4, %v6222
  %v6247 = vsel %vm6162, %v6246, %v6222
  %v6248 = vsel %vm6161, %v247, %v6245
  %v6249 = vsel %vm6161, 0, %v6247
  %v6250 = vcosq.f32.pop %v6248
  %v6251 = vsinq.f32.pop %v6248
  %vm6252 = vweird.f32 %v247
  %v6253 = vand.u32 %v6249, 3
  %vm6254 = vcmp.lt.s32.totalorder %v6253, 2
  %vm6255 = vcmp.eq.s32.totalorder %v6253, 0
  %v6256 = vxor.u32 %v6251, 2147483648
  %v6257 = vsel %vm6255, %v6250, %v6256
  %vm6258 = vcmp.eq.s32.totalorder %v6253, 2
  %v6259 = vxor.u32 %v6250, 2147483648
  %v6260 = vsel %vm6258, %v6259, %v6251
  %v6261 = vsel %vm6254, %v6257, %v6260
  %v6262 = vsel %vm6252, nan, %v6261
  %v6263 = vand.u32 2147483647, %v248
  %vm6264 = vcmp.le.f32.partialorder %v6263, 0.7853982
  %vm6265 = vcmp.lt.s32.totalorder %v248, 0
  %v6266 = vand.u32 %v248, 2139095040
  %v6267 = vshrl.u32 %v6266, 23
  %v6268 = vsub.s32 %v6267, 127
  %v6269 = vand.u32 2147483647, %v248
  %v6270 = vand.u32 %v6269, 8388607
  %v6271 = vor.u32 %v6270, 8388608
  %v6272 = vsub.s32 0, %v6271
  %v6273 = vadd.s32 %v6268, 1
  %vm6274 = vcmp.gt.s32.totalorder %v6273, 0
  %v6275 = vsel %vm6274, %v6273, 0
  %v6276 = vshrl.u32 %v6275, 5
  %v6277 = vand.u32 %v6275, 31
  %v6278 = vsub.s32 32, %v6277
  %v6279 = vshrl.u32 683565275, %v6278
  %v6280 = vshll.u32 683565275, %v6277
  %v6281 = vshrl.u32 2475754826, %v6278
  %v6282 = vor.u32 %v6280, %v6281
  %v6283 = vshll.u32 2475754826, %v6277
  %v6284 = vshrl.u32 2131351028, %v6278
  %v6285 = vor.u32 %v6283, %v6284
  %v6286 = vshll.u32 2131351028, %v6277
  %v6287 = vshrl.u32 2102212464, %v6278
  %v6288 = vor.u32 %v6286, %v6287
  %v6289 = vshll.u32 2102212464, %v6277
  %v6290 = vshrl.u32 920167782, %v6278
  %v6291 = vor.u32 %v6289, %v6290
  %v6292 = vshll.u32 920167782, %v6277
  %v6293 = vshrl.u32 1326507024, %v6278
  %v6294 = vor.u32 %v6292, %v6293
  %vm6295 = vcmp.lt.s32.totalorder %v6276, 1
  %vm6296 = vcmp.lt.s32.totalorder %v6276, 2
  %vm6297 = vcmp.lt.s32.totalorder %v6276, 3
  %vm6298 = vcmp.lt.s32.totalorder %v6276, 4
  %v6299 = vsel %vm6295, %v6279, %v6282
  %v6300 = vsel %vm6298, %v6288, 2102212464
  %v6301 = vsel %vm6297, %v6285, %v6300
  %v6302 = vsel %vm6296, %v6299, %v6301
  %v6303 = vsel %vm6295, %v6282, %v6285
  %v6304 = vsel %vm6298, %v6291, 920167782
  %v6305 = vsel %vm6297, %v6288, %v6304
  %v6306 = vsel %vm6296, %v6303, %v6305
  %v6307 = vsel %vm6295, %v6285, %v6288
  %v6308 = vsel %vm6298, %v6294, 1326507024
  %v6309 = vsel %vm6297, %v6291, %v6308
  %v6310 = vsel %vm6296, %v6307, %v6309
  %v6311 = vshll.u32 %v6271, 8
  %v6312 = vmul.u32.u64.compose %v6311, %v6310
  %v6313 = vextract.low.u32 %v6312
  %v6314 = vextract.high.u32 %v6312
  %v6315 = vmul.u32.u64.compose %v6311, %v6306
  %v6316 = vextract.low.u32 %v6315
  %v6317 = vextract.high.u32 %v6315
  %v6318 = vmul.u32 %v6311, %v6302
  %v6319 = vadd.s32 %v6314, %v6316
  %vm6320 = vc.u32 %v6314, %v6316
  %v6321 = vadd.s32 %v6317, 1
  %v6322 = vsel %vm6320, %v6321, %v6317
  %v6323 = vadd.s32 %v6318, %v6322
  %v6324 = vadd.s32 %v6323, 536870912
  %v6325 = vshrl.u32 %v6324, 30
  %v6326 = vshll.u32 %v6325, 30
  %v6327 = vsub.s32 %v6323, %v6326
  %vm6328 = vcmp.lt.s32.totalorder %v6327, 0
  %v6329 = vsub.s32 0, %v6327
  %v6330 = vsel %vm6328, %v6329, %v6327
  %v6331 = vclz %v6330
  %v6332 = vsub.s32 %v6331, 2
  %vm6333 = vcmp.gt.s32.totalorder 0, %v6332
  %v6334 = vsel %vm6333, 0, %v6332
  %v6335 = vsub.s32 32, %v6334
  %v6336 = vshll.u32 %v6327, %v6334
  %v6337 = vshrl.u32 %v6319, %v6335
  %v6338 = vor.u32 %v6336, %v6337
  %v6339 = vsub.s32 4294967266, %v6334
  %v6340 = vadd.s32 %v6339, 127
  %v6341 = vshll.u32 %v6340, 23
  %v6342 = vor.u32 4788187, %v6341
  %v6343 = vand.u32 2147483647, %v6342
  %v6345 = vcvt.s32.f32 %v6338
  %v6346 = vmul.f32 %v6345, %v6343
  %v6347 = vxor.u32 %v6346, 2147483648
  %v6348 = vsel %vm6265, %v6347, %v6346
  %v6349 = vsub.s32 4, %v6325
  %v6350 = vsel %vm6265, %v6349, %v6325
  %v6351 = vsel %vm6264, %v248, %v6348
  %v6352 = vsel %vm6264, 0, %v6350
  %v6353 = vcosq.f32.pop %v6351
  %v6354 = vsinq.f32.pop %v6351
  %vm6355 = vweird.f32 %v248
  %v6356 = vand.u32 %v6352, 3
  %vm6357 = vcmp.lt.s32.totalorder %v6356, 2
  %vm6358 = vcmp.eq.s32.totalorder %v6356, 0
  %v6359 = vxor.u32 %v6354, 2147483648
  %v6360 = vsel %vm6358, %v6353, %v6359
  %vm6361 = vcmp.eq.s32.totalorder %v6356, 2
  %v6362 = vxor.u32 %v6353, 2147483648
  %v6363 = vsel %vm6361, %v6362, %v6354
  %v6364 = vsel %vm6357, %v6360, %v6363
  %v6365 = vsel %vm6355, nan, %v6364
  %v6366 = vand.u32 2147483647, %v249
  %vm6367 = vcmp.le.f32.partialorder %v6366, 0.7853982
  %vm6368 = vcmp.lt.s32.totalorder %v249, 0
  %v6369 = vand.u32 %v249, 2139095040
  %v6370 = vshrl.u32 %v6369, 23
  %v6371 = vsub.s32 %v6370, 127
  %v6372 = vand.u32 2147483647, %v249
  %v6373 = vand.u32 %v6372, 8388607
  %v6374 = vor.u32 %v6373, 8388608
  %v6375 = vsub.s32 0, %v6374
  %v6376 = vadd.s32 %v6371, 1
  %vm6377 = vcmp.gt.s32.totalorder %v6376, 0
  %v6378 = vsel %vm6377, %v6376, 0
  %v6379 = vshrl.u32 %v6378, 5
  %v6380 = vand.u32 %v6378, 31
  %v6381 = vsub.s32 32, %v6380
  %v6382 = vshrl.u32 683565275, %v6381
  %v6383 = vshll.u32 683565275, %v6380
  %v6384 = vshrl.u32 2475754826, %v6381
  %v6385 = vor.u32 %v6383, %v6384
  %v6386 = vshll.u32 2475754826, %v6380
  %v6387 = vshrl.u32 2131351028, %v6381
  %v6388 = vor.u32 %v6386, %v6387
  %v6389 = vshll.u32 2131351028, %v6380
  %v6390 = vshrl.u32 2102212464, %v6381
  %v6391 = vor.u32 %v6389, %v6390
  %v6392 = vshll.u32 2102212464, %v6380
  %v6393 = vshrl.u32 920167782, %v6381
  %v6394 = vor.u32 %v6392, %v6393
  %v6395 = vshll.u32 920167782, %v6380
  %v6396 = vshrl.u32 1326507024, %v6381
  %v6397 = vor.u32 %v6395, %v6396
  %vm6398 = vcmp.lt.s32.totalorder %v6379, 1
  %vm6399 = vcmp.lt.s32.totalorder %v6379, 2
  %vm6400 = vcmp.lt.s32.totalorder %v6379, 3
  %vm6401 = vcmp.lt.s32.totalorder %v6379, 4
  %v6402 = vsel %vm6398, %v6382, %v6385
  %v6403 = vsel %vm6401, %v6391, 2102212464
  %v6404 = vsel %vm6400, %v6388, %v6403
  %v6405 = vsel %vm6399, %v6402, %v6404
  %v6406 = vsel %vm6398, %v6385, %v6388
  %v6407 = vsel %vm6401, %v6394, 920167782
  %v6408 = vsel %vm6400, %v6391, %v6407
  %v6409 = vsel %vm6399, %v6406, %v6408
  %v6410 = vsel %vm6398, %v6388, %v6391
  %v6411 = vsel %vm6401, %v6397, 1326507024
  %v6412 = vsel %vm6400, %v6394, %v6411
  %v6413 = vsel %vm6399, %v6410, %v6412
  %v6414 = vshll.u32 %v6374, 8
  %v6415 = vmul.u32.u64.compose %v6414, %v6413
  %v6416 = vextract.low.u32 %v6415
  %v6417 = vextract.high.u32 %v6415
  %v6418 = vmul.u32.u64.compose %v6414, %v6409
  %v6419 = vextract.low.u32 %v6418
  %v6420 = vextract.high.u32 %v6418
  %v6421 = vmul.u32 %v6414, %v6405
  %v6422 = vadd.s32 %v6417, %v6419
  %vm6423 = vc.u32 %v6417, %v6419
  %v6424 = vadd.s32 %v6420, 1
  %v6425 = vsel %vm6423, %v6424, %v6420
  %v6426 = vadd.s32 %v6421, %v6425
  %v6427 = vadd.s32 %v6426, 536870912
  %v6428 = vshrl.u32 %v6427, 30
  %v6429 = vshll.u32 %v6428, 30
  %v6430 = vsub.s32 %v6426, %v6429
  %vm6431 = vcmp.lt.s32.totalorder %v6430, 0
  %v6432 = vsub.s32 0, %v6430
  %v6433 = vsel %vm6431, %v6432, %v6430
  %v6434 = vclz %v6433
  %v6435 = vsub.s32 %v6434, 2
  %vm6436 = vcmp.gt.s32.totalorder 0, %v6435
  %v6437 = vsel %vm6436, 0, %v6435
  %v6438 = vsub.s32 32, %v6437
  %v6439 = vshll.u32 %v6430, %v6437
  %v6440 = vshrl.u32 %v6422, %v6438
  %v6441 = vor.u32 %v6439, %v6440
  %v6442 = vsub.s32 4294967266, %v6437
  %v6443 = vadd.s32 %v6442, 127
  %v6444 = vshll.u32 %v6443, 23
  %v6445 = vor.u32 4788187, %v6444
  %v6446 = vand.u32 2147483647, %v6445
  %v6448 = vcvt.s32.f32 %v6441
  %v6449 = vmul.f32 %v6448, %v6446
  %v6450 = vxor.u32 %v6449, 2147483648
  %v6451 = vsel %vm6368, %v6450, %v6449
  %v6452 = vsub.s32 4, %v6428
  %v6453 = vsel %vm6368, %v6452, %v6428
  %v6454 = vsel %vm6367, %v249, %v6451
  %v6455 = vsel %vm6367, 0, %v6453
  %v6456 = vcosq.f32.pop %v6454
  %v6457 = vsinq.f32.pop %v6454
  %vm6458 = vweird.f32 %v249
  %v6459 = vand.u32 %v6455, 3
  %vm6460 = vcmp.lt.s32.totalorder %v6459, 2
  %vm6461 = vcmp.eq.s32.totalorder %v6459, 0
  %v6462 = vxor.u32 %v6457, 2147483648
  %v6463 = vsel %vm6461, %v6456, %v6462
  %vm6464 = vcmp.eq.s32.totalorder %v6459, 2
  %v6465 = vxor.u32 %v6456, 2147483648
  %v6466 = vsel %vm6464, %v6465, %v6457
  %v6467 = vsel %vm6460, %v6463, %v6466
  %v6468 = vsel %vm6458, nan, %v6467
  %v6469 = vand.u32 2147483647, %v250
  %vm6470 = vcmp.le.f32.partialorder %v6469, 0.7853982
  %vm6471 = vcmp.lt.s32.totalorder %v250, 0
  %v6472 = vand.u32 %v250, 2139095040
  %v6473 = vshrl.u32 %v6472, 23
  %v6474 = vsub.s32 %v6473, 127
  %v6475 = vand.u32 2147483647, %v250
  %v6476 = vand.u32 %v6475, 8388607
  %v6477 = vor.u32 %v6476, 8388608
  %v6478 = vsub.s32 0, %v6477
  %v6479 = vadd.s32 %v6474, 1
  %vm6480 = vcmp.gt.s32.totalorder %v6479, 0
  %v6481 = vsel %vm6480, %v6479, 0
  %v6482 = vshrl.u32 %v6481, 5
  %v6483 = vand.u32 %v6481, 31
  %v6484 = vsub.s32 32, %v6483
  %v6485 = vshrl.u32 683565275, %v6484
  %v6486 = vshll.u32 683565275, %v6483
  %v6487 = vshrl.u32 2475754826, %v6484
  %v6488 = vor.u32 %v6486, %v6487
  %v6489 = vshll.u32 2475754826, %v6483
  %v6490 = vshrl.u32 2131351028, %v6484
  %v6491 = vor.u32 %v6489, %v6490
  %v6492 = vshll.u32 2131351028, %v6483
  %v6493 = vshrl.u32 2102212464, %v6484
  %v6494 = vor.u32 %v6492, %v6493
  %v6495 = vshll.u32 2102212464, %v6483
  %v6496 = vshrl.u32 920167782, %v6484
  %v6497 = vor.u32 %v6495, %v6496
  %v6498 = vshll.u32 920167782, %v6483
  %v6499 = vshrl.u32 1326507024, %v6484
  %v6500 = vor.u32 %v6498, %v6499
  %vm6501 = vcmp.lt.s32.totalorder %v6482, 1
  %vm6502 = vcmp.lt.s32.totalorder %v6482, 2
  %vm6503 = vcmp.lt.s32.totalorder %v6482, 3
  %vm6504 = vcmp.lt.s32.totalorder %v6482, 4
  %v6505 = vsel %vm6501, %v6485, %v6488
  %v6506 = vsel %vm6504, %v6494, 2102212464
  %v6507 = vsel %vm6503, %v6491, %v6506
  %v6508 = vsel %vm6502, %v6505, %v6507
  %v6509 = vsel %vm6501, %v6488, %v6491
  %v6510 = vsel %vm6504, %v6497, 920167782
  %v6511 = vsel %vm6503, %v6494, %v6510
  %v6512 = vsel %vm6502, %v6509, %v6511
  %v6513 = vsel %vm6501, %v6491, %v6494
  %v6514 = vsel %vm6504, %v6500, 1326507024
  %v6515 = vsel %vm6503, %v6497, %v6514
  %v6516 = vsel %vm6502, %v6513, %v6515
  %v6517 = vshll.u32 %v6477, 8
  %v6518 = vmul.u32.u64.compose %v6517, %v6516
  %v6519 = vextract.low.u32 %v6518
  %v6520 = vextract.high.u32 %v6518
  %v6521 = vmul.u32.u64.compose %v6517, %v6512
  %v6522 = vextract.low.u32 %v6521
  %v6523 = vextract.high.u32 %v6521
  %v6524 = vmul.u32 %v6517, %v6508
  %v6525 = vadd.s32 %v6520, %v6522
  %vm6526 = vc.u32 %v6520, %v6522
  %v6527 = vadd.s32 %v6523, 1
  %v6528 = vsel %vm6526, %v6527, %v6523
  %v6529 = vadd.s32 %v6524, %v6528
  %v6530 = vadd.s32 %v6529, 536870912
  %v6531 = vshrl.u32 %v6530, 30
  %v6532 = vshll.u32 %v6531, 30
  %v6533 = vsub.s32 %v6529, %v6532
  %vm6534 = vcmp.lt.s32.totalorder %v6533, 0
  %v6535 = vsub.s32 0, %v6533
  %v6536 = vsel %vm6534, %v6535, %v6533
  %v6537 = vclz %v6536
  %v6538 = vsub.s32 %v6537, 2
  %vm6539 = vcmp.gt.s32.totalorder 0, %v6538
  %v6540 = vsel %vm6539, 0, %v6538
  %v6541 = vsub.s32 32, %v6540
  %v6542 = vshll.u32 %v6533, %v6540
  %v6543 = vshrl.u32 %v6525, %v6541
  %v6544 = vor.u32 %v6542, %v6543
  %v6545 = vsub.s32 4294967266, %v6540
  %v6546 = vadd.s32 %v6545, 127
  %v6547 = vshll.u32 %v6546, 23
  %v6548 = vor.u32 4788187, %v6547
  %v6549 = vand.u32 2147483647, %v6548
  %v6551 = vcvt.s32.f32 %v6544
  %v6552 = vmul.f32 %v6551, %v6549
  %v6553 = vxor.u32 %v6552, 2147483648
  %v6554 = vsel %vm6471, %v6553, %v6552
  %v6555 = vsub.s32 4, %v6531
  %v6556 = vsel %vm6471, %v6555, %v6531
  %v6557 = vsel %vm6470, %v250, %v6554
  %v6558 = vsel %vm6470, 0, %v6556
  %v6559 = vcosq.f32.pop %v6557
  %v6560 = vsinq.f32.pop %v6557
  %vm6561 = vweird.f32 %v250
  %v6562 = vand.u32 %v6558, 3
  %vm6563 = vcmp.lt.s32.totalorder %v6562, 2
  %vm6564 = vcmp.eq.s32.totalorder %v6562, 0
  %v6565 = vxor.u32 %v6560, 2147483648
  %v6566 = vsel %vm6564, %v6559, %v6565
  %vm6567 = vcmp.eq.s32.totalorder %v6562, 2
  %v6568 = vxor.u32 %v6559, 2147483648
  %v6569 = vsel %vm6567, %v6568, %v6560
  %v6570 = vsel %vm6563, %v6566, %v6569
  %v6571 = vsel %vm6561, nan, %v6570
  %v6572 = vand.u32 2147483647, %v251
  %vm6573 = vcmp.le.f32.partialorder %v6572, 0.7853982
  %vm6574 = vcmp.lt.s32.totalorder %v251, 0
  %v6575 = vand.u32 %v251, 2139095040
  %v6576 = vshrl.u32 %v6575, 23
  %v6577 = vsub.s32 %v6576, 127
  %v6578 = vand.u32 2147483647, %v251
  %v6579 = vand.u32 %v6578, 8388607
  %v6580 = vor.u32 %v6579, 8388608
  %v6581 = vsub.s32 0, %v6580
  %v6582 = vadd.s32 %v6577, 1
  %vm6583 = vcmp.gt.s32.totalorder %v6582, 0
  %v6584 = vsel %vm6583, %v6582, 0
  %v6585 = vshrl.u32 %v6584, 5
  %v6586 = vand.u32 %v6584, 31
  %v6587 = vsub.s32 32, %v6586
  %v6588 = vshrl.u32 683565275, %v6587
  %v6589 = vshll.u32 683565275, %v6586
  %v6590 = vshrl.u32 2475754826, %v6587
  %v6591 = vor.u32 %v6589, %v6590
  %v6592 = vshll.u32 2475754826, %v6586
  %v6593 = vshrl.u32 2131351028, %v6587
  %v6594 = vor.u32 %v6592, %v6593
  %v6595 = vshll.u32 2131351028, %v6586
  %v6596 = vshrl.u32 2102212464, %v6587
  %v6597 = vor.u32 %v6595, %v6596
  %v6598 = vshll.u32 2102212464, %v6586
  %v6599 = vshrl.u32 920167782, %v6587
  %v6600 = vor.u32 %v6598, %v6599
  %v6601 = vshll.u32 920167782, %v6586
  %v6602 = vshrl.u32 1326507024, %v6587
  %v6603 = vor.u32 %v6601, %v6602
  %vm6604 = vcmp.lt.s32.totalorder %v6585, 1
  %vm6605 = vcmp.lt.s32.totalorder %v6585, 2
  %vm6606 = vcmp.lt.s32.totalorder %v6585, 3
  %vm6607 = vcmp.lt.s32.totalorder %v6585, 4
  %v6608 = vsel %vm6604, %v6588, %v6591
  %v6609 = vsel %vm6607, %v6597, 2102212464
  %v6610 = vsel %vm6606, %v6594, %v6609
  %v6611 = vsel %vm6605, %v6608, %v6610
  %v6612 = vsel %vm6604, %v6591, %v6594
  %v6613 = vsel %vm6607, %v6600, 920167782
  %v6614 = vsel %vm6606, %v6597, %v6613
  %v6615 = vsel %vm6605, %v6612, %v6614
  %v6616 = vsel %vm6604, %v6594, %v6597
  %v6617 = vsel %vm6607, %v6603, 1326507024
  %v6618 = vsel %vm6606, %v6600, %v6617
  %v6619 = vsel %vm6605, %v6616, %v6618
  %v6620 = vshll.u32 %v6580, 8
  %v6621 = vmul.u32.u64.compose %v6620, %v6619
  %v6622 = vextract.low.u32 %v6621
  %v6623 = vextract.high.u32 %v6621
  %v6624 = vmul.u32.u64.compose %v6620, %v6615
  %v6625 = vextract.low.u32 %v6624
  %v6626 = vextract.high.u32 %v6624
  %v6627 = vmul.u32 %v6620, %v6611
  %v6628 = vadd.s32 %v6623, %v6625
  %vm6629 = vc.u32 %v6623, %v6625
  %v6630 = vadd.s32 %v6626, 1
  %v6631 = vsel %vm6629, %v6630, %v6626
  %v6632 = vadd.s32 %v6627, %v6631
  %v6633 = vadd.s32 %v6632, 536870912
  %v6634 = vshrl.u32 %v6633, 30
  %v6635 = vshll.u32 %v6634, 30
  %v6636 = vsub.s32 %v6632, %v6635
  %vm6637 = vcmp.lt.s32.totalorder %v6636, 0
  %v6638 = vsub.s32 0, %v6636
  %v6639 = vsel %vm6637, %v6638, %v6636
  %v6640 = vclz %v6639
  %v6641 = vsub.s32 %v6640, 2
  %vm6642 = vcmp.gt.s32.totalorder 0, %v6641
  %v6643 = vsel %vm6642, 0, %v6641
  %v6644 = vsub.s32 32, %v6643
  %v6645 = vshll.u32 %v6636, %v6643
  %v6646 = vshrl.u32 %v6628, %v6644
  %v6647 = vor.u32 %v6645, %v6646
  %v6648 = vsub.s32 4294967266, %v6643
  %v6649 = vadd.s32 %v6648, 127
  %v6650 = vshll.u32 %v6649, 23
  %v6651 = vor.u32 4788187, %v6650
  %v6652 = vand.u32 2147483647, %v6651
  %v6654 = vcvt.s32.f32 %v6647
  %v6655 = vmul.f32 %v6654, %v6652
  %v6656 = vxor.u32 %v6655, 2147483648
  %v6657 = vsel %vm6574, %v6656, %v6655
  %v6658 = vsub.s32 4, %v6634
  %v6659 = vsel %vm6574, %v6658, %v6634
  %v6660 = vsel %vm6573, %v251, %v6657
  %v6661 = vsel %vm6573, 0, %v6659
  %v6662 = vcosq.f32.pop %v6660
  %v6663 = vsinq.f32.pop %v6660
  %vm6664 = vweird.f32 %v251
  %v6665 = vand.u32 %v6661, 3
  %vm6666 = vcmp.lt.s32.totalorder %v6665, 2
  %vm6667 = vcmp.eq.s32.totalorder %v6665, 0
  %v6668 = vxor.u32 %v6663, 2147483648
  %v6669 = vsel %vm6667, %v6662, %v6668
  %vm6670 = vcmp.eq.s32.totalorder %v6665, 2
  %v6671 = vxor.u32 %v6662, 2147483648
  %v6672 = vsel %vm6670, %v6671, %v6663
  %v6673 = vsel %vm6666, %v6669, %v6672
  %v6674 = vsel %vm6664, nan, %v6673
  %v6675 = vand.u32 2147483647, %v252
  %vm6676 = vcmp.le.f32.partialorder %v6675, 0.7853982
  %vm6677 = vcmp.lt.s32.totalorder %v252, 0
  %v6678 = vand.u32 %v252, 2139095040
  %v6679 = vshrl.u32 %v6678, 23
  %v6680 = vsub.s32 %v6679, 127
  %v6681 = vand.u32 2147483647, %v252
  %v6682 = vand.u32 %v6681, 8388607
  %v6683 = vor.u32 %v6682, 8388608
  %v6684 = vsub.s32 0, %v6683
  %v6685 = vadd.s32 %v6680, 1
  %vm6686 = vcmp.gt.s32.totalorder %v6685, 0
  %v6687 = vsel %vm6686, %v6685, 0
  %v6688 = vshrl.u32 %v6687, 5
  %v6689 = vand.u32 %v6687, 31
  %v6690 = vsub.s32 32, %v6689
  %v6691 = vshrl.u32 683565275, %v6690
  %v6692 = vshll.u32 683565275, %v6689
  %v6693 = vshrl.u32 2475754826, %v6690
  %v6694 = vor.u32 %v6692, %v6693
  %v6695 = vshll.u32 2475754826, %v6689
  %v6696 = vshrl.u32 2131351028, %v6690
  %v6697 = vor.u32 %v6695, %v6696
  %v6698 = vshll.u32 2131351028, %v6689
  %v6699 = vshrl.u32 2102212464, %v6690
  %v6700 = vor.u32 %v6698, %v6699
  %v6701 = vshll.u32 2102212464, %v6689
  %v6702 = vshrl.u32 920167782, %v6690
  %v6703 = vor.u32 %v6701, %v6702
  %v6704 = vshll.u32 920167782, %v6689
  %v6705 = vshrl.u32 1326507024, %v6690
  %v6706 = vor.u32 %v6704, %v6705
  %vm6707 = vcmp.lt.s32.totalorder %v6688, 1
  %vm6708 = vcmp.lt.s32.totalorder %v6688, 2
  %vm6709 = vcmp.lt.s32.totalorder %v6688, 3
  %vm6710 = vcmp.lt.s32.totalorder %v6688, 4
  %v6711 = vsel %vm6707, %v6691, %v6694
  %v6712 = vsel %vm6710, %v6700, 2102212464
  %v6713 = vsel %vm6709, %v6697, %v6712
  %v6714 = vsel %vm6708, %v6711, %v6713
  %v6715 = vsel %vm6707, %v6694, %v6697
  %v6716 = vsel %vm6710, %v6703, 920167782
  %v6717 = vsel %vm6709, %v6700, %v6716
  %v6718 = vsel %vm6708, %v6715, %v6717
  %v6719 = vsel %vm6707, %v6697, %v6700
  %v6720 = vsel %vm6710, %v6706, 1326507024
  %v6721 = vsel %vm6709, %v6703, %v6720
  %v6722 = vsel %vm6708, %v6719, %v6721
  %v6723 = vshll.u32 %v6683, 8
  %v6724 = vmul.u32.u64.compose %v6723, %v6722
  %v6725 = vextract.low.u32 %v6724
  %v6726 = vextract.high.u32 %v6724
  %v6727 = vmul.u32.u64.compose %v6723, %v6718
  %v6728 = vextract.low.u32 %v6727
  %v6729 = vextract.high.u32 %v6727
  %v6730 = vmul.u32 %v6723, %v6714
  %v6731 = vadd.s32 %v6726, %v6728
  %vm6732 = vc.u32 %v6726, %v6728
  %v6733 = vadd.s32 %v6729, 1
  %v6734 = vsel %vm6732, %v6733, %v6729
  %v6735 = vadd.s32 %v6730, %v6734
  %v6736 = vadd.s32 %v6735, 536870912
  %v6737 = vshrl.u32 %v6736, 30
  %v6738 = vshll.u32 %v6737, 30
  %v6739 = vsub.s32 %v6735, %v6738
  %vm6740 = vcmp.lt.s32.totalorder %v6739, 0
  %v6741 = vsub.s32 0, %v6739
  %v6742 = vsel %vm6740, %v6741, %v6739
  %v6743 = vclz %v6742
  %v6744 = vsub.s32 %v6743, 2
  %vm6745 = vcmp.gt.s32.totalorder 0, %v6744
  %v6746 = vsel %vm6745, 0, %v6744
  %v6747 = vsub.s32 32, %v6746
  %v6748 = vshll.u32 %v6739, %v6746
  %v6749 = vshrl.u32 %v6731, %v6747
  %v6750 = vor.u32 %v6748, %v6749
  %v6751 = vsub.s32 4294967266, %v6746
  %v6752 = vadd.s32 %v6751, 127
  %v6753 = vshll.u32 %v6752, 23
  %v6754 = vor.u32 4788187, %v6753
  %v6755 = vand.u32 2147483647, %v6754
  %v6757 = vcvt.s32.f32 %v6750
  %v6758 = vmul.f32 %v6757, %v6755
  %v6759 = vxor.u32 %v6758, 2147483648
  %v6760 = vsel %vm6677, %v6759, %v6758
  %v6761 = vsub.s32 4, %v6737
  %v6762 = vsel %vm6677, %v6761, %v6737
  %v6763 = vsel %vm6676, %v252, %v6760
  %v6764 = vsel %vm6676, 0, %v6762
  %v6765 = vcosq.f32.pop %v6763
  %v6766 = vsinq.f32.pop %v6763
  %vm6767 = vweird.f32 %v252
  %v6768 = vand.u32 %v6764, 3
  %vm6769 = vcmp.lt.s32.totalorder %v6768, 2
  %vm6770 = vcmp.eq.s32.totalorder %v6768, 0
  %v6771 = vxor.u32 %v6766, 2147483648
  %v6772 = vsel %vm6770, %v6765, %v6771
  %vm6773 = vcmp.eq.s32.totalorder %v6768, 2
  %v6774 = vxor.u32 %v6765, 2147483648
  %v6775 = vsel %vm6773, %v6774, %v6766
  %v6776 = vsel %vm6769, %v6772, %v6775
  %v6777 = vsel %vm6767, nan, %v6776
  %v6778 = vand.u32 2147483647, %v253
  %vm6779 = vcmp.le.f32.partialorder %v6778, 0.7853982
  %vm6780 = vcmp.lt.s32.totalorder %v253, 0
  %v6781 = vand.u32 %v253, 2139095040
  %v6782 = vshrl.u32 %v6781, 23
  %v6783 = vsub.s32 %v6782, 127
  %v6784 = vand.u32 2147483647, %v253
  %v6785 = vand.u32 %v6784, 8388607
  %v6786 = vor.u32 %v6785, 8388608
  %v6787 = vsub.s32 0, %v6786
  %v6788 = vadd.s32 %v6783, 1
  %vm6789 = vcmp.gt.s32.totalorder %v6788, 0
  %v6790 = vsel %vm6789, %v6788, 0
  %v6791 = vshrl.u32 %v6790, 5
  %v6792 = vand.u32 %v6790, 31
  %v6793 = vsub.s32 32, %v6792
  %v6794 = vshrl.u32 683565275, %v6793
  %v6795 = vshll.u32 683565275, %v6792
  %v6796 = vshrl.u32 2475754826, %v6793
  %v6797 = vor.u32 %v6795, %v6796
  %v6798 = vshll.u32 2475754826, %v6792
  %v6799 = vshrl.u32 2131351028, %v6793
  %v6800 = vor.u32 %v6798, %v6799
  %v6801 = vshll.u32 2131351028, %v6792
  %v6802 = vshrl.u32 2102212464, %v6793
  %v6803 = vor.u32 %v6801, %v6802
  %v6804 = vshll.u32 2102212464, %v6792
  %v6805 = vshrl.u32 920167782, %v6793
  %v6806 = vor.u32 %v6804, %v6805
  %v6807 = vshll.u32 920167782, %v6792
  %v6808 = vshrl.u32 1326507024, %v6793
  %v6809 = vor.u32 %v6807, %v6808
  %vm6810 = vcmp.lt.s32.totalorder %v6791, 1
  %vm6811 = vcmp.lt.s32.totalorder %v6791, 2
  %vm6812 = vcmp.lt.s32.totalorder %v6791, 3
  %vm6813 = vcmp.lt.s32.totalorder %v6791, 4
  %v6814 = vsel %vm6810, %v6794, %v6797
  %v6815 = vsel %vm6813, %v6803, 2102212464
  %v6816 = vsel %vm6812, %v6800, %v6815
  %v6817 = vsel %vm6811, %v6814, %v6816
  %v6818 = vsel %vm6810, %v6797, %v6800
  %v6819 = vsel %vm6813, %v6806, 920167782
  %v6820 = vsel %vm6812, %v6803, %v6819
  %v6821 = vsel %vm6811, %v6818, %v6820
  %v6822 = vsel %vm6810, %v6800, %v6803
  %v6823 = vsel %vm6813, %v6809, 1326507024
  %v6824 = vsel %vm6812, %v6806, %v6823
  %v6825 = vsel %vm6811, %v6822, %v6824
  %v6826 = vshll.u32 %v6786, 8
  %v6827 = vmul.u32.u64.compose %v6826, %v6825
  %v6828 = vextract.low.u32 %v6827
  %v6829 = vextract.high.u32 %v6827
  %v6830 = vmul.u32.u64.compose %v6826, %v6821
  %v6831 = vextract.low.u32 %v6830
  %v6832 = vextract.high.u32 %v6830
  %v6833 = vmul.u32 %v6826, %v6817
  %v6834 = vadd.s32 %v6829, %v6831
  %vm6835 = vc.u32 %v6829, %v6831
  %v6836 = vadd.s32 %v6832, 1
  %v6837 = vsel %vm6835, %v6836, %v6832
  %v6838 = vadd.s32 %v6833, %v6837
  %v6839 = vadd.s32 %v6838, 536870912
  %v6840 = vshrl.u32 %v6839, 30
  %v6841 = vshll.u32 %v6840, 30
  %v6842 = vsub.s32 %v6838, %v6841
  %vm6843 = vcmp.lt.s32.totalorder %v6842, 0
  %v6844 = vsub.s32 0, %v6842
  %v6845 = vsel %vm6843, %v6844, %v6842
  %v6846 = vclz %v6845
  %v6847 = vsub.s32 %v6846, 2
  %vm6848 = vcmp.gt.s32.totalorder 0, %v6847
  %v6849 = vsel %vm6848, 0, %v6847
  %v6850 = vsub.s32 32, %v6849
  %v6851 = vshll.u32 %v6842, %v6849
  %v6852 = vshrl.u32 %v6834, %v6850
  %v6853 = vor.u32 %v6851, %v6852
  %v6854 = vsub.s32 4294967266, %v6849
  %v6855 = vadd.s32 %v6854, 127
  %v6856 = vshll.u32 %v6855, 23
  %v6857 = vor.u32 4788187, %v6856
  %v6858 = vand.u32 2147483647, %v6857
  %v6860 = vcvt.s32.f32 %v6853
  %v6861 = vmul.f32 %v6860, %v6858
  %v6862 = vxor.u32 %v6861, 2147483648
  %v6863 = vsel %vm6780, %v6862, %v6861
  %v6864 = vsub.s32 4, %v6840
  %v6865 = vsel %vm6780, %v6864, %v6840
  %v6866 = vsel %vm6779, %v253, %v6863
  %v6867 = vsel %vm6779, 0, %v6865
  %v6868 = vcosq.f32.pop %v6866
  %v6869 = vsinq.f32.pop %v6866
  %vm6870 = vweird.f32 %v253
  %v6871 = vand.u32 %v6867, 3
  %vm6872 = vcmp.lt.s32.totalorder %v6871, 2
  %vm6873 = vcmp.eq.s32.totalorder %v6871, 0
  %v6874 = vxor.u32 %v6869, 2147483648
  %v6875 = vsel %vm6873, %v6868, %v6874
  %vm6876 = vcmp.eq.s32.totalorder %v6871, 2
  %v6877 = vxor.u32 %v6868, 2147483648
  %v6878 = vsel %vm6876, %v6877, %v6869
  %v6879 = vsel %vm6872, %v6875, %v6878
  %v6880 = vsel %vm6870, nan, %v6879
  %v6881 = vsel %vm256, %v360, %v3687
  %v6882 = vsel %vm256, %v464, %v3790
  %v6883 = vsel %vm256, %v568, %v3893
  %v6884 = vsel %vm256, %v672, %v3996
  %v6885 = vsel %vm256, %v776, %v4099
  %v6886 = vsel %vm256, %v880, %v4202
  %v6887 = vsel %vm256, %v984, %v4305
  %v6888 = vsel %vm256, %v1088, %v4408
  %v6889 = vsel %vm256, %v1192, %v4511
  %v6890 = vsel %vm256, %v1296, %v4614
  %v6891 = vsel %vm256, %v1400, %v4717
  %v6892 = vsel %vm256, %v1504, %v4820
  %v6893 = vsel %vm256, %v1608, %v4923
  %v6894 = vsel %vm256, %v1712, %v5026
  %v6895 = vsel %vm256, %v1816, %v5129
  %v6896 = vsel %vm256, %v1920, %v5232
  %v6897 = vsel %vm256, %v2024, %v5335
  %v6898 = vsel %vm256, %v2128, %v5438
  %v6899 = vsel %vm256, %v2232, %v5541
  %v6900 = vsel %vm256, %v2336, %v5644
  %v6901 = vsel %vm256, %v2440, %v5747
  %v6902 = vsel %vm256, %v2544, %v5850
  %v6903 = vsel %vm256, %v2648, %v5953
  %v6904 = vsel %vm256, %v2752, %v6056
  %v6905 = vsel %vm256, %v2856, %v6159
  %v6906 = vsel %vm256, %v2960, %v6262
  %v6907 = vsel %vm256, %v3064, %v6365
  %v6908 = vsel %vm256, %v3168, %v6468
  %v6909 = vsel %vm256, %v3272, %v6571
  %v6910 = vsel %vm256, %v3376, %v6674
  %v6911 = vsel %vm256, %v3480, %v6777
  %v6912 = vsel %vm256, %v3584, %v6880
  %v6913 = vld [vmem:[%s2] sm:$0xff]
  %v6914 = vld [vmem:[%s2 + $0x8] sm:$0xff]
  %v6915 = vld [vmem:[%s2 + $0x10] sm:$0xff]
  %v6916 = vld [vmem:[%s2 + $0x18] sm:$0xff]
  %v6917 = vld [vmem:[%s3] sm:$0x1]
  %v6919 = vlaneseq
  %v6920 = vshrl.u32 %v6919, 7
  %v6921 = vsub.s32 0, %v6920
  %v6922 = vrot.slane %v6917, %v6921
  %vm6924 = vcmask 261120
  %v6926 = vsel %vm6924, %v6881, 0
  %v6929 = vsel %vm6924, %v6882, 0
  %v6932 = vsel %vm6924, %v6883, 0
  %v6935 = vsel %vm6924, %v6884, 0
  %v6938 = vsel %vm6924, %v6885, 0
  %v6941 = vsel %vm6924, %v6886, 0
  %v6944 = vsel %vm6924, %v6887, 0
  %v6947 = vsel %vm6924, %v6888, 0
  %v6950 = vsel %vm6924, %v6889, 0
  %v6953 = vsel %vm6924, %v6890, 0
  %v6956 = vsel %vm6924, %v6891, 0
  %v6959 = vsel %vm6924, %v6892, 0
  %v6962 = vsel %vm6924, %v6893, 0
  %v6965 = vsel %vm6924, %v6894, 0
  %v6968 = vsel %vm6924, %v6895, 0
  %v6971 = vsel %vm6924, %v6896, 0
  %v6974 = vsel %vm6924, %v6897, 0
  %v6977 = vsel %vm6924, %v6898, 0
  %v6980 = vsel %vm6924, %v6899, 0
  %v6983 = vsel %vm6924, %v6900, 0
  %v6986 = vsel %vm6924, %v6901, 0
  %v6989 = vsel %vm6924, %v6902, 0
  %v6992 = vsel %vm6924, %v6903, 0
  %v6995 = vsel %vm6924, %v6904, 0
  %v6998 = vsel %vm6924, %v6905, 0
  %v7001 = vsel %vm6924, %v6906, 0
  %v7004 = vsel %vm6924, %v6907, 0
  %v7007 = vsel %vm6924, %v6908, 0
  %v7010 = vsel %vm6924, %v6909, 0
  %v7013 = vsel %vm6924, %v6910, 0
  %v7016 = vsel %vm6924, %v6911, 0
  %v7019 = vsel %vm6924, %v6912, 0
  %7021 = vmatprep.subr.mxu0 0.0
  %7022 = vmatpush1.msra.mxu0 %v6913
  %7023 = vmatprep.subr.mxu0 0.0
  %7024 = vmatpush1.msra.mxu0 %v6914
  %7025 = vmatprep.subr.mxu0 0.0
  %7026 = vmatpush1.msra.mxu0 %v6915
  %7027 = vmatprep.subr.mxu0 0.0
  %7028 = vmatpush1.msra.mxu0 %v6916
  %7029 = vmatprep.subr.mxu0 0.0
  %7030 = vmatpush1.msra.mxu0 0.0
  %7031 = vmatprep.subr.mxu0 0.0
  %7032 = vmatpush1.msra.mxu0 0.0
  %7033 = vmatprep.subr.mxu0 0.0
  %7034 = vmatpush1.msra.mxu0 0.0
  %7035 = vmatprep.subr.mxu0 0.0
  %7036 = vmatpush1.msra.mxu0 0.0
  %7037 = vmatprep.subr.mxu0 0.0
  %7038 = vmatpush1.msra.mxu0 0.0
  %7039 = vmatprep.subr.mxu0 0.0
  %7040 = vmatpush1.msra.mxu0 0.0
  %7041 = vmatprep.subr.mxu0 0.0
  %7042 = vmatpush1.msra.mxu0 0.0
  %7043 = vmatprep.subr.mxu0 0.0
  %7044 = vmatpush1.msra.mxu0 0.0
  %7045 = vmatprep.subr.mxu0 0.0
  %7046 = vmatpush1.msra.mxu0 0.0
  %7047 = vmatprep.subr.mxu0 0.0
  %7048 = vmatpush1.msra.mxu0 0.0
  %7049 = vmatprep.subr.mxu0 0.0
  %7050 = vmatpush1.msra.mxu0 0.0
  %7051 = vmatprep.subr.mxu0 0.0
  %7052 = vmatpush1.msra.mxu0 0.0
  %7053 = vmatprep.subr.mxu0 0.0
  %7054 = vmatpush1.msra.mxu0 0.0
  %7055 = vmatprep.subr.mxu0 0.0
  %7056 = vmatpush1.msra.mxu0 0.0
  %7057 = vmatprep.subr.mxu0 0.0
  %7058 = vmatpush1.msra.mxu0 0.0
  %7059 = vmatprep.subr.mxu0 0.0
  %7060 = vmatpush1.msra.mxu0 0.0
  %7061 = vmatprep.subr.mxu0 0.0
  %7062 = vmatpush1.msra.mxu0 0.0
  %7063 = vmatprep.subr.mxu0 0.0
  %7064 = vmatpush1.msra.mxu0 0.0
  %7065 = vmatprep.subr.mxu0 0.0
  %7066 = vmatpush1.msra.mxu0 0.0
  %7067 = vmatprep.subr.mxu0 0.0
  %7068 = vmatpush1.msra.mxu0 0.0
  %7069 = vmatprep.subr.mxu0 0.0
  %7070 = vmatpush1.msra.mxu0 0.0
  %7071 = vmatprep.subr.mxu0 0.0
  %7072 = vmatpush1.msra.mxu0 0.0
  %7073 = vmatprep.subr.mxu0 0.0
  %7074 = vmatpush1.msra.mxu0 0.0
  %7075 = vmatprep.subr.mxu0 0.0
  %7076 = vmatpush1.msra.mxu0 0.0
  %7077 = vmatprep.subr.mxu0 0.0
  %7078 = vmatpush1.msra.mxu0 0.0
  %7079 = vmatprep.subr.mxu0 0.0
  %7080 = vmatpush1.msra.mxu0 0.0
  %7081 = vmatprep.subr.mxu0 0.0
  %7082 = vmatpush1.msra.mxu0 0.0
  %7083 = vmatprep.subr.mxu0 0.0
  %7084 = vmatpush1.msra.mxu0 0.0
  %7085 = vmatprep.mubr.f32.mxu0 0.0
  %7086 = vmatmul.mubr.f32.gmra.mrb[0].mxu0 %v6926
  %v7087 = vpop.f32.mrb[0].mxu0
  %v7088 = vadd.f32 %v6922, %v7087
  %v7089 = vpop.f32.mrb[0].mxu0
  %7090 = vmatprep.mubr.f32.mxu0 0.0
  %7091 = vmatmul.mubr.f32.gmra.mrb[0].mxu0 %v6929
  %v7092 = vpop.f32.mrb[0].mxu0
  %v7093 = vadd.f32 %v6922, %v7092
  %v7094 = vpop.f32.mrb[0].mxu0
  %7095 = vmatprep.mubr.f32.mxu0 0.0
  %7096 = vmatmul.mubr.f32.gmra.mrb[0].mxu0 %v6932
  %v7097 = vpop.f32.mrb[0].mxu0
  %v7098 = vadd.f32 %v6922, %v7097
  %v7099 = vpop.f32.mrb[0].mxu0
  %7100 = vmatprep.mubr.f32.mxu0 0.0
  %7101 = vmatmul.mubr.f32.gmra.mrb[0].mxu0 %v6935
  %v7102 = vpop.f32.mrb[0].mxu0
  %v7103 = vadd.f32 %v6922, %v7102
  %v7104 = vpop.f32.mrb[0].mxu0
  %7105 = vmatprep.mubr.f32.mxu0 0.0
  %7106 = vmatmul.mubr.f32.gmra.mrb[0].mxu0 %v6938
  %v7107 = vpop.f32.mrb[0].mxu0
  %v7108 = vadd.f32 %v6922, %v7107
  %v7109 = vpop.f32.mrb[0].mxu0
  %7110 = vmatprep.mubr.f32.mxu0 0.0
  %7111 = vmatmul.mubr.f32.gmra.mrb[0].mxu0 %v6941
  %v7112 = vpop.f32.mrb[0].mxu0
  %v7113 = vadd.f32 %v6922, %v7112
  %v7114 = vpop.f32.mrb[0].mxu0
  %7115 = vmatprep.mubr.f32.mxu0 0.0
  %7116 = vmatmul.mubr.f32.gmra.mrb[0].mxu0 %v6944
  %v7117 = vpop.f32.mrb[0].mxu0
  %v7118 = vadd.f32 %v6922, %v7117
  %v7119 = vpop.f32.mrb[0].mxu0
  %7120 = vmatprep.mubr.f32.mxu0 0.0
  %7121 = vmatmul.mubr.f32.gmra.mrb[0].mxu0 %v6947
  %v7122 = vpop.f32.mrb[0].mxu0
  %v7123 = vadd.f32 %v6922, %v7122
  %v7124 = vpop.f32.mrb[0].mxu0
  %7125 = vmatprep.mubr.f32.mxu0 0.0
  %7126 = vmatmul.mubr.f32.gmra.mrb[0].mxu0 %v6950
  %v7127 = vpop.f32.mrb[0].mxu0
  %v7128 = vadd.f32 %v6922, %v7127
  %v7129 = vpop.f32.mrb[0].mxu0
  %7130 = vmatprep.mubr.f32.mxu0 0.0
  %7131 = vmatmul.mubr.f32.gmra.mrb[0].mxu0 %v6953
  %v7132 = vpop.f32.mrb[0].mxu0
  %v7133 = vadd.f32 %v6922, %v7132
  %v7134 = vpop.f32.mrb[0].mxu0
  %7135 = vmatprep.mubr.f32.mxu0 0.0
  %7136 = vmatmul.mubr.f32.gmra.mrb[0].mxu0 %v6956
  %v7137 = vpop.f32.mrb[0].mxu0
  %v7138 = vadd.f32 %v6922, %v7137
  %v7139 = vpop.f32.mrb[0].mxu0
  %7140 = vmatprep.mubr.f32.mxu0 0.0
  %7141 = vmatmul.mubr.f32.gmra.mrb[0].mxu0 %v6959
  %v7142 = vpop.f32.mrb[0].mxu0
  %v7143 = vadd.f32 %v6922, %v7142
  %v7144 = vpop.f32.mrb[0].mxu0
  %7145 = vmatprep.mubr.f32.mxu0 0.0
  %7146 = vmatmul.mubr.f32.gmra.mrb[0].mxu0 %v6962
  %v7147 = vpop.f32.mrb[0].mxu0
  %v7148 = vadd.f32 %v6922, %v7147
  %v7149 = vpop.f32.mrb[0].mxu0
  %7150 = vmatprep.mubr.f32.mxu0 0.0
  %7151 = vmatmul.mubr.f32.gmra.mrb[0].mxu0 %v6965
  %v7152 = vpop.f32.mrb[0].mxu0
  %v7153 = vadd.f32 %v6922, %v7152
  %v7154 = vpop.f32.mrb[0].mxu0
  %7155 = vmatprep.mubr.f32.mxu0 0.0
  %7156 = vmatmul.mubr.f32.gmra.mrb[0].mxu0 %v6968
  %v7157 = vpop.f32.mrb[0].mxu0
  %v7158 = vadd.f32 %v6922, %v7157
  %v7159 = vpop.f32.mrb[0].mxu0
  %7160 = vmatprep.mubr.f32.mxu0 0.0
  %7161 = vmatmul.mubr.f32.gmra.mrb[0].mxu0 %v6971
  %v7162 = vpop.f32.mrb[0].mxu0
  %v7163 = vadd.f32 %v6922, %v7162
  %v7164 = vpop.f32.mrb[0].mxu0
  %7165 = vmatprep.mubr.f32.mxu0 0.0
  %7166 = vmatmul.mubr.f32.gmra.mrb[0].mxu0 %v6974
  %v7167 = vpop.f32.mrb[0].mxu0
  %v7168 = vadd.f32 %v6922, %v7167
  %v7169 = vpop.f32.mrb[0].mxu0
  %7170 = vmatprep.mubr.f32.mxu0 0.0
  %7171 = vmatmul.mubr.f32.gmra.mrb[0].mxu0 %v6977
  %v7172 = vpop.f32.mrb[0].mxu0
  %v7173 = vadd.f32 %v6922, %v7172
  %v7174 = vpop.f32.mrb[0].mxu0
  %7175 = vmatprep.mubr.f32.mxu0 0.0
  %7176 = vmatmul.mubr.f32.gmra.mrb[0].mxu0 %v6980
  %v7177 = vpop.f32.mrb[0].mxu0
  %v7178 = vadd.f32 %v6922, %v7177
  %v7179 = vpop.f32.mrb[0].mxu0
  %7180 = vmatprep.mubr.f32.mxu0 0.0
  %7181 = vmatmul.mubr.f32.gmra.mrb[0].mxu0 %v6983
  %v7182 = vpop.f32.mrb[0].mxu0
  %v7183 = vadd.f32 %v6922, %v7182
  %v7184 = vpop.f32.mrb[0].mxu0
  %7185 = vmatprep.mubr.f32.mxu0 0.0
  %7186 = vmatmul.mubr.f32.gmra.mrb[0].mxu0 %v6986
  %v7187 = vpop.f32.mrb[0].mxu0
  %v7188 = vadd.f32 %v6922, %v7187
  %v7189 = vpop.f32.mrb[0].mxu0
  %7190 = vmatprep.mubr.f32.mxu0 0.0
  %7191 = vmatmul.mubr.f32.gmra.mrb[0].mxu0 %v6989
  %v7192 = vpop.f32.mrb[0].mxu0
  %v7193 = vadd.f32 %v6922, %v7192
  %v7194 = vpop.f32.mrb[0].mxu0
  %7195 = vmatprep.mubr.f32.mxu0 0.0
  %7196 = vmatmul.mubr.f32.gmra.mrb[0].mxu0 %v6992
  %v7197 = vpop.f32.mrb[0].mxu0
  %v7198 = vadd.f32 %v6922, %v7197
  %v7199 = vpop.f32.mrb[0].mxu0
  %7200 = vmatprep.mubr.f32.mxu0 0.0
  %7201 = vmatmul.mubr.f32.gmra.mrb[0].mxu0 %v6995
  %v7202 = vpop.f32.mrb[0].mxu0
  %v7203 = vadd.f32 %v6922, %v7202
  %v7204 = vpop.f32.mrb[0].mxu0
  %7205 = vmatprep.mubr.f32.mxu0 0.0
  %7206 = vmatmul.mubr.f32.gmra.mrb[0].mxu0 %v6998
  %v7207 = vpop.f32.mrb[0].mxu0
  %v7208 = vadd.f32 %v6922, %v7207
  %v7209 = vpop.f32.mrb[0].mxu0
  %7210 = vmatprep.mubr.f32.mxu0 0.0
  %7211 = vmatmul.mubr.f32.gmra.mrb[0].mxu0 %v7001
  %v7212 = vpop.f32.mrb[0].mxu0
  %v7213 = vadd.f32 %v6922, %v7212
  %v7214 = vpop.f32.mrb[0].mxu0
  %7215 = vmatprep.mubr.f32.mxu0 0.0
  %7216 = vmatmul.mubr.f32.gmra.mrb[0].mxu0 %v7004
  %v7217 = vpop.f32.mrb[0].mxu0
  %v7218 = vadd.f32 %v6922, %v7217
  %v7219 = vpop.f32.mrb[0].mxu0
  %7220 = vmatprep.mubr.f32.mxu0 0.0
  %7221 = vmatmul.mubr.f32.gmra.mrb[0].mxu0 %v7007
  %v7222 = vpop.f32.mrb[0].mxu0
  %v7223 = vadd.f32 %v6922, %v7222
  %v7224 = vpop.f32.mrb[0].mxu0
  %7225 = vmatprep.mubr.f32.mxu0 0.0
  %7226 = vmatmul.mubr.f32.gmra.mrb[0].mxu0 %v7010
  %v7227 = vpop.f32.mrb[0].mxu0
  %v7228 = vadd.f32 %v6922, %v7227
  %v7229 = vpop.f32.mrb[0].mxu0
  %7230 = vmatprep.mubr.f32.mxu0 0.0
  %7231 = vmatmul.mubr.f32.gmra.mrb[0].mxu0 %v7013
  %v7232 = vpop.f32.mrb[0].mxu0
  %v7233 = vadd.f32 %v6922, %v7232
  %v7234 = vpop.f32.mrb[0].mxu0
  %7235 = vmatprep.mubr.f32.mxu0 0.0
  %7236 = vmatmul.mubr.f32.gmra.mrb[0].mxu0 %v7016
  %v7237 = vpop.f32.mrb[0].mxu0
  %v7238 = vadd.f32 %v6922, %v7237
  %v7239 = vpop.f32.mrb[0].mxu0
  %7240 = vmatprep.mubr.f32.mxu0 0.0
  %7241 = vmatmul.mubr.f32.gmra.mrb[0].mxu0 %v7019
  %v7242 = vpop.f32.mrb[0].mxu0
  %v7243 = vadd.f32 %v6922, %v7242
  %v7244 = vpop.f32.mrb[0].mxu0
  %7245 = vdwg.mxu0
  %v7246 = vxor.u32 %v7088, 2147483648
  %v7247 = vxor.u32 %v7093, 2147483648
  %v7248 = vxor.u32 %v7098, 2147483648
  %v7249 = vxor.u32 %v7103, 2147483648
  %v7250 = vxor.u32 %v7108, 2147483648
  %v7251 = vxor.u32 %v7113, 2147483648
  %v7252 = vxor.u32 %v7118, 2147483648
  %v7253 = vxor.u32 %v7123, 2147483648
  %v7254 = vxor.u32 %v7128, 2147483648
  %v7255 = vxor.u32 %v7133, 2147483648
  %v7256 = vxor.u32 %v7138, 2147483648
  %v7257 = vxor.u32 %v7143, 2147483648
  %v7258 = vxor.u32 %v7148, 2147483648
  %v7259 = vxor.u32 %v7153, 2147483648
  %v7260 = vxor.u32 %v7158, 2147483648
  %v7261 = vxor.u32 %v7163, 2147483648
  %v7262 = vxor.u32 %v7168, 2147483648
  %v7263 = vxor.u32 %v7173, 2147483648
  %v7264 = vxor.u32 %v7178, 2147483648
  %v7265 = vxor.u32 %v7183, 2147483648
  %v7266 = vxor.u32 %v7188, 2147483648
  %v7267 = vxor.u32 %v7193, 2147483648
  %v7268 = vxor.u32 %v7198, 2147483648
  %v7269 = vxor.u32 %v7203, 2147483648
  %v7270 = vxor.u32 %v7208, 2147483648
  %v7271 = vxor.u32 %v7213, 2147483648
  %v7272 = vxor.u32 %v7218, 2147483648
  %v7273 = vxor.u32 %v7223, 2147483648
  %v7274 = vxor.u32 %v7228, 2147483648
  %v7275 = vxor.u32 %v7233, 2147483648
  %v7276 = vxor.u32 %v7238, 2147483648
  %v7277 = vxor.u32 %v7243, 2147483648
  %v7278 = vmul.f32 %v7246, 1.442695
  %v7279 = vpow.pop %v7278
  %v7280 = vmul.f32 %v7247, 1.442695
  %v7281 = vpow.pop %v7280
  %v7282 = vmul.f32 %v7248, 1.442695
  %v7283 = vpow.pop %v7282
  %v7284 = vmul.f32 %v7249, 1.442695
  %v7285 = vpow.pop %v7284
  %v7286 = vmul.f32 %v7250, 1.442695
  %v7287 = vpow.pop %v7286
  %v7288 = vmul.f32 %v7251, 1.442695
  %v7289 = vpow.pop %v7288
  %v7290 = vmul.f32 %v7252, 1.442695
  %v7291 = vpow.pop %v7290
  %v7292 = vmul.f32 %v7253, 1.442695
  %v7293 = vpow.pop %v7292
  %v7294 = vmul.f32 %v7254, 1.442695
  %v7295 = vpow.pop %v7294
  %v7296 = vmul.f32 %v7255, 1.442695
  %v7297 = vpow.pop %v7296
  %v7298 = vmul.f32 %v7256, 1.442695
  %v7299 = vpow.pop %v7298
  %v7300 = vmul.f32 %v7257, 1.442695
  %v7301 = vpow.pop %v7300
  %v7302 = vmul.f32 %v7258, 1.442695
  %v7303 = vpow.pop %v7302
  %v7304 = vmul.f32 %v7259, 1.442695
  %v7305 = vpow.pop %v7304
  %v7306 = vmul.f32 %v7260, 1.442695
  %v7307 = vpow.pop %v7306
  %v7308 = vmul.f32 %v7261, 1.442695
  %v7309 = vpow.pop %v7308
  %v7310 = vmul.f32 %v7262, 1.442695
  %v7311 = vpow.pop %v7310
  %v7312 = vmul.f32 %v7263, 1.442695
  %v7313 = vpow.pop %v7312
  %v7314 = vmul.f32 %v7264, 1.442695
  %v7315 = vpow.pop %v7314
  %v7316 = vmul.f32 %v7265, 1.442695
  %v7317 = vpow.pop %v7316
  %v7318 = vmul.f32 %v7266, 1.442695
  %v7319 = vpow.pop %v7318
  %v7320 = vmul.f32 %v7267, 1.442695
  %v7321 = vpow.pop %v7320
  %v7322 = vmul.f32 %v7268, 1.442695
  %v7323 = vpow.pop %v7322
  %v7324 = vmul.f32 %v7269, 1.442695
  %v7325 = vpow.pop %v7324
  %v7326 = vmul.f32 %v7270, 1.442695
  %v7327 = vpow.pop %v7326
  %v7328 = vmul.f32 %v7271, 1.442695
  %v7329 = vpow.pop %v7328
  %v7330 = vmul.f32 %v7272, 1.442695
  %v7331 = vpow.pop %v7330
  %v7332 = vmul.f32 %v7273, 1.442695
  %v7333 = vpow.pop %v7332
  %v7334 = vmul.f32 %v7274, 1.442695
  %v7335 = vpow.pop %v7334
  %v7336 = vmul.f32 %v7275, 1.442695
  %v7337 = vpow.pop %v7336
  %v7338 = vmul.f32 %v7276, 1.442695
  %v7339 = vpow.pop %v7338
  %v7340 = vmul.f32 %v7277, 1.442695
  %v7341 = vpow.pop %v7340
  %v7342 = vadd.f32 %v7279, 1.0
  %v7343 = vadd.f32 %v7281, 1.0
  %v7344 = vadd.f32 %v7283, 1.0
  %v7345 = vadd.f32 %v7285, 1.0
  %v7346 = vadd.f32 %v7287, 1.0
  %v7347 = vadd.f32 %v7289, 1.0
  %v7348 = vadd.f32 %v7291, 1.0
  %v7349 = vadd.f32 %v7293, 1.0
  %v7350 = vadd.f32 %v7295, 1.0
  %v7351 = vadd.f32 %v7297, 1.0
  %v7352 = vadd.f32 %v7299, 1.0
  %v7353 = vadd.f32 %v7301, 1.0
  %v7354 = vadd.f32 %v7303, 1.0
  %v7355 = vadd.f32 %v7305, 1.0
  %v7356 = vadd.f32 %v7307, 1.0
  %v7357 = vadd.f32 %v7309, 1.0
  %v7358 = vadd.f32 %v7311, 1.0
  %v7359 = vadd.f32 %v7313, 1.0
  %v7360 = vadd.f32 %v7315, 1.0
  %v7361 = vadd.f32 %v7317, 1.0
  %v7362 = vadd.f32 %v7319, 1.0
  %v7363 = vadd.f32 %v7321, 1.0
  %v7364 = vadd.f32 %v7323, 1.0
  %v7365 = vadd.f32 %v7325, 1.0
  %v7366 = vadd.f32 %v7327, 1.0
  %v7367 = vadd.f32 %v7329, 1.0
  %v7368 = vadd.f32 %v7331, 1.0
  %v7369 = vadd.f32 %v7333, 1.0
  %v7370 = vadd.f32 %v7335, 1.0
  %v7371 = vadd.f32 %v7337, 1.0
  %v7372 = vadd.f32 %v7339, 1.0
  %v7373 = vadd.f32 %v7341, 1.0
  %v7374 = vrcp.pop %v7342
  %v7375 = vmul.f32 1.0, %v7374
  %v7376 = vrcp.pop %v7343
  %v7377 = vmul.f32 1.0, %v7376
  %v7378 = vrcp.pop %v7344
  %v7379 = vmul.f32 1.0, %v7378
  %v7380 = vrcp.pop %v7345
  %v7381 = vmul.f32 1.0, %v7380
  %v7382 = vrcp.pop %v7346
  %v7383 = vmul.f32 1.0, %v7382
  %v7384 = vrcp.pop %v7347
  %v7385 = vmul.f32 1.0, %v7384
  %v7386 = vrcp.pop %v7348
  %v7387 = vmul.f32 1.0, %v7386
  %v7388 = vrcp.pop %v7349
  %v7389 = vmul.f32 1.0, %v7388
  %v7390 = vrcp.pop %v7350
  %v7391 = vmul.f32 1.0, %v7390
  %v7392 = vrcp.pop %v7351
  %v7393 = vmul.f32 1.0, %v7392
  %v7394 = vrcp.pop %v7352
  %v7395 = vmul.f32 1.0, %v7394
  %v7396 = vrcp.pop %v7353
  %v7397 = vmul.f32 1.0, %v7396
  %v7398 = vrcp.pop %v7354
  %v7399 = vmul.f32 1.0, %v7398
  %v7400 = vrcp.pop %v7355
  %v7401 = vmul.f32 1.0, %v7400
  %v7402 = vrcp.pop %v7356
  %v7403 = vmul.f32 1.0, %v7402
  %v7404 = vrcp.pop %v7357
  %v7405 = vmul.f32 1.0, %v7404
  %v7406 = vrcp.pop %v7358
  %v7407 = vmul.f32 1.0, %v7406
  %v7408 = vrcp.pop %v7359
  %v7409 = vmul.f32 1.0, %v7408
  %v7410 = vrcp.pop %v7360
  %v7411 = vmul.f32 1.0, %v7410
  %v7412 = vrcp.pop %v7361
  %v7413 = vmul.f32 1.0, %v7412
  %v7414 = vrcp.pop %v7362
  %v7415 = vmul.f32 1.0, %v7414
  %v7416 = vrcp.pop %v7363
  %v7417 = vmul.f32 1.0, %v7416
  %v7418 = vrcp.pop %v7364
  %v7419 = vmul.f32 1.0, %v7418
  %v7420 = vrcp.pop %v7365
  %v7421 = vmul.f32 1.0, %v7420
  %v7422 = vrcp.pop %v7366
  %v7423 = vmul.f32 1.0, %v7422
  %v7424 = vrcp.pop %v7367
  %v7425 = vmul.f32 1.0, %v7424
  %v7426 = vrcp.pop %v7368
  %v7427 = vmul.f32 1.0, %v7426
  %v7428 = vrcp.pop %v7369
  %v7429 = vmul.f32 1.0, %v7428
  %v7430 = vrcp.pop %v7370
  %v7431 = vmul.f32 1.0, %v7430
  %v7432 = vrcp.pop %v7371
  %v7433 = vmul.f32 1.0, %v7432
  %v7434 = vrcp.pop %v7372
  %v7435 = vmul.f32 1.0, %v7434
  %v7436 = vrcp.pop %v7373
  %v7437 = vmul.f32 1.0, %v7436
  %v7438 = vmul.f32 %v7088, %v7375
  %v7439 = vmul.f32 %v7093, %v7377
  %v7440 = vmul.f32 %v7098, %v7379
  %v7441 = vmul.f32 %v7103, %v7381
  %v7442 = vmul.f32 %v7108, %v7383
  %v7443 = vmul.f32 %v7113, %v7385
  %v7444 = vmul.f32 %v7118, %v7387
  %v7445 = vmul.f32 %v7123, %v7389
  %v7446 = vmul.f32 %v7128, %v7391
  %v7447 = vmul.f32 %v7133, %v7393
  %v7448 = vmul.f32 %v7138, %v7395
  %v7449 = vmul.f32 %v7143, %v7397
  %v7450 = vmul.f32 %v7148, %v7399
  %v7451 = vmul.f32 %v7153, %v7401
  %v7452 = vmul.f32 %v7158, %v7403
  %v7453 = vmul.f32 %v7163, %v7405
  %v7454 = vmul.f32 %v7168, %v7407
  %v7455 = vmul.f32 %v7173, %v7409
  %v7456 = vmul.f32 %v7178, %v7411
  %v7457 = vmul.f32 %v7183, %v7413
  %v7458 = vmul.f32 %v7188, %v7415
  %v7459 = vmul.f32 %v7193, %v7417
  %v7460 = vmul.f32 %v7198, %v7419
  %v7461 = vmul.f32 %v7203, %v7421
  %v7462 = vmul.f32 %v7208, %v7423
  %v7463 = vmul.f32 %v7213, %v7425
  %v7464 = vmul.f32 %v7218, %v7427
  %v7465 = vmul.f32 %v7223, %v7429
  %v7466 = vmul.f32 %v7228, %v7431
  %v7467 = vmul.f32 %v7233, %v7433
  %v7468 = vmul.f32 %v7238, %v7435
  %v7469 = vmul.f32 %v7243, %v7437
  %v7470 = vld [vmem:[%s4] sm:$0xff]
  %v7471 = vld [vmem:[%s4 + $0x8] sm:$0xff]
  %v7472 = vld [vmem:[%s4 + $0x10] sm:$0xff]
  %v7473 = vld [vmem:[%s4 + $0x18] sm:$0xff]
  %v7474 = vld [vmem:[%s5] sm:$0x1]
  %v7476 = vlaneseq
  %v7477 = vshrl.u32 %v7476, 7
  %v7478 = vsub.s32 0, %v7477
  %v7479 = vrot.slane %v7474, %v7478
  %v7482 = vsel %vm6924, %v7438, 0
  %v7485 = vsel %vm6924, %v7439, 0
  %v7488 = vsel %vm6924, %v7440, 0
  %v7491 = vsel %vm6924, %v7441, 0
  %v7494 = vsel %vm6924, %v7442, 0
  %v7497 = vsel %vm6924, %v7443, 0
  %v7500 = vsel %vm6924, %v7444, 0
  %v7503 = vsel %vm6924, %v7445, 0
  %v7506 = vsel %vm6924, %v7446, 0
  %v7509 = vsel %vm6924, %v7447, 0
  %v7512 = vsel %vm6924, %v7448, 0
  %v7515 = vsel %vm6924, %v7449, 0
  %v7518 = vsel %vm6924, %v7450, 0
  %v7521 = vsel %vm6924, %v7451, 0
  %v7524 = vsel %vm6924, %v7452, 0
  %v7527 = vsel %vm6924, %v7453, 0
  %v7530 = vsel %vm6924, %v7454, 0
  %v7533 = vsel %vm6924, %v7455, 0
  %v7536 = vsel %vm6924, %v7456, 0
  %v7539 = vsel %vm6924, %v7457, 0
  %v7542 = vsel %vm6924, %v7458, 0
  %v7545 = vsel %vm6924, %v7459, 0
  %v7548 = vsel %vm6924, %v7460, 0
  %v7551 = vsel %vm6924, %v7461, 0
  %v7554 = vsel %vm6924, %v7462, 0
  %v7557 = vsel %vm6924, %v7463, 0
  %v7560 = vsel %vm6924, %v7464, 0
  %v7563 = vsel %vm6924, %v7465, 0
  %v7566 = vsel %vm6924, %v7466, 0
  %v7569 = vsel %vm6924, %v7467, 0
  %v7572 = vsel %vm6924, %v7468, 0
  %v7575 = vsel %vm6924, %v7469, 0
  %7577 = vmatprep.subr.mxu0 0.0
  %7578 = vmatpush1.msra.mxu0 %v7470
  %7579 = vmatprep.subr.mxu0 0.0
  %7580 = vmatpush1.msra.mxu0 %v7471
  %7581 = vmatprep.subr.mxu0 0.0
  %7582 = vmatpush1.msra.mxu0 %v7472
  %7583 = vmatprep.subr.mxu0 0.0
  %7584 = vmatpush1.msra.mxu0 %v7473
  %7585 = vmatprep.subr.mxu0 0.0
  %7586 = vmatpush1.msra.mxu0 0.0
  %7587 = vmatprep.subr.mxu0 0.0
  %7588 = vmatpush1.msra.mxu0 0.0
  %7589 = vmatprep.subr.mxu0 0.0
  %7590 = vmatpush1.msra.mxu0 0.0
  %7591 = vmatprep.subr.mxu0 0.0
  %7592 = vmatpush1.msra.mxu0 0.0
  %7593 = vmatprep.subr.mxu0 0.0
  %7594 = vmatpush1.msra.mxu0 0.0
  %7595 = vmatprep.subr.mxu0 0.0
  %7596 = vmatpush1.msra.mxu0 0.0
  %7597 = vmatprep.subr.mxu0 0.0
  %7598 = vmatpush1.msra.mxu0 0.0
  %7599 = vmatprep.subr.mxu0 0.0
  %7600 = vmatpush1.msra.mxu0 0.0
  %7601 = vmatprep.subr.mxu0 0.0
  %7602 = vmatpush1.msra.mxu0 0.0
  %7603 = vmatprep.subr.mxu0 0.0
  %7604 = vmatpush1.msra.mxu0 0.0
  %7605 = vmatprep.subr.mxu0 0.0
  %7606 = vmatpush1.msra.mxu0 0.0
  %7607 = vmatprep.subr.mxu0 0.0
  %7608 = vmatpush1.msra.mxu0 0.0
  %7609 = vmatprep.subr.mxu0 0.0
  %7610 = vmatpush1.msra.mxu0 0.0
  %7611 = vmatprep.subr.mxu0 0.0
  %7612 = vmatpush1.msra.mxu0 0.0
  %7613 = vmatprep.subr.mxu0 0.0
  %7614 = vmatpush1.msra.mxu0 0.0
  %7615 = vmatprep.subr.mxu0 0.0
  %7616 = vmatpush1.msra.mxu0 0.0
  %7617 = vmatprep.subr.mxu0 0.0
  %7618 = vmatpush1.msra.mxu0 0.0
  %7619 = vmatprep.subr.mxu0 0.0
  %7620 = vmatpush1.msra.mxu0 0.0
  %7621 = vmatprep.subr.mxu0 0.0
  %7622 = vmatpush1.msra.mxu0 0.0
  %7623 = vmatprep.subr.mxu0 0.0
  %7624 = vmatpush1.msra.mxu0 0.0
  %7625 = vmatprep.subr.mxu0 0.0
  %7626 = vmatpush1.msra.mxu0 0.0
  %7627 = vmatprep.subr.mxu0 0.0
  %7628 = vmatpush1.msra.mxu0 0.0
  %7629 = vmatprep.subr.mxu0 0.0
  %7630 = vmatpush1.msra.mxu0 0.0
  %7631 = vmatprep.subr.mxu0 0.0
  %7632 = vmatpush1.msra.mxu0 0.0
  %7633 = vmatprep.subr.mxu0 0.0
  %7634 = vmatpush1.msra.mxu0 0.0
  %7635 = vmatprep.subr.mxu0 0.0
  %7636 = vmatpush1.msra.mxu0 0.0
  %7637 = vmatprep.subr.mxu0 0.0
  %7638 = vmatpush1.msra.mxu0 0.0
  %7639 = vmatprep.subr.mxu0 0.0
  %7640 = vmatpush1.msra.mxu0 0.0
  %7641 = vmatprep.mubr.f32.mxu0 0.0
  %7642 = vmatmul.mubr.f32.gmra.mrb[0].mxu0 %v7482
  %v7643 = vpop.f32.mrb[0].mxu0
  %v7644 = vadd.f32 %v7479, %v7643
  %v7645 = vpop.f32.mrb[0].mxu0
  %7646 = vmatprep.mubr.f32.mxu0 0.0
  %7647 = vmatmul.mubr.f32.gmra.mrb[0].mxu0 %v7485
  %v7648 = vpop.f32.mrb[0].mxu0
  %v7649 = vadd.f32 %v7479, %v7648
  %v7650 = vpop.f32.mrb[0].mxu0
  %7651 = vmatprep.mubr.f32.mxu0 0.0
  %7652 = vmatmul.mubr.f32.gmra.mrb[0].mxu0 %v7488
  %v7653 = vpop.f32.mrb[0].mxu0
  %v7654 = vadd.f32 %v7479, %v7653
  %v7655 = vpop.f32.mrb[0].mxu0
  %7656 = vmatprep.mubr.f32.mxu0 0.0
  %7657 = vmatmul.mubr.f32.gmra.mrb[0].mxu0 %v7491
  %v7658 = vpop.f32.mrb[0].mxu0
  %v7659 = vadd.f32 %v7479, %v7658
  %v7660 = vpop.f32.mrb[0].mxu0
  %7661 = vmatprep.mubr.f32.mxu0 0.0
  %7662 = vmatmul.mubr.f32.gmra.mrb[0].mxu0 %v7494
  %v7663 = vpop.f32.mrb[0].mxu0
  %v7664 = vadd.f32 %v7479, %v7663
  %v7665 = vpop.f32.mrb[0].mxu0
  %7666 = vmatprep.mubr.f32.mxu0 0.0
  %7667 = vmatmul.mubr.f32.gmra.mrb[0].mxu0 %v7497
  %v7668 = vpop.f32.mrb[0].mxu0
  %v7669 = vadd.f32 %v7479, %v7668
  %v7670 = vpop.f32.mrb[0].mxu0
  %7671 = vmatprep.mubr.f32.mxu0 0.0
  %7672 = vmatmul.mubr.f32.gmra.mrb[0].mxu0 %v7500
  %v7673 = vpop.f32.mrb[0].mxu0
  %v7674 = vadd.f32 %v7479, %v7673
  %v7675 = vpop.f32.mrb[0].mxu0
  %7676 = vmatprep.mubr.f32.mxu0 0.0
  %7677 = vmatmul.mubr.f32.gmra.mrb[0].mxu0 %v7503
  %v7678 = vpop.f32.mrb[0].mxu0
  %v7679 = vadd.f32 %v7479, %v7678
  %v7680 = vpop.f32.mrb[0].mxu0
  %7681 = vmatprep.mubr.f32.mxu0 0.0
  %7682 = vmatmul.mubr.f32.gmra.mrb[0].mxu0 %v7506
  %v7683 = vpop.f32.mrb[0].mxu0
  %v7684 = vadd.f32 %v7479, %v7683
  %v7685 = vpop.f32.mrb[0].mxu0
  %7686 = vmatprep.mubr.f32.mxu0 0.0
  %7687 = vmatmul.mubr.f32.gmra.mrb[0].mxu0 %v7509
  %v7688 = vpop.f32.mrb[0].mxu0
  %v7689 = vadd.f32 %v7479, %v7688
  %v7690 = vpop.f32.mrb[0].mxu0
  %7691 = vmatprep.mubr.f32.mxu0 0.0
  %7692 = vmatmul.mubr.f32.gmra.mrb[0].mxu0 %v7512
  %v7693 = vpop.f32.mrb[0].mxu0
  %v7694 = vadd.f32 %v7479, %v7693
  %v7695 = vpop.f32.mrb[0].mxu0
  %7696 = vmatprep.mubr.f32.mxu0 0.0
  %7697 = vmatmul.mubr.f32.gmra.mrb[0].mxu0 %v7515
  %v7698 = vpop.f32.mrb[0].mxu0
  %v7699 = vadd.f32 %v7479, %v7698
  %v7700 = vpop.f32.mrb[0].mxu0
  %7701 = vmatprep.mubr.f32.mxu0 0.0
  %7702 = vmatmul.mubr.f32.gmra.mrb[0].mxu0 %v7518
  %v7703 = vpop.f32.mrb[0].mxu0
  %v7704 = vadd.f32 %v7479, %v7703
  %v7705 = vpop.f32.mrb[0].mxu0
  %7706 = vmatprep.mubr.f32.mxu0 0.0
  %7707 = vmatmul.mubr.f32.gmra.mrb[0].mxu0 %v7521
  %v7708 = vpop.f32.mrb[0].mxu0
  %v7709 = vadd.f32 %v7479, %v7708
  %v7710 = vpop.f32.mrb[0].mxu0
  %7711 = vmatprep.mubr.f32.mxu0 0.0
  %7712 = vmatmul.mubr.f32.gmra.mrb[0].mxu0 %v7524
  %v7713 = vpop.f32.mrb[0].mxu0
  %v7714 = vadd.f32 %v7479, %v7713
  %v7715 = vpop.f32.mrb[0].mxu0
  %7716 = vmatprep.mubr.f32.mxu0 0.0
  %7717 = vmatmul.mubr.f32.gmra.mrb[0].mxu0 %v7527
  %v7718 = vpop.f32.mrb[0].mxu0
  %v7719 = vadd.f32 %v7479, %v7718
  %v7720 = vpop.f32.mrb[0].mxu0
  %7721 = vmatprep.mubr.f32.mxu0 0.0
  %7722 = vmatmul.mubr.f32.gmra.mrb[0].mxu0 %v7530
  %v7723 = vpop.f32.mrb[0].mxu0
  %v7724 = vadd.f32 %v7479, %v7723
  %v7725 = vpop.f32.mrb[0].mxu0
  %7726 = vmatprep.mubr.f32.mxu0 0.0
  %7727 = vmatmul.mubr.f32.gmra.mrb[0].mxu0 %v7533
  %v7728 = vpop.f32.mrb[0].mxu0
  %v7729 = vadd.f32 %v7479, %v7728
  %v7730 = vpop.f32.mrb[0].mxu0
  %7731 = vmatprep.mubr.f32.mxu0 0.0
  %7732 = vmatmul.mubr.f32.gmra.mrb[0].mxu0 %v7536
  %v7733 = vpop.f32.mrb[0].mxu0
  %v7734 = vadd.f32 %v7479, %v7733
  %v7735 = vpop.f32.mrb[0].mxu0
  %7736 = vmatprep.mubr.f32.mxu0 0.0
  %7737 = vmatmul.mubr.f32.gmra.mrb[0].mxu0 %v7539
  %v7738 = vpop.f32.mrb[0].mxu0
  %v7739 = vadd.f32 %v7479, %v7738
  %v7740 = vpop.f32.mrb[0].mxu0
  %7741 = vmatprep.mubr.f32.mxu0 0.0
  %7742 = vmatmul.mubr.f32.gmra.mrb[0].mxu0 %v7542
  %v7743 = vpop.f32.mrb[0].mxu0
  %v7744 = vadd.f32 %v7479, %v7743
  %v7745 = vpop.f32.mrb[0].mxu0
  %7746 = vmatprep.mubr.f32.mxu0 0.0
  %7747 = vmatmul.mubr.f32.gmra.mrb[0].mxu0 %v7545
  %v7748 = vpop.f32.mrb[0].mxu0
  %v7749 = vadd.f32 %v7479, %v7748
  %v7750 = vpop.f32.mrb[0].mxu0
  %7751 = vmatprep.mubr.f32.mxu0 0.0
  %7752 = vmatmul.mubr.f32.gmra.mrb[0].mxu0 %v7548
  %v7753 = vpop.f32.mrb[0].mxu0
  %v7754 = vadd.f32 %v7479, %v7753
  %v7755 = vpop.f32.mrb[0].mxu0
  %7756 = vmatprep.mubr.f32.mxu0 0.0
  %7757 = vmatmul.mubr.f32.gmra.mrb[0].mxu0 %v7551
  %v7758 = vpop.f32.mrb[0].mxu0
  %v7759 = vadd.f32 %v7479, %v7758
  %v7760 = vpop.f32.mrb[0].mxu0
  %7761 = vmatprep.mubr.f32.mxu0 0.0
  %7762 = vmatmul.mubr.f32.gmra.mrb[0].mxu0 %v7554
  %v7763 = vpop.f32.mrb[0].mxu0
  %v7764 = vadd.f32 %v7479, %v7763
  %v7765 = vpop.f32.mrb[0].mxu0
  %7766 = vmatprep.mubr.f32.mxu0 0.0
  %7767 = vmatmul.mubr.f32.gmra.mrb[0].mxu0 %v7557
  %v7768 = vpop.f32.mrb[0].mxu0
  %v7769 = vadd.f32 %v7479, %v7768
  %v7770 = vpop.f32.mrb[0].mxu0
  %7771 = vmatprep.mubr.f32.mxu0 0.0
  %7772 = vmatmul.mubr.f32.gmra.mrb[0].mxu0 %v7560
  %v7773 = vpop.f32.mrb[0].mxu0
  %v7774 = vadd.f32 %v7479, %v7773
  %v7775 = vpop.f32.mrb[0].mxu0
  %7776 = vmatprep.mubr.f32.mxu0 0.0
  %7777 = vmatmul.mubr.f32.gmra.mrb[0].mxu0 %v7563
  %v7778 = vpop.f32.mrb[0].mxu0
  %v7779 = vadd.f32 %v7479, %v7778
  %v7780 = vpop.f32.mrb[0].mxu0
  %7781 = vmatprep.mubr.f32.mxu0 0.0
  %7782 = vmatmul.mubr.f32.gmra.mrb[0].mxu0 %v7566
  %v7783 = vpop.f32.mrb[0].mxu0
  %v7784 = vadd.f32 %v7479, %v7783
  %v7785 = vpop.f32.mrb[0].mxu0
  %7786 = vmatprep.mubr.f32.mxu0 0.0
  %7787 = vmatmul.mubr.f32.gmra.mrb[0].mxu0 %v7569
  %v7788 = vpop.f32.mrb[0].mxu0
  %v7789 = vadd.f32 %v7479, %v7788
  %v7790 = vpop.f32.mrb[0].mxu0
  %7791 = vmatprep.mubr.f32.mxu0 0.0
  %7792 = vmatmul.mubr.f32.gmra.mrb[0].mxu0 %v7572
  %v7793 = vpop.f32.mrb[0].mxu0
  %v7794 = vadd.f32 %v7479, %v7793
  %v7795 = vpop.f32.mrb[0].mxu0
  %7796 = vmatprep.mubr.f32.mxu0 0.0
  %7797 = vmatmul.mubr.f32.gmra.mrb[0].mxu0 %v7575
  %v7798 = vpop.f32.mrb[0].mxu0
  %v7799 = vadd.f32 %v7479, %v7798
  %v7800 = vpop.f32.mrb[0].mxu0
  %7801 = vdwg.mxu0
  %7802 = vst.msk [vmem:[%s6] sm:$0xff] %vm6924, %v7644
  %7803 = vst.msk [vmem:[%s6 + $0x8] sm:$0xff] %vm6924, %v7649
  %7804 = vst.msk [vmem:[%s6 + $0x10] sm:$0xff] %vm6924, %v7654
  %7805 = vst.msk [vmem:[%s6 + $0x18] sm:$0xff] %vm6924, %v7659
  %7806 = vst.msk [vmem:[%s6 + $0x20] sm:$0xff] %vm6924, %v7664
  %7807 = vst.msk [vmem:[%s6 + $0x28] sm:$0xff] %vm6924, %v7669
  %7808 = vst.msk [vmem:[%s6 + $0x30] sm:$0xff] %vm6924, %v7674
  %7809 = vst.msk [vmem:[%s6 + $0x38] sm:$0xff] %vm6924, %v7679
  %7810 = vst.msk [vmem:[%s6 + $0x40] sm:$0xff] %vm6924, %v7684
  %7811 = vst.msk [vmem:[%s6 + $0x48] sm:$0xff] %vm6924, %v7689
  %7812 = vst.msk [vmem:[%s6 + $0x50] sm:$0xff] %vm6924, %v7694
  %7813 = vst.msk [vmem:[%s6 + $0x58] sm:$0xff] %vm6924, %v7699
  %7814 = vst.msk [vmem:[%s6 + $0x60] sm:$0xff] %vm6924, %v7704
  %7815 = vst.msk [vmem:[%s6 + $0x68] sm:$0xff] %vm6924, %v7709
  %7816 = vst.msk [vmem:[%s6 + $0x70] sm:$0xff] %vm6924, %v7714
  %7817 = vst.msk [vmem:[%s6 + $0x78] sm:$0xff] %vm6924, %v7719
  %7818 = vst.msk [vmem:[%s6 + $0x80] sm:$0xff] %vm6924, %v7724
  %7819 = vst.msk [vmem:[%s6 + $0x88] sm:$0xff] %vm6924, %v7729
  %7820 = vst.msk [vmem:[%s6 + $0x90] sm:$0xff] %vm6924, %v7734
  %7821 = vst.msk [vmem:[%s6 + $0x98] sm:$0xff] %vm6924, %v7739
  %7822 = vst.msk [vmem:[%s6 + $0xa0] sm:$0xff] %vm6924, %v7744
  %7823 = vst.msk [vmem:[%s6 + $0xa8] sm:$0xff] %vm6924, %v7749
  %7824 = vst.msk [vmem:[%s6 + $0xb0] sm:$0xff] %vm6924, %v7754
  %7825 = vst.msk [vmem:[%s6 + $0xb8] sm:$0xff] %vm6924, %v7759
  %7826 = vst.msk [vmem:[%s6 + $0xc0] sm:$0xff] %vm6924, %v7764
  %7827 = vst.msk [vmem:[%s6 + $0xc8] sm:$0xff] %vm6924, %v7769
  %7828 = vst.msk [vmem:[%s6 + $0xd0] sm:$0xff] %vm6924, %v7774
  %7829 = vst.msk [vmem:[%s6 + $0xd8] sm:$0xff] %vm6924, %v7779
  %7830 = vst.msk [vmem:[%s6 + $0xe0] sm:$0xff] %vm6924, %v7784
  %7831 = vst.msk [vmem:[%s6 + $0xe8] sm:$0xff] %vm6924, %v7789
  %7832 = vst.msk [vmem:[%s6 + $0xf0] sm:$0xff] %vm6924, %v7794
  %7833 = vst.msk [vmem:[%s6 + $0xf8] sm:$0xff] %vm6924, %v7799
  // Predicated region
  $region26: #{tpu_custom_call.1} parent=0 // pred_check
    _
  $region27: #{tpu_custom_call.1} parent=0 // pred_check_branch
    %7835 = sbr.rel (0) target = $region29
  $region28: #{tpu_custom_call.1} parent=0 // pred_region
    _
  $region29: #{tpu_custom_call.1} parent=0 // pred_fallthru
    _
  // Predicated region
  $region30: #{tpu_custom_call.1} parent=0 // pred_check
    _
  $region31: #{tpu_custom_call.1} parent=0 // pred_check_branch
    %7837 = sbr.rel (0) target = $region33
  $region32: #{tpu_custom_call.1} parent=0 // pred_region
    _
  $region33: #{tpu_custom_call.1} parent=0 // pred_fallthru
    _

</llo_original>
